<compile_context>
chip_gen: v7x
topology: tpu7x:2x2x1
jax: 0.10.0
libtpu: 0.0.40
codegen_flags: <defaults>
</compile_context>

<pallas_src>
import functools

import jax
import jax.numpy as jnp
from jax.experimental import pallas as pl
from jax.experimental.pallas import tpu as pltpu

LANE = 128
EPS = 1e-5
ACT_DTYPE = jnp.bfloat16   # inter-stage activations (HBM-bound passes)
MXU_DTYPE = jnp.bfloat16   # MXU operand dtype (accumulation stays f32)


def _round_up(x, m):
    return (x + m - 1) // m * m


def _vmem_limit_bytes():
    """~3/4 of this chip's VMEM, capped at 100 MiB (v5e/v6e ~96 MiB, v7x ~48 MiB)."""
    try:
        cap = pltpu.get_tpu_info().vmem_capacity_bytes
    except Exception:
        cap = 64 * 1024 * 1024                 # conservative (v7x-sized) fallback
    return int(min(100 * 1024 * 1024, cap * 3 // 4))


# --------------- fused (BN+ReLU prologue) -> conv3x3 -> stats ----------------
def fused_conv3x3_kernel(scale_ref, shift_ref, x_ref, w_ref,
                         y_ref, stats_ref, xpad_ref,
                         *, apply_bn_relu_prologue: bool):
    """One batch element: (optional BN+ReLU) -> zero-pad -> 3x3 conv -> stats.

    scale_ref/shift_ref: (1, Cin)          folded BN scale/shift for the input
    x_ref              : (1, H, W, Cin)    un-padded NHWC tile (f32 or bf16)
    w_ref              : (9, Cin, Cout)    per-tap weights, bf16
    y_ref              : (1, H, W, Cout)   pre-BN conv output (bf16)
    stats_ref          : (1, 2, Cout)      [sum, sum of squares] over H*W (f32)
    xpad_ref           : VMEM scratch (H+2, W+2, Cin), bf16, in-kernel zero pad
    """
    H, W = y_ref.shape[1], y_ref.shape[2]
    cin = x_ref.shape[3]
    cout = y_ref.shape[3]

    x = x_ref[0].astype(jnp.float32)                         # (H, W, Cin)
    if apply_bn_relu_prologue:
        sc = scale_ref[...].reshape(1, 1, cin)
        sh = shift_ref[...].reshape(1, 1, cin)
        x = jnp.maximum(x * sc + sh, 0.0)
    x = x.astype(xpad_ref.dtype)                             # bf16 MXU operand

    # "Same" padding: zero ONLY the 1-element halo border each grid step
    # (the interior is fully overwritten below; zero-once would be unsafe
    # under megacore "parallel" sharding since each core owns its scratch).
    zrow = jnp.zeros((1, W + 2, cin), xpad_ref.dtype)
    zcol = jnp.zeros((H, 1, cin), xpad_ref.dtype)
    xpad_ref[0:1, :, :] = zrow
    xpad_ref[H + 1:H + 2, :, :] = zrow
    xpad_ref[1:H + 1, 0:1, :] = zcol
    xpad_ref[1:H + 1, W + 1:W + 2, :] = zcol
    xpad_ref[1:H + 1, 1:W + 1, :] = x

    # 3x3 conv as 9 accumulating MXU matmuls (no 9x im2col slab), f32 acc.
    acc = jnp.zeros((H * W, cout), jnp.float32)
    for dy in range(3):
        for dx in range(3):
            tap = xpad_ref[dy:dy + H, dx:dx + W, :].reshape(H * W, cin)
            acc = acc + jnp.dot(tap, w_ref[3 * dy + dx],
                                preferred_element_type=jnp.float32)

    y_ref[0] = acc.reshape(H, W, cout).astype(y_ref.dtype)

    # Per-channel partial BN statistics of the (f32) pre-BN conv output.
    stats_ref[0, 0:1, :] = jnp.sum(acc, axis=0, keepdims=True)
    stats_ref[0, 1:2, :] = jnp.sum(acc * acc, axis=0, keepdims=True)


def _fused_conv(x, w_taps, scale, shift, *, apply_prologue, vmem_limit):
    N, H, W, cin = x.shape
    cout_p = w_taps.shape[2]
    kernel = functools.partial(fused_conv3x3_kernel,
                               apply_bn_relu_prologue=apply_prologue)
    return pl.pallas_call(
        kernel,
        out_shape=(
            jax.ShapeDtypeStruct((N, H, W, cout_p), ACT_DTYPE),
            jax.ShapeDtypeStruct((N, 2, cout_p), jnp.float32),
        ),
        grid=(N,),
        in_specs=[
            pl.BlockSpec((1, cin), lambda n: (0, 0)),                 # scale
            pl.BlockSpec((1, cin), lambda n: (0, 0)),                 # shift
            pl.BlockSpec((1, H, W, cin), lambda n: (n, 0, 0, 0)),     # x
            pl.BlockSpec((9, cin, cout_p), lambda n: (0, 0, 0)),      # weights
        ],
        out_specs=(
            pl.BlockSpec((1, H, W, cout_p), lambda n: (n, 0, 0, 0)),
            pl.BlockSpec((1, 2, cout_p), lambda n: (n, 0, 0)),
        ),
        scratch_shapes=[pltpu.VMEM((H + 2, W + 2, cin), MXU_DTYPE)],
        compiler_params=pltpu.CompilerParams(
            dimension_semantics=("parallel",),
            vmem_limit_bytes=vmem_limit),
    )(scale, shift, x, w_taps)


# ------------------------- BN-apply + ReLU epilogue ---------------------------
def bn_relu_apply_kernel(scale_ref, shift_ref, x_ref, o_ref):
    cout = o_ref.shape[3]
    x = x_ref[0, :, :, :cout].astype(jnp.float32)            # (H, W, Cout)
    sc = scale_ref[...].reshape(1, 1, cout)
    sh = shift_ref[...].reshape(1, 1, cout)
    o_ref[0] = jnp.maximum(x * sc + sh, 0.0).astype(o_ref.dtype)


def _bn_relu_apply(x, scale, shift, cout, vmem_limit):
    N, H, W, C = x.shape
    return pl.pallas_call(
        bn_relu_apply_kernel,
        out_shape=jax.ShapeDtypeStruct((N, H, W, cout), jnp.float32),
        grid=(N,),
        in_specs=[
            pl.BlockSpec((1, cout), lambda n: (0, 0)),
            pl.BlockSpec((1, cout), lambda n: (0, 0)),
            pl.BlockSpec((1, H, W, C), lambda n: (n, 0, 0, 0)),
        ],
        out_specs=pl.BlockSpec((1, H, W, cout), lambda n: (n, 0, 0, 0)),
        compiler_params=pltpu.CompilerParams(
            dimension_semantics=("parallel",),
            vmem_limit_bytes=vmem_limit),
    )(scale, shift, x)


# ------------------------------- helpers --------------------------------------
def _prep_weight(w_hwio, cin_used, cout_p):
    """(3,3,Cin,Cout) HWIO -> (9, cin_used, cout_p) bf16; tap index = 3*dy+dx."""
    kh, kw, cin, cout = w_hwio.shape
    w = jnp.pad(w_hwio.astype(jnp.float32),
                ((0, 0), (0, 0), (0, cin_used - cin), (0, cout_p - cout)))
    return w.reshape(kh * kw, cin_used, cout_p).astype(MXU_DTYPE)


def _pad_vec(v, c_pad):
    v = v.astype(jnp.float32)
    return jnp.pad(v, (0, c_pad - v.shape[0]))


def _bn_scale_shift(stats, gamma_pad, beta_pad, count):
    # stats: (N, 2, C_pad) per-batch-element partial [sum, sumsq]; tiny host-side
    # reduction + fold of gamma/beta into a per-channel scale/shift row.
    tot = jnp.sum(stats, axis=0)                             # (2, C_pad)
    mean = tot[0] / count
    var = jnp.maximum(tot[1] / count - mean * mean, 0.0)     # biased variance
    inv = jax.lax.rsqrt(var + EPS)
    scale = gamma_pad * inv
    shift = beta_pad - mean * scale
    return scale.reshape(1, -1), shift.reshape(1, -1)


# ------------------------------ DoubleConv -------------------------------------
def init_double_conv_params(key, in_channels, out_channels):
    k1, k2 = jax.random.split(key)
    # Conv weights in HWIO layout (3, 3, Cin, Cout); no bias (matches module).
    w1 = jax.random.normal(k1, (3, 3, in_channels, out_channels),
                           dtype=jnp.float32) * 0.1
    w2 = jax.random.normal(k2, (3, 3, out_channels, out_channels),
                           dtype=jnp.float32) * 0.1
    # BatchNorm affine params at PyTorch init: gamma=1, beta=0.
    return dict(w1=w1, gamma1=jnp.ones((out_channels,), jnp.float32),
                beta1=jnp.zeros((out_channels,), jnp.float32),
                w2=w2, gamma2=jnp.ones((out_channels,), jnp.float32),
                beta2=jnp.zeros((out_channels,), jnp.float32))


def double_conv_nhwc(x_nhwc, params):
    """Core forward pass in NHWC (no layout transposes)."""
    N, H, W, Cin = x_nhwc.shape
    Cout = params["w1"].shape[3]
    cout_p = _round_up(Cout, LANE)
    vmem_limit = _vmem_limit_bytes()

    x = x_nhwc.astype(jnp.float32)

    # Weights: pass-1 keeps the true Cin on the contraction dim (no HBM/VMEM
    # channel inflation); pass-2 input is y1 which is stored with cout_p lanes.
    w1 = _prep_weight(params["w1"], Cin, cout_p)             # (9, Cin, cout_p)
    w2 = _prep_weight(params["w2"], cout_p, cout_p)          # (9, cout_p, cout_p)
    g1, b1 = _pad_vec(params["gamma1"], cout_p), _pad_vec(params["beta1"], cout_p)
    g2, b2 = _pad_vec(params["gamma2"], cout_p), _pad_vec(params["beta2"], cout_p)

    count = float(N * H * W)
    ones = jnp.ones((1, Cin), jnp.float32)
    zeros = jnp.zeros((1, Cin), jnp.float32)

    # pass 1: conv1 + stats1 (prologue disabled)
    y1, stats1 = _fused_conv(x, w1, ones, zeros,
                             apply_prologue=False, vmem_limit=vmem_limit)
    scale1, shift1 = _bn_scale_shift(stats1, g1, b1, count)

    # pass 2: BN1+ReLU fused as prologue of conv2, + stats2
    y2, stats2 = _fused_conv(y1, w2, scale1, shift1,
                             apply_prologue=True, vmem_limit=vmem_limit)
    scale2, shift2 = _bn_scale_shift(stats2, g2, b2, count)

    # pass 3: BN2 + ReLU epilogue, writing only the true Cout channels in f32.
    out = _bn_relu_apply(y2, scale2[:, :Cout], shift2[:, :Cout],
                         Cout, vmem_limit)
    return out                                               # (N, H, W, Cout)


def double_conv(x_nchw, params):
    """Forward pass of DoubleConv. Input/output: NCHW (PyTorch convention).

    Callers that can stay NHWC should use double_conv_nhwc directly and skip
    the two full-tensor transposes below.
    """
    x = jnp.transpose(x_nchw, (0, 2, 3, 1))                  # NCHW -> NHWC
    out = double_conv_nhwc(x, params)
    return jnp.transpose(out, (0, 3, 1, 2))                  # NHWC -> NCHW


# ------------------------------ reference --------------------------------------
def double_conv_ref(x, params):
    def conv(h, w):
        return jax.lax.conv_general_dilated(
            h, w, window_strides=(1, 1), padding=((1, 1), (1, 1)),
            dimension_numbers=("NCHW", "HWIO", "NCHW"))

    def bn_relu(y, gamma, beta):
        mean = jnp.mean(y, axis=(0, 2, 3), keepdims=True)
        var = jnp.var(y, axis=(0, 2, 3), keepdims=True)      # biased
        yhat = (y - mean) * jax.lax.rsqrt(var + EPS)
        out = yhat * gamma.reshape(1, -1, 1, 1) + beta.reshape(1, -1, 1, 1)
        return jnp.maximum(out, 0.0)

    h = bn_relu(conv(x, params["w1"]), params["gamma1"], params["beta1"])
    h = bn_relu(conv(h, params["w2"]), params["gamma2"], params["beta2"])
    return h


if __name__ == "__main__":
    key = jax.random.PRNGKey(0)
    kx, kp = jax.random.split(key)

    N, Cin, Cout, H, W = 2, 4, 8, 16, 16
    x = jax.random.normal(kx, (N, Cin, H, W), dtype=jnp.float32)
    params = init_double_conv_params(kp, Cin, Cout)

    out = jax.block_until_ready(jax.jit(double_conv)(x, params))
    assert out.shape == (N, Cout, H, W)

    ref = jax.block_until_ready(double_conv_ref(x, params))
    max_err = float(jnp.max(jnp.abs(out - ref)))
    # bf16 MXU operands + bf16 inter-stage activations => looser parity than
    # the exact-f32 reference path.
    assert max_err < 1e-1, f"max abs error vs reference: {max_err}"
    print("KERNEL_OK")
</pallas_src>

<mosaic_0001>
module attributes {stable_mosaic.version = 11 : i64} {
  func.func @fused_conv3x3_kernel(%arg0: i32, %arg1: memref<1x4xf32, #tpu.memory_space<vmem>>, %arg2: memref<1x4xf32, #tpu.memory_space<vmem>>, %arg3: memref<1x16x16x4xf32, #tpu.memory_space<vmem>>, %arg4: memref<9x4x128xbf16, #tpu.memory_space<vmem>>, %arg5: memref<1x16x16x128xbf16, #tpu.memory_space<vmem>>, %arg6: memref<1x2x128xf32, #tpu.memory_space<vmem>>, %arg7: memref<18x18x4xbf16, #tpu.memory_space<vmem>>) attributes {dimension_semantics = [#tpu.dimension_semantics<parallel>], iteration_bounds = array<i64: 2>, scalar_prefetch = 0 : i64, scratch_operands = 1 : i64, tpu.core_type = #tpu.core_type<tc>, window_params = [{pipeline_mode = #tpu.pipeline_mode<synchronous>, transform_indices = @transform_0, window_bounds = array<i64: 1, 4>}, {pipeline_mode = #tpu.pipeline_mode<synchronous>, transform_indices = @transform_1, window_bounds = array<i64: 1, 4>}, {transform_indices = @transform_2, window_bounds = array<i64: 1, 16, 16, 4>}, {pipeline_mode = #tpu.pipeline_mode<synchronous>, transform_indices = @transform_3, window_bounds = array<i64: 9, 4, 128>}, {transform_indices = @transform_4, window_bounds = array<i64: 1, 16, 16, 128>}, {transform_indices = @transform_5, window_bounds = array<i64: 1, 2, 128>}]} {
    %c0 = arith.constant 0 : index
    %c0_0 = arith.constant 0 : index
    %c0_1 = arith.constant 0 : index
    %c0_2 = arith.constant 0 : index
    %0 = vector.load %arg3[%c0, %c0_0, %c0_1, %c0_2] : memref<1x16x16x4xf32, #tpu.memory_space<vmem>>, vector<1x16x16x4xf32>
    %1 = vector.shape_cast %0 : vector<1x16x16x4xf32> to vector<16x16x4xf32>
    %2 = arith.truncf %1 : vector<16x16x4xf32> to vector<16x16x4xbf16>
    %cst = arith.constant 0.000000e+00 : bf16
    %3 = vector.broadcast %cst : bf16 to vector<1x18x4xbf16>
    %cst_3 = arith.constant 0.000000e+00 : bf16
    %4 = vector.broadcast %cst_3 : bf16 to vector<16x1x4xbf16>
    %c0_4 = arith.constant 0 : index
    %c0_5 = arith.constant 0 : index
    %c0_6 = arith.constant 0 : index
    %5 = vector.load %arg7[%c0_4, %c0_5, %c0_6] : memref<18x18x4xbf16, #tpu.memory_space<vmem>>, vector<1x18x4xbf16>
    tpu.vector_store %arg7[%c0_4, %c0_5, %c0_6], %3 {strides = array<i32>} : memref<18x18x4xbf16, #tpu.memory_space<vmem>>, vector<1x18x4xbf16>,
    %c17 = arith.constant 17 : index
    %c0_7 = arith.constant 0 : index
    %c0_8 = arith.constant 0 : index
    %6 = vector.load %arg7[%c17, %c0_7, %c0_8] : memref<18x18x4xbf16, #tpu.memory_space<vmem>>, vector<1x18x4xbf16>
    tpu.vector_store %arg7[%c17, %c0_7, %c0_8], %3 {strides = array<i32>} : memref<18x18x4xbf16, #tpu.memory_space<vmem>>, vector<1x18x4xbf16>,
    %c1 = arith.constant 1 : index
    %c0_9 = arith.constant 0 : index
    %c0_10 = arith.constant 0 : index
    %7 = vector.load %arg7[%c1, %c0_9, %c0_10] : memref<18x18x4xbf16, #tpu.memory_space<vmem>>, vector<16x1x4xbf16>
    tpu.vector_store %arg7[%c1, %c0_9, %c0_10], %4 {strides = array<i32>} : memref<18x18x4xbf16, #tpu.memory_space<vmem>>, vector<16x1x4xbf16>,
    %c1_11 = arith.constant 1 : index
    %c17_12 = arith.constant 17 : index
    %c0_13 = arith.constant 0 : index
    %8 = vector.load %arg7[%c1_11, %c17_12, %c0_13] : memref<18x18x4xbf16, #tpu.memory_space<vmem>>, vector<16x1x4xbf16>
    tpu.vector_store %arg7[%c1_11, %c17_12, %c0_13], %4 {strides = array<i32>} : memref<18x18x4xbf16, #tpu.memory_space<vmem>>, vector<16x1x4xbf16>,
    %c1_14 = arith.constant 1 : index
    %c1_15 = arith.constant 1 : index
    %c0_16 = arith.constant 0 : index
    %9 = vector.load %arg7[%c1_14, %c1_15, %c0_16] : memref<18x18x4xbf16, #tpu.memory_space<vmem>>, vector<16x16x4xbf16>
    tpu.vector_store %arg7[%c1_14, %c1_15, %c0_16], %2 {strides = array<i32>} : memref<18x18x4xbf16, #tpu.memory_space<vmem>>, vector<16x16x4xbf16>,
    %cst_17 = arith.constant 0.000000e+00 : f32
    %10 = vector.broadcast %cst_17 : f32 to vector<256x128xf32>
    %c0_18 = arith.constant 0 : index
    %c0_19 = arith.constant 0 : index
    %c0_20 = arith.constant 0 : index
    %11 = vector.load %arg7[%c0_18, %c0_19, %c0_20] : memref<18x18x4xbf16, #tpu.memory_space<vmem>>, vector<16x16x4xbf16>
    %12 = vector.shape_cast %11 : vector<16x16x4xbf16> to vector<256x4xbf16>
    %c0_21 = arith.constant 0 : index
    %c0_22 = arith.constant 0 : index
    %c0_23 = arith.constant 0 : index
    %13 = vector.load %arg4[%c0_21, %c0_22, %c0_23] : memref<9x4x128xbf16, #tpu.memory_space<vmem>>, vector<1x4x128xbf16>
    %14 = vector.shape_cast %13 : vector<1x4x128xbf16> to vector<4x128xbf16>
    %cst_24 = arith.constant dense<0.000000e+00> : vector<256x128xf32>
    %15 = tpu.matmul %12, %14, %cst_24 {dimension_numbers = #tpu.dot_dimension_numbers<[1], [0], [0], [1], [0, 0, 1, 1], [], []>} : vector<256x4xbf16>, vector<4x128xbf16>, vector<256x128xf32> -> vector<256x128xf32>
    %16 = arith.addf %10, %15 : vector<256x128xf32>
    %c0_25 = arith.constant 0 : index
    %c1_26 = arith.constant 1 : index
    %c0_27 = arith.constant 0 : index
    %17 = vector.load %arg7[%c0_25, %c1_26, %c0_27] : memref<18x18x4xbf16, #tpu.memory_space<vmem>>, vector<16x16x4xbf16>
    %18 = vector.shape_cast %17 : vector<16x16x4xbf16> to vector<256x4xbf16>
    %c1_28 = arith.constant 1 : index
    %c0_29 = arith.constant 0 : index
    %c0_30 = arith.constant 0 : index
    %19 = vector.load %arg4[%c1_28, %c0_29, %c0_30] : memref<9x4x128xbf16, #tpu.memory_space<vmem>>, vector<1x4x128xbf16>
    %20 = vector.shape_cast %19 : vector<1x4x128xbf16> to vector<4x128xbf16>
    %cst_31 = arith.constant dense<0.000000e+00> : vector<256x128xf32>
    %21 = tpu.matmul %18, %20, %cst_31 {dimension_numbers = #tpu.dot_dimension_numbers<[1], [0], [0], [1], [0, 0, 1, 1], [], []>} : vector<256x4xbf16>, vector<4x128xbf16>, vector<256x128xf32> -> vector<256x128xf32>
    %22 = arith.addf %16, %21 : vector<256x128xf32>
    %c0_32 = arith.constant 0 : index
    %c2 = arith.constant 2 : index
    %c0_33 = arith.constant 0 : index
    %23 = vector.load %arg7[%c0_32, %c2, %c0_33] : memref<18x18x4xbf16, #tpu.memory_space<vmem>>, vector<16x16x4xbf16>
    %24 = vector.shape_cast %23 : vector<16x16x4xbf16> to vector<256x4xbf16>
    %c2_34 = arith.constant 2 : index
    %c0_35 = arith.constant 0 : index
    %c0_36 = arith.constant 0 : index
    %25 = vector.load %arg4[%c2_34, %c0_35, %c0_36] : memref<9x4x128xbf16, #tpu.memory_space<vmem>>, vector<1x4x128xbf16>
    %26 = vector.shape_cast %25 : vector<1x4x128xbf16> to vector<4x128xbf16>
    %cst_37 = arith.constant dense<0.000000e+00> : vector<256x128xf32>
    %27 = tpu.matmul %24, %26, %cst_37 {dimension_numbers = #tpu.dot_dimension_numbers<[1], [0], [0], [1], [0, 0, 1, 1], [], []>} : vector<256x4xbf16>, vector<4x128xbf16>, vector<256x128xf32> -> vector<256x128xf32>
    %28 = arith.addf %22, %27 : vector<256x128xf32>
    %c1_38 = arith.constant 1 : index
    %c0_39 = arith.constant 0 : index
    %c0_40 = arith.constant 0 : index
    %29 = vector.load %arg7[%c1_38, %c0_39, %c0_40] : memref<18x18x4xbf16, #tpu.memory_space<vmem>>, vector<16x16x4xbf16>
    %30 = vector.shape_cast %29 : vector<16x16x4xbf16> to vector<256x4xbf16>
    %c3 = arith.constant 3 : index
    %c0_41 = arith.constant 0 : index
    %c0_42 = arith.constant 0 : index
    %31 = vector.load %arg4[%c3, %c0_41, %c0_42] : memref<9x4x128xbf16, #tpu.memory_space<vmem>>, vector<1x4x128xbf16>
    %32 = vector.shape_cast %31 : vector<1x4x128xbf16> to vector<4x128xbf16>
    %cst_43 = arith.constant dense<0.000000e+00> : vector<256x128xf32>
    %33 = tpu.matmul %30, %32, %cst_43 {dimension_numbers = #tpu.dot_dimension_numbers<[1], [0], [0], [1], [0, 0, 1, 1], [], []>} : vector<256x4xbf16>, vector<4x128xbf16>, vector<256x128xf32> -> vector<256x128xf32>
    %34 = arith.addf %28, %33 : vector<256x128xf32>
    %c1_44 = arith.constant 1 : index
    %c1_45 = arith.constant 1 : index
    %c0_46 = arith.constant 0 : index
    %35 = vector.load %arg7[%c1_44, %c1_45, %c0_46] : memref<18x18x4xbf16, #tpu.memory_space<vmem>>, vector<16x16x4xbf16>
    %36 = vector.shape_cast %35 : vector<16x16x4xbf16> to vector<256x4xbf16>
    %c4 = arith.constant 4 : index
    %c0_47 = arith.constant 0 : index
    %c0_48 = arith.constant 0 : index
    %37 = vector.load %arg4[%c4, %c0_47, %c0_48] : memref<9x4x128xbf16, #tpu.memory_space<vmem>>, vector<1x4x128xbf16>
    %38 = vector.shape_cast %37 : vector<1x4x128xbf16> to vector<4x128xbf16>
    %cst_49 = arith.constant dense<0.000000e+00> : vector<256x128xf32>
    %39 = tpu.matmul %36, %38, %cst_49 {dimension_numbers = #tpu.dot_dimension_numbers<[1], [0], [0], [1], [0, 0, 1, 1], [], []>} : vector<256x4xbf16>, vector<4x128xbf16>, vector<256x128xf32> -> vector<256x128xf32>
    %40 = arith.addf %34, %39 : vector<256x128xf32>
    %c1_50 = arith.constant 1 : index
    %c2_51 = arith.constant 2 : index
    %c0_52 = arith.constant 0 : index
    %41 = vector.load %arg7[%c1_50, %c2_51, %c0_52] : memref<18x18x4xbf16, #tpu.memory_space<vmem>>, vector<16x16x4xbf16>
    %42 = vector.shape_cast %41 : vector<16x16x4xbf16> to vector<256x4xbf16>
    %c5 = arith.constant 5 : index
    %c0_53 = arith.constant 0 : index
    %c0_54 = arith.constant 0 : index
    %43 = vector.load %arg4[%c5, %c0_53, %c0_54] : memref<9x4x128xbf16, #tpu.memory_space<vmem>>, vector<1x4x128xbf16>
    %44 = vector.shape_cast %43 : vector<1x4x128xbf16> to vector<4x128xbf16>
    %cst_55 = arith.constant dense<0.000000e+00> : vector<256x128xf32>
    %45 = tpu.matmul %42, %44, %cst_55 {dimension_numbers = #tpu.dot_dimension_numbers<[1], [0], [0], [1], [0, 0, 1, 1], [], []>} : vector<256x4xbf16>, vector<4x128xbf16>, vector<256x128xf32> -> vector<256x128xf32>
    %46 = arith.addf %40, %45 : vector<256x128xf32>
    %c2_56 = arith.constant 2 : index
    %c0_57 = arith.constant 0 : index
    %c0_58 = arith.constant 0 : index
    %47 = vector.load %arg7[%c2_56, %c0_57, %c0_58] : memref<18x18x4xbf16, #tpu.memory_space<vmem>>, vector<16x16x4xbf16>
    %48 = vector.shape_cast %47 : vector<16x16x4xbf16> to vector<256x4xbf16>
    %c6 = arith.constant 6 : index
    %c0_59 = arith.constant 0 : index
    %c0_60 = arith.constant 0 : index
    %49 = vector.load %arg4[%c6, %c0_59, %c0_60] : memref<9x4x128xbf16, #tpu.memory_space<vmem>>, vector<1x4x128xbf16>
    %50 = vector.shape_cast %49 : vector<1x4x128xbf16> to vector<4x128xbf16>
    %cst_61 = arith.constant dense<0.000000e+00> : vector<256x128xf32>
    %51 = tpu.matmul %48, %50, %cst_61 {dimension_numbers = #tpu.dot_dimension_numbers<[1], [0], [0], [1], [0, 0, 1, 1], [], []>} : vector<256x4xbf16>, vector<4x128xbf16>, vector<256x128xf32> -> vector<256x128xf32>
    %52 = arith.addf %46, %51 : vector<256x128xf32>
    %c2_62 = arith.constant 2 : index
    %c1_63 = arith.constant 1 : index
    %c0_64 = arith.constant 0 : index
    %53 = vector.load %arg7[%c2_62, %c1_63, %c0_64] : memref<18x18x4xbf16, #tpu.memory_space<vmem>>, vector<16x16x4xbf16>
    %54 = vector.shape_cast %53 : vector<16x16x4xbf16> to vector<256x4xbf16>
    %c7 = arith.constant 7 : index
    %c0_65 = arith.constant 0 : index
    %c0_66 = arith.constant 0 : index
    %55 = vector.load %arg4[%c7, %c0_65, %c0_66] : memref<9x4x128xbf16, #tpu.memory_space<vmem>>, vector<1x4x128xbf16>
    %56 = vector.shape_cast %55 : vector<1x4x128xbf16> to vector<4x128xbf16>
    %cst_67 = arith.constant dense<0.000000e+00> : vector<256x128xf32>
    %57 = tpu.matmul %54, %56, %cst_67 {dimension_numbers = #tpu.dot_dimension_numbers<[1], [0], [0], [1], [0, 0, 1, 1], [], []>} : vector<256x4xbf16>, vector<4x128xbf16>, vector<256x128xf32> -> vector<256x128xf32>
    %58 = arith.addf %52, %57 : vector<256x128xf32>
    %c2_68 = arith.constant 2 : index
    %c2_69 = arith.constant 2 : index
    %c0_70 = arith.constant 0 : index
    %59 = vector.load %arg7[%c2_68, %c2_69, %c0_70] : memref<18x18x4xbf16, #tpu.memory_space<vmem>>, vector<16x16x4xbf16>
    %60 = vector.shape_cast %59 : vector<16x16x4xbf16> to vector<256x4xbf16>
    %c8 = arith.constant 8 : index
    %c0_71 = arith.constant 0 : index
    %c0_72 = arith.constant 0 : index
    %61 = vector.load %arg4[%c8, %c0_71, %c0_72] : memref<9x4x128xbf16, #tpu.memory_space<vmem>>, vector<1x4x128xbf16>
    %62 = vector.shape_cast %61 : vector<1x4x128xbf16> to vector<4x128xbf16>
    %cst_73 = arith.constant dense<0.000000e+00> : vector<256x128xf32>
    %63 = tpu.matmul %60, %62, %cst_73 {dimension_numbers = #tpu.dot_dimension_numbers<[1], [0], [0], [1], [0, 0, 1, 1], [], []>} : vector<256x4xbf16>, vector<4x128xbf16>, vector<256x128xf32> -> vector<256x128xf32>
    %64 = arith.addf %58, %63 : vector<256x128xf32>
    %65 = vector.shape_cast %64 : vector<256x128xf32> to vector<16x16x128xf32>
    %66 = arith.truncf %65 : vector<16x16x128xf32> to vector<16x16x128xbf16>
    %c0_74 = arith.constant 0 : index
    %c0_75 = arith.constant 0 : index
    %c0_76 = arith.constant 0 : index
    %c0_77 = arith.constant 0 : index
    %67 = vector.load %arg5[%c0_74, %c0_75, %c0_76, %c0_77] : memref<1x16x16x128xbf16, #tpu.memory_space<vmem>>, vector<1x16x16x128xbf16>
    %68 = vector.shape_cast %67 : vector<1x16x16x128xbf16> to vector<16x16x128xbf16>
    %69 = vector.shape_cast %66 : vector<16x16x128xbf16> to vector<1x16x16x128xbf16>
    tpu.vector_store %arg5[%c0_74, %c0_75, %c0_76, %c0_77], %69 {strides = array<i32>} : memref<1x16x16x128xbf16, #tpu.memory_space<vmem>>, vector<1x16x16x128xbf16>,
    %cst_78 = arith.constant dense<0.000000e+00> : vector<128xf32>
    %70 = vector.multi_reduction <add>, %64, %cst_78 [0] : vector<256x128xf32> to vector<128xf32>
    %71 = vector.shape_cast %70 : vector<128xf32> to vector<1x128xf32>
    %c0_79 = arith.constant 0 : index
    %c0_80 = arith.constant 0 : index
    %c0_81 = arith.constant 0 : index
    %72 = vector.load %arg6[%c0_79, %c0_80, %c0_81] : memref<1x2x128xf32, #tpu.memory_space<vmem>>, vector<1x1x128xf32>
    %73 = vector.shape_cast %72 : vector<1x1x128xf32> to vector<1x128xf32>
    %74 = vector.shape_cast %71 : vector<1x128xf32> to vector<1x1x128xf32>
    tpu.vector_store %arg6[%c0_79, %c0_80, %c0_81], %74 {strides = array<i32>} : memref<1x2x128xf32, #tpu.memory_space<vmem>>, vector<1x1x128xf32>,
    %75 = arith.mulf %64, %64 : vector<256x128xf32>
    %cst_82 = arith.constant dense<0.000000e+00> : vector<128xf32>
    %76 = vector.multi_reduction <add>, %75, %cst_82 [0] : vector<256x128xf32> to vector<128xf32>
    %77 = vector.shape_cast %76 : vector<128xf32> to vector<1x128xf32>
    %c0_83 = arith.constant 0 : index
    %c1_84 = arith.constant 1 : index
    %c0_85 = arith.constant 0 : index
    %78 = vector.load %arg6[%c0_83, %c1_84, %c0_85] : memref<1x2x128xf32, #tpu.memory_space<vmem>>, vector<1x1x128xf32>
    %79 = vector.shape_cast %78 : vector<1x1x128xf32> to vector<1x128xf32>
    %80 = vector.shape_cast %77 : vector<1x128xf32> to vector<1x1x128xf32>
    tpu.vector_store %arg6[%c0_83, %c1_84, %c0_85], %80 {strides = array<i32>} : memref<1x2x128xf32, #tpu.memory_space<vmem>>, vector<1x1x128xf32>,
    return
  }
  func.func @transform_0(%arg0: i32) -> (i32, i32) {
    %c0_i32 = arith.constant 0 : i32
    %c0_i32_0 = arith.constant 0 : i32
    %c0_i32_1 = arith.constant 0 : i32
    return %c0_i32, %c0_i32_0 : i32, i32
  }
  func.func @transform_1(%arg0: i32) -> (i32, i32) {
    %c0_i32 = arith.constant 0 : i32
    %c0_i32_0 = arith.constant 0 : i32
    %c0_i32_1 = arith.constant 0 : i32
    return %c0_i32, %c0_i32_0 : i32, i32
  }
  func.func @transform_2(%arg0: i32) -> (i32, i32, i32, i32) {
    %c0_i32 = arith.constant 0 : i32
    %c0_i32_0 = arith.constant 0 : i32
    %c0_i32_1 = arith.constant 0 : i32
    %c0_i32_2 = arith.constant 0 : i32
    return %arg0, %c0_i32, %c0_i32_0, %c0_i32_1 : i32, i32, i32, i32
  }
  func.func @transform_3(%arg0: i32) -> (i32, i32, i32) {
    %c0_i32 = arith.constant 0 : i32
    %c0_i32_0 = arith.constant 0 : i32
    %c0_i32_1 = arith.constant 0 : i32
    %c0_i32_2 = arith.constant 0 : i32
    return %c0_i32, %c0_i32_0, %c0_i32_1 : i32, i32, i32
  }
  func.func @transform_4(%arg0: i32) -> (i32, i32, i32, i32) {
    %c0_i32 = arith.constant 0 : i32
    %c0_i32_0 = arith.constant 0 : i32
    %c0_i32_1 = arith.constant 0 : i32
    %c0_i32_2 = arith.constant 0 : i32
    return %arg0, %c0_i32, %c0_i32_0, %c0_i32_1 : i32, i32, i32, i32
  }
  func.func @transform_5(%arg0: i32) -> (i32, i32, i32) {
    %c0_i32 = arith.constant 0 : i32
    %c0_i32_0 = arith.constant 0 : i32
    %c0_i32_1 = arith.constant 0 : i32
    return %arg0, %c0_i32, %c0_i32_0 : i32, i32, i32
  }
}

module attributes {stable_mosaic.version = 11 : i64} {
  func.func @fused_conv3x3_kernel(%arg0: i32, %arg1: memref<1x128xf32, #tpu.memory_space<vmem>>, %arg2: memref<1x128xf32, #tpu.memory_space<vmem>>, %arg3: memref<1x16x16x128xbf16, #tpu.memory_space<vmem>>, %arg4: memref<9x128x128xbf16, #tpu.memory_space<vmem>>, %arg5: memref<1x16x16x128xbf16, #tpu.memory_space<vmem>>, %arg6: memref<1x2x128xf32, #tpu.memory_space<vmem>>, %arg7: memref<18x18x128xbf16, #tpu.memory_space<vmem>>) attributes {dimension_semantics = [#tpu.dimension_semantics<parallel>], iteration_bounds = array<i64: 2>, scalar_prefetch = 0 : i64, scratch_operands = 1 : i64, tpu.core_type = #tpu.core_type<tc>, window_params = [{pipeline_mode = #tpu.pipeline_mode<synchronous>, transform_indices = @transform_0, window_bounds = array<i64: 1, 128>}, {pipeline_mode = #tpu.pipeline_mode<synchronous>, transform_indices = @transform_1, window_bounds = array<i64: 1, 128>}, {transform_indices = @transform_2, window_bounds = array<i64: 1, 16, 16, 128>}, {pipeline_mode = #tpu.pipeline_mode<synchronous>, transform_indices = @transform_3, window_bounds = array<i64: 9, 128, 128>}, {transform_indices = @transform_4, window_bounds = array<i64: 1, 16, 16, 128>}, {transform_indices = @transform_5, window_bounds = array<i64: 1, 2, 128>}]} {
    %c0 = arith.constant 0 : index
    %c0_0 = arith.constant 0 : index
    %c0_1 = arith.constant 0 : index
    %c0_2 = arith.constant 0 : index
    %0 = vector.load %arg3[%c0, %c0_0, %c0_1, %c0_2] : memref<1x16x16x128xbf16, #tpu.memory_space<vmem>>, vector<1x16x16x128xbf16>
    %1 = vector.shape_cast %0 : vector<1x16x16x128xbf16> to vector<16x16x128xbf16>
    %2 = arith.extf %1 : vector<16x16x128xbf16> to vector<16x16x128xf32>
    %c0_3 = arith.constant 0 : index
    %c0_4 = arith.constant 0 : index
    %3 = vector.load %arg1[%c0_3, %c0_4] : memref<1x128xf32, #tpu.memory_space<vmem>>, vector<1x128xf32>
    %4 = vector.shape_cast %3 : vector<1x128xf32> to vector<1x1x128xf32>
    %c0_5 = arith.constant 0 : index
    %c0_6 = arith.constant 0 : index
    %5 = vector.load %arg2[%c0_5, %c0_6] : memref<1x128xf32, #tpu.memory_space<vmem>>, vector<1x128xf32>
    %6 = vector.shape_cast %5 : vector<1x128xf32> to vector<1x1x128xf32>
    %7 = vector.broadcast %4 : vector<1x1x128xf32> to vector<16x16x128xf32>
    %8 = arith.mulf %2, %7 : vector<16x16x128xf32>
    %9 = vector.broadcast %6 : vector<1x1x128xf32> to vector<16x16x128xf32>
    %10 = arith.addf %8, %9 : vector<16x16x128xf32>
    %cst = arith.constant 0.000000e+00 : f32
    %11 = vector.broadcast %cst : f32 to vector<16x16x128xf32>
    %12 = arith.maximumf %10, %11 : vector<16x16x128xf32>
    %13 = arith.truncf %12 : vector<16x16x128xf32> to vector<16x16x128xbf16>
    %cst_7 = arith.constant 0.000000e+00 : bf16
    %14 = vector.broadcast %cst_7 : bf16 to vector<1x18x128xbf16>
    %cst_8 = arith.constant 0.000000e+00 : bf16
    %15 = vector.broadcast %cst_8 : bf16 to vector<16x1x128xbf16>
    %c0_9 = arith.constant 0 : index
    %c0_10 = arith.constant 0 : index
    %c0_11 = arith.constant 0 : index
    %16 = vector.load %arg7[%c0_9, %c0_10, %c0_11] : memref<18x18x128xbf16, #tpu.memory_space<vmem>>, vector<1x18x128xbf16>
    tpu.vector_store %arg7[%c0_9, %c0_10, %c0_11], %14 {strides = array<i32>} : memref<18x18x128xbf16, #tpu.memory_space<vmem>>, vector<1x18x128xbf16>,
    %c17 = arith.constant 17 : index
    %c0_12 = arith.constant 0 : index
    %c0_13 = arith.constant 0 : index
    %17 = vector.load %arg7[%c17, %c0_12, %c0_13] : memref<18x18x128xbf16, #tpu.memory_space<vmem>>, vector<1x18x128xbf16>
    tpu.vector_store %arg7[%c17, %c0_12, %c0_13], %14 {strides = array<i32>} : memref<18x18x128xbf16, #tpu.memory_space<vmem>>, vector<1x18x128xbf16>,
    %c1 = arith.constant 1 : index
    %c0_14 = arith.constant 0 : index
    %c0_15 = arith.constant 0 : index
    %18 = vector.load %arg7[%c1, %c0_14, %c0_15] : memref<18x18x128xbf16, #tpu.memory_space<vmem>>, vector<16x1x128xbf16>
    tpu.vector_store %arg7[%c1, %c0_14, %c0_15], %15 {strides = array<i32>} : memref<18x18x128xbf16, #tpu.memory_space<vmem>>, vector<16x1x128xbf16>,
    %c1_16 = arith.constant 1 : index
    %c17_17 = arith.constant 17 : index
    %c0_18 = arith.constant 0 : index
    %19 = vector.load %arg7[%c1_16, %c17_17, %c0_18] : memref<18x18x128xbf16, #tpu.memory_space<vmem>>, vector<16x1x128xbf16>
    tpu.vector_store %arg7[%c1_16, %c17_17, %c0_18], %15 {strides = array<i32>} : memref<18x18x128xbf16, #tpu.memory_space<vmem>>, vector<16x1x128xbf16>,
    %c1_19 = arith.constant 1 : index
    %c1_20 = arith.constant 1 : index
    %c0_21 = arith.constant 0 : index
    %20 = vector.load %arg7[%c1_19, %c1_20, %c0_21] : memref<18x18x128xbf16, #tpu.memory_space<vmem>>, vector<16x16x128xbf16>
    tpu.vector_store %arg7[%c1_19, %c1_20, %c0_21], %13 {strides = array<i32>} : memref<18x18x128xbf16, #tpu.memory_space<vmem>>, vector<16x16x128xbf16>,
    %cst_22 = arith.constant 0.000000e+00 : f32
    %21 = vector.broadcast %cst_22 : f32 to vector<256x128xf32>
    %c0_23 = arith.constant 0 : index
    %c0_24 = arith.constant 0 : index
    %c0_25 = arith.constant 0 : index
    %22 = vector.load %arg7[%c0_23, %c0_24, %c0_25] : memref<18x18x128xbf16, #tpu.memory_space<vmem>>, vector<16x16x128xbf16>
    %23 = vector.shape_cast %22 : vector<16x16x128xbf16> to vector<256x128xbf16>
    %c0_26 = arith.constant 0 : index
    %c0_27 = arith.constant 0 : index
    %c0_28 = arith.constant 0 : index
    %24 = vector.load %arg4[%c0_26, %c0_27, %c0_28] : memref<9x128x128xbf16, #tpu.memory_space<vmem>>, vector<1x128x128xbf16>
    %25 = vector.shape_cast %24 : vector<1x128x128xbf16> to vector<128x128xbf16>
    %cst_29 = arith.constant dense<0.000000e+00> : vector<256x128xf32>
    %26 = tpu.matmul %23, %25, %cst_29 {dimension_numbers = #tpu.dot_dimension_numbers<[1], [0], [0], [1], [0, 0, 1, 1], [], []>} : vector<256x128xbf16>, vector<128x128xbf16>, vector<256x128xf32> -> vector<256x128xf32>
    %27 = arith.addf %21, %26 : vector<256x128xf32>
    %c0_30 = arith.constant 0 : index
    %c1_31 = arith.constant 1 : index
    %c0_32 = arith.constant 0 : index
    %28 = vector.load %arg7[%c0_30, %c1_31, %c0_32] : memref<18x18x128xbf16, #tpu.memory_space<vmem>>, vector<16x16x128xbf16>
    %29 = vector.shape_cast %28 : vector<16x16x128xbf16> to vector<256x128xbf16>
    %c1_33 = arith.constant 1 : index
    %c0_34 = arith.constant 0 : index
    %c0_35 = arith.constant 0 : index
    %30 = vector.load %arg4[%c1_33, %c0_34, %c0_35] : memref<9x128x128xbf16, #tpu.memory_space<vmem>>, vector<1x128x128xbf16>
    %31 = vector.shape_cast %30 : vector<1x128x128xbf16> to vector<128x128xbf16>
    %cst_36 = arith.constant dense<0.000000e+00> : vector<256x128xf32>
    %32 = tpu.matmul %29, %31, %cst_36 {dimension_numbers = #tpu.dot_dimension_numbers<[1], [0], [0], [1], [0, 0, 1, 1], [], []>} : vector<256x128xbf16>, vector<128x128xbf16>, vector<256x128xf32> -> vector<256x128xf32>
    %33 = arith.addf %27, %32 : vector<256x128xf32>
    %c0_37 = arith.constant 0 : index
    %c2 = arith.constant 2 : index
    %c0_38 = arith.constant 0 : index
    %34 = vector.load %arg7[%c0_37, %c2, %c0_38] : memref<18x18x128xbf16, #tpu.memory_space<vmem>>, vector<16x16x128xbf16>
    %35 = vector.shape_cast %34 : vector<16x16x128xbf16> to vector<256x128xbf16>
    %c2_39 = arith.constant 2 : index
    %c0_40 = arith.constant 0 : index
    %c0_41 = arith.constant 0 : index
    %36 = vector.load %arg4[%c2_39, %c0_40, %c0_41] : memref<9x128x128xbf16, #tpu.memory_space<vmem>>, vector<1x128x128xbf16>
    %37 = vector.shape_cast %36 : vector<1x128x128xbf16> to vector<128x128xbf16>
    %cst_42 = arith.constant dense<0.000000e+00> : vector<256x128xf32>
    %38 = tpu.matmul %35, %37, %cst_42 {dimension_numbers = #tpu.dot_dimension_numbers<[1], [0], [0], [1], [0, 0, 1, 1], [], []>} : vector<256x128xbf16>, vector<128x128xbf16>, vector<256x128xf32> -> vector<256x128xf32>
    %39 = arith.addf %33, %38 : vector<256x128xf32>
    %c1_43 = arith.constant 1 : index
    %c0_44 = arith.constant 0 : index
    %c0_45 = arith.constant 0 : index
    %40 = vector.load %arg7[%c1_43, %c0_44, %c0_45] : memref<18x18x128xbf16, #tpu.memory_space<vmem>>, vector<16x16x128xbf16>
    %41 = vector.shape_cast %40 : vector<16x16x128xbf16> to vector<256x128xbf16>
    %c3 = arith.constant 3 : index
    %c0_46 = arith.constant 0 : index
    %c0_47 = arith.constant 0 : index
    %42 = vector.load %arg4[%c3, %c0_46, %c0_47] : memref<9x128x128xbf16, #tpu.memory_space<vmem>>, vector<1x128x128xbf16>
    %43 = vector.shape_cast %42 : vector<1x128x128xbf16> to vector<128x128xbf16>
    %cst_48 = arith.constant dense<0.000000e+00> : vector<256x128xf32>
    %44 = tpu.matmul %41, %43, %cst_48 {dimension_numbers = #tpu.dot_dimension_numbers<[1], [0], [0], [1], [0, 0, 1, 1], [], []>} : vector<256x128xbf16>, vector<128x128xbf16>, vector<256x128xf32> -> vector<256x128xf32>
    %45 = arith.addf %39, %44 : vector<256x128xf32>
    %c1_49 = arith.constant 1 : index
    %c1_50 = arith.constant 1 : index
    %c0_51 = arith.constant 0 : index
    %46 = vector.load %arg7[%c1_49, %c1_50, %c0_51] : memref<18x18x128xbf16, #tpu.memory_space<vmem>>, vector<16x16x128xbf16>
    %47 = vector.shape_cast %46 : vector<16x16x128xbf16> to vector<256x128xbf16>
    %c4 = arith.constant 4 : index
    %c0_52 = arith.constant 0 : index
    %c0_53 = arith.constant 0 : index
    %48 = vector.load %arg4[%c4, %c0_52, %c0_53] : memref<9x128x128xbf16, #tpu.memory_space<vmem>>, vector<1x128x128xbf16>
    %49 = vector.shape_cast %48 : vector<1x128x128xbf16> to vector<128x128xbf16>
    %cst_54 = arith.constant dense<0.000000e+00> : vector<256x128xf32>
    %50 = tpu.matmul %47, %49, %cst_54 {dimension_numbers = #tpu.dot_dimension_numbers<[1], [0], [0], [1], [0, 0, 1, 1], [], []>} : vector<256x128xbf16>, vector<128x128xbf16>, vector<256x128xf32> -> vector<256x128xf32>
    %51 = arith.addf %45, %50 : vector<256x128xf32>
    %c1_55 = arith.constant 1 : index
    %c2_56 = arith.constant 2 : index
    %c0_57 = arith.constant 0 : index
    %52 = vector.load %arg7[%c1_55, %c2_56, %c0_57] : memref<18x18x128xbf16, #tpu.memory_space<vmem>>, vector<16x16x128xbf16>
    %53 = vector.shape_cast %52 : vector<16x16x128xbf16> to vector<256x128xbf16>
    %c5 = arith.constant 5 : index
    %c0_58 = arith.constant 0 : index
    %c0_59 = arith.constant 0 : index
    %54 = vector.load %arg4[%c5, %c0_58, %c0_59] : memref<9x128x128xbf16, #tpu.memory_space<vmem>>, vector<1x128x128xbf16>
    %55 = vector.shape_cast %54 : vector<1x128x128xbf16> to vector<128x128xbf16>
    %cst_60 = arith.constant dense<0.000000e+00> : vector<256x128xf32>
    %56 = tpu.matmul %53, %55, %cst_60 {dimension_numbers = #tpu.dot_dimension_numbers<[1], [0], [0], [1], [0, 0, 1, 1], [], []>} : vector<256x128xbf16>, vector<128x128xbf16>, vector<256x128xf32> -> vector<256x128xf32>
    %57 = arith.addf %51, %56 : vector<256x128xf32>
    %c2_61 = arith.constant 2 : index
    %c0_62 = arith.constant 0 : index
    %c0_63 = arith.constant 0 : index
    %58 = vector.load %arg7[%c2_61, %c0_62, %c0_63] : memref<18x18x128xbf16, #tpu.memory_space<vmem>>, vector<16x16x128xbf16>
    %59 = vector.shape_cast %58 : vector<16x16x128xbf16> to vector<256x128xbf16>
    %c6 = arith.constant 6 : index
    %c0_64 = arith.constant 0 : index
    %c0_65 = arith.constant 0 : index
    %60 = vector.load %arg4[%c6, %c0_64, %c0_65] : memref<9x128x128xbf16, #tpu.memory_space<vmem>>, vector<1x128x128xbf16>
    %61 = vector.shape_cast %60 : vector<1x128x128xbf16> to vector<128x128xbf16>
    %cst_66 = arith.constant dense<0.000000e+00> : vector<256x128xf32>
    %62 = tpu.matmul %59, %61, %cst_66 {dimension_numbers = #tpu.dot_dimension_numbers<[1], [0], [0], [1], [0, 0, 1, 1], [], []>} : vector<256x128xbf16>, vector<128x128xbf16>, vector<256x128xf32> -> vector<256x128xf32>
    %63 = arith.addf %57, %62 : vector<256x128xf32>
    %c2_67 = arith.constant 2 : index
    %c1_68 = arith.constant 1 : index
    %c0_69 = arith.constant 0 : index
    %64 = vector.load %arg7[%c2_67, %c1_68, %c0_69] : memref<18x18x128xbf16, #tpu.memory_space<vmem>>, vector<16x16x128xbf16>
    %65 = vector.shape_cast %64 : vector<16x16x128xbf16> to vector<256x128xbf16>
    %c7 = arith.constant 7 : index
    %c0_70 = arith.constant 0 : index
    %c0_71 = arith.constant 0 : index
    %66 = vector.load %arg4[%c7, %c0_70, %c0_71] : memref<9x128x128xbf16, #tpu.memory_space<vmem>>, vector<1x128x128xbf16>
    %67 = vector.shape_cast %66 : vector<1x128x128xbf16> to vector<128x128xbf16>
    %cst_72 = arith.constant dense<0.000000e+00> : vector<256x128xf32>
    %68 = tpu.matmul %65, %67, %cst_72 {dimension_numbers = #tpu.dot_dimension_numbers<[1], [0], [0], [1], [0, 0, 1, 1], [], []>} : vector<256x128xbf16>, vector<128x128xbf16>, vector<256x128xf32> -> vector<256x128xf32>
    %69 = arith.addf %63, %68 : vector<256x128xf32>
    %c2_73 = arith.constant 2 : index
    %c2_74 = arith.constant 2 : index
    %c0_75 = arith.constant 0 : index
    %70 = vector.load %arg7[%c2_73, %c2_74, %c0_75] : memref<18x18x128xbf16, #tpu.memory_space<vmem>>, vector<16x16x128xbf16>
    %71 = vector.shape_cast %70 : vector<16x16x128xbf16> to vector<256x128xbf16>
    %c8 = arith.constant 8 : index
    %c0_76 = arith.constant 0 : index
    %c0_77 = arith.constant 0 : index
    %72 = vector.load %arg4[%c8, %c0_76, %c0_77] : memref<9x128x128xbf16, #tpu.memory_space<vmem>>, vector<1x128x128xbf16>
    %73 = vector.shape_cast %72 : vector<1x128x128xbf16> to vector<128x128xbf16>
    %cst_78 = arith.constant dense<0.000000e+00> : vector<256x128xf32>
    %74 = tpu.matmul %71, %73, %cst_78 {dimension_numbers = #tpu.dot_dimension_numbers<[1], [0], [0], [1], [0, 0, 1, 1], [], []>} : vector<256x128xbf16>, vector<128x128xbf16>, vector<256x128xf32> -> vector<256x128xf32>
    %75 = arith.addf %69, %74 : vector<256x128xf32>
    %76 = vector.shape_cast %75 : vector<256x128xf32> to vector<16x16x128xf32>
    %77 = arith.truncf %76 : vector<16x16x128xf32> to vector<16x16x128xbf16>
    %c0_79 = arith.constant 0 : index
    %c0_80 = arith.constant 0 : index
    %c0_81 = arith.constant 0 : index
    %c0_82 = arith.constant 0 : index
    %78 = vector.load %arg5[%c0_79, %c0_80, %c0_81, %c0_82] : memref<1x16x16x128xbf16, #tpu.memory_space<vmem>>, vector<1x16x16x128xbf16>
    %79 = vector.shape_cast %78 : vector<1x16x16x128xbf16> to vector<16x16x128xbf16>
    %80 = vector.shape_cast %77 : vector<16x16x128xbf16> to vector<1x16x16x128xbf16>
    tpu.vector_store %arg5[%c0_79, %c0_80, %c0_81, %c0_82], %80 {strides = array<i32>} : memref<1x16x16x128xbf16, #tpu.memory_space<vmem>>, vector<1x16x16x128xbf16>,
    %cst_83 = arith.constant dense<0.000000e+00> : vector<128xf32>
    %81 = vector.multi_reduction <add>, %75, %cst_83 [0] : vector<256x128xf32> to vector<128xf32>
    %82 = vector.shape_cast %81 : vector<128xf32> to vector<1x128xf32>
    %c0_84 = arith.constant 0 : index
    %c0_85 = arith.constant 0 : index
    %c0_86 = arith.constant 0 : index
    %83 = vector.load %arg6[%c0_84, %c0_85, %c0_86] : memref<1x2x128xf32, #tpu.memory_space<vmem>>, vector<1x1x128xf32>
    %84 = vector.shape_cast %83 : vector<1x1x128xf32> to vector<1x128xf32>
    %85 = vector.shape_cast %82 : vector<1x128xf32> to vector<1x1x128xf32>
    tpu.vector_store %arg6[%c0_84, %c0_85, %c0_86], %85 {strides = array<i32>} : memref<1x2x128xf32, #tpu.memory_space<vmem>>, vector<1x1x128xf32>,
    %86 = arith.mulf %75, %75 : vector<256x128xf32>
    %cst_87 = arith.constant dense<0.000000e+00> : vector<128xf32>
    %87 = vector.multi_reduction <add>, %86, %cst_87 [0] : vector<256x128xf32> to vector<128xf32>
    %88 = vector.shape_cast %87 : vector<128xf32> to vector<1x128xf32>
    %c0_88 = arith.constant 0 : index
    %c1_89 = arith.constant 1 : index
    %c0_90 = arith.constant 0 : index
    %89 = vector.load %arg6[%c0_88, %c1_89, %c0_90] : memref<1x2x128xf32, #tpu.memory_space<vmem>>, vector<1x1x128xf32>
    %90 = vector.shape_cast %89 : vector<1x1x128xf32> to vector<1x128xf32>
    %91 = vector.shape_cast %88 : vector<1x128xf32> to vector<1x1x128xf32>
    tpu.vector_store %arg6[%c0_88, %c1_89, %c0_90], %91 {strides = array<i32>} : memref<1x2x128xf32, #tpu.memory_space<vmem>>, vector<1x1x128xf32>,
    return
  }
  func.func @transform_0(%arg0: i32) -> (i32, i32) {
    %c0_i32 = arith.constant 0 : i32
    %c0_i32_0 = arith.constant 0 : i32
    %c0_i32_1 = arith.constant 0 : i32
    return %c0_i32, %c0_i32_0 : i32, i32
  }
  func.func @transform_1(%arg0: i32) -> (i32, i32) {
    %c0_i32 = arith.constant 0 : i32
    %c0_i32_0 = arith.constant 0 : i32
    %c0_i32_1 = arith.constant 0 : i32
    return %c0_i32, %c0_i32_0 : i32, i32
  }
  func.func @transform_2(%arg0: i32) -> (i32, i32, i32, i32) {
    %c0_i32 = arith.constant 0 : i32
    %c0_i32_0 = arith.constant 0 : i32
    %c0_i32_1 = arith.constant 0 : i32
    %c0_i32_2 = arith.constant 0 : i32
    return %arg0, %c0_i32, %c0_i32_0, %c0_i32_1 : i32, i32, i32, i32
  }
  func.func @transform_3(%arg0: i32) -> (i32, i32, i32) {
    %c0_i32 = arith.constant 0 : i32
    %c0_i32_0 = arith.constant 0 : i32
    %c0_i32_1 = arith.constant 0 : i32
    %c0_i32_2 = arith.constant 0 : i32
    return %c0_i32, %c0_i32_0, %c0_i32_1 : i32, i32, i32
  }
  func.func @transform_4(%arg0: i32) -> (i32, i32, i32, i32) {
    %c0_i32 = arith.constant 0 : i32
    %c0_i32_0 = arith.constant 0 : i32
    %c0_i32_1 = arith.constant 0 : i32
    %c0_i32_2 = arith.constant 0 : i32
    return %arg0, %c0_i32, %c0_i32_0, %c0_i32_1 : i32, i32, i32, i32
  }
  func.func @transform_5(%arg0: i32) -> (i32, i32, i32) {
    %c0_i32 = arith.constant 0 : i32
    %c0_i32_0 = arith.constant 0 : i32
    %c0_i32_1 = arith.constant 0 : i32
    return %arg0, %c0_i32, %c0_i32_0 : i32, i32, i32
  }
}

module attributes {stable_mosaic.version = 11 : i64} {
  func.func @bn_relu_apply_kernel(%arg0: i32, %arg1: memref<1x8xf32, #tpu.memory_space<vmem>>, %arg2: memref<1x8xf32, #tpu.memory_space<vmem>>, %arg3: memref<1x16x16x128xbf16, #tpu.memory_space<vmem>>, %arg4: memref<1x16x16x8xf32, #tpu.memory_space<vmem>>) attributes {dimension_semantics = [#tpu.dimension_semantics<parallel>], iteration_bounds = array<i64: 2>, scalar_prefetch = 0 : i64, scratch_operands = 0 : i64, tpu.core_type = #tpu.core_type<tc>, window_params = [{pipeline_mode = #tpu.pipeline_mode<synchronous>, transform_indices = @transform_0, window_bounds = array<i64: 1, 8>}, {pipeline_mode = #tpu.pipeline_mode<synchronous>, transform_indices = @transform_1, window_bounds = array<i64: 1, 8>}, {transform_indices = @transform_2, window_bounds = array<i64: 1, 16, 16, 128>}, {transform_indices = @transform_3, window_bounds = array<i64: 1, 16, 16, 8>}]} {
    %c0 = arith.constant 0 : index
    %c0_0 = arith.constant 0 : index
    %c0_1 = arith.constant 0 : index
    %c0_2 = arith.constant 0 : index
    %0 = vector.load %arg3[%c0, %c0_0, %c0_1, %c0_2] : memref<1x16x16x128xbf16, #tpu.memory_space<vmem>>, vector<1x16x16x8xbf16>
    %1 = vector.shape_cast %0 : vector<1x16x16x8xbf16> to vector<16x16x8xbf16>
    %2 = arith.extf %1 : vector<16x16x8xbf16> to vector<16x16x8xf32>
    %c0_3 = arith.constant 0 : index
    %c0_4 = arith.constant 0 : index
    %3 = vector.load %arg1[%c0_3, %c0_4] : memref<1x8xf32, #tpu.memory_space<vmem>>, vector<1x8xf32>
    %4 = vector.shape_cast %3 : vector<1x8xf32> to vector<1x1x8xf32>
    %c0_5 = arith.constant 0 : index
    %c0_6 = arith.constant 0 : index
    %5 = vector.load %arg2[%c0_5, %c0_6] : memref<1x8xf32, #tpu.memory_space<vmem>>, vector<1x8xf32>
    %6 = vector.shape_cast %5 : vector<1x8xf32> to vector<1x1x8xf32>
    %7 = vector.broadcast %4 : vector<1x1x8xf32> to vector<16x16x8xf32>
    %8 = arith.mulf %2, %7 : vector<16x16x8xf32>
    %9 = vector.broadcast %6 : vector<1x1x8xf32> to vector<16x16x8xf32>
    %10 = arith.addf %8, %9 : vector<16x16x8xf32>
    %cst = arith.constant 0.000000e+00 : f32
    %11 = vector.broadcast %cst : f32 to vector<16x16x8xf32>
    %12 = arith.maximumf %10, %11 : vector<16x16x8xf32>
    %c0_7 = arith.constant 0 : index
    %c0_8 = arith.constant 0 : index
    %c0_9 = arith.constant 0 : index
    %c0_10 = arith.constant 0 : index
    %13 = vector.load %arg4[%c0_7, %c0_8, %c0_9, %c0_10] : memref<1x16x16x8xf32, #tpu.memory_space<vmem>>, vector<1x16x16x8xf32>
    %14 = vector.shape_cast %13 : vector<1x16x16x8xf32> to vector<16x16x8xf32>
    %15 = vector.shape_cast %12 : vector<16x16x8xf32> to vector<1x16x16x8xf32>
    tpu.vector_store %arg4[%c0_7, %c0_8, %c0_9, %c0_10], %15 {strides = array<i32>} : memref<1x16x16x8xf32, #tpu.memory_space<vmem>>, vector<1x16x16x8xf32>,
    return
  }
  func.func @transform_0(%arg0: i32) -> (i32, i32) {
    %c0_i32 = arith.constant 0 : i32
    %c0_i32_0 = arith.constant 0 : i32
    %c0_i32_1 = arith.constant 0 : i32
    return %c0_i32, %c0_i32_0 : i32, i32
  }
  func.func @transform_1(%arg0: i32) -> (i32, i32) {
    %c0_i32 = arith.constant 0 : i32
    %c0_i32_0 = arith.constant 0 : i32
    %c0_i32_1 = arith.constant 0 : i32
    return %c0_i32, %c0_i32_0 : i32, i32
  }
  func.func @transform_2(%arg0: i32) -> (i32, i32, i32, i32) {
    %c0_i32 = arith.constant 0 : i32
    %c0_i32_0 = arith.constant 0 : i32
    %c0_i32_1 = arith.constant 0 : i32
    %c0_i32_2 = arith.constant 0 : i32
    return %arg0, %c0_i32, %c0_i32_0, %c0_i32_1 : i32, i32, i32, i32
  }
  func.func @transform_3(%arg0: i32) -> (i32, i32, i32, i32) {
    %c0_i32 = arith.constant 0 : i32
    %c0_i32_0 = arith.constant 0 : i32
    %c0_i32_1 = arith.constant 0 : i32
    %c0_i32_2 = arith.constant 0 : i32
    return %arg0, %c0_i32, %c0_i32_0, %c0_i32_1 : i32, i32, i32, i32
  }
}

</mosaic_0001>

<llo_original>
// kernel: double_conv.5
$region0: #{double_conv.5}
  #allocation0 [shape = 'u32[]', space=smem, size = 0x4, offset = 0x4, fixed_abs, tag = 'smem constant byte address 0x4 - core index']
  #allocation1 [shape = 'u32[144,128]{1,0:T(1,128)}', space=vmem, size = 0x12000, scoped, tag = 'internal scratch']
  %s0 = inlined_call_operand.vmem [shape: f32[1,8], index: 0, kind: input, shape index: {}]
  %s1 = inlined_call_operand.vmem [shape: f32[1,8], index: 1, kind: input, shape index: {}]
  %s2 = inlined_call_operand.vmem [shape: bf16[2,16,16,128], index: 2, kind: input, shape index: {}]
  %s3 = inlined_call_operand.vmem [shape: f32[2,16,16,8], index: 3, kind: output, shape index: {}]
  %s4 = sld [smem:[#allocation0]]
  $region45: #{double_conv.5} parent=0
    _
  %s6 = ssub.s32 1, %s4
  %s7 = scalar_select 0, %s6, %s4
  loop: start=0, step=1, limit=4
  $region2: #{double_conv.5} parent=0 // loop_pre_header
    _
  $region3: #{double_conv.5} parent=0 // loop_header
    %s9 = sphi 0, %s13
    %p10 = scmp.ge.s32.totalorder %s9, 4
    %s17 = sphi 0, %s17
    %s19 = sphi 0, %s17
    %s20 = sphi 0, %s19
    %s34 = sphi 0, %s20
    %s38 = sphi 0, %s38
    %s40 = sphi 0, %s38
    %s41 = sphi 0, %s40
    %s55 = sphi 0, %s41
    %s61 = sphi 0, %s63
    %s64 = sphi 0, %s61
    %s65 = sphi 0, %s64
    %s81 = sphi 0, %s65
    %s87 = sphi 0, %s89
    %s90 = sphi 0, %s87
    %s91 = sphi 0, %s90
    %s107 = sphi 0, %s91
  $region4: #{double_conv.5} parent=0 // loop_header_branch
    %12 = sbr.rel (%p10) target = $region8
  $region5: #{double_conv.5} parent=0 // loop_body
    %s14 = ssub.s32 %s9, 1
    %s15 = ssub.s32 %s9, 2
    %s16 = sadd.s32 %s9, 1
    %s18 = sadd.s32 %s17, 1
    %p21 = scmp.eq.s32.totalorder %s9, 1
    %p22 = scmp.ne.s32.totalorder %s17, %s19
    %p23 = scmp.eq.s32.totalorder %s9, 0
    %p24 = por %p22, %p23
    %p25 = scmp.ne.s32.totalorder %s17, %s19
    %p26 = scmp.eq.s32.totalorder %s14, 1
    %p27 = por %p25, %p26
    %p28 = scmp.ne.s32.totalorder %s19, %s20
    %p29 = scmp.eq.s32.totalorder %s14, 0
    %p30 = por %p28, %p29
    %p31 = scmp.ne.s32.totalorder %s19, %s20
    %p32 = scmp.eq.s32.totalorder %s15, 1
    %p33 = por %p31, %p32
    %p35 = scmp.ne.s32.totalorder %s20, %s34
    %p36 = scmp.eq.s32.totalorder %s15, 0
    %p37 = por %p35, %p36
    %s39 = sadd.s32 %s38, 1
    %p42 = scmp.eq.s32.totalorder %s9, 1
    %p43 = scmp.ne.s32.totalorder %s38, %s40
    %p44 = scmp.eq.s32.totalorder %s9, 0
    %p45 = por %p43, %p44
    %p46 = scmp.ne.s32.totalorder %s38, %s40
    %p47 = scmp.eq.s32.totalorder %s14, 1
    %p48 = por %p46, %p47
    %p49 = scmp.ne.s32.totalorder %s40, %s41
    %p50 = scmp.eq.s32.totalorder %s14, 0
    %p51 = por %p49, %p50
    %p52 = scmp.ne.s32.totalorder %s40, %s41
    %p53 = scmp.eq.s32.totalorder %s15, 1
    %p54 = por %p52, %p53
    %p56 = scmp.ne.s32.totalorder %s41, %s55
    %p57 = scmp.eq.s32.totalorder %s15, 0
    %p58 = por %p56, %p57
    %s59 = ssub.s32 %s9, %s16
    %p60 = scmp.eq.s32.totalorder %s59, 0
    %s62 = sadd.s32 %s61, 1
    %s63 = scalar_select %p60, %s61, %s62
    %p66 = pneg %p60
    %p67 = scmp.eq.s32.totalorder %s9, 1
    %p68 = por %p66, %p67
    %p69 = scmp.ne.s32.totalorder %s61, %s64
    %p70 = scmp.eq.s32.totalorder %s9, 0
    %p71 = por %p69, %p70
    %p72 = scmp.ne.s32.totalorder %s61, %s64
    %p73 = scmp.eq.s32.totalorder %s14, 1
    %p74 = por %p72, %p73
    %p75 = scmp.ne.s32.totalorder %s64, %s65
    %p76 = scmp.eq.s32.totalorder %s14, 0
    %p77 = por %p75, %p76
    %p78 = scmp.ne.s32.totalorder %s64, %s65
    %p79 = scmp.eq.s32.totalorder %s15, 1
    %p80 = por %p78, %p79
    %p82 = scmp.ne.s32.totalorder %s65, %s81
    %p83 = scmp.eq.s32.totalorder %s15, 0
    %p84 = por %p82, %p83
    %s85 = ssub.s32 %s9, %s16
    %p86 = scmp.eq.s32.totalorder %s85, 0
    %s88 = sadd.s32 %s87, 1
    %s89 = scalar_select %p86, %s87, %s88
    %p92 = pneg %p86
    %p93 = scmp.eq.s32.totalorder %s9, 1
    %p94 = por %p92, %p93
    %p95 = scmp.ne.s32.totalorder %s87, %s90
    %p96 = scmp.eq.s32.totalorder %s9, 0
    %p97 = por %p95, %p96
    %p98 = scmp.ne.s32.totalorder %s87, %s90
    %p99 = scmp.eq.s32.totalorder %s14, 1
    %p100 = por %p98, %p99
    %p101 = scmp.ne.s32.totalorder %s90, %s91
    %p102 = scmp.eq.s32.totalorder %s14, 0
    %p103 = por %p101, %p102
    %p104 = scmp.ne.s32.totalorder %s90, %s91
    %p105 = scmp.eq.s32.totalorder %s15, 1
    %p106 = por %p104, %p105
    %p108 = scmp.ne.s32.totalorder %s91, %s107
    %p109 = scmp.eq.s32.totalorder %s15, 0
    %p110 = por %p108, %p109
    %p111 = scmp.le.s32.totalorder 1, %s9
    %p112 = scmp.lt.s32.totalorder %s9, 3
    %p113 = pnand %p111, %p112
    %p114 = pneg %p113
    // Predicated region
    $region9: #{double_conv.5} parent=5 // pred_check
      _
    $region10: #{double_conv.5} parent=5 // pred_check_branch
      %116 = sbr.rel (%p113) target = $region12
    $region11: #{double_conv.5} parent=5 // pred_region
      %s117 = ssub.s32 %s9, 1
      // Predicated region
      $region13: #{double_conv.5} parent=11 // pred_check
        %p118 = pneg %p30
      $region14: #{double_conv.5} parent=11 // pred_check_branch
        %120 = sbr.rel (%p118) target = $region16
      $region15: #{double_conv.5} parent=11 // pred_region
        _
      $region16: #{double_conv.5} parent=11 // pred_fallthru
        _
      // Predicated region
      $region17: #{double_conv.5} parent=11 // pred_check
        %p121 = pneg %p51
      $region18: #{double_conv.5} parent=11 // pred_check_branch
        %123 = sbr.rel (%p121) target = $region20
      $region19: #{double_conv.5} parent=11 // pred_region
        _
      $region20: #{double_conv.5} parent=11 // pred_fallthru
        _
    $region12: #{double_conv.5} parent=5 // pred_fallthru
      _
    %p124 = scmp.lt.s32.totalorder %s9, 2
    // Predicated region
    $region21: #{double_conv.5} parent=5 // pred_check
      %p125 = pneg %p124
    $region22: #{double_conv.5} parent=5 // pred_check_branch
      %127 = sbr.rel (%p125) target = $region24
    $region23: #{double_conv.5} parent=5 // pred_region
      // Predicated region
      $region25: #{double_conv.5} parent=23 // pred_check
        %p128 = pneg %p71
      $region26: #{double_conv.5} parent=23 // pred_check_branch
        %130 = sbr.rel (%p128) target = $region28
      $region27: #{double_conv.5} parent=23 // pred_region
        %p131 = scmp.lt.s32.totalorder %s9, 1
        %s132 = scalar_select %p131, %s9, 1
        %s133 = smul.addr %s132, 32
        %s134 = smul.addr %s133, 4
        %s135 = scalar_lea.vmem %s2, %s134
      $region28: #{double_conv.5} parent=23 // pred_fallthru
        _
    $region24: #{double_conv.5} parent=5 // pred_fallthru
      _
    %p136 = scmp.le.s32.totalorder 1, %s9
    %p137 = scmp.lt.s32.totalorder %s9, 3
    %p138 = pnand %p136, %p137
    %p139 = pneg %p138
    // Predicated region
    $region29: #{double_conv.5} parent=5 // pred_check
      _
    $region30: #{double_conv.5} parent=5 // pred_check_branch
      %141 = sbr.rel (%p138) target = $region32
    $region31: #{double_conv.5} parent=5 // pred_region
      %s142 = ssub.s32 %s9, 1
      %p143 = pneg %p30
      %p144 = pneg %p27
      %p145 = pneg %p51
      %p146 = pneg %p48
      %p147 = scmp.lt.s32.totalorder %s14, 1
      %s148 = scalar_select %p147, %s14, 1
      %s149 = smul.addr %s148, 32
      %s150 = smul.addr %s149, 4
      %s151 = scalar_lea.vmem %s2, %s150
      %p152 = pneg %p77
      %p153 = pneg %p74
      %p154 = pneg %p103
      %p155 = pneg %p100
      %p156 = scmp.lt.s32.totalorder %s14, 1
      %s157 = scalar_select %p156, %s14, 1
      %s158 = smul.addr %s157, 32
      %s159 = smul.addr %s158, 8
      %s160 = scalar_lea.vmem %s3, %s159
      %p161 = scmp.lt.s32.totalorder %s14, 1
      %s162 = scalar_select %p161, %s14, 1
      %s163 = smul.addr %s162, 32
      %s164 = smul.addr %s163, 4
      %s165 = scalar_lea.vmem %s2, %s164
      %p166 = scmp.lt.s32.totalorder %s14, 1
      %s167 = scalar_select %p166, %s14, 1
      %s168 = smul.addr %s167, 32
      %s169 = smul.addr %s168, 8
      %s170 = scalar_lea.vmem %s3, %s169
      %v171 = vld [vmem:[%s165] sm:$0xf]
      %v172 = vld [vmem:[%s165 + $0x4] sm:$0xf]
      %v173 = vld [vmem:[%s165 + $0x8] sm:$0xf]
      %v174 = vld [vmem:[%s165 + $0xc] sm:$0xf]
      %v175 = vld [vmem:[%s165 + $0x10] sm:$0xf]
      %v176 = vld [vmem:[%s165 + $0x14] sm:$0xf]
      %v177 = vld [vmem:[%s165 + $0x18] sm:$0xf]
      %v178 = vld [vmem:[%s165 + $0x1c] sm:$0xf]
      %v179 = vld [vmem:[%s165 + $0x20] sm:$0xf]
      %v180 = vld [vmem:[%s165 + $0x24] sm:$0xf]
      %v181 = vld [vmem:[%s165 + $0x28] sm:$0xf]
      %v182 = vld [vmem:[%s165 + $0x2c] sm:$0xf]
      %v183 = vld [vmem:[%s165 + $0x30] sm:$0xf]
      %v184 = vld [vmem:[%s165 + $0x34] sm:$0xf]
      %v185 = vld [vmem:[%s165 + $0x38] sm:$0xf]
      %v186 = vld [vmem:[%s165 + $0x3c] sm:$0xf]
      %v187 = vld [vmem:[%s165 + $0x40] sm:$0xf]
      %v188 = vld [vmem:[%s165 + $0x44] sm:$0xf]
      %v189 = vld [vmem:[%s165 + $0x48] sm:$0xf]
      %v190 = vld [vmem:[%s165 + $0x4c] sm:$0xf]
      %v191 = vld [vmem:[%s165 + $0x50] sm:$0xf]
      %v192 = vld [vmem:[%s165 + $0x54] sm:$0xf]
      %v193 = vld [vmem:[%s165 + $0x58] sm:$0xf]
      %v194 = vld [vmem:[%s165 + $0x5c] sm:$0xf]
      %v195 = vld [vmem:[%s165 + $0x60] sm:$0xf]
      %v196 = vld [vmem:[%s165 + $0x64] sm:$0xf]
      %v197 = vld [vmem:[%s165 + $0x68] sm:$0xf]
      %v198 = vld [vmem:[%s165 + $0x6c] sm:$0xf]
      %v199 = vld [vmem:[%s165 + $0x70] sm:$0xf]
      %v200 = vld [vmem:[%s165 + $0x74] sm:$0xf]
      %v201 = vld [vmem:[%s165 + $0x78] sm:$0xf]
      %v202 = vld [vmem:[%s165 + $0x7c] sm:$0xf]
      %v203 = vunpack.c.l.bf16 %v171
      %v204 = vunpack.c.l.bf16 %v172
      %v205 = vunpack.c.l.bf16 %v173
      %v206 = vunpack.c.l.bf16 %v174
      %v207 = vunpack.c.l.bf16 %v175
      %v208 = vunpack.c.l.bf16 %v176
      %v209 = vunpack.c.l.bf16 %v177
      %v210 = vunpack.c.l.bf16 %v178
      %v211 = vunpack.c.l.bf16 %v179
      %v212 = vunpack.c.l.bf16 %v180
      %v213 = vunpack.c.l.bf16 %v181
      %v214 = vunpack.c.l.bf16 %v182
      %v215 = vunpack.c.l.bf16 %v183
      %v216 = vunpack.c.l.bf16 %v184
      %v217 = vunpack.c.l.bf16 %v185
      %v218 = vunpack.c.l.bf16 %v186
      %v219 = vunpack.c.l.bf16 %v187
      %v220 = vunpack.c.l.bf16 %v188
      %v221 = vunpack.c.l.bf16 %v189
      %v222 = vunpack.c.l.bf16 %v190
      %v223 = vunpack.c.l.bf16 %v191
      %v224 = vunpack.c.l.bf16 %v192
      %v225 = vunpack.c.l.bf16 %v193
      %v226 = vunpack.c.l.bf16 %v194
      %v227 = vunpack.c.l.bf16 %v195
      %v228 = vunpack.c.l.bf16 %v196
      %v229 = vunpack.c.l.bf16 %v197
      %v230 = vunpack.c.l.bf16 %v198
      %v231 = vunpack.c.l.bf16 %v199
      %v232 = vunpack.c.l.bf16 %v200
      %v233 = vunpack.c.l.bf16 %v201
      %v234 = vunpack.c.l.bf16 %v202
      %v235 = vld [vmem:[%s0] sm:$0x1]
      %v236 = vld [vmem:[%s1] sm:$0x1]
      %v238 = vlaneseq
      %v239 = vshrl.u32 %v238, 7
      %v240 = vsub.s32 0, %v239
      %v241 = vrot.slane %v235, %v240
      %v243 = vmul.f32 %v203, %v241
      %v244 = vmul.f32 %v204, %v241
      %v245 = vmul.f32 %v205, %v241
      %v246 = vmul.f32 %v206, %v241
      %v247 = vmul.f32 %v207, %v241
      %v248 = vmul.f32 %v208, %v241
      %v249 = vmul.f32 %v209, %v241
      %v250 = vmul.f32 %v210, %v241
      %v251 = vmul.f32 %v211, %v241
      %v252 = vmul.f32 %v212, %v241
      %v253 = vmul.f32 %v213, %v241
      %v254 = vmul.f32 %v214, %v241
      %v255 = vmul.f32 %v215, %v241
      %v256 = vmul.f32 %v216, %v241
      %v257 = vmul.f32 %v217, %v241
      %v258 = vmul.f32 %v218, %v241
      %v259 = vmul.f32 %v219, %v241
      %v260 = vmul.f32 %v220, %v241
      %v261 = vmul.f32 %v221, %v241
      %v262 = vmul.f32 %v222, %v241
      %v263 = vmul.f32 %v223, %v241
      %v264 = vmul.f32 %v224, %v241
      %v265 = vmul.f32 %v225, %v241
      %v266 = vmul.f32 %v226, %v241
      %v267 = vmul.f32 %v227, %v241
      %v268 = vmul.f32 %v228, %v241
      %v269 = vmul.f32 %v229, %v241
      %v270 = vmul.f32 %v230, %v241
      %v271 = vmul.f32 %v231, %v241
      %v272 = vmul.f32 %v232, %v241
      %v273 = vmul.f32 %v233, %v241
      %v274 = vmul.f32 %v234, %v241
      %v276 = vlaneseq
      %v277 = vshrl.u32 %v276, 7
      %v278 = vsub.s32 0, %v277
      %v279 = vrot.slane %v236, %v278
      %v281 = vadd.f32 %v243, %v279
      %v282 = vadd.f32 %v244, %v279
      %v283 = vadd.f32 %v245, %v279
      %v284 = vadd.f32 %v246, %v279
      %v285 = vadd.f32 %v247, %v279
      %v286 = vadd.f32 %v248, %v279
      %v287 = vadd.f32 %v249, %v279
      %v288 = vadd.f32 %v250, %v279
      %v289 = vadd.f32 %v251, %v279
      %v290 = vadd.f32 %v252, %v279
      %v291 = vadd.f32 %v253, %v279
      %v292 = vadd.f32 %v254, %v279
      %v293 = vadd.f32 %v255, %v279
      %v294 = vadd.f32 %v256, %v279
      %v295 = vadd.f32 %v257, %v279
      %v296 = vadd.f32 %v258, %v279
      %v297 = vadd.f32 %v259, %v279
      %v298 = vadd.f32 %v260, %v279
      %v299 = vadd.f32 %v261, %v279
      %v300 = vadd.f32 %v262, %v279
      %v301 = vadd.f32 %v263, %v279
      %v302 = vadd.f32 %v264, %v279
      %v303 = vadd.f32 %v265, %v279
      %v304 = vadd.f32 %v266, %v279
      %v305 = vadd.f32 %v267, %v279
      %v306 = vadd.f32 %v268, %v279
      %v307 = vadd.f32 %v269, %v279
      %v308 = vadd.f32 %v270, %v279
      %v309 = vadd.f32 %v271, %v279
      %v310 = vadd.f32 %v272, %v279
      %v311 = vadd.f32 %v273, %v279
      %v312 = vadd.f32 %v274, %v279
      %v313 = vmax.f32 %v281, 0.0
      %v314 = vmax.f32 %v282, 0.0
      %v315 = vmax.f32 %v283, 0.0
      %v316 = vmax.f32 %v284, 0.0
      %v317 = vmax.f32 %v285, 0.0
      %v318 = vmax.f32 %v286, 0.0
      %v319 = vmax.f32 %v287, 0.0
      %v320 = vmax.f32 %v288, 0.0
      %v321 = vmax.f32 %v289, 0.0
      %v322 = vmax.f32 %v290, 0.0
      %v323 = vmax.f32 %v291, 0.0
      %v324 = vmax.f32 %v292, 0.0
      %v325 = vmax.f32 %v293, 0.0
      %v326 = vmax.f32 %v294, 0.0
      %v327 = vmax.f32 %v295, 0.0
      %v328 = vmax.f32 %v296, 0.0
      %v329 = vmax.f32 %v297, 0.0
      %v330 = vmax.f32 %v298, 0.0
      %v331 = vmax.f32 %v299, 0.0
      %v332 = vmax.f32 %v300, 0.0
      %v333 = vmax.f32 %v301, 0.0
      %v334 = vmax.f32 %v302, 0.0
      %v335 = vmax.f32 %v303, 0.0
      %v336 = vmax.f32 %v304, 0.0
      %v337 = vmax.f32 %v305, 0.0
      %v338 = vmax.f32 %v306, 0.0
      %v339 = vmax.f32 %v307, 0.0
      %v340 = vmax.f32 %v308, 0.0
      %v341 = vmax.f32 %v309, 0.0
      %v342 = vmax.f32 %v310, 0.0
      %v343 = vmax.f32 %v311, 0.0
      %v344 = vmax.f32 %v312, 0.0
      %vm345 = vcmask 64512
      %346 = vst.msk [vmem:[%s170] sm:$0xff] %vm345, %v313
      %347 = vst.msk [vmem:[%s170 + $0x8] sm:$0xff] %vm345, %v314
      %348 = vst.msk [vmem:[%s170 + $0x10] sm:$0xff] %vm345, %v315
      %349 = vst.msk [vmem:[%s170 + $0x18] sm:$0xff] %vm345, %v316
      %350 = vst.msk [vmem:[%s170 + $0x20] sm:$0xff] %vm345, %v317
      %351 = vst.msk [vmem:[%s170 + $0x28] sm:$0xff] %vm345, %v318
      %352 = vst.msk [vmem:[%s170 + $0x30] sm:$0xff] %vm345, %v319
      %353 = vst.msk [vmem:[%s170 + $0x38] sm:$0xff] %vm345, %v320
      %354 = vst.msk [vmem:[%s170 + $0x40] sm:$0xff] %vm345, %v321
      %355 = vst.msk [vmem:[%s170 + $0x48] sm:$0xff] %vm345, %v322
      %356 = vst.msk [vmem:[%s170 + $0x50] sm:$0xff] %vm345, %v323
      %357 = vst.msk [vmem:[%s170 + $0x58] sm:$0xff] %vm345, %v324
      %358 = vst.msk [vmem:[%s170 + $0x60] sm:$0xff] %vm345, %v325
      %359 = vst.msk [vmem:[%s170 + $0x68] sm:$0xff] %vm345, %v326
      %360 = vst.msk [vmem:[%s170 + $0x70] sm:$0xff] %vm345, %v327
      %361 = vst.msk [vmem:[%s170 + $0x78] sm:$0xff] %vm345, %v328
      %362 = vst.msk [vmem:[%s170 + $0x80] sm:$0xff] %vm345, %v329
      %363 = vst.msk [vmem:[%s170 + $0x88] sm:$0xff] %vm345, %v330
      %364 = vst.msk [vmem:[%s170 + $0x90] sm:$0xff] %vm345, %v331
      %365 = vst.msk [vmem:[%s170 + $0x98] sm:$0xff] %vm345, %v332
      %366 = vst.msk [vmem:[%s170 + $0xa0] sm:$0xff] %vm345, %v333
      %367 = vst.msk [vmem:[%s170 + $0xa8] sm:$0xff] %vm345, %v334
      %368 = vst.msk [vmem:[%s170 + $0xb0] sm:$0xff] %vm345, %v335
      %369 = vst.msk [vmem:[%s170 + $0xb8] sm:$0xff] %vm345, %v336
      %370 = vst.msk [vmem:[%s170 + $0xc0] sm:$0xff] %vm345, %v337
      %371 = vst.msk [vmem:[%s170 + $0xc8] sm:$0xff] %vm345, %v338
      %372 = vst.msk [vmem:[%s170 + $0xd0] sm:$0xff] %vm345, %v339
      %373 = vst.msk [vmem:[%s170 + $0xd8] sm:$0xff] %vm345, %v340
      %374 = vst.msk [vmem:[%s170 + $0xe0] sm:$0xff] %vm345, %v341
      %375 = vst.msk [vmem:[%s170 + $0xe8] sm:$0xff] %vm345, %v342
      %376 = vst.msk [vmem:[%s170 + $0xf0] sm:$0xff] %vm345, %v343
      %377 = vst.msk [vmem:[%s170 + $0xf8] sm:$0xff] %vm345, %v344
      %p378 = scmp.lt.s32.totalorder %s14, 1
      %s379 = scalar_select %p378, %s14, 1
      %s380 = smul.addr %s379, 32
      %s381 = smul.addr %s380, 8
      %s382 = scalar_lea.vmem %s3, %s381
      // Predicated region
      $region33: #{double_conv.5} parent=31 // pred_check
        %p383 = pneg %p100
      $region34: #{double_conv.5} parent=31 // pred_check_branch
        %385 = sbr.rel (%p383) target = $region36
      $region35: #{double_conv.5} parent=31 // pred_region
        _
      $region36: #{double_conv.5} parent=31 // pred_fallthru
        _
    $region32: #{double_conv.5} parent=5 // pred_fallthru
      _
    %p386 = scmp.le.s32.totalorder 2, %s9
    // Predicated region
    $region37: #{double_conv.5} parent=5 // pred_check
      %p387 = pneg %p386
    $region38: #{double_conv.5} parent=5 // pred_check_branch
      %389 = sbr.rel (%p387) target = $region40
    $region39: #{double_conv.5} parent=5 // pred_region
      %s390 = ssub.s32 %s9, 2
      // Predicated region
      $region41: #{double_conv.5} parent=39 // pred_check
        %p391 = pneg %p106
      $region42: #{double_conv.5} parent=39 // pred_check_branch
        %393 = sbr.rel (%p391) target = $region44
      $region43: #{double_conv.5} parent=39 // pred_region
        %p394 = scmp.lt.s32.totalorder %s15, 1
        %s395 = scalar_select %p394, %s15, 1
        %s396 = smul.addr %s395, 32
        %s397 = smul.addr %s396, 8
        %s398 = scalar_lea.vmem %s3, %s397
      $region44: #{double_conv.5} parent=39 // pred_fallthru
        _
    $region40: #{double_conv.5} parent=5 // pred_fallthru
      _
  $region6: #{double_conv.5} parent=0 // loop_footer
    %s13 = sadd.s32 1, %s9
  $region7: #{double_conv.5} parent=0 // loop_footer_branch
    %8 = sbr.rel target = $region3
  $region8: #{double_conv.5} parent=0 // loop_exit
    _

// kernel: double_conv.4
$region0: #{double_conv.4}
  #allocation0 [shape = 'u32[]', space=smem, size = 0x4, offset = 0x4, fixed_abs, tag = 'smem constant byte address 0x4 - core index']
  #allocation1 [shape = 'u32[144,128]{1,0:T(1,128)}', space=vmem, size = 0x12000, scoped, tag = 'internal scratch']
  #allocation2 [shape = 'bf16[18,18,128]{2,1,0:T(8,128)(2,1)}', space=vmem, size = 0x1b000, scoped, tag = 'scratch operand']
  %s0 = inlined_call_operand.vmem [shape: f32[1,128], index: 0, kind: input, shape index: {}]
  %s1 = inlined_call_operand.vmem [shape: f32[1,128], index: 1, kind: input, shape index: {}]
  %s2 = inlined_call_operand.vmem [shape: bf16[2,16,16,128], index: 2, kind: input, shape index: {}]
  %s3 = inlined_call_operand.vmem [shape: bf16[9,128,128], index: 3, kind: input, shape index: {}]
  %s4 = inlined_call_operand.vmem [shape: bf16[2,16,16,128], index: 4, kind: output, shape index: {0}]
  %s5 = inlined_call_operand.vmem [shape: f32[2,2,128], index: 5, kind: output, shape index: {1}]
  %6 = xla_tuple %s4, %s5
  %s7 = sld [smem:[#allocation0]]
  $region57: #{double_conv.4} parent=0
    _
  %s9 = ssub.s32 1, %s7
  %s10 = scalar_select 0, %s9, %s7
  loop: start=0, step=1, limit=4
  $region2: #{double_conv.4} parent=0 // loop_pre_header
    _
  $region3: #{double_conv.4} parent=0 // loop_header
    %s12 = sphi 0, %s16
    %p13 = scmp.ge.s32.totalorder %s12, 4
    %s20 = sphi 0, %s20
    %s22 = sphi 0, %s20
    %s23 = sphi 0, %s22
    %s37 = sphi 0, %s23
    %s41 = sphi 0, %s41
    %s43 = sphi 0, %s41
    %s44 = sphi 0, %s43
    %s58 = sphi 0, %s44
    %s64 = sphi 0, %s66
    %s67 = sphi 0, %s64
    %s68 = sphi 0, %s67
    %s84 = sphi 0, %s68
    %s88 = sphi 0, %s88
    %s90 = sphi 0, %s88
    %s91 = sphi 0, %s90
    %s105 = sphi 0, %s91
    %s111 = sphi 0, %s113
    %s114 = sphi 0, %s111
    %s115 = sphi 0, %s114
    %s131 = sphi 0, %s115
    %s137 = sphi 0, %s139
    %s140 = sphi 0, %s137
    %s141 = sphi 0, %s140
    %s157 = sphi 0, %s141
  $region4: #{double_conv.4} parent=0 // loop_header_branch
    %15 = sbr.rel (%p13) target = $region8
  $region5: #{double_conv.4} parent=0 // loop_body
    %s17 = ssub.s32 %s12, 1
    %s18 = ssub.s32 %s12, 2
    %s19 = sadd.s32 %s12, 1
    %s21 = sadd.s32 %s20, 1
    %p24 = scmp.eq.s32.totalorder %s12, 1
    %p25 = scmp.ne.s32.totalorder %s20, %s22
    %p26 = scmp.eq.s32.totalorder %s12, 0
    %p27 = por %p25, %p26
    %p28 = scmp.ne.s32.totalorder %s20, %s22
    %p29 = scmp.eq.s32.totalorder %s17, 1
    %p30 = por %p28, %p29
    %p31 = scmp.ne.s32.totalorder %s22, %s23
    %p32 = scmp.eq.s32.totalorder %s17, 0
    %p33 = por %p31, %p32
    %p34 = scmp.ne.s32.totalorder %s22, %s23
    %p35 = scmp.eq.s32.totalorder %s18, 1
    %p36 = por %p34, %p35
    %p38 = scmp.ne.s32.totalorder %s23, %s37
    %p39 = scmp.eq.s32.totalorder %s18, 0
    %p40 = por %p38, %p39
    %s42 = sadd.s32 %s41, 1
    %p45 = scmp.eq.s32.totalorder %s12, 1
    %p46 = scmp.ne.s32.totalorder %s41, %s43
    %p47 = scmp.eq.s32.totalorder %s12, 0
    %p48 = por %p46, %p47
    %p49 = scmp.ne.s32.totalorder %s41, %s43
    %p50 = scmp.eq.s32.totalorder %s17, 1
    %p51 = por %p49, %p50
    %p52 = scmp.ne.s32.totalorder %s43, %s44
    %p53 = scmp.eq.s32.totalorder %s17, 0
    %p54 = por %p52, %p53
    %p55 = scmp.ne.s32.totalorder %s43, %s44
    %p56 = scmp.eq.s32.totalorder %s18, 1
    %p57 = por %p55, %p56
    %p59 = scmp.ne.s32.totalorder %s44, %s58
    %p60 = scmp.eq.s32.totalorder %s18, 0
    %p61 = por %p59, %p60
    %s62 = ssub.s32 %s12, %s19
    %p63 = scmp.eq.s32.totalorder %s62, 0
    %s65 = sadd.s32 %s64, 1
    %s66 = scalar_select %p63, %s64, %s65
    %p69 = pneg %p63
    %p70 = scmp.eq.s32.totalorder %s12, 1
    %p71 = por %p69, %p70
    %p72 = scmp.ne.s32.totalorder %s64, %s67
    %p73 = scmp.eq.s32.totalorder %s12, 0
    %p74 = por %p72, %p73
    %p75 = scmp.ne.s32.totalorder %s64, %s67
    %p76 = scmp.eq.s32.totalorder %s17, 1
    %p77 = por %p75, %p76
    %p78 = scmp.ne.s32.totalorder %s67, %s68
    %p79 = scmp.eq.s32.totalorder %s17, 0
    %p80 = por %p78, %p79
    %p81 = scmp.ne.s32.totalorder %s67, %s68
    %p82 = scmp.eq.s32.totalorder %s18, 1
    %p83 = por %p81, %p82
    %p85 = scmp.ne.s32.totalorder %s68, %s84
    %p86 = scmp.eq.s32.totalorder %s18, 0
    %p87 = por %p85, %p86
    %s89 = sadd.s32 %s88, 1
    %p92 = scmp.eq.s32.totalorder %s12, 1
    %p93 = scmp.ne.s32.totalorder %s88, %s90
    %p94 = scmp.eq.s32.totalorder %s12, 0
    %p95 = por %p93, %p94
    %p96 = scmp.ne.s32.totalorder %s88, %s90
    %p97 = scmp.eq.s32.totalorder %s17, 1
    %p98 = por %p96, %p97
    %p99 = scmp.ne.s32.totalorder %s90, %s91
    %p100 = scmp.eq.s32.totalorder %s17, 0
    %p101 = por %p99, %p100
    %p102 = scmp.ne.s32.totalorder %s90, %s91
    %p103 = scmp.eq.s32.totalorder %s18, 1
    %p104 = por %p102, %p103
    %p106 = scmp.ne.s32.totalorder %s91, %s105
    %p107 = scmp.eq.s32.totalorder %s18, 0
    %p108 = por %p106, %p107
    %s109 = ssub.s32 %s12, %s19
    %p110 = scmp.eq.s32.totalorder %s109, 0
    %s112 = sadd.s32 %s111, 1
    %s113 = scalar_select %p110, %s111, %s112
    %p116 = pneg %p110
    %p117 = scmp.eq.s32.totalorder %s12, 1
    %p118 = por %p116, %p117
    %p119 = scmp.ne.s32.totalorder %s111, %s114
    %p120 = scmp.eq.s32.totalorder %s12, 0
    %p121 = por %p119, %p120
    %p122 = scmp.ne.s32.totalorder %s111, %s114
    %p123 = scmp.eq.s32.totalorder %s17, 1
    %p124 = por %p122, %p123
    %p125 = scmp.ne.s32.totalorder %s114, %s115
    %p126 = scmp.eq.s32.totalorder %s17, 0
    %p127 = por %p125, %p126
    %p128 = scmp.ne.s32.totalorder %s114, %s115
    %p129 = scmp.eq.s32.totalorder %s18, 1
    %p130 = por %p128, %p129
    %p132 = scmp.ne.s32.totalorder %s115, %s131
    %p133 = scmp.eq.s32.totalorder %s18, 0
    %p134 = por %p132, %p133
    %s135 = ssub.s32 %s12, %s19
    %p136 = scmp.eq.s32.totalorder %s135, 0
    %s138 = sadd.s32 %s137, 1
    %s139 = scalar_select %p136, %s137, %s138
    %p142 = pneg %p136
    %p143 = scmp.eq.s32.totalorder %s12, 1
    %p144 = por %p142, %p143
    %p145 = scmp.ne.s32.totalorder %s137, %s140
    %p146 = scmp.eq.s32.totalorder %s12, 0
    %p147 = por %p145, %p146
    %p148 = scmp.ne.s32.totalorder %s137, %s140
    %p149 = scmp.eq.s32.totalorder %s17, 1
    %p150 = por %p148, %p149
    %p151 = scmp.ne.s32.totalorder %s140, %s141
    %p152 = scmp.eq.s32.totalorder %s17, 0
    %p153 = por %p151, %p152
    %p154 = scmp.ne.s32.totalorder %s140, %s141
    %p155 = scmp.eq.s32.totalorder %s18, 1
    %p156 = por %p154, %p155
    %p158 = scmp.ne.s32.totalorder %s141, %s157
    %p159 = scmp.eq.s32.totalorder %s18, 0
    %p160 = por %p158, %p159
    %p161 = scmp.le.s32.totalorder 1, %s12
    %p162 = scmp.lt.s32.totalorder %s12, 3
    %p163 = pnand %p161, %p162
    %p164 = pneg %p163
    // Predicated region
    $region9: #{double_conv.4} parent=5 // pred_check
      _
    $region10: #{double_conv.4} parent=5 // pred_check_branch
      %166 = sbr.rel (%p163) target = $region12
    $region11: #{double_conv.4} parent=5 // pred_region
      %s167 = ssub.s32 %s12, 1
      // Predicated region
      $region13: #{double_conv.4} parent=11 // pred_check
        %p168 = pneg %p33
      $region14: #{double_conv.4} parent=11 // pred_check_branch
        %170 = sbr.rel (%p168) target = $region16
      $region15: #{double_conv.4} parent=11 // pred_region
        _
      $region16: #{double_conv.4} parent=11 // pred_fallthru
        _
      // Predicated region
      $region17: #{double_conv.4} parent=11 // pred_check
        %p171 = pneg %p54
      $region18: #{double_conv.4} parent=11 // pred_check_branch
        %173 = sbr.rel (%p171) target = $region20
      $region19: #{double_conv.4} parent=11 // pred_region
        _
      $region20: #{double_conv.4} parent=11 // pred_fallthru
        _
      // Predicated region
      $region21: #{double_conv.4} parent=11 // pred_check
        %p174 = pneg %p101
      $region22: #{double_conv.4} parent=11 // pred_check_branch
        %176 = sbr.rel (%p174) target = $region24
      $region23: #{double_conv.4} parent=11 // pred_region
        _
      $region24: #{double_conv.4} parent=11 // pred_fallthru
        _
    $region12: #{double_conv.4} parent=5 // pred_fallthru
      _
    %p177 = scmp.lt.s32.totalorder %s12, 2
    // Predicated region
    $region25: #{double_conv.4} parent=5 // pred_check
      %p178 = pneg %p177
    $region26: #{double_conv.4} parent=5 // pred_check_branch
      %180 = sbr.rel (%p178) target = $region28
    $region27: #{double_conv.4} parent=5 // pred_region
      // Predicated region
      $region29: #{double_conv.4} parent=27 // pred_check
        %p181 = pneg %p74
      $region30: #{double_conv.4} parent=27 // pred_check_branch
        %183 = sbr.rel (%p181) target = $region32
      $region31: #{double_conv.4} parent=27 // pred_region
        %p184 = scmp.lt.s32.totalorder %s12, 1
        %s185 = scalar_select %p184, %s12, 1
        %s186 = smul.addr %s185, 32
        %s187 = smul.addr %s186, 4
        %s188 = scalar_lea.vmem %s2, %s187
      $region32: #{double_conv.4} parent=27 // pred_fallthru
        _
    $region28: #{double_conv.4} parent=5 // pred_fallthru
      _
    %p189 = scmp.le.s32.totalorder 1, %s12
    %p190 = scmp.lt.s32.totalorder %s12, 3
    %p191 = pnand %p189, %p190
    %p192 = pneg %p191
    // Predicated region
    $region33: #{double_conv.4} parent=5 // pred_check
      _
    $region34: #{double_conv.4} parent=5 // pred_check_branch
      %194 = sbr.rel (%p191) target = $region36
    $region35: #{double_conv.4} parent=5 // pred_region
      %s195 = ssub.s32 %s12, 1
      %p196 = pneg %p33
      %p197 = pneg %p30
      %p198 = pneg %p54
      %p199 = pneg %p51
      %p200 = scmp.lt.s32.totalorder %s17, 1
      %s201 = scalar_select %p200, %s17, 1
      %s202 = smul.addr %s201, 32
      %s203 = smul.addr %s202, 4
      %s204 = scalar_lea.vmem %s2, %s203
      %p205 = pneg %p80
      %p206 = pneg %p77
      %p207 = pneg %p101
      %p208 = pneg %p98
      %p209 = pneg %p127
      %p210 = pneg %p124
      %p211 = scmp.lt.s32.totalorder %s17, 1
      %s212 = scalar_select %p211, %s17, 1
      %s213 = smul.addr %s212, 32
      %s214 = smul.addr %s213, 4
      %s215 = scalar_lea.vmem %s4, %s214
      %p216 = pneg %p153
      %p217 = pneg %p150
      %p218 = scmp.lt.s32.totalorder %s17, 1
      %s219 = scalar_select %p218, %s17, 1
      %s220 = smul.addr %s219, 2
      %s221 = scalar_lea.vmem %s5, %s220
      %p222 = scmp.lt.s32.totalorder %s17, 1
      %s223 = scalar_select %p222, %s17, 1
      %s224 = smul.addr %s223, 32
      %s225 = smul.addr %s224, 4
      %s226 = scalar_lea.vmem %s2, %s225
      %p227 = scmp.lt.s32.totalorder %s17, 1
      %s228 = scalar_select %p227, %s17, 1
      %s229 = smul.addr %s228, 32
      %s230 = smul.addr %s229, 4
      %s231 = scalar_lea.vmem %s4, %s230
      %p232 = scmp.lt.s32.totalorder %s17, 1
      %s233 = scalar_select %p232, %s17, 1
      %s234 = smul.addr %s233, 2
      %s235 = scalar_lea.vmem %s5, %s234
      %v237 = vld [vmem:[%s226] sm:$0xf]
      %v238 = vld [vmem:[%s226 + $0x4] sm:$0xf]
      %v239 = vld [vmem:[%s226 + $0x8] sm:$0xf]
      %v240 = vld [vmem:[%s226 + $0xc] sm:$0xf]
      %v241 = vld [vmem:[%s226 + $0x10] sm:$0xf]
      %v242 = vld [vmem:[%s226 + $0x14] sm:$0xf]
      %v243 = vld [vmem:[%s226 + $0x18] sm:$0xf]
      %v244 = vld [vmem:[%s226 + $0x1c] sm:$0xf]
      %v245 = vld [vmem:[%s226 + $0x20] sm:$0xf]
      %v246 = vld [vmem:[%s226 + $0x24] sm:$0xf]
      %v247 = vld [vmem:[%s226 + $0x28] sm:$0xf]
      %v248 = vld [vmem:[%s226 + $0x2c] sm:$0xf]
      %v249 = vld [vmem:[%s226 + $0x30] sm:$0xf]
      %v250 = vld [vmem:[%s226 + $0x34] sm:$0xf]
      %v251 = vld [vmem:[%s226 + $0x38] sm:$0xf]
      %v252 = vld [vmem:[%s226 + $0x3c] sm:$0xf]
      %v253 = vld [vmem:[%s226 + $0x40] sm:$0xf]
      %v254 = vld [vmem:[%s226 + $0x44] sm:$0xf]
      %v255 = vld [vmem:[%s226 + $0x48] sm:$0xf]
      %v256 = vld [vmem:[%s226 + $0x4c] sm:$0xf]
      %v257 = vld [vmem:[%s226 + $0x50] sm:$0xf]
      %v258 = vld [vmem:[%s226 + $0x54] sm:$0xf]
      %v259 = vld [vmem:[%s226 + $0x58] sm:$0xf]
      %v260 = vld [vmem:[%s226 + $0x5c] sm:$0xf]
      %v261 = vld [vmem:[%s226 + $0x60] sm:$0xf]
      %v262 = vld [vmem:[%s226 + $0x64] sm:$0xf]
      %v263 = vld [vmem:[%s226 + $0x68] sm:$0xf]
      %v264 = vld [vmem:[%s226 + $0x6c] sm:$0xf]
      %v265 = vld [vmem:[%s226 + $0x70] sm:$0xf]
      %v266 = vld [vmem:[%s226 + $0x74] sm:$0xf]
      %v267 = vld [vmem:[%s226 + $0x78] sm:$0xf]
      %v268 = vld [vmem:[%s226 + $0x7c] sm:$0xf]
      %v269 = vunpack.c.l.bf16 %v237
      %v270 = vunpack.c.l.bf16 %v238
      %v271 = vunpack.c.l.bf16 %v239
      %v272 = vunpack.c.l.bf16 %v240
      %v273 = vunpack.c.l.bf16 %v241
      %v274 = vunpack.c.l.bf16 %v242
      %v275 = vunpack.c.l.bf16 %v243
      %v276 = vunpack.c.l.bf16 %v244
      %v277 = vunpack.c.l.bf16 %v245
      %v278 = vunpack.c.l.bf16 %v246
      %v279 = vunpack.c.l.bf16 %v247
      %v280 = vunpack.c.l.bf16 %v248
      %v281 = vunpack.c.l.bf16 %v249
      %v282 = vunpack.c.l.bf16 %v250
      %v283 = vunpack.c.l.bf16 %v251
      %v284 = vunpack.c.l.bf16 %v252
      %v285 = vunpack.c.l.bf16 %v253
      %v286 = vunpack.c.l.bf16 %v254
      %v287 = vunpack.c.l.bf16 %v255
      %v288 = vunpack.c.l.bf16 %v256
      %v289 = vunpack.c.l.bf16 %v257
      %v290 = vunpack.c.l.bf16 %v258
      %v291 = vunpack.c.l.bf16 %v259
      %v292 = vunpack.c.l.bf16 %v260
      %v293 = vunpack.c.l.bf16 %v261
      %v294 = vunpack.c.l.bf16 %v262
      %v295 = vunpack.c.l.bf16 %v263
      %v296 = vunpack.c.l.bf16 %v264
      %v297 = vunpack.c.l.bf16 %v265
      %v298 = vunpack.c.l.bf16 %v266
      %v299 = vunpack.c.l.bf16 %v267
      %v300 = vunpack.c.l.bf16 %v268
      %v301 = vld [vmem:[%s0] sm:$0x1]
      %v302 = vld [vmem:[%s1] sm:$0x1]
      %v304 = vlaneseq
      %v305 = vshrl.u32 %v304, 7
      %v306 = vsub.s32 0, %v305
      %v307 = vrot.slane %v301, %v306
      %v309 = vmul.f32 %v269, %v307
      %v310 = vmul.f32 %v270, %v307
      %v311 = vmul.f32 %v271, %v307
      %v312 = vmul.f32 %v272, %v307
      %v313 = vmul.f32 %v273, %v307
      %v314 = vmul.f32 %v274, %v307
      %v315 = vmul.f32 %v275, %v307
      %v316 = vmul.f32 %v276, %v307
      %v317 = vmul.f32 %v277, %v307
      %v318 = vmul.f32 %v278, %v307
      %v319 = vmul.f32 %v279, %v307
      %v320 = vmul.f32 %v280, %v307
      %v321 = vmul.f32 %v281, %v307
      %v322 = vmul.f32 %v282, %v307
      %v323 = vmul.f32 %v283, %v307
      %v324 = vmul.f32 %v284, %v307
      %v325 = vmul.f32 %v285, %v307
      %v326 = vmul.f32 %v286, %v307
      %v327 = vmul.f32 %v287, %v307
      %v328 = vmul.f32 %v288, %v307
      %v329 = vmul.f32 %v289, %v307
      %v330 = vmul.f32 %v290, %v307
      %v331 = vmul.f32 %v291, %v307
      %v332 = vmul.f32 %v292, %v307
      %v333 = vmul.f32 %v293, %v307
      %v334 = vmul.f32 %v294, %v307
      %v335 = vmul.f32 %v295, %v307
      %v336 = vmul.f32 %v296, %v307
      %v337 = vmul.f32 %v297, %v307
      %v338 = vmul.f32 %v298, %v307
      %v339 = vmul.f32 %v299, %v307
      %v340 = vmul.f32 %v300, %v307
      %v342 = vlaneseq
      %v343 = vshrl.u32 %v342, 7
      %v344 = vsub.s32 0, %v343
      %v345 = vrot.slane %v302, %v344
      %v347 = vadd.f32 %v309, %v345
      %v348 = vadd.f32 %v310, %v345
      %v349 = vadd.f32 %v311, %v345
      %v350 = vadd.f32 %v312, %v345
      %v351 = vadd.f32 %v313, %v345
      %v352 = vadd.f32 %v314, %v345
      %v353 = vadd.f32 %v315, %v345
      %v354 = vadd.f32 %v316, %v345
      %v355 = vadd.f32 %v317, %v345
      %v356 = vadd.f32 %v318, %v345
      %v357 = vadd.f32 %v319, %v345
      %v358 = vadd.f32 %v320, %v345
      %v359 = vadd.f32 %v321, %v345
      %v360 = vadd.f32 %v322, %v345
      %v361 = vadd.f32 %v323, %v345
      %v362 = vadd.f32 %v324, %v345
      %v363 = vadd.f32 %v325, %v345
      %v364 = vadd.f32 %v326, %v345
      %v365 = vadd.f32 %v327, %v345
      %v366 = vadd.f32 %v328, %v345
      %v367 = vadd.f32 %v329, %v345
      %v368 = vadd.f32 %v330, %v345
      %v369 = vadd.f32 %v331, %v345
      %v370 = vadd.f32 %v332, %v345
      %v371 = vadd.f32 %v333, %v345
      %v372 = vadd.f32 %v334, %v345
      %v373 = vadd.f32 %v335, %v345
      %v374 = vadd.f32 %v336, %v345
      %v375 = vadd.f32 %v337, %v345
      %v376 = vadd.f32 %v338, %v345
      %v377 = vadd.f32 %v339, %v345
      %v378 = vadd.f32 %v340, %v345
      %v379 = vmax.f32 %v347, 0.0
      %v380 = vmax.f32 %v348, 0.0
      %v381 = vmax.f32 %v349, 0.0
      %v382 = vmax.f32 %v350, 0.0
      %v383 = vmax.f32 %v351, 0.0
      %v384 = vmax.f32 %v352, 0.0
      %v385 = vmax.f32 %v353, 0.0
      %v386 = vmax.f32 %v354, 0.0
      %v387 = vmax.f32 %v355, 0.0
      %v388 = vmax.f32 %v356, 0.0
      %v389 = vmax.f32 %v357, 0.0
      %v390 = vmax.f32 %v358, 0.0
      %v391 = vmax.f32 %v359, 0.0
      %v392 = vmax.f32 %v360, 0.0
      %v393 = vmax.f32 %v361, 0.0
      %v394 = vmax.f32 %v362, 0.0
      %v395 = vmax.f32 %v363, 0.0
      %v396 = vmax.f32 %v364, 0.0
      %v397 = vmax.f32 %v365, 0.0
      %v398 = vmax.f32 %v366, 0.0
      %v399 = vmax.f32 %v367, 0.0
      %v400 = vmax.f32 %v368, 0.0
      %v401 = vmax.f32 %v369, 0.0
      %v402 = vmax.f32 %v370, 0.0
      %v403 = vmax.f32 %v371, 0.0
      %v404 = vmax.f32 %v372, 0.0
      %v405 = vmax.f32 %v373, 0.0
      %v406 = vmax.f32 %v374, 0.0
      %v407 = vmax.f32 %v375, 0.0
      %v408 = vmax.f32 %v376, 0.0
      %v409 = vmax.f32 %v377, 0.0
      %v410 = vmax.f32 %v378, 0.0
      %v411 = vpack.c.bf16 %v380, %v379
      %v412 = vpack.c.bf16 %v382, %v381
      %v413 = vpack.c.bf16 %v384, %v383
      %v414 = vpack.c.bf16 %v386, %v385
      %v415 = vpack.c.bf16 %v388, %v387
      %v416 = vpack.c.bf16 %v390, %v389
      %v417 = vpack.c.bf16 %v392, %v391
      %v418 = vpack.c.bf16 %v394, %v393
      %v419 = vpack.c.bf16 %v396, %v395
      %v420 = vpack.c.bf16 %v398, %v397
      %v421 = vpack.c.bf16 %v400, %v399
      %v422 = vpack.c.bf16 %v402, %v401
      %v423 = vpack.c.bf16 %v404, %v403
      %v424 = vpack.c.bf16 %v406, %v405
      %v425 = vpack.c.bf16 %v408, %v407
      %v426 = vpack.c.bf16 %v410, %v409
      %427 = vst [vmem:[#allocation2] sm:$0xf] 0
      %428 = vst [vmem:[#allocation2 + $0x4] sm:$0xf] 0
      %429 = vst [vmem:[#allocation2 + $0x8] sm:$0x1] 0
      %s430 = scalar_lea.vmem [#allocation2], 204
      %431 = vst [vmem:[%s430] sm:$0xf] 0
      %432 = vst [vmem:[%s430 + $0x4] sm:$0xf] 0
      %433 = vst [vmem:[%s430 + $0x8] sm:$0x1] 0
      %s434 = scalar_lea.vmem [#allocation2], 12
      %vm435 = vcmask 1040384
      %vm436 = vsmask.f32 256
      %vm437 = vmand %vm435, %vm436
      %v438 = vld [vmem:[%s434] sm:$0x1]
      %v439 = vsel %vm437, 0, %v438
      %440 = vst [vmem:[%s434] sm:$0x1] %v439
      %v441 = vld [vmem:[%s434 + $0xc] sm:$0x1]
      %v442 = vsel %vm437, 0, %v441
      %443 = vst [vmem:[%s434 + $0xc] sm:$0x1] %v442
      %v444 = vld [vmem:[%s434 + $0x18] sm:$0x1]
      %v445 = vsel %vm437, 0, %v444
      %446 = vst [vmem:[%s434 + $0x18] sm:$0x1] %v445
      %v447 = vld [vmem:[%s434 + $0x24] sm:$0x1]
      %v448 = vsel %vm437, 0, %v447
      %449 = vst [vmem:[%s434 + $0x24] sm:$0x1] %v448
      %v450 = vld [vmem:[%s434 + $0x30] sm:$0x1]
      %v451 = vsel %vm437, 0, %v450
      %452 = vst [vmem:[%s434 + $0x30] sm:$0x1] %v451
      %v453 = vld [vmem:[%s434 + $0x3c] sm:$0x1]
      %v454 = vsel %vm437, 0, %v453
      %455 = vst [vmem:[%s434 + $0x3c] sm:$0x1] %v454
      %v456 = vld [vmem:[%s434 + $0x48] sm:$0x1]
      %v457 = vsel %vm437, 0, %v456
      %458 = vst [vmem:[%s434 + $0x48] sm:$0x1] %v457
      %v459 = vld [vmem:[%s434 + $0x54] sm:$0x1]
      %v460 = vsel %vm437, 0, %v459
      %461 = vst [vmem:[%s434 + $0x54] sm:$0x1] %v460
      %v462 = vld [vmem:[%s434 + $0x60] sm:$0x1]
      %v463 = vsel %vm437, 0, %v462
      %464 = vst [vmem:[%s434 + $0x60] sm:$0x1] %v463
      %v465 = vld [vmem:[%s434 + $0x6c] sm:$0x1]
      %v466 = vsel %vm437, 0, %v465
      %467 = vst [vmem:[%s434 + $0x6c] sm:$0x1] %v466
      %v468 = vld [vmem:[%s434 + $0x78] sm:$0x1]
      %v469 = vsel %vm437, 0, %v468
      %470 = vst [vmem:[%s434 + $0x78] sm:$0x1] %v469
      %v471 = vld [vmem:[%s434 + $0x84] sm:$0x1]
      %v472 = vsel %vm437, 0, %v471
      %473 = vst [vmem:[%s434 + $0x84] sm:$0x1] %v472
      %v474 = vld [vmem:[%s434 + $0x90] sm:$0x1]
      %v475 = vsel %vm437, 0, %v474
      %476 = vst [vmem:[%s434 + $0x90] sm:$0x1] %v475
      %v477 = vld [vmem:[%s434 + $0x9c] sm:$0x1]
      %v478 = vsel %vm437, 0, %v477
      %479 = vst [vmem:[%s434 + $0x9c] sm:$0x1] %v478
      %v480 = vld [vmem:[%s434 + $0xa8] sm:$0x1]
      %v481 = vsel %vm437, 0, %v480
      %482 = vst [vmem:[%s434 + $0xa8] sm:$0x1] %v481
      %v483 = vld [vmem:[%s434 + $0xb4] sm:$0x1]
      %v484 = vsel %vm437, 0, %v483
      %485 = vst [vmem:[%s434 + $0xb4] sm:$0x1] %v484
      %vm486 = vsmask.f32 7938
      %vm487 = vmand %vm435, %vm486
      %v488 = vld [vmem:[%s434 + $0x8] sm:$0x1]
      %v489 = vsel %vm487, 0, %v488
      %490 = vst [vmem:[%s434 + $0x8] sm:$0x1] %v489
      %v491 = vld [vmem:[%s434 + $0x14] sm:$0x1]
      %v492 = vsel %vm487, 0, %v491
      %493 = vst [vmem:[%s434 + $0x14] sm:$0x1] %v492
      %v494 = vld [vmem:[%s434 + $0x20] sm:$0x1]
      %v495 = vsel %vm487, 0, %v494
      %496 = vst [vmem:[%s434 + $0x20] sm:$0x1] %v495
      %v497 = vld [vmem:[%s434 + $0x2c] sm:$0x1]
      %v498 = vsel %vm487, 0, %v497
      %499 = vst [vmem:[%s434 + $0x2c] sm:$0x1] %v498
      %v500 = vld [vmem:[%s434 + $0x38] sm:$0x1]
      %v501 = vsel %vm487, 0, %v500
      %502 = vst [vmem:[%s434 + $0x38] sm:$0x1] %v501
      %v503 = vld [vmem:[%s434 + $0x44] sm:$0x1]
      %v504 = vsel %vm487, 0, %v503
      %505 = vst [vmem:[%s434 + $0x44] sm:$0x1] %v504
      %v506 = vld [vmem:[%s434 + $0x50] sm:$0x1]
      %v507 = vsel %vm487, 0, %v506
      %508 = vst [vmem:[%s434 + $0x50] sm:$0x1] %v507
      %v509 = vld [vmem:[%s434 + $0x5c] sm:$0x1]
      %v510 = vsel %vm487, 0, %v509
      %511 = vst [vmem:[%s434 + $0x5c] sm:$0x1] %v510
      %v512 = vld [vmem:[%s434 + $0x68] sm:$0x1]
      %v513 = vsel %vm487, 0, %v512
      %514 = vst [vmem:[%s434 + $0x68] sm:$0x1] %v513
      %v515 = vld [vmem:[%s434 + $0x74] sm:$0x1]
      %v516 = vsel %vm487, 0, %v515
      %517 = vst [vmem:[%s434 + $0x74] sm:$0x1] %v516
      %v518 = vld [vmem:[%s434 + $0x80] sm:$0x1]
      %v519 = vsel %vm487, 0, %v518
      %520 = vst [vmem:[%s434 + $0x80] sm:$0x1] %v519
      %v521 = vld [vmem:[%s434 + $0x8c] sm:$0x1]
      %v522 = vsel %vm487, 0, %v521
      %523 = vst [vmem:[%s434 + $0x8c] sm:$0x1] %v522
      %v524 = vld [vmem:[%s434 + $0x98] sm:$0x1]
      %v525 = vsel %vm487, 0, %v524
      %526 = vst [vmem:[%s434 + $0x98] sm:$0x1] %v525
      %v527 = vld [vmem:[%s434 + $0xa4] sm:$0x1]
      %v528 = vsel %vm487, 0, %v527
      %529 = vst [vmem:[%s434 + $0xa4] sm:$0x1] %v528
      %v530 = vld [vmem:[%s434 + $0xb0] sm:$0x1]
      %v531 = vsel %vm487, 0, %v530
      %532 = vst [vmem:[%s434 + $0xb0] sm:$0x1] %v531
      %v533 = vld [vmem:[%s434 + $0xbc] sm:$0x1]
      %v534 = vsel %vm487, 0, %v533
      %535 = vst [vmem:[%s434 + $0xbc] sm:$0x1] %v534
      %v552 = vunpack.c.l.b16 %v411
      %v553 = vunpack.c.h.b16 %v411
      %v554 = vunpack.c.l.b16 %v412
      %v555 = vunpack.c.h.b16 %v412
      %v556 = vunpack.c.l.b16 %v413
      %v557 = vunpack.c.h.b16 %v413
      %v558 = vunpack.c.l.b16 %v414
      %v559 = vunpack.c.h.b16 %v414
      %v560 = vunpack.c.l.b16 %v415
      %v561 = vunpack.c.h.b16 %v415
      %v562 = vunpack.c.l.b16 %v416
      %v563 = vunpack.c.h.b16 %v416
      %v564 = vunpack.c.l.b16 %v417
      %v565 = vunpack.c.h.b16 %v417
      %v566 = vunpack.c.l.b16 %v418
      %v567 = vunpack.c.h.b16 %v418
      %v568 = vunpack.c.l.b16 %v419
      %v569 = vunpack.c.h.b16 %v419
      %v570 = vunpack.c.l.b16 %v420
      %v571 = vunpack.c.h.b16 %v420
      %v572 = vunpack.c.l.b16 %v421
      %v573 = vunpack.c.h.b16 %v421
      %v574 = vunpack.c.l.b16 %v422
      %v575 = vunpack.c.h.b16 %v422
      %v576 = vunpack.c.l.b16 %v423
      %v577 = vunpack.c.h.b16 %v423
      %v578 = vunpack.c.l.b16 %v424
      %v579 = vunpack.c.h.b16 %v424
      %v580 = vunpack.c.l.b16 %v425
      %v581 = vunpack.c.h.b16 %v425
      %v582 = vunpack.c.l.b16 %v426
      %v583 = vunpack.c.h.b16 %v426
      %v584 = vpack.c.b16 %v552, %v552
      %v585 = vpack.c.b16 %v553, %v553
      %v586 = vpack.c.b16 %v554, %v554
      %v587 = vpack.c.b16 %v555, %v555
      %v588 = vpack.c.b16 %v556, %v556
      %v589 = vpack.c.b16 %v557, %v557
      %v590 = vpack.c.b16 %v558, %v558
      %v591 = vpack.c.b16 %v559, %v559
      %v592 = vpack.c.b16 %v560, %v560
      %v593 = vpack.c.b16 %v561, %v561
      %v594 = vpack.c.b16 %v562, %v562
      %v595 = vpack.c.b16 %v563, %v563
      %v596 = vpack.c.b16 %v564, %v564
      %v597 = vpack.c.b16 %v565, %v565
      %v598 = vpack.c.b16 %v566, %v566
      %v599 = vpack.c.b16 %v567, %v567
      %v600 = vpack.c.b16 %v568, %v568
      %v601 = vpack.c.b16 %v569, %v569
      %v602 = vpack.c.b16 %v570, %v570
      %v603 = vpack.c.b16 %v571, %v571
      %v604 = vpack.c.b16 %v572, %v572
      %v605 = vpack.c.b16 %v573, %v573
      %v606 = vpack.c.b16 %v574, %v574
      %v607 = vpack.c.b16 %v575, %v575
      %v608 = vpack.c.b16 %v576, %v576
      %v609 = vpack.c.b16 %v577, %v577
      %v610 = vpack.c.b16 %v578, %v578
      %v611 = vpack.c.b16 %v579, %v579
      %v612 = vpack.c.b16 %v580, %v580
      %v613 = vpack.c.b16 %v581, %v581
      %v614 = vpack.c.b16 %v582, %v582
      %v615 = vpack.c.b16 %v583, %v583
      %vm616 = vsmask.f32 4368
      %vm617 = vmor %vm436, %vm616
      %v619 = vshrl.u32 %v584, 16
      %v621 = vrot.slane %v619, 7
      %v622 = vshll.u32 %v584, 16
      %v624 = vor.u32 %v621, %v622
      %v625 = vrot.slane %v621, 4
      %v627 = vshrl.u32 %v585, 16
      %v629 = vrot.slane %v627, 7
      %v630 = vshll.u32 %v585, 16
      %v632 = vor.u32 %v629, %v630
      %v633 = vsel %vm617, %v625, %v632
      %v634 = vrot.slane %v629, 4
      %v636 = vshrl.u32 %v586, 16
      %v638 = vrot.slane %v636, 7
      %v639 = vshll.u32 %v586, 16
      %v641 = vor.u32 %v638, %v639
      %v642 = vrot.slane %v638, 4
      %v644 = vshrl.u32 %v587, 16
      %v646 = vrot.slane %v644, 7
      %v647 = vshll.u32 %v587, 16
      %v649 = vor.u32 %v646, %v647
      %v650 = vsel %vm617, %v642, %v649
      %v651 = vrot.slane %v646, 4
      %v653 = vshrl.u32 %v588, 16
      %v655 = vrot.slane %v653, 7
      %v656 = vshll.u32 %v588, 16
      %v658 = vor.u32 %v655, %v656
      %v659 = vrot.slane %v655, 4
      %v661 = vshrl.u32 %v589, 16
      %v663 = vrot.slane %v661, 7
      %v664 = vshll.u32 %v589, 16
      %v666 = vor.u32 %v663, %v664
      %v667 = vsel %vm617, %v659, %v666
      %v668 = vrot.slane %v663, 4
      %v670 = vshrl.u32 %v590, 16
      %v672 = vrot.slane %v670, 7
      %v673 = vshll.u32 %v590, 16
      %v675 = vor.u32 %v672, %v673
      %v676 = vrot.slane %v672, 4
      %v678 = vshrl.u32 %v591, 16
      %v680 = vrot.slane %v678, 7
      %v681 = vshll.u32 %v591, 16
      %v683 = vor.u32 %v680, %v681
      %v684 = vsel %vm617, %v676, %v683
      %v685 = vrot.slane %v680, 4
      %v687 = vshrl.u32 %v592, 16
      %v689 = vrot.slane %v687, 7
      %v690 = vshll.u32 %v592, 16
      %v692 = vor.u32 %v689, %v690
      %v693 = vrot.slane %v689, 4
      %v695 = vshrl.u32 %v593, 16
      %v697 = vrot.slane %v695, 7
      %v698 = vshll.u32 %v593, 16
      %v700 = vor.u32 %v697, %v698
      %v701 = vsel %vm617, %v693, %v700
      %v702 = vrot.slane %v697, 4
      %v704 = vshrl.u32 %v594, 16
      %v706 = vrot.slane %v704, 7
      %v707 = vshll.u32 %v594, 16
      %v709 = vor.u32 %v706, %v707
      %v710 = vrot.slane %v706, 4
      %v712 = vshrl.u32 %v595, 16
      %v714 = vrot.slane %v712, 7
      %v715 = vshll.u32 %v595, 16
      %v717 = vor.u32 %v714, %v715
      %v718 = vsel %vm617, %v710, %v717
      %v719 = vrot.slane %v714, 4
      %v721 = vshrl.u32 %v596, 16
      %v723 = vrot.slane %v721, 7
      %v724 = vshll.u32 %v596, 16
      %v726 = vor.u32 %v723, %v724
      %v727 = vrot.slane %v723, 4
      %v729 = vshrl.u32 %v597, 16
      %v731 = vrot.slane %v729, 7
      %v732 = vshll.u32 %v597, 16
      %v734 = vor.u32 %v731, %v732
      %v735 = vsel %vm617, %v727, %v734
      %v736 = vrot.slane %v731, 4
      %v738 = vshrl.u32 %v598, 16
      %v740 = vrot.slane %v738, 7
      %v741 = vshll.u32 %v598, 16
      %v743 = vor.u32 %v740, %v741
      %v744 = vrot.slane %v740, 4
      %v746 = vshrl.u32 %v599, 16
      %v748 = vrot.slane %v746, 7
      %v749 = vshll.u32 %v599, 16
      %v751 = vor.u32 %v748, %v749
      %v752 = vsel %vm617, %v744, %v751
      %v753 = vrot.slane %v748, 4
      %v755 = vshrl.u32 %v600, 16
      %v757 = vrot.slane %v755, 7
      %v758 = vshll.u32 %v600, 16
      %v760 = vor.u32 %v757, %v758
      %v761 = vrot.slane %v757, 4
      %v763 = vshrl.u32 %v601, 16
      %v765 = vrot.slane %v763, 7
      %v766 = vshll.u32 %v601, 16
      %v768 = vor.u32 %v765, %v766
      %v769 = vsel %vm617, %v761, %v768
      %v770 = vrot.slane %v765, 4
      %v772 = vshrl.u32 %v602, 16
      %v774 = vrot.slane %v772, 7
      %v775 = vshll.u32 %v602, 16
      %v777 = vor.u32 %v774, %v775
      %v778 = vrot.slane %v774, 4
      %v780 = vshrl.u32 %v603, 16
      %v782 = vrot.slane %v780, 7
      %v783 = vshll.u32 %v603, 16
      %v785 = vor.u32 %v782, %v783
      %v786 = vsel %vm617, %v778, %v785
      %v787 = vrot.slane %v782, 4
      %v789 = vshrl.u32 %v604, 16
      %v791 = vrot.slane %v789, 7
      %v792 = vshll.u32 %v604, 16
      %v794 = vor.u32 %v791, %v792
      %v795 = vrot.slane %v791, 4
      %v797 = vshrl.u32 %v605, 16
      %v799 = vrot.slane %v797, 7
      %v800 = vshll.u32 %v605, 16
      %v802 = vor.u32 %v799, %v800
      %v803 = vsel %vm617, %v795, %v802
      %v804 = vrot.slane %v799, 4
      %v806 = vshrl.u32 %v606, 16
      %v808 = vrot.slane %v806, 7
      %v809 = vshll.u32 %v606, 16
      %v811 = vor.u32 %v808, %v809
      %v812 = vrot.slane %v808, 4
      %v814 = vshrl.u32 %v607, 16
      %v816 = vrot.slane %v814, 7
      %v817 = vshll.u32 %v607, 16
      %v819 = vor.u32 %v816, %v817
      %v820 = vsel %vm617, %v812, %v819
      %v821 = vrot.slane %v816, 4
      %v823 = vshrl.u32 %v608, 16
      %v825 = vrot.slane %v823, 7
      %v826 = vshll.u32 %v608, 16
      %v828 = vor.u32 %v825, %v826
      %v829 = vrot.slane %v825, 4
      %v831 = vshrl.u32 %v609, 16
      %v833 = vrot.slane %v831, 7
      %v834 = vshll.u32 %v609, 16
      %v836 = vor.u32 %v833, %v834
      %v837 = vsel %vm617, %v829, %v836
      %v838 = vrot.slane %v833, 4
      %v840 = vshrl.u32 %v610, 16
      %v842 = vrot.slane %v840, 7
      %v843 = vshll.u32 %v610, 16
      %v845 = vor.u32 %v842, %v843
      %v846 = vrot.slane %v842, 4
      %v848 = vshrl.u32 %v611, 16
      %v850 = vrot.slane %v848, 7
      %v851 = vshll.u32 %v611, 16
      %v853 = vor.u32 %v850, %v851
      %v854 = vsel %vm617, %v846, %v853
      %v855 = vrot.slane %v850, 4
      %v857 = vshrl.u32 %v612, 16
      %v859 = vrot.slane %v857, 7
      %v860 = vshll.u32 %v612, 16
      %v862 = vor.u32 %v859, %v860
      %v863 = vrot.slane %v859, 4
      %v865 = vshrl.u32 %v613, 16
      %v867 = vrot.slane %v865, 7
      %v868 = vshll.u32 %v613, 16
      %v870 = vor.u32 %v867, %v868
      %v871 = vsel %vm617, %v863, %v870
      %v872 = vrot.slane %v867, 4
      %v874 = vshrl.u32 %v614, 16
      %v876 = vrot.slane %v874, 7
      %v877 = vshll.u32 %v614, 16
      %v879 = vor.u32 %v876, %v877
      %v880 = vrot.slane %v876, 4
      %v882 = vshrl.u32 %v615, 16
      %v884 = vrot.slane %v882, 7
      %v885 = vshll.u32 %v615, 16
      %v887 = vor.u32 %v884, %v885
      %v888 = vsel %vm617, %v880, %v887
      %v889 = vrot.slane %v884, 4
      %vm938 = vcmask 1043456
      %vm939 = vmand %vm938, %vm486
      %v940 = vld [vmem:[%s434] sm:$0xf]
      %v941 = vsel %vm939, %v624, %v940
      %942 = vst [vmem:[%s434] sm:$0xf] %v941
      %943 = vst [vmem:[%s434 + $0x4] sm:$0xf] %v633
      %v944 = vld [vmem:[%s434 + $0x8] sm:$0x1]
      %v945 = vsel %vm437, %v634, %v944
      %946 = vst [vmem:[%s434 + $0x8] sm:$0x1] %v945
      %v947 = vld [vmem:[%s434 + $0xc] sm:$0xf]
      %v948 = vsel %vm939, %v641, %v947
      %949 = vst [vmem:[%s434 + $0xc] sm:$0xf] %v948
      %950 = vst [vmem:[%s434 + $0x10] sm:$0xf] %v650
      %v951 = vld [vmem:[%s434 + $0x14] sm:$0x1]
      %v952 = vsel %vm437, %v651, %v951
      %953 = vst [vmem:[%s434 + $0x14] sm:$0x1] %v952
      %v954 = vld [vmem:[%s434 + $0x18] sm:$0xf]
      %v955 = vsel %vm939, %v658, %v954
      %956 = vst [vmem:[%s434 + $0x18] sm:$0xf] %v955
      %957 = vst [vmem:[%s434 + $0x1c] sm:$0xf] %v667
      %v958 = vld [vmem:[%s434 + $0x20] sm:$0x1]
      %v959 = vsel %vm437, %v668, %v958
      %960 = vst [vmem:[%s434 + $0x20] sm:$0x1] %v959
      %v961 = vld [vmem:[%s434 + $0x24] sm:$0xf]
      %v962 = vsel %vm939, %v675, %v961
      %963 = vst [vmem:[%s434 + $0x24] sm:$0xf] %v962
      %964 = vst [vmem:[%s434 + $0x28] sm:$0xf] %v684
      %v965 = vld [vmem:[%s434 + $0x2c] sm:$0x1]
      %v966 = vsel %vm437, %v685, %v965
      %967 = vst [vmem:[%s434 + $0x2c] sm:$0x1] %v966
      %v968 = vld [vmem:[%s434 + $0x30] sm:$0xf]
      %v969 = vsel %vm939, %v692, %v968
      %970 = vst [vmem:[%s434 + $0x30] sm:$0xf] %v969
      %971 = vst [vmem:[%s434 + $0x34] sm:$0xf] %v701
      %v972 = vld [vmem:[%s434 + $0x38] sm:$0x1]
      %v973 = vsel %vm437, %v702, %v972
      %974 = vst [vmem:[%s434 + $0x38] sm:$0x1] %v973
      %v975 = vld [vmem:[%s434 + $0x3c] sm:$0xf]
      %v976 = vsel %vm939, %v709, %v975
      %977 = vst [vmem:[%s434 + $0x3c] sm:$0xf] %v976
      %978 = vst [vmem:[%s434 + $0x40] sm:$0xf] %v718
      %v979 = vld [vmem:[%s434 + $0x44] sm:$0x1]
      %v980 = vsel %vm437, %v719, %v979
      %981 = vst [vmem:[%s434 + $0x44] sm:$0x1] %v980
      %v982 = vld [vmem:[%s434 + $0x48] sm:$0xf]
      %v983 = vsel %vm939, %v726, %v982
      %984 = vst [vmem:[%s434 + $0x48] sm:$0xf] %v983
      %985 = vst [vmem:[%s434 + $0x4c] sm:$0xf] %v735
      %v986 = vld [vmem:[%s434 + $0x50] sm:$0x1]
      %v987 = vsel %vm437, %v736, %v986
      %988 = vst [vmem:[%s434 + $0x50] sm:$0x1] %v987
      %v989 = vld [vmem:[%s434 + $0x54] sm:$0xf]
      %v990 = vsel %vm939, %v743, %v989
      %991 = vst [vmem:[%s434 + $0x54] sm:$0xf] %v990
      %992 = vst [vmem:[%s434 + $0x58] sm:$0xf] %v752
      %v993 = vld [vmem:[%s434 + $0x5c] sm:$0x1]
      %v994 = vsel %vm437, %v753, %v993
      %995 = vst [vmem:[%s434 + $0x5c] sm:$0x1] %v994
      %v996 = vld [vmem:[%s434 + $0x60] sm:$0xf]
      %v997 = vsel %vm939, %v760, %v996
      %998 = vst [vmem:[%s434 + $0x60] sm:$0xf] %v997
      %999 = vst [vmem:[%s434 + $0x64] sm:$0xf] %v769
      %v1000 = vld [vmem:[%s434 + $0x68] sm:$0x1]
      %v1001 = vsel %vm437, %v770, %v1000
      %1002 = vst [vmem:[%s434 + $0x68] sm:$0x1] %v1001
      %v1003 = vld [vmem:[%s434 + $0x6c] sm:$0xf]
      %v1004 = vsel %vm939, %v777, %v1003
      %1005 = vst [vmem:[%s434 + $0x6c] sm:$0xf] %v1004
      %1006 = vst [vmem:[%s434 + $0x70] sm:$0xf] %v786
      %v1007 = vld [vmem:[%s434 + $0x74] sm:$0x1]
      %v1008 = vsel %vm437, %v787, %v1007
      %1009 = vst [vmem:[%s434 + $0x74] sm:$0x1] %v1008
      %v1010 = vld [vmem:[%s434 + $0x78] sm:$0xf]
      %v1011 = vsel %vm939, %v794, %v1010
      %1012 = vst [vmem:[%s434 + $0x78] sm:$0xf] %v1011
      %1013 = vst [vmem:[%s434 + $0x7c] sm:$0xf] %v803
      %v1014 = vld [vmem:[%s434 + $0x80] sm:$0x1]
      %v1015 = vsel %vm437, %v804, %v1014
      %1016 = vst [vmem:[%s434 + $0x80] sm:$0x1] %v1015
      %v1017 = vld [vmem:[%s434 + $0x84] sm:$0xf]
      %v1018 = vsel %vm939, %v811, %v1017
      %1019 = vst [vmem:[%s434 + $0x84] sm:$0xf] %v1018
      %1020 = vst [vmem:[%s434 + $0x88] sm:$0xf] %v820
      %v1021 = vld [vmem:[%s434 + $0x8c] sm:$0x1]
      %v1022 = vsel %vm437, %v821, %v1021
      %1023 = vst [vmem:[%s434 + $0x8c] sm:$0x1] %v1022
      %v1024 = vld [vmem:[%s434 + $0x90] sm:$0xf]
      %v1025 = vsel %vm939, %v828, %v1024
      %1026 = vst [vmem:[%s434 + $0x90] sm:$0xf] %v1025
      %1027 = vst [vmem:[%s434 + $0x94] sm:$0xf] %v837
      %v1028 = vld [vmem:[%s434 + $0x98] sm:$0x1]
      %v1029 = vsel %vm437, %v838, %v1028
      %1030 = vst [vmem:[%s434 + $0x98] sm:$0x1] %v1029
      %v1031 = vld [vmem:[%s434 + $0x9c] sm:$0xf]
      %v1032 = vsel %vm939, %v845, %v1031
      %1033 = vst [vmem:[%s434 + $0x9c] sm:$0xf] %v1032
      %1034 = vst [vmem:[%s434 + $0xa0] sm:$0xf] %v854
      %v1035 = vld [vmem:[%s434 + $0xa4] sm:$0x1]
      %v1036 = vsel %vm437, %v855, %v1035
      %1037 = vst [vmem:[%s434 + $0xa4] sm:$0x1] %v1036
      %v1038 = vld [vmem:[%s434 + $0xa8] sm:$0xf]
      %v1039 = vsel %vm939, %v862, %v1038
      %1040 = vst [vmem:[%s434 + $0xa8] sm:$0xf] %v1039
      %1041 = vst [vmem:[%s434 + $0xac] sm:$0xf] %v871
      %v1042 = vld [vmem:[%s434 + $0xb0] sm:$0x1]
      %v1043 = vsel %vm437, %v872, %v1042
      %1044 = vst [vmem:[%s434 + $0xb0] sm:$0x1] %v1043
      %v1045 = vld [vmem:[%s434 + $0xb4] sm:$0xf]
      %v1046 = vsel %vm939, %v879, %v1045
      %1047 = vst [vmem:[%s434 + $0xb4] sm:$0xf] %v1046
      %1048 = vst [vmem:[%s434 + $0xb8] sm:$0xf] %v888
      %v1049 = vld [vmem:[%s434 + $0xbc] sm:$0x1]
      %v1050 = vsel %vm437, %v889, %v1049
      %1051 = vst [vmem:[%s434 + $0xbc] sm:$0x1] %v1050
      %v1052 = vld [vmem:[#allocation2] sm:$0xf]
      %v1053 = vld [vmem:[#allocation2 + $0x4] sm:$0xf]
      %v1054 = vld [vmem:[#allocation2 + $0xc] sm:$0xf]
      %v1055 = vld [vmem:[#allocation2 + $0x10] sm:$0xf]
      %v1056 = vld [vmem:[#allocation2 + $0x18] sm:$0xf]
      %v1057 = vld [vmem:[#allocation2 + $0x1c] sm:$0xf]
      %v1058 = vld [vmem:[#allocation2 + $0x24] sm:$0xf]
      %v1059 = vld [vmem:[#allocation2 + $0x28] sm:$0xf]
      %v1060 = vld [vmem:[#allocation2 + $0x30] sm:$0xf]
      %v1061 = vld [vmem:[#allocation2 + $0x34] sm:$0xf]
      %v1062 = vld [vmem:[#allocation2 + $0x3c] sm:$0xf]
      %v1063 = vld [vmem:[#allocation2 + $0x40] sm:$0xf]
      %v1064 = vld [vmem:[#allocation2 + $0x48] sm:$0xf]
      %v1065 = vld [vmem:[#allocation2 + $0x4c] sm:$0xf]
      %v1066 = vld [vmem:[#allocation2 + $0x54] sm:$0xf]
      %v1067 = vld [vmem:[#allocation2 + $0x58] sm:$0xf]
      %v1068 = vld [vmem:[#allocation2 + $0x60] sm:$0xf]
      %v1069 = vld [vmem:[#allocation2 + $0x64] sm:$0xf]
      %v1070 = vld [vmem:[#allocation2 + $0x6c] sm:$0xf]
      %v1071 = vld [vmem:[#allocation2 + $0x70] sm:$0xf]
      %v1072 = vld [vmem:[#allocation2 + $0x78] sm:$0xf]
      %v1073 = vld [vmem:[#allocation2 + $0x7c] sm:$0xf]
      %v1074 = vld [vmem:[#allocation2 + $0x84] sm:$0xf]
      %v1075 = vld [vmem:[#allocation2 + $0x88] sm:$0xf]
      %v1076 = vld [vmem:[#allocation2 + $0x90] sm:$0xf]
      %v1077 = vld [vmem:[#allocation2 + $0x94] sm:$0xf]
      %v1078 = vld [vmem:[#allocation2 + $0x9c] sm:$0xf]
      %v1079 = vld [vmem:[#allocation2 + $0xa0] sm:$0xf]
      %v1080 = vld [vmem:[#allocation2 + $0xa8] sm:$0xf]
      %v1081 = vld [vmem:[#allocation2 + $0xac] sm:$0xf]
      %v1082 = vld [vmem:[#allocation2 + $0xb4] sm:$0xf]
      %v1083 = vld [vmem:[#allocation2 + $0xb8] sm:$0xf]
      %v1084 = vld [vmem:[%s3] sm:$0xf]
      %v1085 = vld [vmem:[%s3 + $0x4] sm:$0xf]
      %v1086 = vld [vmem:[%s3 + $0x8] sm:$0xf]
      %v1087 = vld [vmem:[%s3 + $0xc] sm:$0xf]
      %v1088 = vld [vmem:[%s3 + $0x10] sm:$0xf]
      %v1089 = vld [vmem:[%s3 + $0x14] sm:$0xf]
      %v1090 = vld [vmem:[%s3 + $0x18] sm:$0xf]
      %v1091 = vld [vmem:[%s3 + $0x1c] sm:$0xf]
      %v1092 = vld [vmem:[%s3 + $0x20] sm:$0xf]
      %v1093 = vld [vmem:[%s3 + $0x24] sm:$0xf]
      %v1094 = vld [vmem:[%s3 + $0x28] sm:$0xf]
      %v1095 = vld [vmem:[%s3 + $0x2c] sm:$0xf]
      %v1096 = vld [vmem:[%s3 + $0x30] sm:$0xf]
      %v1097 = vld [vmem:[%s3 + $0x34] sm:$0xf]
      %v1098 = vld [vmem:[%s3 + $0x38] sm:$0xf]
      %v1099 = vld [vmem:[%s3 + $0x3c] sm:$0xf]
      %v1100 = vld [vmem:[#allocation2 + $0x8] sm:$0x1]
      %v1101 = vld [vmem:[#allocation2 + $0x14] sm:$0x1]
      %v1102 = vld [vmem:[#allocation2 + $0x20] sm:$0x1]
      %v1103 = vld [vmem:[#allocation2 + $0x2c] sm:$0x1]
      %v1104 = vld [vmem:[#allocation2 + $0x38] sm:$0x1]
      %v1105 = vld [vmem:[#allocation2 + $0x44] sm:$0x1]
      %v1106 = vld [vmem:[#allocation2 + $0x50] sm:$0x1]
      %v1107 = vld [vmem:[#allocation2 + $0x5c] sm:$0x1]
      %v1108 = vld [vmem:[#allocation2 + $0x68] sm:$0x1]
      %v1109 = vld [vmem:[#allocation2 + $0x74] sm:$0x1]
      %v1110 = vld [vmem:[#allocation2 + $0x80] sm:$0x1]
      %v1111 = vld [vmem:[#allocation2 + $0x8c] sm:$0x1]
      %v1112 = vld [vmem:[#allocation2 + $0x98] sm:$0x1]
      %v1113 = vld [vmem:[#allocation2 + $0xa4] sm:$0x1]
      %v1114 = vld [vmem:[#allocation2 + $0xb0] sm:$0x1]
      %v1115 = vld [vmem:[#allocation2 + $0xbc] sm:$0x1]
      %vm1116 = vsmask.f32 3328
      %vm1117 = vsmask.f32 7440
      %vm1118 = vmor %vm1116, %vm1117
      %v1120 = vshrl.u32 %v1052, 16
      %v1122 = vrot.slane %v1120, 4
      %v1123 = vshll.u32 %v1052, 16
      %v1125 = vrot.slane %v1123, 5
      %v1126 = vor.u32 %v1122, %v1125
      %v1127 = vrot.slane %v1126, 4
      %v1129 = vshll.u32 %v1053, 16
      %v1131 = vrot.slane %v1129, 5
      %v1132 = vsel %vm1118, %v1127, %v1131
      %v1133 = vshrl.u32 %v1053, 16
      %v1135 = vrot.slane %v1133, 4
      %v1136 = vor.u32 %v1135, %v1131
      %v1137 = vrot.slane %v1136, 4
      %v1139 = vshll.u32 %v1100, 16
      %v1141 = vrot.slane %v1139, 5
      %v1142 = vsel %vm1118, %v1137, %v1141
      %v1144 = vshrl.u32 %v1054, 16
      %v1146 = vrot.slane %v1144, 4
      %v1147 = vshll.u32 %v1054, 16
      %v1149 = vrot.slane %v1147, 5
      %v1150 = vor.u32 %v1146, %v1149
      %v1151 = vrot.slane %v1150, 4
      %v1153 = vshll.u32 %v1055, 16
      %v1155 = vrot.slane %v1153, 5
      %v1156 = vsel %vm1118, %v1151, %v1155
      %v1157 = vshrl.u32 %v1055, 16
      %v1159 = vrot.slane %v1157, 4
      %v1160 = vor.u32 %v1159, %v1155
      %v1161 = vrot.slane %v1160, 4
      %v1163 = vshll.u32 %v1101, 16
      %v1165 = vrot.slane %v1163, 5
      %v1166 = vsel %vm1118, %v1161, %v1165
      %v1168 = vshrl.u32 %v1056, 16
      %v1170 = vrot.slane %v1168, 4
      %v1171 = vshll.u32 %v1056, 16
      %v1173 = vrot.slane %v1171, 5
      %v1174 = vor.u32 %v1170, %v1173
      %v1175 = vrot.slane %v1174, 4
      %v1177 = vshll.u32 %v1057, 16
      %v1179 = vrot.slane %v1177, 5
      %v1180 = vsel %vm1118, %v1175, %v1179
      %v1181 = vshrl.u32 %v1057, 16
      %v1183 = vrot.slane %v1181, 4
      %v1184 = vor.u32 %v1183, %v1179
      %v1185 = vrot.slane %v1184, 4
      %v1187 = vshll.u32 %v1102, 16
      %v1189 = vrot.slane %v1187, 5
      %v1190 = vsel %vm1118, %v1185, %v1189
      %v1192 = vshrl.u32 %v1058, 16
      %v1194 = vrot.slane %v1192, 4
      %v1195 = vshll.u32 %v1058, 16
      %v1197 = vrot.slane %v1195, 5
      %v1198 = vor.u32 %v1194, %v1197
      %v1199 = vrot.slane %v1198, 4
      %v1201 = vshll.u32 %v1059, 16
      %v1203 = vrot.slane %v1201, 5
      %v1204 = vsel %vm1118, %v1199, %v1203
      %v1205 = vshrl.u32 %v1059, 16
      %v1207 = vrot.slane %v1205, 4
      %v1208 = vor.u32 %v1207, %v1203
      %v1209 = vrot.slane %v1208, 4
      %v1211 = vshll.u32 %v1103, 16
      %v1213 = vrot.slane %v1211, 5
      %v1214 = vsel %vm1118, %v1209, %v1213
      %v1216 = vshrl.u32 %v1060, 16
      %v1218 = vrot.slane %v1216, 4
      %v1219 = vshll.u32 %v1060, 16
      %v1221 = vrot.slane %v1219, 5
      %v1222 = vor.u32 %v1218, %v1221
      %v1223 = vrot.slane %v1222, 4
      %v1225 = vshll.u32 %v1061, 16
      %v1227 = vrot.slane %v1225, 5
      %v1228 = vsel %vm1118, %v1223, %v1227
      %v1229 = vshrl.u32 %v1061, 16
      %v1231 = vrot.slane %v1229, 4
      %v1232 = vor.u32 %v1231, %v1227
      %v1233 = vrot.slane %v1232, 4
      %v1235 = vshll.u32 %v1104, 16
      %v1237 = vrot.slane %v1235, 5
      %v1238 = vsel %vm1118, %v1233, %v1237
      %v1240 = vshrl.u32 %v1062, 16
      %v1242 = vrot.slane %v1240, 4
      %v1243 = vshll.u32 %v1062, 16
      %v1245 = vrot.slane %v1243, 5
      %v1246 = vor.u32 %v1242, %v1245
      %v1247 = vrot.slane %v1246, 4
      %v1249 = vshll.u32 %v1063, 16
      %v1251 = vrot.slane %v1249, 5
      %v1252 = vsel %vm1118, %v1247, %v1251
      %v1253 = vshrl.u32 %v1063, 16
      %v1255 = vrot.slane %v1253, 4
      %v1256 = vor.u32 %v1255, %v1251
      %v1257 = vrot.slane %v1256, 4
      %v1259 = vshll.u32 %v1105, 16
      %v1261 = vrot.slane %v1259, 5
      %v1262 = vsel %vm1118, %v1257, %v1261
      %v1264 = vshrl.u32 %v1064, 16
      %v1266 = vrot.slane %v1264, 4
      %v1267 = vshll.u32 %v1064, 16
      %v1269 = vrot.slane %v1267, 5
      %v1270 = vor.u32 %v1266, %v1269
      %v1271 = vrot.slane %v1270, 4
      %v1273 = vshll.u32 %v1065, 16
      %v1275 = vrot.slane %v1273, 5
      %v1276 = vsel %vm1118, %v1271, %v1275
      %v1277 = vshrl.u32 %v1065, 16
      %v1279 = vrot.slane %v1277, 4
      %v1280 = vor.u32 %v1279, %v1275
      %v1281 = vrot.slane %v1280, 4
      %v1283 = vshll.u32 %v1106, 16
      %v1285 = vrot.slane %v1283, 5
      %v1286 = vsel %vm1118, %v1281, %v1285
      %v1288 = vshrl.u32 %v1066, 16
      %v1290 = vrot.slane %v1288, 4
      %v1291 = vshll.u32 %v1066, 16
      %v1293 = vrot.slane %v1291, 5
      %v1294 = vor.u32 %v1290, %v1293
      %v1295 = vrot.slane %v1294, 4
      %v1297 = vshll.u32 %v1067, 16
      %v1299 = vrot.slane %v1297, 5
      %v1300 = vsel %vm1118, %v1295, %v1299
      %v1301 = vshrl.u32 %v1067, 16
      %v1303 = vrot.slane %v1301, 4
      %v1304 = vor.u32 %v1303, %v1299
      %v1305 = vrot.slane %v1304, 4
      %v1307 = vshll.u32 %v1107, 16
      %v1309 = vrot.slane %v1307, 5
      %v1310 = vsel %vm1118, %v1305, %v1309
      %v1312 = vshrl.u32 %v1068, 16
      %v1314 = vrot.slane %v1312, 4
      %v1315 = vshll.u32 %v1068, 16
      %v1317 = vrot.slane %v1315, 5
      %v1318 = vor.u32 %v1314, %v1317
      %v1319 = vrot.slane %v1318, 4
      %v1321 = vshll.u32 %v1069, 16
      %v1323 = vrot.slane %v1321, 5
      %v1324 = vsel %vm1118, %v1319, %v1323
      %v1325 = vshrl.u32 %v1069, 16
      %v1327 = vrot.slane %v1325, 4
      %v1328 = vor.u32 %v1327, %v1323
      %v1329 = vrot.slane %v1328, 4
      %v1331 = vshll.u32 %v1108, 16
      %v1333 = vrot.slane %v1331, 5
      %v1334 = vsel %vm1118, %v1329, %v1333
      %v1336 = vshrl.u32 %v1070, 16
      %v1338 = vrot.slane %v1336, 4
      %v1339 = vshll.u32 %v1070, 16
      %v1341 = vrot.slane %v1339, 5
      %v1342 = vor.u32 %v1338, %v1341
      %v1343 = vrot.slane %v1342, 4
      %v1345 = vshll.u32 %v1071, 16
      %v1347 = vrot.slane %v1345, 5
      %v1348 = vsel %vm1118, %v1343, %v1347
      %v1349 = vshrl.u32 %v1071, 16
      %v1351 = vrot.slane %v1349, 4
      %v1352 = vor.u32 %v1351, %v1347
      %v1353 = vrot.slane %v1352, 4
      %v1355 = vshll.u32 %v1109, 16
      %v1357 = vrot.slane %v1355, 5
      %v1358 = vsel %vm1118, %v1353, %v1357
      %v1360 = vshrl.u32 %v1072, 16
      %v1362 = vrot.slane %v1360, 4
      %v1363 = vshll.u32 %v1072, 16
      %v1365 = vrot.slane %v1363, 5
      %v1366 = vor.u32 %v1362, %v1365
      %v1367 = vrot.slane %v1366, 4
      %v1369 = vshll.u32 %v1073, 16
      %v1371 = vrot.slane %v1369, 5
      %v1372 = vsel %vm1118, %v1367, %v1371
      %v1373 = vshrl.u32 %v1073, 16
      %v1375 = vrot.slane %v1373, 4
      %v1376 = vor.u32 %v1375, %v1371
      %v1377 = vrot.slane %v1376, 4
      %v1379 = vshll.u32 %v1110, 16
      %v1381 = vrot.slane %v1379, 5
      %v1382 = vsel %vm1118, %v1377, %v1381
      %v1384 = vshrl.u32 %v1074, 16
      %v1386 = vrot.slane %v1384, 4
      %v1387 = vshll.u32 %v1074, 16
      %v1389 = vrot.slane %v1387, 5
      %v1390 = vor.u32 %v1386, %v1389
      %v1391 = vrot.slane %v1390, 4
      %v1393 = vshll.u32 %v1075, 16
      %v1395 = vrot.slane %v1393, 5
      %v1396 = vsel %vm1118, %v1391, %v1395
      %v1397 = vshrl.u32 %v1075, 16
      %v1399 = vrot.slane %v1397, 4
      %v1400 = vor.u32 %v1399, %v1395
      %v1401 = vrot.slane %v1400, 4
      %v1403 = vshll.u32 %v1111, 16
      %v1405 = vrot.slane %v1403, 5
      %v1406 = vsel %vm1118, %v1401, %v1405
      %v1408 = vshrl.u32 %v1076, 16
      %v1410 = vrot.slane %v1408, 4
      %v1411 = vshll.u32 %v1076, 16
      %v1413 = vrot.slane %v1411, 5
      %v1414 = vor.u32 %v1410, %v1413
      %v1415 = vrot.slane %v1414, 4
      %v1417 = vshll.u32 %v1077, 16
      %v1419 = vrot.slane %v1417, 5
      %v1420 = vsel %vm1118, %v1415, %v1419
      %v1421 = vshrl.u32 %v1077, 16
      %v1423 = vrot.slane %v1421, 4
      %v1424 = vor.u32 %v1423, %v1419
      %v1425 = vrot.slane %v1424, 4
      %v1427 = vshll.u32 %v1112, 16
      %v1429 = vrot.slane %v1427, 5
      %v1430 = vsel %vm1118, %v1425, %v1429
      %v1432 = vshrl.u32 %v1078, 16
      %v1434 = vrot.slane %v1432, 4
      %v1435 = vshll.u32 %v1078, 16
      %v1437 = vrot.slane %v1435, 5
      %v1438 = vor.u32 %v1434, %v1437
      %v1439 = vrot.slane %v1438, 4
      %v1441 = vshll.u32 %v1079, 16
      %v1443 = vrot.slane %v1441, 5
      %v1444 = vsel %vm1118, %v1439, %v1443
      %v1445 = vshrl.u32 %v1079, 16
      %v1447 = vrot.slane %v1445, 4
      %v1448 = vor.u32 %v1447, %v1443
      %v1449 = vrot.slane %v1448, 4
      %v1451 = vshll.u32 %v1113, 16
      %v1453 = vrot.slane %v1451, 5
      %v1454 = vsel %vm1118, %v1449, %v1453
      %v1456 = vshrl.u32 %v1080, 16
      %v1458 = vrot.slane %v1456, 4
      %v1459 = vshll.u32 %v1080, 16
      %v1461 = vrot.slane %v1459, 5
      %v1462 = vor.u32 %v1458, %v1461
      %v1463 = vrot.slane %v1462, 4
      %v1465 = vshll.u32 %v1081, 16
      %v1467 = vrot.slane %v1465, 5
      %v1468 = vsel %vm1118, %v1463, %v1467
      %v1469 = vshrl.u32 %v1081, 16
      %v1471 = vrot.slane %v1469, 4
      %v1472 = vor.u32 %v1471, %v1467
      %v1473 = vrot.slane %v1472, 4
      %v1475 = vshll.u32 %v1114, 16
      %v1477 = vrot.slane %v1475, 5
      %v1478 = vsel %vm1118, %v1473, %v1477
      %v1480 = vshrl.u32 %v1082, 16
      %v1482 = vrot.slane %v1480, 4
      %v1483 = vshll.u32 %v1082, 16
      %v1485 = vrot.slane %v1483, 5
      %v1486 = vor.u32 %v1482, %v1485
      %v1487 = vrot.slane %v1486, 4
      %v1489 = vshll.u32 %v1083, 16
      %v1491 = vrot.slane %v1489, 5
      %v1492 = vsel %vm1118, %v1487, %v1491
      %v1493 = vshrl.u32 %v1083, 16
      %v1495 = vrot.slane %v1493, 4
      %v1496 = vor.u32 %v1495, %v1491
      %v1497 = vrot.slane %v1496, 4
      %v1499 = vshll.u32 %v1115, 16
      %v1501 = vrot.slane %v1499, 5
      %v1502 = vsel %vm1118, %v1497, %v1501
      %s1503 = scalar_lea.vmem %s3, 64
      %v1504 = vld [vmem:[%s1503] sm:$0xf]
      %v1505 = vld [vmem:[%s1503 + $0x4] sm:$0xf]
      %v1506 = vld [vmem:[%s1503 + $0x8] sm:$0xf]
      %v1507 = vld [vmem:[%s1503 + $0xc] sm:$0xf]
      %v1508 = vld [vmem:[%s1503 + $0x10] sm:$0xf]
      %v1509 = vld [vmem:[%s1503 + $0x14] sm:$0xf]
      %v1510 = vld [vmem:[%s1503 + $0x18] sm:$0xf]
      %v1511 = vld [vmem:[%s1503 + $0x1c] sm:$0xf]
      %v1512 = vld [vmem:[%s1503 + $0x20] sm:$0xf]
      %v1513 = vld [vmem:[%s1503 + $0x24] sm:$0xf]
      %v1514 = vld [vmem:[%s1503 + $0x28] sm:$0xf]
      %v1515 = vld [vmem:[%s1503 + $0x2c] sm:$0xf]
      %v1516 = vld [vmem:[%s1503 + $0x30] sm:$0xf]
      %v1517 = vld [vmem:[%s1503 + $0x34] sm:$0xf]
      %v1518 = vld [vmem:[%s1503 + $0x38] sm:$0xf]
      %v1519 = vld [vmem:[%s1503 + $0x3c] sm:$0xf]
      %v1520 = vunpack.c.l.b16 %v1132
      %v1521 = vunpack.c.l.b16 %v1142
      %v1522 = vunpack.c.l.b16 %v1156
      %v1523 = vunpack.c.l.b16 %v1166
      %v1524 = vunpack.c.l.b16 %v1180
      %v1525 = vunpack.c.l.b16 %v1190
      %v1526 = vunpack.c.l.b16 %v1204
      %v1527 = vunpack.c.l.b16 %v1214
      %v1528 = vunpack.c.l.b16 %v1228
      %v1529 = vunpack.c.l.b16 %v1238
      %v1530 = vunpack.c.l.b16 %v1252
      %v1531 = vunpack.c.l.b16 %v1262
      %v1532 = vunpack.c.l.b16 %v1276
      %v1533 = vunpack.c.l.b16 %v1286
      %v1534 = vunpack.c.l.b16 %v1300
      %v1535 = vunpack.c.l.b16 %v1310
      %v1536 = vunpack.c.l.b16 %v1324
      %v1537 = vunpack.c.l.b16 %v1334
      %v1538 = vunpack.c.l.b16 %v1348
      %v1539 = vunpack.c.l.b16 %v1358
      %v1540 = vunpack.c.l.b16 %v1372
      %v1541 = vunpack.c.l.b16 %v1382
      %v1542 = vunpack.c.l.b16 %v1396
      %v1543 = vunpack.c.l.b16 %v1406
      %v1544 = vunpack.c.l.b16 %v1420
      %v1545 = vunpack.c.l.b16 %v1430
      %v1546 = vunpack.c.l.b16 %v1444
      %v1547 = vunpack.c.l.b16 %v1454
      %v1548 = vunpack.c.l.b16 %v1468
      %v1549 = vunpack.c.l.b16 %v1478
      %v1550 = vunpack.c.l.b16 %v1492
      %v1551 = vunpack.c.l.b16 %v1502
      %v1552 = vpack.c.b16 %v1521, %v1520
      %v1553 = vpack.c.b16 %v1523, %v1522
      %v1554 = vpack.c.b16 %v1525, %v1524
      %v1555 = vpack.c.b16 %v1527, %v1526
      %v1556 = vpack.c.b16 %v1529, %v1528
      %v1557 = vpack.c.b16 %v1531, %v1530
      %v1558 = vpack.c.b16 %v1533, %v1532
      %v1559 = vpack.c.b16 %v1535, %v1534
      %v1560 = vpack.c.b16 %v1537, %v1536
      %v1561 = vpack.c.b16 %v1539, %v1538
      %v1562 = vpack.c.b16 %v1541, %v1540
      %v1563 = vpack.c.b16 %v1543, %v1542
      %v1564 = vpack.c.b16 %v1545, %v1544
      %v1565 = vpack.c.b16 %v1547, %v1546
      %v1566 = vpack.c.b16 %v1549, %v1548
      %v1567 = vpack.c.b16 %v1551, %v1550
      %v1600 = vunpack.c.l.b16 %v1504
      %v1601 = vunpack.c.l.b16 %v1505
      %v1602 = vunpack.c.l.b16 %v1506
      %v1603 = vunpack.c.l.b16 %v1507
      %v1604 = vunpack.c.l.b16 %v1508
      %v1605 = vunpack.c.l.b16 %v1509
      %v1606 = vunpack.c.l.b16 %v1510
      %v1607 = vunpack.c.l.b16 %v1511
      %v1608 = vunpack.c.l.b16 %v1512
      %v1609 = vunpack.c.l.b16 %v1513
      %v1610 = vunpack.c.l.b16 %v1514
      %v1611 = vunpack.c.l.b16 %v1515
      %v1612 = vunpack.c.l.b16 %v1516
      %v1613 = vunpack.c.l.b16 %v1517
      %v1614 = vunpack.c.l.b16 %v1518
      %v1615 = vunpack.c.l.b16 %v1519
      %v1616 = vpack.c.b16 %v1601, %v1600
      %v1617 = vpack.c.b16 %v1603, %v1602
      %v1618 = vpack.c.b16 %v1605, %v1604
      %v1619 = vpack.c.b16 %v1607, %v1606
      %v1620 = vpack.c.b16 %v1609, %v1608
      %v1621 = vpack.c.b16 %v1611, %v1610
      %v1622 = vpack.c.b16 %v1613, %v1612
      %v1623 = vpack.c.b16 %v1615, %v1614
      %1632 = vmatprep.subr.bf16.mxu0 0
      %1633 = vmatpush1.bf16.msra.mxu0 %v1616
      %1634 = vmatprep.subr.bf16.mxu0 0
      %1635 = vmatpush1.bf16.msra.mxu0 %v1617
      %1636 = vmatprep.subr.bf16.mxu0 0
      %1637 = vmatpush1.bf16.msra.mxu0 %v1618
      %1638 = vmatprep.subr.bf16.mxu0 0
      %1639 = vmatpush1.bf16.msra.mxu0 %v1619
      %1640 = vmatprep.subr.bf16.mxu0 0
      %1641 = vmatpush1.bf16.msra.mxu0 %v1620
      %1642 = vmatprep.subr.bf16.mxu0 0
      %1643 = vmatpush1.bf16.msra.mxu0 %v1621
      %1644 = vmatprep.subr.bf16.mxu0 0
      %1645 = vmatpush1.bf16.msra.mxu0 %v1622
      %1646 = vmatprep.subr.bf16.mxu0 0
      %1647 = vmatpush1.bf16.msra.mxu0 %v1623
      %1648 = vmatprep.subr.bf16.mxu0 0
      %1649 = vmatpush1.bf16.msra.mxu0 0
      %1650 = vmatprep.subr.bf16.mxu0 0
      %1651 = vmatpush1.bf16.msra.mxu0 0
      %1652 = vmatprep.subr.bf16.mxu0 0
      %1653 = vmatpush1.bf16.msra.mxu0 0
      %1654 = vmatprep.subr.bf16.mxu0 0
      %1655 = vmatpush1.bf16.msra.mxu0 0
      %1656 = vmatprep.subr.bf16.mxu0 0
      %1657 = vmatpush1.bf16.msra.mxu0 0
      %1658 = vmatprep.subr.bf16.mxu0 0
      %1659 = vmatpush1.bf16.msra.mxu0 0
      %1660 = vmatprep.subr.bf16.mxu0 0
      %1661 = vmatpush1.bf16.msra.mxu0 0
      %1662 = vmatprep.subr.bf16.mxu0 0
      %1663 = vmatpush1.bf16.msra.mxu0 0
      %1664 = vmatprep.mubr.bf16.mxu0 0
      %1665 = vmatmul.mubr.bf16.gmra.mrb[0].mxu0 %v1552
      %v1666 = vpop.f32.mrb[0].mxu0
      %v1667 = vadd.f32 0.0, %v1666
      %v1668 = vpop.f32.mrb[0].mxu0
      %v1669 = vpop.f32.mrb[0].mxu0
      %v1670 = vadd.f32 0.0, %v1669
      %v1671 = vpop.f32.mrb[0].mxu0
      %1672 = vmatprep.mubr.bf16.mxu0 0
      %1673 = vmatmul.mubr.bf16.gmra.mrb[0].mxu0 %v1553
      %v1674 = vpop.f32.mrb[0].mxu0
      %v1675 = vadd.f32 0.0, %v1674
      %v1676 = vpop.f32.mrb[0].mxu0
      %v1677 = vpop.f32.mrb[0].mxu0
      %v1678 = vadd.f32 0.0, %v1677
      %v1679 = vpop.f32.mrb[0].mxu0
      %1680 = vmatprep.mubr.bf16.mxu0 0
      %1681 = vmatmul.mubr.bf16.gmra.mrb[0].mxu0 %v1554
      %v1682 = vpop.f32.mrb[0].mxu0
      %v1683 = vadd.f32 0.0, %v1682
      %v1684 = vpop.f32.mrb[0].mxu0
      %v1685 = vpop.f32.mrb[0].mxu0
      %v1686 = vadd.f32 0.0, %v1685
      %v1687 = vpop.f32.mrb[0].mxu0
      %1688 = vmatprep.mubr.bf16.mxu0 0
      %1689 = vmatmul.mubr.bf16.gmra.mrb[0].mxu0 %v1555
      %v1690 = vpop.f32.mrb[0].mxu0
      %v1691 = vadd.f32 0.0, %v1690
      %v1692 = vpop.f32.mrb[0].mxu0
      %v1693 = vpop.f32.mrb[0].mxu0
      %v1694 = vadd.f32 0.0, %v1693
      %v1695 = vpop.f32.mrb[0].mxu0
      %1696 = vmatprep.mubr.bf16.mxu0 0
      %1697 = vmatmul.mubr.bf16.gmra.mrb[0].mxu0 %v1556
      %v1698 = vpop.f32.mrb[0].mxu0
      %v1699 = vadd.f32 0.0, %v1698
      %v1700 = vpop.f32.mrb[0].mxu0
      %v1701 = vpop.f32.mrb[0].mxu0
      %v1702 = vadd.f32 0.0, %v1701
      %v1703 = vpop.f32.mrb[0].mxu0
      %1704 = vmatprep.mubr.bf16.mxu0 0
      %1705 = vmatmul.mubr.bf16.gmra.mrb[0].mxu0 %v1557
      %v1706 = vpop.f32.mrb[0].mxu0
      %v1707 = vadd.f32 0.0, %v1706
      %v1708 = vpop.f32.mrb[0].mxu0
      %v1709 = vpop.f32.mrb[0].mxu0
      %v1710 = vadd.f32 0.0, %v1709
      %v1711 = vpop.f32.mrb[0].mxu0
      %1712 = vmatprep.mubr.bf16.mxu0 0
      %1713 = vmatmul.mubr.bf16.gmra.mrb[0].mxu0 %v1558
      %v1714 = vpop.f32.mrb[0].mxu0
      %v1715 = vadd.f32 0.0, %v1714
      %v1716 = vpop.f32.mrb[0].mxu0
      %v1717 = vpop.f32.mrb[0].mxu0
      %v1718 = vadd.f32 0.0, %v1717
      %v1719 = vpop.f32.mrb[0].mxu0
      %1720 = vmatprep.mubr.bf16.mxu0 0
      %1721 = vmatmul.mubr.bf16.gmra.mrb[0].mxu0 %v1559
      %v1722 = vpop.f32.mrb[0].mxu0
      %v1723 = vadd.f32 0.0, %v1722
      %v1724 = vpop.f32.mrb[0].mxu0
      %v1725 = vpop.f32.mrb[0].mxu0
      %v1726 = vadd.f32 0.0, %v1725
      %v1727 = vpop.f32.mrb[0].mxu0
      %1728 = vmatprep.mubr.bf16.mxu0 0
      %1729 = vmatmul.mubr.bf16.gmra.mrb[0].mxu0 %v1560
      %v1730 = vpop.f32.mrb[0].mxu0
      %v1731 = vadd.f32 0.0, %v1730
      %v1732 = vpop.f32.mrb[0].mxu0
      %v1733 = vpop.f32.mrb[0].mxu0
      %v1734 = vadd.f32 0.0, %v1733
      %v1735 = vpop.f32.mrb[0].mxu0
      %1736 = vmatprep.mubr.bf16.mxu0 0
      %1737 = vmatmul.mubr.bf16.gmra.mrb[0].mxu0 %v1561
      %v1738 = vpop.f32.mrb[0].mxu0
      %v1739 = vadd.f32 0.0, %v1738
      %v1740 = vpop.f32.mrb[0].mxu0
      %v1741 = vpop.f32.mrb[0].mxu0
      %v1742 = vadd.f32 0.0, %v1741
      %v1743 = vpop.f32.mrb[0].mxu0
      %1744 = vmatprep.mubr.bf16.mxu0 0
      %1745 = vmatmul.mubr.bf16.gmra.mrb[0].mxu0 %v1562
      %v1746 = vpop.f32.mrb[0].mxu0
      %v1747 = vadd.f32 0.0, %v1746
      %v1748 = vpop.f32.mrb[0].mxu0
      %v1749 = vpop.f32.mrb[0].mxu0
      %v1750 = vadd.f32 0.0, %v1749
      %v1751 = vpop.f32.mrb[0].mxu0
      %1752 = vmatprep.mubr.bf16.mxu0 0
      %1753 = vmatmul.mubr.bf16.gmra.mrb[0].mxu0 %v1563
      %v1754 = vpop.f32.mrb[0].mxu0
      %v1755 = vadd.f32 0.0, %v1754
      %v1756 = vpop.f32.mrb[0].mxu0
      %v1757 = vpop.f32.mrb[0].mxu0
      %v1758 = vadd.f32 0.0, %v1757
      %v1759 = vpop.f32.mrb[0].mxu0
      %1760 = vmatprep.mubr.bf16.mxu0 0
      %1761 = vmatmul.mubr.bf16.gmra.mrb[0].mxu0 %v1564
      %v1762 = vpop.f32.mrb[0].mxu0
      %v1763 = vadd.f32 0.0, %v1762
      %v1764 = vpop.f32.mrb[0].mxu0
      %v1765 = vpop.f32.mrb[0].mxu0
      %v1766 = vadd.f32 0.0, %v1765
      %v1767 = vpop.f32.mrb[0].mxu0
      %1768 = vmatprep.mubr.bf16.mxu0 0
      %1769 = vmatmul.mubr.bf16.gmra.mrb[0].mxu0 %v1565
      %v1770 = vpop.f32.mrb[0].mxu0
      %v1771 = vadd.f32 0.0, %v1770
      %v1772 = vpop.f32.mrb[0].mxu0
      %v1773 = vpop.f32.mrb[0].mxu0
      %v1774 = vadd.f32 0.0, %v1773
      %v1775 = vpop.f32.mrb[0].mxu0
      %1776 = vmatprep.mubr.bf16.mxu0 0
      %1777 = vmatmul.mubr.bf16.gmra.mrb[0].mxu0 %v1566
      %v1778 = vpop.f32.mrb[0].mxu0
      %v1779 = vadd.f32 0.0, %v1778
      %v1780 = vpop.f32.mrb[0].mxu0
      %v1781 = vpop.f32.mrb[0].mxu0
      %v1782 = vadd.f32 0.0, %v1781
      %v1783 = vpop.f32.mrb[0].mxu0
      %1784 = vmatprep.mubr.bf16.mxu0 0
      %1785 = vmatmul.mubr.bf16.gmra.mrb[0].mxu0 %v1567
      %v1786 = vpop.f32.mrb[0].mxu0
      %v1787 = vadd.f32 0.0, %v1786
      %v1788 = vpop.f32.mrb[0].mxu0
      %v1789 = vpop.f32.mrb[0].mxu0
      %v1790 = vadd.f32 0.0, %v1789
      %v1791 = vpop.f32.mrb[0].mxu0
      %1792 = vdwg.mxu0
      %v1825 = vunpack.c.l.b16 %v1052
      %v1826 = vunpack.c.l.b16 %v1053
      %v1827 = vunpack.c.l.b16 %v1054
      %v1828 = vunpack.c.l.b16 %v1055
      %v1829 = vunpack.c.l.b16 %v1056
      %v1830 = vunpack.c.l.b16 %v1057
      %v1831 = vunpack.c.l.b16 %v1058
      %v1832 = vunpack.c.l.b16 %v1059
      %v1833 = vunpack.c.l.b16 %v1060
      %v1834 = vunpack.c.l.b16 %v1061
      %v1835 = vunpack.c.l.b16 %v1062
      %v1836 = vunpack.c.l.b16 %v1063
      %v1837 = vunpack.c.l.b16 %v1064
      %v1838 = vunpack.c.l.b16 %v1065
      %v1839 = vunpack.c.l.b16 %v1066
      %v1840 = vunpack.c.l.b16 %v1067
      %v1841 = vunpack.c.l.b16 %v1068
      %v1842 = vunpack.c.l.b16 %v1069
      %v1843 = vunpack.c.l.b16 %v1070
      %v1844 = vunpack.c.l.b16 %v1071
      %v1845 = vunpack.c.l.b16 %v1072
      %v1846 = vunpack.c.l.b16 %v1073
      %v1847 = vunpack.c.l.b16 %v1074
      %v1848 = vunpack.c.l.b16 %v1075
      %v1849 = vunpack.c.l.b16 %v1076
      %v1850 = vunpack.c.l.b16 %v1077
      %v1851 = vunpack.c.l.b16 %v1078
      %v1852 = vunpack.c.l.b16 %v1079
      %v1853 = vunpack.c.l.b16 %v1080
      %v1854 = vunpack.c.l.b16 %v1081
      %v1855 = vunpack.c.l.b16 %v1082
      %v1856 = vunpack.c.l.b16 %v1083
      %v1857 = vpack.c.b16 %v1826, %v1825
      %v1858 = vpack.c.b16 %v1828, %v1827
      %v1859 = vpack.c.b16 %v1830, %v1829
      %v1860 = vpack.c.b16 %v1832, %v1831
      %v1861 = vpack.c.b16 %v1834, %v1833
      %v1862 = vpack.c.b16 %v1836, %v1835
      %v1863 = vpack.c.b16 %v1838, %v1837
      %v1864 = vpack.c.b16 %v1840, %v1839
      %v1865 = vpack.c.b16 %v1842, %v1841
      %v1866 = vpack.c.b16 %v1844, %v1843
      %v1867 = vpack.c.b16 %v1846, %v1845
      %v1868 = vpack.c.b16 %v1848, %v1847
      %v1869 = vpack.c.b16 %v1850, %v1849
      %v1870 = vpack.c.b16 %v1852, %v1851
      %v1871 = vpack.c.b16 %v1854, %v1853
      %v1872 = vpack.c.b16 %v1856, %v1855
      %v1905 = vunpack.c.l.b16 %v1084
      %v1906 = vunpack.c.l.b16 %v1085
      %v1907 = vunpack.c.l.b16 %v1086
      %v1908 = vunpack.c.l.b16 %v1087
      %v1909 = vunpack.c.l.b16 %v1088
      %v1910 = vunpack.c.l.b16 %v1089
      %v1911 = vunpack.c.l.b16 %v1090
      %v1912 = vunpack.c.l.b16 %v1091
      %v1913 = vunpack.c.l.b16 %v1092
      %v1914 = vunpack.c.l.b16 %v1093
      %v1915 = vunpack.c.l.b16 %v1094
      %v1916 = vunpack.c.l.b16 %v1095
      %v1917 = vunpack.c.l.b16 %v1096
      %v1918 = vunpack.c.l.b16 %v1097
      %v1919 = vunpack.c.l.b16 %v1098
      %v1920 = vunpack.c.l.b16 %v1099
      %v1921 = vpack.c.b16 %v1906, %v1905
      %v1922 = vpack.c.b16 %v1908, %v1907
      %v1923 = vpack.c.b16 %v1910, %v1909
      %v1924 = vpack.c.b16 %v1912, %v1911
      %v1925 = vpack.c.b16 %v1914, %v1913
      %v1926 = vpack.c.b16 %v1916, %v1915
      %v1927 = vpack.c.b16 %v1918, %v1917
      %v1928 = vpack.c.b16 %v1920, %v1919
      %1937 = vmatprep.subr.bf16.mxu0 0
      %1938 = vmatpush1.bf16.msra.mxu0 %v1921
      %1939 = vmatprep.subr.bf16.mxu0 0
      %1940 = vmatpush1.bf16.msra.mxu0 %v1922
      %1941 = vmatprep.subr.bf16.mxu0 0
      %1942 = vmatpush1.bf16.msra.mxu0 %v1923
      %1943 = vmatprep.subr.bf16.mxu0 0
      %1944 = vmatpush1.bf16.msra.mxu0 %v1924
      %1945 = vmatprep.subr.bf16.mxu0 0
      %1946 = vmatpush1.bf16.msra.mxu0 %v1925
      %1947 = vmatprep.subr.bf16.mxu0 0
      %1948 = vmatpush1.bf16.msra.mxu0 %v1926
      %1949 = vmatprep.subr.bf16.mxu0 0
      %1950 = vmatpush1.bf16.msra.mxu0 %v1927
      %1951 = vmatprep.subr.bf16.mxu0 0
      %1952 = vmatpush1.bf16.msra.mxu0 %v1928
      %1953 = vmatprep.subr.bf16.mxu0 0
      %1954 = vmatpush1.bf16.msra.mxu0 0
      %1955 = vmatprep.subr.bf16.mxu0 0
      %1956 = vmatpush1.bf16.msra.mxu0 0
      %1957 = vmatprep.subr.bf16.mxu0 0
      %1958 = vmatpush1.bf16.msra.mxu0 0
      %1959 = vmatprep.subr.bf16.mxu0 0
      %1960 = vmatpush1.bf16.msra.mxu0 0
      %1961 = vmatprep.subr.bf16.mxu0 0
      %1962 = vmatpush1.bf16.msra.mxu0 0
      %1963 = vmatprep.subr.bf16.mxu0 0
      %1964 = vmatpush1.bf16.msra.mxu0 0
      %1965 = vmatprep.subr.bf16.mxu0 0
      %1966 = vmatpush1.bf16.msra.mxu0 0
      %1967 = vmatprep.subr.bf16.mxu0 0
      %1968 = vmatpush1.bf16.msra.mxu0 0
      %1969 = vmatprep.mubr.bf16.mxu0 0
      %1970 = vmatmul.mubr.bf16.gmra.mrb[0].mxu0 %v1857
      %v1971 = vpop.f32.mrb[0].mxu0
      %v1972 = vadd.f32 %v1667, %v1971
      %v1973 = vpop.f32.mrb[0].mxu0
      %v1974 = vpop.f32.mrb[0].mxu0
      %v1975 = vadd.f32 %v1670, %v1974
      %v1976 = vpop.f32.mrb[0].mxu0
      %1977 = vmatprep.mubr.bf16.mxu0 0
      %1978 = vmatmul.mubr.bf16.gmra.mrb[0].mxu0 %v1858
      %v1979 = vpop.f32.mrb[0].mxu0
      %v1980 = vadd.f32 %v1675, %v1979
      %v1981 = vpop.f32.mrb[0].mxu0
      %v1982 = vpop.f32.mrb[0].mxu0
      %v1983 = vadd.f32 %v1678, %v1982
      %v1984 = vpop.f32.mrb[0].mxu0
      %1985 = vmatprep.mubr.bf16.mxu0 0
      %1986 = vmatmul.mubr.bf16.gmra.mrb[0].mxu0 %v1859
      %v1987 = vpop.f32.mrb[0].mxu0
      %v1988 = vadd.f32 %v1683, %v1987
      %v1989 = vpop.f32.mrb[0].mxu0
      %v1990 = vpop.f32.mrb[0].mxu0
      %v1991 = vadd.f32 %v1686, %v1990
      %v1992 = vpop.f32.mrb[0].mxu0
      %1993 = vmatprep.mubr.bf16.mxu0 0
      %1994 = vmatmul.mubr.bf16.gmra.mrb[0].mxu0 %v1860
      %v1995 = vpop.f32.mrb[0].mxu0
      %v1996 = vadd.f32 %v1691, %v1995
      %v1997 = vpop.f32.mrb[0].mxu0
      %v1998 = vpop.f32.mrb[0].mxu0
      %v1999 = vadd.f32 %v1694, %v1998
      %v2000 = vpop.f32.mrb[0].mxu0
      %2001 = vmatprep.mubr.bf16.mxu0 0
      %2002 = vmatmul.mubr.bf16.gmra.mrb[0].mxu0 %v1861
      %v2003 = vpop.f32.mrb[0].mxu0
      %v2004 = vadd.f32 %v1699, %v2003
      %v2005 = vpop.f32.mrb[0].mxu0
      %v2006 = vpop.f32.mrb[0].mxu0
      %v2007 = vadd.f32 %v1702, %v2006
      %v2008 = vpop.f32.mrb[0].mxu0
      %2009 = vmatprep.mubr.bf16.mxu0 0
      %2010 = vmatmul.mubr.bf16.gmra.mrb[0].mxu0 %v1862
      %v2011 = vpop.f32.mrb[0].mxu0
      %v2012 = vadd.f32 %v1707, %v2011
      %v2013 = vpop.f32.mrb[0].mxu0
      %v2014 = vpop.f32.mrb[0].mxu0
      %v2015 = vadd.f32 %v1710, %v2014
      %v2016 = vpop.f32.mrb[0].mxu0
      %2017 = vmatprep.mubr.bf16.mxu0 0
      %2018 = vmatmul.mubr.bf16.gmra.mrb[0].mxu0 %v1863
      %v2019 = vpop.f32.mrb[0].mxu0
      %v2020 = vadd.f32 %v1715, %v2019
      %v2021 = vpop.f32.mrb[0].mxu0
      %v2022 = vpop.f32.mrb[0].mxu0
      %v2023 = vadd.f32 %v1718, %v2022
      %v2024 = vpop.f32.mrb[0].mxu0
      %2025 = vmatprep.mubr.bf16.mxu0 0
      %2026 = vmatmul.mubr.bf16.gmra.mrb[0].mxu0 %v1864
      %v2027 = vpop.f32.mrb[0].mxu0
      %v2028 = vadd.f32 %v1723, %v2027
      %v2029 = vpop.f32.mrb[0].mxu0
      %v2030 = vpop.f32.mrb[0].mxu0
      %v2031 = vadd.f32 %v1726, %v2030
      %v2032 = vpop.f32.mrb[0].mxu0
      %2033 = vmatprep.mubr.bf16.mxu0 0
      %2034 = vmatmul.mubr.bf16.gmra.mrb[0].mxu0 %v1865
      %v2035 = vpop.f32.mrb[0].mxu0
      %v2036 = vadd.f32 %v1731, %v2035
      %v2037 = vpop.f32.mrb[0].mxu0
      %v2038 = vpop.f32.mrb[0].mxu0
      %v2039 = vadd.f32 %v1734, %v2038
      %v2040 = vpop.f32.mrb[0].mxu0
      %2041 = vmatprep.mubr.bf16.mxu0 0
      %2042 = vmatmul.mubr.bf16.gmra.mrb[0].mxu0 %v1866
      %v2043 = vpop.f32.mrb[0].mxu0
      %v2044 = vadd.f32 %v1739, %v2043
      %v2045 = vpop.f32.mrb[0].mxu0
      %v2046 = vpop.f32.mrb[0].mxu0
      %v2047 = vadd.f32 %v1742, %v2046
      %v2048 = vpop.f32.mrb[0].mxu0
      %2049 = vmatprep.mubr.bf16.mxu0 0
      %2050 = vmatmul.mubr.bf16.gmra.mrb[0].mxu0 %v1867
      %v2051 = vpop.f32.mrb[0].mxu0
      %v2052 = vadd.f32 %v1747, %v2051
      %v2053 = vpop.f32.mrb[0].mxu0
      %v2054 = vpop.f32.mrb[0].mxu0
      %v2055 = vadd.f32 %v1750, %v2054
      %v2056 = vpop.f32.mrb[0].mxu0
      %2057 = vmatprep.mubr.bf16.mxu0 0
      %2058 = vmatmul.mubr.bf16.gmra.mrb[0].mxu0 %v1868
      %v2059 = vpop.f32.mrb[0].mxu0
      %v2060 = vadd.f32 %v1755, %v2059
      %v2061 = vpop.f32.mrb[0].mxu0
      %v2062 = vpop.f32.mrb[0].mxu0
      %v2063 = vadd.f32 %v1758, %v2062
      %v2064 = vpop.f32.mrb[0].mxu0
      %2065 = vmatprep.mubr.bf16.mxu0 0
      %2066 = vmatmul.mubr.bf16.gmra.mrb[0].mxu0 %v1869
      %v2067 = vpop.f32.mrb[0].mxu0
      %v2068 = vadd.f32 %v1763, %v2067
      %v2069 = vpop.f32.mrb[0].mxu0
      %v2070 = vpop.f32.mrb[0].mxu0
      %v2071 = vadd.f32 %v1766, %v2070
      %v2072 = vpop.f32.mrb[0].mxu0
      %2073 = vmatprep.mubr.bf16.mxu0 0
      %2074 = vmatmul.mubr.bf16.gmra.mrb[0].mxu0 %v1870
      %v2075 = vpop.f32.mrb[0].mxu0
      %v2076 = vadd.f32 %v1771, %v2075
      %v2077 = vpop.f32.mrb[0].mxu0
      %v2078 = vpop.f32.mrb[0].mxu0
      %v2079 = vadd.f32 %v1774, %v2078
      %v2080 = vpop.f32.mrb[0].mxu0
      %2081 = vmatprep.mubr.bf16.mxu0 0
      %2082 = vmatmul.mubr.bf16.gmra.mrb[0].mxu0 %v1871
      %v2083 = vpop.f32.mrb[0].mxu0
      %v2084 = vadd.f32 %v1779, %v2083
      %v2085 = vpop.f32.mrb[0].mxu0
      %v2086 = vpop.f32.mrb[0].mxu0
      %v2087 = vadd.f32 %v1782, %v2086
      %v2088 = vpop.f32.mrb[0].mxu0
      %2089 = vmatprep.mubr.bf16.mxu0 0
      %2090 = vmatmul.mubr.bf16.gmra.mrb[0].mxu0 %v1872
      %v2091 = vpop.f32.mrb[0].mxu0
      %v2092 = vadd.f32 %v1787, %v2091
      %v2093 = vpop.f32.mrb[0].mxu0
      %v2094 = vpop.f32.mrb[0].mxu0
      %v2095 = vadd.f32 %v1790, %v2094
      %v2096 = vpop.f32.mrb[0].mxu0
      %2097 = vdwg.mxu0
      %v2098 = vld [vmem:[#allocation2] sm:$0xe]
      %v2099 = vld [vmem:[#allocation2 + $0xc] sm:$0xe]
      %v2100 = vld [vmem:[#allocation2 + $0x18] sm:$0xe]
      %v2101 = vld [vmem:[#allocation2 + $0x24] sm:$0xe]
      %v2102 = vld [vmem:[#allocation2 + $0x30] sm:$0xe]
      %v2103 = vld [vmem:[#allocation2 + $0x3c] sm:$0xe]
      %v2104 = vld [vmem:[#allocation2 + $0x48] sm:$0xe]
      %v2105 = vld [vmem:[#allocation2 + $0x54] sm:$0xe]
      %v2106 = vld [vmem:[#allocation2 + $0x60] sm:$0xe]
      %v2107 = vld [vmem:[#allocation2 + $0x6c] sm:$0xe]
      %v2108 = vld [vmem:[#allocation2 + $0x78] sm:$0xe]
      %v2109 = vld [vmem:[#allocation2 + $0x84] sm:$0xe]
      %v2110 = vld [vmem:[#allocation2 + $0x90] sm:$0xe]
      %v2111 = vld [vmem:[#allocation2 + $0x9c] sm:$0xe]
      %v2112 = vld [vmem:[#allocation2 + $0xa8] sm:$0xe]
      %v2113 = vld [vmem:[#allocation2 + $0xb4] sm:$0xe]
      %vm2146 = vcmask 1042432
      %vm2147 = vcmask 1046532
      %vm2148 = vmor %vm2146, %vm2147
      %v2149 = vrot.slane %v2098, 5
      %v2150 = vrot.slane %v2149, 4
      %v2151 = vrot.slane %v1053, 5
      %v2152 = vsel %vm2148, %v2150, %v2151
      %v2153 = vrot.slane %v2151, 4
      %v2154 = vrot.slane %v1100, 5
      %v2155 = vsel %vm2148, %v2153, %v2154
      %v2156 = vrot.slane %v2099, 5
      %v2157 = vrot.slane %v2156, 4
      %v2158 = vrot.slane %v1055, 5
      %v2159 = vsel %vm2148, %v2157, %v2158
      %v2160 = vrot.slane %v2158, 4
      %v2161 = vrot.slane %v1101, 5
      %v2162 = vsel %vm2148, %v2160, %v2161
      %v2163 = vrot.slane %v2100, 5
      %v2164 = vrot.slane %v2163, 4
      %v2165 = vrot.slane %v1057, 5
      %v2166 = vsel %vm2148, %v2164, %v2165
      %v2167 = vrot.slane %v2165, 4
      %v2168 = vrot.slane %v1102, 5
      %v2169 = vsel %vm2148, %v2167, %v2168
      %v2170 = vrot.slane %v2101, 5
      %v2171 = vrot.slane %v2170, 4
      %v2172 = vrot.slane %v1059, 5
      %v2173 = vsel %vm2148, %v2171, %v2172
      %v2174 = vrot.slane %v2172, 4
      %v2175 = vrot.slane %v1103, 5
      %v2176 = vsel %vm2148, %v2174, %v2175
      %v2177 = vrot.slane %v2102, 5
      %v2178 = vrot.slane %v2177, 4
      %v2179 = vrot.slane %v1061, 5
      %v2180 = vsel %vm2148, %v2178, %v2179
      %v2181 = vrot.slane %v2179, 4
      %v2182 = vrot.slane %v1104, 5
      %v2183 = vsel %vm2148, %v2181, %v2182
      %v2184 = vrot.slane %v2103, 5
      %v2185 = vrot.slane %v2184, 4
      %v2186 = vrot.slane %v1063, 5
      %v2187 = vsel %vm2148, %v2185, %v2186
      %v2188 = vrot.slane %v2186, 4
      %v2189 = vrot.slane %v1105, 5
      %v2190 = vsel %vm2148, %v2188, %v2189
      %v2191 = vrot.slane %v2104, 5
      %v2192 = vrot.slane %v2191, 4
      %v2193 = vrot.slane %v1065, 5
      %v2194 = vsel %vm2148, %v2192, %v2193
      %v2195 = vrot.slane %v2193, 4
      %v2196 = vrot.slane %v1106, 5
      %v2197 = vsel %vm2148, %v2195, %v2196
      %v2198 = vrot.slane %v2105, 5
      %v2199 = vrot.slane %v2198, 4
      %v2200 = vrot.slane %v1067, 5
      %v2201 = vsel %vm2148, %v2199, %v2200
      %v2202 = vrot.slane %v2200, 4
      %v2203 = vrot.slane %v1107, 5
      %v2204 = vsel %vm2148, %v2202, %v2203
      %v2205 = vrot.slane %v2106, 5
      %v2206 = vrot.slane %v2205, 4
      %v2207 = vrot.slane %v1069, 5
      %v2208 = vsel %vm2148, %v2206, %v2207
      %v2209 = vrot.slane %v2207, 4
      %v2210 = vrot.slane %v1108, 5
      %v2211 = vsel %vm2148, %v2209, %v2210
      %v2212 = vrot.slane %v2107, 5
      %v2213 = vrot.slane %v2212, 4
      %v2214 = vrot.slane %v1071, 5
      %v2215 = vsel %vm2148, %v2213, %v2214
      %v2216 = vrot.slane %v2214, 4
      %v2217 = vrot.slane %v1109, 5
      %v2218 = vsel %vm2148, %v2216, %v2217
      %v2219 = vrot.slane %v2108, 5
      %v2220 = vrot.slane %v2219, 4
      %v2221 = vrot.slane %v1073, 5
      %v2222 = vsel %vm2148, %v2220, %v2221
      %v2223 = vrot.slane %v2221, 4
      %v2224 = vrot.slane %v1110, 5
      %v2225 = vsel %vm2148, %v2223, %v2224
      %v2226 = vrot.slane %v2109, 5
      %v2227 = vrot.slane %v2226, 4
      %v2228 = vrot.slane %v1075, 5
      %v2229 = vsel %vm2148, %v2227, %v2228
      %v2230 = vrot.slane %v2228, 4
      %v2231 = vrot.slane %v1111, 5
      %v2232 = vsel %vm2148, %v2230, %v2231
      %v2233 = vrot.slane %v2110, 5
      %v2234 = vrot.slane %v2233, 4
      %v2235 = vrot.slane %v1077, 5
      %v2236 = vsel %vm2148, %v2234, %v2235
      %v2237 = vrot.slane %v2235, 4
      %v2238 = vrot.slane %v1112, 5
      %v2239 = vsel %vm2148, %v2237, %v2238
      %v2240 = vrot.slane %v2111, 5
      %v2241 = vrot.slane %v2240, 4
      %v2242 = vrot.slane %v1079, 5
      %v2243 = vsel %vm2148, %v2241, %v2242
      %v2244 = vrot.slane %v2242, 4
      %v2245 = vrot.slane %v1113, 5
      %v2246 = vsel %vm2148, %v2244, %v2245
      %v2247 = vrot.slane %v2112, 5
      %v2248 = vrot.slane %v2247, 4
      %v2249 = vrot.slane %v1081, 5
      %v2250 = vsel %vm2148, %v2248, %v2249
      %v2251 = vrot.slane %v2249, 4
      %v2252 = vrot.slane %v1114, 5
      %v2253 = vsel %vm2148, %v2251, %v2252
      %v2254 = vrot.slane %v2113, 5
      %v2255 = vrot.slane %v2254, 4
      %v2256 = vrot.slane %v1083, 5
      %v2257 = vsel %vm2148, %v2255, %v2256
      %v2258 = vrot.slane %v2256, 4
      %v2259 = vrot.slane %v1115, 5
      %v2260 = vsel %vm2148, %v2258, %v2259
      %s2261 = scalar_lea.vmem %s3, 128
      %v2262 = vld [vmem:[%s2261] sm:$0xf]
      %v2263 = vld [vmem:[%s2261 + $0x4] sm:$0xf]
      %v2264 = vld [vmem:[%s2261 + $0x8] sm:$0xf]
      %v2265 = vld [vmem:[%s2261 + $0xc] sm:$0xf]
      %v2266 = vld [vmem:[%s2261 + $0x10] sm:$0xf]
      %v2267 = vld [vmem:[%s2261 + $0x14] sm:$0xf]
      %v2268 = vld [vmem:[%s2261 + $0x18] sm:$0xf]
      %v2269 = vld [vmem:[%s2261 + $0x1c] sm:$0xf]
      %v2270 = vld [vmem:[%s2261 + $0x20] sm:$0xf]
      %v2271 = vld [vmem:[%s2261 + $0x24] sm:$0xf]
      %v2272 = vld [vmem:[%s2261 + $0x28] sm:$0xf]
      %v2273 = vld [vmem:[%s2261 + $0x2c] sm:$0xf]
      %v2274 = vld [vmem:[%s2261 + $0x30] sm:$0xf]
      %v2275 = vld [vmem:[%s2261 + $0x34] sm:$0xf]
      %v2276 = vld [vmem:[%s2261 + $0x38] sm:$0xf]
      %v2277 = vld [vmem:[%s2261 + $0x3c] sm:$0xf]
      %v2278 = vunpack.c.l.b16 %v2152
      %v2279 = vunpack.c.l.b16 %v2155
      %v2280 = vunpack.c.l.b16 %v2159
      %v2281 = vunpack.c.l.b16 %v2162
      %v2282 = vunpack.c.l.b16 %v2166
      %v2283 = vunpack.c.l.b16 %v2169
      %v2284 = vunpack.c.l.b16 %v2173
      %v2285 = vunpack.c.l.b16 %v2176
      %v2286 = vunpack.c.l.b16 %v2180
      %v2287 = vunpack.c.l.b16 %v2183
      %v2288 = vunpack.c.l.b16 %v2187
      %v2289 = vunpack.c.l.b16 %v2190
      %v2290 = vunpack.c.l.b16 %v2194
      %v2291 = vunpack.c.l.b16 %v2197
      %v2292 = vunpack.c.l.b16 %v2201
      %v2293 = vunpack.c.l.b16 %v2204
      %v2294 = vunpack.c.l.b16 %v2208
      %v2295 = vunpack.c.l.b16 %v2211
      %v2296 = vunpack.c.l.b16 %v2215
      %v2297 = vunpack.c.l.b16 %v2218
      %v2298 = vunpack.c.l.b16 %v2222
      %v2299 = vunpack.c.l.b16 %v2225
      %v2300 = vunpack.c.l.b16 %v2229
      %v2301 = vunpack.c.l.b16 %v2232
      %v2302 = vunpack.c.l.b16 %v2236
      %v2303 = vunpack.c.l.b16 %v2239
      %v2304 = vunpack.c.l.b16 %v2243
      %v2305 = vunpack.c.l.b16 %v2246
      %v2306 = vunpack.c.l.b16 %v2250
      %v2307 = vunpack.c.l.b16 %v2253
      %v2308 = vunpack.c.l.b16 %v2257
      %v2309 = vunpack.c.l.b16 %v2260
      %v2310 = vpack.c.b16 %v2279, %v2278
      %v2311 = vpack.c.b16 %v2281, %v2280
      %v2312 = vpack.c.b16 %v2283, %v2282
      %v2313 = vpack.c.b16 %v2285, %v2284
      %v2314 = vpack.c.b16 %v2287, %v2286
      %v2315 = vpack.c.b16 %v2289, %v2288
      %v2316 = vpack.c.b16 %v2291, %v2290
      %v2317 = vpack.c.b16 %v2293, %v2292
      %v2318 = vpack.c.b16 %v2295, %v2294
      %v2319 = vpack.c.b16 %v2297, %v2296
      %v2320 = vpack.c.b16 %v2299, %v2298
      %v2321 = vpack.c.b16 %v2301, %v2300
      %v2322 = vpack.c.b16 %v2303, %v2302
      %v2323 = vpack.c.b16 %v2305, %v2304
      %v2324 = vpack.c.b16 %v2307, %v2306
      %v2325 = vpack.c.b16 %v2309, %v2308
      %v2358 = vunpack.c.l.b16 %v2262
      %v2359 = vunpack.c.l.b16 %v2263
      %v2360 = vunpack.c.l.b16 %v2264
      %v2361 = vunpack.c.l.b16 %v2265
      %v2362 = vunpack.c.l.b16 %v2266
      %v2363 = vunpack.c.l.b16 %v2267
      %v2364 = vunpack.c.l.b16 %v2268
      %v2365 = vunpack.c.l.b16 %v2269
      %v2366 = vunpack.c.l.b16 %v2270
      %v2367 = vunpack.c.l.b16 %v2271
      %v2368 = vunpack.c.l.b16 %v2272
      %v2369 = vunpack.c.l.b16 %v2273
      %v2370 = vunpack.c.l.b16 %v2274
      %v2371 = vunpack.c.l.b16 %v2275
      %v2372 = vunpack.c.l.b16 %v2276
      %v2373 = vunpack.c.l.b16 %v2277
      %v2374 = vpack.c.b16 %v2359, %v2358
      %v2375 = vpack.c.b16 %v2361, %v2360
      %v2376 = vpack.c.b16 %v2363, %v2362
      %v2377 = vpack.c.b16 %v2365, %v2364
      %v2378 = vpack.c.b16 %v2367, %v2366
      %v2379 = vpack.c.b16 %v2369, %v2368
      %v2380 = vpack.c.b16 %v2371, %v2370
      %v2381 = vpack.c.b16 %v2373, %v2372
      %2390 = vmatprep.subr.bf16.mxu0 0
      %2391 = vmatpush1.bf16.msra.mxu0 %v2374
      %2392 = vmatprep.subr.bf16.mxu0 0
      %2393 = vmatpush1.bf16.msra.mxu0 %v2375
      %2394 = vmatprep.subr.bf16.mxu0 0
      %2395 = vmatpush1.bf16.msra.mxu0 %v2376
      %2396 = vmatprep.subr.bf16.mxu0 0
      %2397 = vmatpush1.bf16.msra.mxu0 %v2377
      %2398 = vmatprep.subr.bf16.mxu0 0
      %2399 = vmatpush1.bf16.msra.mxu0 %v2378
      %2400 = vmatprep.subr.bf16.mxu0 0
      %2401 = vmatpush1.bf16.msra.mxu0 %v2379
      %2402 = vmatprep.subr.bf16.mxu0 0
      %2403 = vmatpush1.bf16.msra.mxu0 %v2380
      %2404 = vmatprep.subr.bf16.mxu0 0
      %2405 = vmatpush1.bf16.msra.mxu0 %v2381
      %2406 = vmatprep.subr.bf16.mxu0 0
      %2407 = vmatpush1.bf16.msra.mxu0 0
      %2408 = vmatprep.subr.bf16.mxu0 0
      %2409 = vmatpush1.bf16.msra.mxu0 0
      %2410 = vmatprep.subr.bf16.mxu0 0
      %2411 = vmatpush1.bf16.msra.mxu0 0
      %2412 = vmatprep.subr.bf16.mxu0 0
      %2413 = vmatpush1.bf16.msra.mxu0 0
      %2414 = vmatprep.subr.bf16.mxu0 0
      %2415 = vmatpush1.bf16.msra.mxu0 0
      %2416 = vmatprep.subr.bf16.mxu0 0
      %2417 = vmatpush1.bf16.msra.mxu0 0
      %2418 = vmatprep.subr.bf16.mxu0 0
      %2419 = vmatpush1.bf16.msra.mxu0 0
      %2420 = vmatprep.subr.bf16.mxu0 0
      %2421 = vmatpush1.bf16.msra.mxu0 0
      %2422 = vmatprep.mubr.bf16.mxu0 0
      %2423 = vmatmul.mubr.bf16.gmra.mrb[0].mxu0 %v2310
      %v2424 = vpop.f32.mrb[0].mxu0
      %v2425 = vadd.f32 0.0, %v2424
      %v2426 = vpop.f32.mrb[0].mxu0
      %v2427 = vpop.f32.mrb[0].mxu0
      %v2428 = vadd.f32 0.0, %v2427
      %v2429 = vpop.f32.mrb[0].mxu0
      %2430 = vmatprep.mubr.bf16.mxu0 0
      %2431 = vmatmul.mubr.bf16.gmra.mrb[0].mxu0 %v2311
      %v2432 = vpop.f32.mrb[0].mxu0
      %v2433 = vadd.f32 0.0, %v2432
      %v2434 = vpop.f32.mrb[0].mxu0
      %v2435 = vpop.f32.mrb[0].mxu0
      %v2436 = vadd.f32 0.0, %v2435
      %v2437 = vpop.f32.mrb[0].mxu0
      %2438 = vmatprep.mubr.bf16.mxu0 0
      %2439 = vmatmul.mubr.bf16.gmra.mrb[0].mxu0 %v2312
      %v2440 = vpop.f32.mrb[0].mxu0
      %v2441 = vadd.f32 0.0, %v2440
      %v2442 = vpop.f32.mrb[0].mxu0
      %v2443 = vpop.f32.mrb[0].mxu0
      %v2444 = vadd.f32 0.0, %v2443
      %v2445 = vpop.f32.mrb[0].mxu0
      %2446 = vmatprep.mubr.bf16.mxu0 0
      %2447 = vmatmul.mubr.bf16.gmra.mrb[0].mxu0 %v2313
      %v2448 = vpop.f32.mrb[0].mxu0
      %v2449 = vadd.f32 0.0, %v2448
      %v2450 = vpop.f32.mrb[0].mxu0
      %v2451 = vpop.f32.mrb[0].mxu0
      %v2452 = vadd.f32 0.0, %v2451
      %v2453 = vpop.f32.mrb[0].mxu0
      %2454 = vmatprep.mubr.bf16.mxu0 0
      %2455 = vmatmul.mubr.bf16.gmra.mrb[0].mxu0 %v2314
      %v2456 = vpop.f32.mrb[0].mxu0
      %v2457 = vadd.f32 0.0, %v2456
      %v2458 = vpop.f32.mrb[0].mxu0
      %v2459 = vpop.f32.mrb[0].mxu0
      %v2460 = vadd.f32 0.0, %v2459
      %v2461 = vpop.f32.mrb[0].mxu0
      %2462 = vmatprep.mubr.bf16.mxu0 0
      %2463 = vmatmul.mubr.bf16.gmra.mrb[0].mxu0 %v2315
      %v2464 = vpop.f32.mrb[0].mxu0
      %v2465 = vadd.f32 0.0, %v2464
      %v2466 = vpop.f32.mrb[0].mxu0
      %v2467 = vpop.f32.mrb[0].mxu0
      %v2468 = vadd.f32 0.0, %v2467
      %v2469 = vpop.f32.mrb[0].mxu0
      %2470 = vmatprep.mubr.bf16.mxu0 0
      %2471 = vmatmul.mubr.bf16.gmra.mrb[0].mxu0 %v2316
      %v2472 = vpop.f32.mrb[0].mxu0
      %v2473 = vadd.f32 0.0, %v2472
      %v2474 = vpop.f32.mrb[0].mxu0
      %v2475 = vpop.f32.mrb[0].mxu0
      %v2476 = vadd.f32 0.0, %v2475
      %v2477 = vpop.f32.mrb[0].mxu0
      %2478 = vmatprep.mubr.bf16.mxu0 0
      %2479 = vmatmul.mubr.bf16.gmra.mrb[0].mxu0 %v2317
      %v2480 = vpop.f32.mrb[0].mxu0
      %v2481 = vadd.f32 0.0, %v2480
      %v2482 = vpop.f32.mrb[0].mxu0
      %v2483 = vpop.f32.mrb[0].mxu0
      %v2484 = vadd.f32 0.0, %v2483
      %v2485 = vpop.f32.mrb[0].mxu0
      %2486 = vmatprep.mubr.bf16.mxu0 0
      %2487 = vmatmul.mubr.bf16.gmra.mrb[0].mxu0 %v2318
      %v2488 = vpop.f32.mrb[0].mxu0
      %v2489 = vadd.f32 0.0, %v2488
      %v2490 = vpop.f32.mrb[0].mxu0
      %v2491 = vpop.f32.mrb[0].mxu0
      %v2492 = vadd.f32 0.0, %v2491
      %v2493 = vpop.f32.mrb[0].mxu0
      %2494 = vmatprep.mubr.bf16.mxu0 0
      %2495 = vmatmul.mubr.bf16.gmra.mrb[0].mxu0 %v2319
      %v2496 = vpop.f32.mrb[0].mxu0
      %v2497 = vadd.f32 0.0, %v2496
      %v2498 = vpop.f32.mrb[0].mxu0
      %v2499 = vpop.f32.mrb[0].mxu0
      %v2500 = vadd.f32 0.0, %v2499
      %v2501 = vpop.f32.mrb[0].mxu0
      %2502 = vmatprep.mubr.bf16.mxu0 0
      %2503 = vmatmul.mubr.bf16.gmra.mrb[0].mxu0 %v2320
      %v2504 = vpop.f32.mrb[0].mxu0
      %v2505 = vadd.f32 0.0, %v2504
      %v2506 = vpop.f32.mrb[0].mxu0
      %v2507 = vpop.f32.mrb[0].mxu0
      %v2508 = vadd.f32 0.0, %v2507
      %v2509 = vpop.f32.mrb[0].mxu0
      %2510 = vmatprep.mubr.bf16.mxu0 0
      %2511 = vmatmul.mubr.bf16.gmra.mrb[0].mxu0 %v2321
      %v2512 = vpop.f32.mrb[0].mxu0
      %v2513 = vadd.f32 0.0, %v2512
      %v2514 = vpop.f32.mrb[0].mxu0
      %v2515 = vpop.f32.mrb[0].mxu0
      %v2516 = vadd.f32 0.0, %v2515
      %v2517 = vpop.f32.mrb[0].mxu0
      %2518 = vmatprep.mubr.bf16.mxu0 0
      %2519 = vmatmul.mubr.bf16.gmra.mrb[0].mxu0 %v2322
      %v2520 = vpop.f32.mrb[0].mxu0
      %v2521 = vadd.f32 0.0, %v2520
      %v2522 = vpop.f32.mrb[0].mxu0
      %v2523 = vpop.f32.mrb[0].mxu0
      %v2524 = vadd.f32 0.0, %v2523
      %v2525 = vpop.f32.mrb[0].mxu0
      %2526 = vmatprep.mubr.bf16.mxu0 0
      %2527 = vmatmul.mubr.bf16.gmra.mrb[0].mxu0 %v2323
      %v2528 = vpop.f32.mrb[0].mxu0
      %v2529 = vadd.f32 0.0, %v2528
      %v2530 = vpop.f32.mrb[0].mxu0
      %v2531 = vpop.f32.mrb[0].mxu0
      %v2532 = vadd.f32 0.0, %v2531
      %v2533 = vpop.f32.mrb[0].mxu0
      %2534 = vmatprep.mubr.bf16.mxu0 0
      %2535 = vmatmul.mubr.bf16.gmra.mrb[0].mxu0 %v2324
      %v2536 = vpop.f32.mrb[0].mxu0
      %v2537 = vadd.f32 0.0, %v2536
      %v2538 = vpop.f32.mrb[0].mxu0
      %v2539 = vpop.f32.mrb[0].mxu0
      %v2540 = vadd.f32 0.0, %v2539
      %v2541 = vpop.f32.mrb[0].mxu0
      %2542 = vmatprep.mubr.bf16.mxu0 0
      %2543 = vmatmul.mubr.bf16.gmra.mrb[0].mxu0 %v2325
      %v2544 = vpop.f32.mrb[0].mxu0
      %v2545 = vadd.f32 0.0, %v2544
      %v2546 = vpop.f32.mrb[0].mxu0
      %v2547 = vpop.f32.mrb[0].mxu0
      %v2548 = vadd.f32 0.0, %v2547
      %v2549 = vpop.f32.mrb[0].mxu0
      %2550 = vdwg.mxu0
      %v2551 = vadd.f32 %v1972, %v2425
      %v2552 = vadd.f32 %v1975, %v2428
      %v2553 = vadd.f32 %v1980, %v2433
      %v2554 = vadd.f32 %v1983, %v2436
      %v2555 = vadd.f32 %v1988, %v2441
      %v2556 = vadd.f32 %v1991, %v2444
      %v2557 = vadd.f32 %v1996, %v2449
      %v2558 = vadd.f32 %v1999, %v2452
      %v2559 = vadd.f32 %v2004, %v2457
      %v2560 = vadd.f32 %v2007, %v2460
      %v2561 = vadd.f32 %v2012, %v2465
      %v2562 = vadd.f32 %v2015, %v2468
      %v2563 = vadd.f32 %v2020, %v2473
      %v2564 = vadd.f32 %v2023, %v2476
      %v2565 = vadd.f32 %v2028, %v2481
      %v2566 = vadd.f32 %v2031, %v2484
      %v2567 = vadd.f32 %v2036, %v2489
      %v2568 = vadd.f32 %v2039, %v2492
      %v2569 = vadd.f32 %v2044, %v2497
      %v2570 = vadd.f32 %v2047, %v2500
      %v2571 = vadd.f32 %v2052, %v2505
      %v2572 = vadd.f32 %v2055, %v2508
      %v2573 = vadd.f32 %v2060, %v2513
      %v2574 = vadd.f32 %v2063, %v2516
      %v2575 = vadd.f32 %v2068, %v2521
      %v2576 = vadd.f32 %v2071, %v2524
      %v2577 = vadd.f32 %v2076, %v2529
      %v2578 = vadd.f32 %v2079, %v2532
      %v2579 = vadd.f32 %v2084, %v2537
      %v2580 = vadd.f32 %v2087, %v2540
      %v2581 = vadd.f32 %v2092, %v2545
      %v2582 = vadd.f32 %v2095, %v2548
      %v2583 = vld [vmem:[%s434] sm:$0xf]
      %v2584 = vld [vmem:[%s434 + $0x4] sm:$0xf]
      %v2585 = vld [vmem:[%s434 + $0xc] sm:$0xf]
      %v2586 = vld [vmem:[%s434 + $0x10] sm:$0xf]
      %v2587 = vld [vmem:[%s434 + $0x18] sm:$0xf]
      %v2588 = vld [vmem:[%s434 + $0x1c] sm:$0xf]
      %v2589 = vld [vmem:[%s434 + $0x24] sm:$0xf]
      %v2590 = vld [vmem:[%s434 + $0x28] sm:$0xf]
      %v2591 = vld [vmem:[%s434 + $0x30] sm:$0xf]
      %v2592 = vld [vmem:[%s434 + $0x34] sm:$0xf]
      %v2593 = vld [vmem:[%s434 + $0x3c] sm:$0xf]
      %v2594 = vld [vmem:[%s434 + $0x40] sm:$0xf]
      %v2595 = vld [vmem:[%s434 + $0x48] sm:$0xf]
      %v2596 = vld [vmem:[%s434 + $0x4c] sm:$0xf]
      %v2597 = vld [vmem:[%s434 + $0x54] sm:$0xf]
      %v2598 = vld [vmem:[%s434 + $0x58] sm:$0xf]
      %v2599 = vld [vmem:[%s434 + $0x60] sm:$0xf]
      %v2600 = vld [vmem:[%s434 + $0x64] sm:$0xf]
      %v2601 = vld [vmem:[%s434 + $0x6c] sm:$0xf]
      %v2602 = vld [vmem:[%s434 + $0x70] sm:$0xf]
      %v2603 = vld [vmem:[%s434 + $0x78] sm:$0xf]
      %v2604 = vld [vmem:[%s434 + $0x7c] sm:$0xf]
      %v2605 = vld [vmem:[%s434 + $0x84] sm:$0xf]
      %v2606 = vld [vmem:[%s434 + $0x88] sm:$0xf]
      %v2607 = vld [vmem:[%s434 + $0x90] sm:$0xf]
      %v2608 = vld [vmem:[%s434 + $0x94] sm:$0xf]
      %v2609 = vld [vmem:[%s434 + $0x9c] sm:$0xf]
      %v2610 = vld [vmem:[%s434 + $0xa0] sm:$0xf]
      %v2611 = vld [vmem:[%s434 + $0xa8] sm:$0xf]
      %v2612 = vld [vmem:[%s434 + $0xac] sm:$0xf]
      %v2613 = vld [vmem:[%s434 + $0xb4] sm:$0xf]
      %v2614 = vld [vmem:[%s434 + $0xb8] sm:$0xf]
      %s2615 = scalar_lea.vmem %s3, 192
      %v2616 = vld [vmem:[%s2615] sm:$0xf]
      %v2617 = vld [vmem:[%s2615 + $0x4] sm:$0xf]
      %v2618 = vld [vmem:[%s2615 + $0x8] sm:$0xf]
      %v2619 = vld [vmem:[%s2615 + $0xc] sm:$0xf]
      %v2620 = vld [vmem:[%s2615 + $0x10] sm:$0xf]
      %v2621 = vld [vmem:[%s2615 + $0x14] sm:$0xf]
      %v2622 = vld [vmem:[%s2615 + $0x18] sm:$0xf]
      %v2623 = vld [vmem:[%s2615 + $0x1c] sm:$0xf]
      %v2624 = vld [vmem:[%s2615 + $0x20] sm:$0xf]
      %v2625 = vld [vmem:[%s2615 + $0x24] sm:$0xf]
      %v2626 = vld [vmem:[%s2615 + $0x28] sm:$0xf]
      %v2627 = vld [vmem:[%s2615 + $0x2c] sm:$0xf]
      %v2628 = vld [vmem:[%s2615 + $0x30] sm:$0xf]
      %v2629 = vld [vmem:[%s2615 + $0x34] sm:$0xf]
      %v2630 = vld [vmem:[%s2615 + $0x38] sm:$0xf]
      %v2631 = vld [vmem:[%s2615 + $0x3c] sm:$0xf]
      %v2664 = vunpack.c.l.b16 %v2583
      %v2665 = vunpack.c.l.b16 %v2584
      %v2666 = vunpack.c.l.b16 %v2585
      %v2667 = vunpack.c.l.b16 %v2586
      %v2668 = vunpack.c.l.b16 %v2587
      %v2669 = vunpack.c.l.b16 %v2588
      %v2670 = vunpack.c.l.b16 %v2589
      %v2671 = vunpack.c.l.b16 %v2590
      %v2672 = vunpack.c.l.b16 %v2591
      %v2673 = vunpack.c.l.b16 %v2592
      %v2674 = vunpack.c.l.b16 %v2593
      %v2675 = vunpack.c.l.b16 %v2594
      %v2676 = vunpack.c.l.b16 %v2595
      %v2677 = vunpack.c.l.b16 %v2596
      %v2678 = vunpack.c.l.b16 %v2597
      %v2679 = vunpack.c.l.b16 %v2598
      %v2680 = vunpack.c.l.b16 %v2599
      %v2681 = vunpack.c.l.b16 %v2600
      %v2682 = vunpack.c.l.b16 %v2601
      %v2683 = vunpack.c.l.b16 %v2602
      %v2684 = vunpack.c.l.b16 %v2603
      %v2685 = vunpack.c.l.b16 %v2604
      %v2686 = vunpack.c.l.b16 %v2605
      %v2687 = vunpack.c.l.b16 %v2606
      %v2688 = vunpack.c.l.b16 %v2607
      %v2689 = vunpack.c.l.b16 %v2608
      %v2690 = vunpack.c.l.b16 %v2609
      %v2691 = vunpack.c.l.b16 %v2610
      %v2692 = vunpack.c.l.b16 %v2611
      %v2693 = vunpack.c.l.b16 %v2612
      %v2694 = vunpack.c.l.b16 %v2613
      %v2695 = vunpack.c.l.b16 %v2614
      %v2696 = vpack.c.b16 %v2665, %v2664
      %v2697 = vpack.c.b16 %v2667, %v2666
      %v2698 = vpack.c.b16 %v2669, %v2668
      %v2699 = vpack.c.b16 %v2671, %v2670
      %v2700 = vpack.c.b16 %v2673, %v2672
      %v2701 = vpack.c.b16 %v2675, %v2674
      %v2702 = vpack.c.b16 %v2677, %v2676
      %v2703 = vpack.c.b16 %v2679, %v2678
      %v2704 = vpack.c.b16 %v2681, %v2680
      %v2705 = vpack.c.b16 %v2683, %v2682
      %v2706 = vpack.c.b16 %v2685, %v2684
      %v2707 = vpack.c.b16 %v2687, %v2686
      %v2708 = vpack.c.b16 %v2689, %v2688
      %v2709 = vpack.c.b16 %v2691, %v2690
      %v2710 = vpack.c.b16 %v2693, %v2692
      %v2711 = vpack.c.b16 %v2695, %v2694
      %v2744 = vunpack.c.l.b16 %v2616
      %v2745 = vunpack.c.l.b16 %v2617
      %v2746 = vunpack.c.l.b16 %v2618
      %v2747 = vunpack.c.l.b16 %v2619
      %v2748 = vunpack.c.l.b16 %v2620
      %v2749 = vunpack.c.l.b16 %v2621
      %v2750 = vunpack.c.l.b16 %v2622
      %v2751 = vunpack.c.l.b16 %v2623
      %v2752 = vunpack.c.l.b16 %v2624
      %v2753 = vunpack.c.l.b16 %v2625
      %v2754 = vunpack.c.l.b16 %v2626
      %v2755 = vunpack.c.l.b16 %v2627
      %v2756 = vunpack.c.l.b16 %v2628
      %v2757 = vunpack.c.l.b16 %v2629
      %v2758 = vunpack.c.l.b16 %v2630
      %v2759 = vunpack.c.l.b16 %v2631
      %v2760 = vpack.c.b16 %v2745, %v2744
      %v2761 = vpack.c.b16 %v2747, %v2746
      %v2762 = vpack.c.b16 %v2749, %v2748
      %v2763 = vpack.c.b16 %v2751, %v2750
      %v2764 = vpack.c.b16 %v2753, %v2752
      %v2765 = vpack.c.b16 %v2755, %v2754
      %v2766 = vpack.c.b16 %v2757, %v2756
      %v2767 = vpack.c.b16 %v2759, %v2758
      %2776 = vmatprep.subr.bf16.mxu0 0
      %2777 = vmatpush1.bf16.msra.mxu0 %v2760
      %2778 = vmatprep.subr.bf16.mxu0 0
      %2779 = vmatpush1.bf16.msra.mxu0 %v2761
      %2780 = vmatprep.subr.bf16.mxu0 0
      %2781 = vmatpush1.bf16.msra.mxu0 %v2762
      %2782 = vmatprep.subr.bf16.mxu0 0
      %2783 = vmatpush1.bf16.msra.mxu0 %v2763
      %2784 = vmatprep.subr.bf16.mxu0 0
      %2785 = vmatpush1.bf16.msra.mxu0 %v2764
      %2786 = vmatprep.subr.bf16.mxu0 0
      %2787 = vmatpush1.bf16.msra.mxu0 %v2765
      %2788 = vmatprep.subr.bf16.mxu0 0
      %2789 = vmatpush1.bf16.msra.mxu0 %v2766
      %2790 = vmatprep.subr.bf16.mxu0 0
      %2791 = vmatpush1.bf16.msra.mxu0 %v2767
      %2792 = vmatprep.subr.bf16.mxu0 0
      %2793 = vmatpush1.bf16.msra.mxu0 0
      %2794 = vmatprep.subr.bf16.mxu0 0
      %2795 = vmatpush1.bf16.msra.mxu0 0
      %2796 = vmatprep.subr.bf16.mxu0 0
      %2797 = vmatpush1.bf16.msra.mxu0 0
      %2798 = vmatprep.subr.bf16.mxu0 0
      %2799 = vmatpush1.bf16.msra.mxu0 0
      %2800 = vmatprep.subr.bf16.mxu0 0
      %2801 = vmatpush1.bf16.msra.mxu0 0
      %2802 = vmatprep.subr.bf16.mxu0 0
      %2803 = vmatpush1.bf16.msra.mxu0 0
      %2804 = vmatprep.subr.bf16.mxu0 0
      %2805 = vmatpush1.bf16.msra.mxu0 0
      %2806 = vmatprep.subr.bf16.mxu0 0
      %2807 = vmatpush1.bf16.msra.mxu0 0
      %2808 = vmatprep.mubr.bf16.mxu0 0
      %2809 = vmatmul.mubr.bf16.gmra.mrb[0].mxu0 %v2696
      %v2810 = vpop.f32.mrb[0].mxu0
      %v2811 = vadd.f32 0.0, %v2810
      %v2812 = vpop.f32.mrb[0].mxu0
      %v2813 = vpop.f32.mrb[0].mxu0
      %v2814 = vadd.f32 0.0, %v2813
      %v2815 = vpop.f32.mrb[0].mxu0
      %2816 = vmatprep.mubr.bf16.mxu0 0
      %2817 = vmatmul.mubr.bf16.gmra.mrb[0].mxu0 %v2697
      %v2818 = vpop.f32.mrb[0].mxu0
      %v2819 = vadd.f32 0.0, %v2818
      %v2820 = vpop.f32.mrb[0].mxu0
      %v2821 = vpop.f32.mrb[0].mxu0
      %v2822 = vadd.f32 0.0, %v2821
      %v2823 = vpop.f32.mrb[0].mxu0
      %2824 = vmatprep.mubr.bf16.mxu0 0
      %2825 = vmatmul.mubr.bf16.gmra.mrb[0].mxu0 %v2698
      %v2826 = vpop.f32.mrb[0].mxu0
      %v2827 = vadd.f32 0.0, %v2826
      %v2828 = vpop.f32.mrb[0].mxu0
      %v2829 = vpop.f32.mrb[0].mxu0
      %v2830 = vadd.f32 0.0, %v2829
      %v2831 = vpop.f32.mrb[0].mxu0
      %2832 = vmatprep.mubr.bf16.mxu0 0
      %2833 = vmatmul.mubr.bf16.gmra.mrb[0].mxu0 %v2699
      %v2834 = vpop.f32.mrb[0].mxu0
      %v2835 = vadd.f32 0.0, %v2834
      %v2836 = vpop.f32.mrb[0].mxu0
      %v2837 = vpop.f32.mrb[0].mxu0
      %v2838 = vadd.f32 0.0, %v2837
      %v2839 = vpop.f32.mrb[0].mxu0
      %2840 = vmatprep.mubr.bf16.mxu0 0
      %2841 = vmatmul.mubr.bf16.gmra.mrb[0].mxu0 %v2700
      %v2842 = vpop.f32.mrb[0].mxu0
      %v2843 = vadd.f32 0.0, %v2842
      %v2844 = vpop.f32.mrb[0].mxu0
      %v2845 = vpop.f32.mrb[0].mxu0
      %v2846 = vadd.f32 0.0, %v2845
      %v2847 = vpop.f32.mrb[0].mxu0
      %2848 = vmatprep.mubr.bf16.mxu0 0
      %2849 = vmatmul.mubr.bf16.gmra.mrb[0].mxu0 %v2701
      %v2850 = vpop.f32.mrb[0].mxu0
      %v2851 = vadd.f32 0.0, %v2850
      %v2852 = vpop.f32.mrb[0].mxu0
      %v2853 = vpop.f32.mrb[0].mxu0
      %v2854 = vadd.f32 0.0, %v2853
      %v2855 = vpop.f32.mrb[0].mxu0
      %2856 = vmatprep.mubr.bf16.mxu0 0
      %2857 = vmatmul.mubr.bf16.gmra.mrb[0].mxu0 %v2702
      %v2858 = vpop.f32.mrb[0].mxu0
      %v2859 = vadd.f32 0.0, %v2858
      %v2860 = vpop.f32.mrb[0].mxu0
      %v2861 = vpop.f32.mrb[0].mxu0
      %v2862 = vadd.f32 0.0, %v2861
      %v2863 = vpop.f32.mrb[0].mxu0
      %2864 = vmatprep.mubr.bf16.mxu0 0
      %2865 = vmatmul.mubr.bf16.gmra.mrb[0].mxu0 %v2703
      %v2866 = vpop.f32.mrb[0].mxu0
      %v2867 = vadd.f32 0.0, %v2866
      %v2868 = vpop.f32.mrb[0].mxu0
      %v2869 = vpop.f32.mrb[0].mxu0
      %v2870 = vadd.f32 0.0, %v2869
      %v2871 = vpop.f32.mrb[0].mxu0
      %2872 = vmatprep.mubr.bf16.mxu0 0
      %2873 = vmatmul.mubr.bf16.gmra.mrb[0].mxu0 %v2704
      %v2874 = vpop.f32.mrb[0].mxu0
      %v2875 = vadd.f32 0.0, %v2874
      %v2876 = vpop.f32.mrb[0].mxu0
      %v2877 = vpop.f32.mrb[0].mxu0
      %v2878 = vadd.f32 0.0, %v2877
      %v2879 = vpop.f32.mrb[0].mxu0
      %2880 = vmatprep.mubr.bf16.mxu0 0
      %2881 = vmatmul.mubr.bf16.gmra.mrb[0].mxu0 %v2705
      %v2882 = vpop.f32.mrb[0].mxu0
      %v2883 = vadd.f32 0.0, %v2882
      %v2884 = vpop.f32.mrb[0].mxu0
      %v2885 = vpop.f32.mrb[0].mxu0
      %v2886 = vadd.f32 0.0, %v2885
      %v2887 = vpop.f32.mrb[0].mxu0
      %2888 = vmatprep.mubr.bf16.mxu0 0
      %2889 = vmatmul.mubr.bf16.gmra.mrb[0].mxu0 %v2706
      %v2890 = vpop.f32.mrb[0].mxu0
      %v2891 = vadd.f32 0.0, %v2890
      %v2892 = vpop.f32.mrb[0].mxu0
      %v2893 = vpop.f32.mrb[0].mxu0
      %v2894 = vadd.f32 0.0, %v2893
      %v2895 = vpop.f32.mrb[0].mxu0
      %2896 = vmatprep.mubr.bf16.mxu0 0
      %2897 = vmatmul.mubr.bf16.gmra.mrb[0].mxu0 %v2707
      %v2898 = vpop.f32.mrb[0].mxu0
      %v2899 = vadd.f32 0.0, %v2898
      %v2900 = vpop.f32.mrb[0].mxu0
      %v2901 = vpop.f32.mrb[0].mxu0
      %v2902 = vadd.f32 0.0, %v2901
      %v2903 = vpop.f32.mrb[0].mxu0
      %2904 = vmatprep.mubr.bf16.mxu0 0
      %2905 = vmatmul.mubr.bf16.gmra.mrb[0].mxu0 %v2708
      %v2906 = vpop.f32.mrb[0].mxu0
      %v2907 = vadd.f32 0.0, %v2906
      %v2908 = vpop.f32.mrb[0].mxu0
      %v2909 = vpop.f32.mrb[0].mxu0
      %v2910 = vadd.f32 0.0, %v2909
      %v2911 = vpop.f32.mrb[0].mxu0
      %2912 = vmatprep.mubr.bf16.mxu0 0
      %2913 = vmatmul.mubr.bf16.gmra.mrb[0].mxu0 %v2709
      %v2914 = vpop.f32.mrb[0].mxu0
      %v2915 = vadd.f32 0.0, %v2914
      %v2916 = vpop.f32.mrb[0].mxu0
      %v2917 = vpop.f32.mrb[0].mxu0
      %v2918 = vadd.f32 0.0, %v2917
      %v2919 = vpop.f32.mrb[0].mxu0
      %2920 = vmatprep.mubr.bf16.mxu0 0
      %2921 = vmatmul.mubr.bf16.gmra.mrb[0].mxu0 %v2710
      %v2922 = vpop.f32.mrb[0].mxu0
      %v2923 = vadd.f32 0.0, %v2922
      %v2924 = vpop.f32.mrb[0].mxu0
      %v2925 = vpop.f32.mrb[0].mxu0
      %v2926 = vadd.f32 0.0, %v2925
      %v2927 = vpop.f32.mrb[0].mxu0
      %2928 = vmatprep.mubr.bf16.mxu0 0
      %2929 = vmatmul.mubr.bf16.gmra.mrb[0].mxu0 %v2711
      %v2930 = vpop.f32.mrb[0].mxu0
      %v2931 = vadd.f32 0.0, %v2930
      %v2932 = vpop.f32.mrb[0].mxu0
      %v2933 = vpop.f32.mrb[0].mxu0
      %v2934 = vadd.f32 0.0, %v2933
      %v2935 = vpop.f32.mrb[0].mxu0
      %2936 = vdwg.mxu0
      %v2937 = vadd.f32 %v2551, %v2811
      %v2938 = vadd.f32 %v2552, %v2814
      %v2939 = vadd.f32 %v2553, %v2819
      %v2940 = vadd.f32 %v2554, %v2822
      %v2941 = vadd.f32 %v2555, %v2827
      %v2942 = vadd.f32 %v2556, %v2830
      %v2943 = vadd.f32 %v2557, %v2835
      %v2944 = vadd.f32 %v2558, %v2838
      %v2945 = vadd.f32 %v2559, %v2843
      %v2946 = vadd.f32 %v2560, %v2846
      %v2947 = vadd.f32 %v2561, %v2851
      %v2948 = vadd.f32 %v2562, %v2854
      %v2949 = vadd.f32 %v2563, %v2859
      %v2950 = vadd.f32 %v2564, %v2862
      %v2951 = vadd.f32 %v2565, %v2867
      %v2952 = vadd.f32 %v2566, %v2870
      %v2953 = vadd.f32 %v2567, %v2875
      %v2954 = vadd.f32 %v2568, %v2878
      %v2955 = vadd.f32 %v2569, %v2883
      %v2956 = vadd.f32 %v2570, %v2886
      %v2957 = vadd.f32 %v2571, %v2891
      %v2958 = vadd.f32 %v2572, %v2894
      %v2959 = vadd.f32 %v2573, %v2899
      %v2960 = vadd.f32 %v2574, %v2902
      %v2961 = vadd.f32 %v2575, %v2907
      %v2962 = vadd.f32 %v2576, %v2910
      %v2963 = vadd.f32 %v2577, %v2915
      %v2964 = vadd.f32 %v2578, %v2918
      %v2965 = vadd.f32 %v2579, %v2923
      %v2966 = vadd.f32 %v2580, %v2926
      %v2967 = vadd.f32 %v2581, %v2931
      %v2968 = vadd.f32 %v2582, %v2934
      %v2969 = vld [vmem:[%s434] sm:$0xf]
      %v2970 = vld [vmem:[%s434 + $0x4] sm:$0xf]
      %v2971 = vld [vmem:[%s434 + $0x8] sm:$0x1]
      %v2972 = vld [vmem:[%s434 + $0xc] sm:$0xf]
      %v2973 = vld [vmem:[%s434 + $0x10] sm:$0xf]
      %v2974 = vld [vmem:[%s434 + $0x14] sm:$0x1]
      %v2975 = vld [vmem:[%s434 + $0x18] sm:$0xf]
      %v2976 = vld [vmem:[%s434 + $0x1c] sm:$0xf]
      %v2977 = vld [vmem:[%s434 + $0x20] sm:$0x1]
      %v2978 = vld [vmem:[%s434 + $0x24] sm:$0xf]
      %v2979 = vld [vmem:[%s434 + $0x28] sm:$0xf]
      %v2980 = vld [vmem:[%s434 + $0x2c] sm:$0x1]
      %v2981 = vld [vmem:[%s434 + $0x30] sm:$0xf]
      %v2982 = vld [vmem:[%s434 + $0x34] sm:$0xf]
      %v2983 = vld [vmem:[%s434 + $0x38] sm:$0x1]
      %v2984 = vld [vmem:[%s434 + $0x3c] sm:$0xf]
      %v2985 = vld [vmem:[%s434 + $0x40] sm:$0xf]
      %v2986 = vld [vmem:[%s434 + $0x44] sm:$0x1]
      %v2987 = vld [vmem:[%s434 + $0x48] sm:$0xf]
      %v2988 = vld [vmem:[%s434 + $0x4c] sm:$0xf]
      %v2989 = vld [vmem:[%s434 + $0x50] sm:$0x1]
      %v2990 = vld [vmem:[%s434 + $0x54] sm:$0xf]
      %v2991 = vld [vmem:[%s434 + $0x58] sm:$0xf]
      %v2992 = vld [vmem:[%s434 + $0x5c] sm:$0x1]
      %v2993 = vld [vmem:[%s434 + $0x60] sm:$0xf]
      %v2994 = vld [vmem:[%s434 + $0x64] sm:$0xf]
      %v2995 = vld [vmem:[%s434 + $0x68] sm:$0x1]
      %v2996 = vld [vmem:[%s434 + $0x6c] sm:$0xf]
      %v2997 = vld [vmem:[%s434 + $0x70] sm:$0xf]
      %v2998 = vld [vmem:[%s434 + $0x74] sm:$0x1]
      %v2999 = vld [vmem:[%s434 + $0x78] sm:$0xf]
      %v3000 = vld [vmem:[%s434 + $0x7c] sm:$0xf]
      %v3001 = vld [vmem:[%s434 + $0x80] sm:$0x1]
      %v3002 = vld [vmem:[%s434 + $0x84] sm:$0xf]
      %v3003 = vld [vmem:[%s434 + $0x88] sm:$0xf]
      %v3004 = vld [vmem:[%s434 + $0x8c] sm:$0x1]
      %v3005 = vld [vmem:[%s434 + $0x90] sm:$0xf]
      %v3006 = vld [vmem:[%s434 + $0x94] sm:$0xf]
      %v3007 = vld [vmem:[%s434 + $0x98] sm:$0x1]
      %v3008 = vld [vmem:[%s434 + $0x9c] sm:$0xf]
      %v3009 = vld [vmem:[%s434 + $0xa0] sm:$0xf]
      %v3010 = vld [vmem:[%s434 + $0xa4] sm:$0x1]
      %v3011 = vld [vmem:[%s434 + $0xa8] sm:$0xf]
      %v3012 = vld [vmem:[%s434 + $0xac] sm:$0xf]
      %v3013 = vld [vmem:[%s434 + $0xb0] sm:$0x1]
      %v3014 = vld [vmem:[%s434 + $0xb4] sm:$0xf]
      %v3015 = vld [vmem:[%s434 + $0xb8] sm:$0xf]
      %v3016 = vld [vmem:[%s434 + $0xbc] sm:$0x1]
      %v3018 = vshrl.u32 %v2969, 16
      %v3020 = vrot.slane %v3018, 4
      %v3021 = vshll.u32 %v2969, 16
      %v3023 = vrot.slane %v3021, 5
      %v3024 = vor.u32 %v3020, %v3023
      %v3025 = vrot.slane %v3024, 4
      %v3027 = vshll.u32 %v2970, 16
      %v3029 = vrot.slane %v3027, 5
      %v3030 = vsel %vm1118, %v3025, %v3029
      %v3031 = vshrl.u32 %v2970, 16
      %v3033 = vrot.slane %v3031, 4
      %v3034 = vor.u32 %v3033, %v3029
      %v3035 = vrot.slane %v3034, 4
      %v3037 = vshll.u32 %v2971, 16
      %v3039 = vrot.slane %v3037, 5
      %v3040 = vsel %vm1118, %v3035, %v3039
      %v3042 = vshrl.u32 %v2972, 16
      %v3044 = vrot.slane %v3042, 4
      %v3045 = vshll.u32 %v2972, 16
      %v3047 = vrot.slane %v3045, 5
      %v3048 = vor.u32 %v3044, %v3047
      %v3049 = vrot.slane %v3048, 4
      %v3051 = vshll.u32 %v2973, 16
      %v3053 = vrot.slane %v3051, 5
      %v3054 = vsel %vm1118, %v3049, %v3053
      %v3055 = vshrl.u32 %v2973, 16
      %v3057 = vrot.slane %v3055, 4
      %v3058 = vor.u32 %v3057, %v3053
      %v3059 = vrot.slane %v3058, 4
      %v3061 = vshll.u32 %v2974, 16
      %v3063 = vrot.slane %v3061, 5
      %v3064 = vsel %vm1118, %v3059, %v3063
      %v3066 = vshrl.u32 %v2975, 16
      %v3068 = vrot.slane %v3066, 4
      %v3069 = vshll.u32 %v2975, 16
      %v3071 = vrot.slane %v3069, 5
      %v3072 = vor.u32 %v3068, %v3071
      %v3073 = vrot.slane %v3072, 4
      %v3075 = vshll.u32 %v2976, 16
      %v3077 = vrot.slane %v3075, 5
      %v3078 = vsel %vm1118, %v3073, %v3077
      %v3079 = vshrl.u32 %v2976, 16
      %v3081 = vrot.slane %v3079, 4
      %v3082 = vor.u32 %v3081, %v3077
      %v3083 = vrot.slane %v3082, 4
      %v3085 = vshll.u32 %v2977, 16
      %v3087 = vrot.slane %v3085, 5
      %v3088 = vsel %vm1118, %v3083, %v3087
      %v3090 = vshrl.u32 %v2978, 16
      %v3092 = vrot.slane %v3090, 4
      %v3093 = vshll.u32 %v2978, 16
      %v3095 = vrot.slane %v3093, 5
      %v3096 = vor.u32 %v3092, %v3095
      %v3097 = vrot.slane %v3096, 4
      %v3099 = vshll.u32 %v2979, 16
      %v3101 = vrot.slane %v3099, 5
      %v3102 = vsel %vm1118, %v3097, %v3101
      %v3103 = vshrl.u32 %v2979, 16
      %v3105 = vrot.slane %v3103, 4
      %v3106 = vor.u32 %v3105, %v3101
      %v3107 = vrot.slane %v3106, 4
      %v3109 = vshll.u32 %v2980, 16
      %v3111 = vrot.slane %v3109, 5
      %v3112 = vsel %vm1118, %v3107, %v3111
      %v3114 = vshrl.u32 %v2981, 16
      %v3116 = vrot.slane %v3114, 4
      %v3117 = vshll.u32 %v2981, 16
      %v3119 = vrot.slane %v3117, 5
      %v3120 = vor.u32 %v3116, %v3119
      %v3121 = vrot.slane %v3120, 4
      %v3123 = vshll.u32 %v2982, 16
      %v3125 = vrot.slane %v3123, 5
      %v3126 = vsel %vm1118, %v3121, %v3125
      %v3127 = vshrl.u32 %v2982, 16
      %v3129 = vrot.slane %v3127, 4
      %v3130 = vor.u32 %v3129, %v3125
      %v3131 = vrot.slane %v3130, 4
      %v3133 = vshll.u32 %v2983, 16
      %v3135 = vrot.slane %v3133, 5
      %v3136 = vsel %vm1118, %v3131, %v3135
      %v3138 = vshrl.u32 %v2984, 16
      %v3140 = vrot.slane %v3138, 4
      %v3141 = vshll.u32 %v2984, 16
      %v3143 = vrot.slane %v3141, 5
      %v3144 = vor.u32 %v3140, %v3143
      %v3145 = vrot.slane %v3144, 4
      %v3147 = vshll.u32 %v2985, 16
      %v3149 = vrot.slane %v3147, 5
      %v3150 = vsel %vm1118, %v3145, %v3149
      %v3151 = vshrl.u32 %v2985, 16
      %v3153 = vrot.slane %v3151, 4
      %v3154 = vor.u32 %v3153, %v3149
      %v3155 = vrot.slane %v3154, 4
      %v3157 = vshll.u32 %v2986, 16
      %v3159 = vrot.slane %v3157, 5
      %v3160 = vsel %vm1118, %v3155, %v3159
      %v3162 = vshrl.u32 %v2987, 16
      %v3164 = vrot.slane %v3162, 4
      %v3165 = vshll.u32 %v2987, 16
      %v3167 = vrot.slane %v3165, 5
      %v3168 = vor.u32 %v3164, %v3167
      %v3169 = vrot.slane %v3168, 4
      %v3171 = vshll.u32 %v2988, 16
      %v3173 = vrot.slane %v3171, 5
      %v3174 = vsel %vm1118, %v3169, %v3173
      %v3175 = vshrl.u32 %v2988, 16
      %v3177 = vrot.slane %v3175, 4
      %v3178 = vor.u32 %v3177, %v3173
      %v3179 = vrot.slane %v3178, 4
      %v3181 = vshll.u32 %v2989, 16
      %v3183 = vrot.slane %v3181, 5
      %v3184 = vsel %vm1118, %v3179, %v3183
      %v3186 = vshrl.u32 %v2990, 16
      %v3188 = vrot.slane %v3186, 4
      %v3189 = vshll.u32 %v2990, 16
      %v3191 = vrot.slane %v3189, 5
      %v3192 = vor.u32 %v3188, %v3191
      %v3193 = vrot.slane %v3192, 4
      %v3195 = vshll.u32 %v2991, 16
      %v3197 = vrot.slane %v3195, 5
      %v3198 = vsel %vm1118, %v3193, %v3197
      %v3199 = vshrl.u32 %v2991, 16
      %v3201 = vrot.slane %v3199, 4
      %v3202 = vor.u32 %v3201, %v3197
      %v3203 = vrot.slane %v3202, 4
      %v3205 = vshll.u32 %v2992, 16
      %v3207 = vrot.slane %v3205, 5
      %v3208 = vsel %vm1118, %v3203, %v3207
      %v3210 = vshrl.u32 %v2993, 16
      %v3212 = vrot.slane %v3210, 4
      %v3213 = vshll.u32 %v2993, 16
      %v3215 = vrot.slane %v3213, 5
      %v3216 = vor.u32 %v3212, %v3215
      %v3217 = vrot.slane %v3216, 4
      %v3219 = vshll.u32 %v2994, 16
      %v3221 = vrot.slane %v3219, 5
      %v3222 = vsel %vm1118, %v3217, %v3221
      %v3223 = vshrl.u32 %v2994, 16
      %v3225 = vrot.slane %v3223, 4
      %v3226 = vor.u32 %v3225, %v3221
      %v3227 = vrot.slane %v3226, 4
      %v3229 = vshll.u32 %v2995, 16
      %v3231 = vrot.slane %v3229, 5
      %v3232 = vsel %vm1118, %v3227, %v3231
      %v3234 = vshrl.u32 %v2996, 16
      %v3236 = vrot.slane %v3234, 4
      %v3237 = vshll.u32 %v2996, 16
      %v3239 = vrot.slane %v3237, 5
      %v3240 = vor.u32 %v3236, %v3239
      %v3241 = vrot.slane %v3240, 4
      %v3243 = vshll.u32 %v2997, 16
      %v3245 = vrot.slane %v3243, 5
      %v3246 = vsel %vm1118, %v3241, %v3245
      %v3247 = vshrl.u32 %v2997, 16
      %v3249 = vrot.slane %v3247, 4
      %v3250 = vor.u32 %v3249, %v3245
      %v3251 = vrot.slane %v3250, 4
      %v3253 = vshll.u32 %v2998, 16
      %v3255 = vrot.slane %v3253, 5
      %v3256 = vsel %vm1118, %v3251, %v3255
      %v3258 = vshrl.u32 %v2999, 16
      %v3260 = vrot.slane %v3258, 4
      %v3261 = vshll.u32 %v2999, 16
      %v3263 = vrot.slane %v3261, 5
      %v3264 = vor.u32 %v3260, %v3263
      %v3265 = vrot.slane %v3264, 4
      %v3267 = vshll.u32 %v3000, 16
      %v3269 = vrot.slane %v3267, 5
      %v3270 = vsel %vm1118, %v3265, %v3269
      %v3271 = vshrl.u32 %v3000, 16
      %v3273 = vrot.slane %v3271, 4
      %v3274 = vor.u32 %v3273, %v3269
      %v3275 = vrot.slane %v3274, 4
      %v3277 = vshll.u32 %v3001, 16
      %v3279 = vrot.slane %v3277, 5
      %v3280 = vsel %vm1118, %v3275, %v3279
      %v3282 = vshrl.u32 %v3002, 16
      %v3284 = vrot.slane %v3282, 4
      %v3285 = vshll.u32 %v3002, 16
      %v3287 = vrot.slane %v3285, 5
      %v3288 = vor.u32 %v3284, %v3287
      %v3289 = vrot.slane %v3288, 4
      %v3291 = vshll.u32 %v3003, 16
      %v3293 = vrot.slane %v3291, 5
      %v3294 = vsel %vm1118, %v3289, %v3293
      %v3295 = vshrl.u32 %v3003, 16
      %v3297 = vrot.slane %v3295, 4
      %v3298 = vor.u32 %v3297, %v3293
      %v3299 = vrot.slane %v3298, 4
      %v3301 = vshll.u32 %v3004, 16
      %v3303 = vrot.slane %v3301, 5
      %v3304 = vsel %vm1118, %v3299, %v3303
      %v3306 = vshrl.u32 %v3005, 16
      %v3308 = vrot.slane %v3306, 4
      %v3309 = vshll.u32 %v3005, 16
      %v3311 = vrot.slane %v3309, 5
      %v3312 = vor.u32 %v3308, %v3311
      %v3313 = vrot.slane %v3312, 4
      %v3315 = vshll.u32 %v3006, 16
      %v3317 = vrot.slane %v3315, 5
      %v3318 = vsel %vm1118, %v3313, %v3317
      %v3319 = vshrl.u32 %v3006, 16
      %v3321 = vrot.slane %v3319, 4
      %v3322 = vor.u32 %v3321, %v3317
      %v3323 = vrot.slane %v3322, 4
      %v3325 = vshll.u32 %v3007, 16
      %v3327 = vrot.slane %v3325, 5
      %v3328 = vsel %vm1118, %v3323, %v3327
      %v3330 = vshrl.u32 %v3008, 16
      %v3332 = vrot.slane %v3330, 4
      %v3333 = vshll.u32 %v3008, 16
      %v3335 = vrot.slane %v3333, 5
      %v3336 = vor.u32 %v3332, %v3335
      %v3337 = vrot.slane %v3336, 4
      %v3339 = vshll.u32 %v3009, 16
      %v3341 = vrot.slane %v3339, 5
      %v3342 = vsel %vm1118, %v3337, %v3341
      %v3343 = vshrl.u32 %v3009, 16
      %v3345 = vrot.slane %v3343, 4
      %v3346 = vor.u32 %v3345, %v3341
      %v3347 = vrot.slane %v3346, 4
      %v3349 = vshll.u32 %v3010, 16
      %v3351 = vrot.slane %v3349, 5
      %v3352 = vsel %vm1118, %v3347, %v3351
      %v3354 = vshrl.u32 %v3011, 16
      %v3356 = vrot.slane %v3354, 4
      %v3357 = vshll.u32 %v3011, 16
      %v3359 = vrot.slane %v3357, 5
      %v3360 = vor.u32 %v3356, %v3359
      %v3361 = vrot.slane %v3360, 4
      %v3363 = vshll.u32 %v3012, 16
      %v3365 = vrot.slane %v3363, 5
      %v3366 = vsel %vm1118, %v3361, %v3365
      %v3367 = vshrl.u32 %v3012, 16
      %v3369 = vrot.slane %v3367, 4
      %v3370 = vor.u32 %v3369, %v3365
      %v3371 = vrot.slane %v3370, 4
      %v3373 = vshll.u32 %v3013, 16
      %v3375 = vrot.slane %v3373, 5
      %v3376 = vsel %vm1118, %v3371, %v3375
      %v3378 = vshrl.u32 %v3014, 16
      %v3380 = vrot.slane %v3378, 4
      %v3381 = vshll.u32 %v3014, 16
      %v3383 = vrot.slane %v3381, 5
      %v3384 = vor.u32 %v3380, %v3383
      %v3385 = vrot.slane %v3384, 4
      %v3387 = vshll.u32 %v3015, 16
      %v3389 = vrot.slane %v3387, 5
      %v3390 = vsel %vm1118, %v3385, %v3389
      %v3391 = vshrl.u32 %v3015, 16
      %v3393 = vrot.slane %v3391, 4
      %v3394 = vor.u32 %v3393, %v3389
      %v3395 = vrot.slane %v3394, 4
      %v3397 = vshll.u32 %v3016, 16
      %v3399 = vrot.slane %v3397, 5
      %v3400 = vsel %vm1118, %v3395, %v3399
      %s3401 = scalar_lea.vmem %s3, 256
      %v3402 = vld [vmem:[%s3401] sm:$0xf]
      %v3403 = vld [vmem:[%s3401 + $0x4] sm:$0xf]
      %v3404 = vld [vmem:[%s3401 + $0x8] sm:$0xf]
      %v3405 = vld [vmem:[%s3401 + $0xc] sm:$0xf]
      %v3406 = vld [vmem:[%s3401 + $0x10] sm:$0xf]
      %v3407 = vld [vmem:[%s3401 + $0x14] sm:$0xf]
      %v3408 = vld [vmem:[%s3401 + $0x18] sm:$0xf]
      %v3409 = vld [vmem:[%s3401 + $0x1c] sm:$0xf]
      %v3410 = vld [vmem:[%s3401 + $0x20] sm:$0xf]
      %v3411 = vld [vmem:[%s3401 + $0x24] sm:$0xf]
      %v3412 = vld [vmem:[%s3401 + $0x28] sm:$0xf]
      %v3413 = vld [vmem:[%s3401 + $0x2c] sm:$0xf]
      %v3414 = vld [vmem:[%s3401 + $0x30] sm:$0xf]
      %v3415 = vld [vmem:[%s3401 + $0x34] sm:$0xf]
      %v3416 = vld [vmem:[%s3401 + $0x38] sm:$0xf]
      %v3417 = vld [vmem:[%s3401 + $0x3c] sm:$0xf]
      %v3418 = vunpack.c.l.b16 %v3030
      %v3419 = vunpack.c.l.b16 %v3040
      %v3420 = vunpack.c.l.b16 %v3054
      %v3421 = vunpack.c.l.b16 %v3064
      %v3422 = vunpack.c.l.b16 %v3078
      %v3423 = vunpack.c.l.b16 %v3088
      %v3424 = vunpack.c.l.b16 %v3102
      %v3425 = vunpack.c.l.b16 %v3112
      %v3426 = vunpack.c.l.b16 %v3126
      %v3427 = vunpack.c.l.b16 %v3136
      %v3428 = vunpack.c.l.b16 %v3150
      %v3429 = vunpack.c.l.b16 %v3160
      %v3430 = vunpack.c.l.b16 %v3174
      %v3431 = vunpack.c.l.b16 %v3184
      %v3432 = vunpack.c.l.b16 %v3198
      %v3433 = vunpack.c.l.b16 %v3208
      %v3434 = vunpack.c.l.b16 %v3222
      %v3435 = vunpack.c.l.b16 %v3232
      %v3436 = vunpack.c.l.b16 %v3246
      %v3437 = vunpack.c.l.b16 %v3256
      %v3438 = vunpack.c.l.b16 %v3270
      %v3439 = vunpack.c.l.b16 %v3280
      %v3440 = vunpack.c.l.b16 %v3294
      %v3441 = vunpack.c.l.b16 %v3304
      %v3442 = vunpack.c.l.b16 %v3318
      %v3443 = vunpack.c.l.b16 %v3328
      %v3444 = vunpack.c.l.b16 %v3342
      %v3445 = vunpack.c.l.b16 %v3352
      %v3446 = vunpack.c.l.b16 %v3366
      %v3447 = vunpack.c.l.b16 %v3376
      %v3448 = vunpack.c.l.b16 %v3390
      %v3449 = vunpack.c.l.b16 %v3400
      %v3450 = vpack.c.b16 %v3419, %v3418
      %v3451 = vpack.c.b16 %v3421, %v3420
      %v3452 = vpack.c.b16 %v3423, %v3422
      %v3453 = vpack.c.b16 %v3425, %v3424
      %v3454 = vpack.c.b16 %v3427, %v3426
      %v3455 = vpack.c.b16 %v3429, %v3428
      %v3456 = vpack.c.b16 %v3431, %v3430
      %v3457 = vpack.c.b16 %v3433, %v3432
      %v3458 = vpack.c.b16 %v3435, %v3434
      %v3459 = vpack.c.b16 %v3437, %v3436
      %v3460 = vpack.c.b16 %v3439, %v3438
      %v3461 = vpack.c.b16 %v3441, %v3440
      %v3462 = vpack.c.b16 %v3443, %v3442
      %v3463 = vpack.c.b16 %v3445, %v3444
      %v3464 = vpack.c.b16 %v3447, %v3446
      %v3465 = vpack.c.b16 %v3449, %v3448
      %v3498 = vunpack.c.l.b16 %v3402
      %v3499 = vunpack.c.l.b16 %v3403
      %v3500 = vunpack.c.l.b16 %v3404
      %v3501 = vunpack.c.l.b16 %v3405
      %v3502 = vunpack.c.l.b16 %v3406
      %v3503 = vunpack.c.l.b16 %v3407
      %v3504 = vunpack.c.l.b16 %v3408
      %v3505 = vunpack.c.l.b16 %v3409
      %v3506 = vunpack.c.l.b16 %v3410
      %v3507 = vunpack.c.l.b16 %v3411
      %v3508 = vunpack.c.l.b16 %v3412
      %v3509 = vunpack.c.l.b16 %v3413
      %v3510 = vunpack.c.l.b16 %v3414
      %v3511 = vunpack.c.l.b16 %v3415
      %v3512 = vunpack.c.l.b16 %v3416
      %v3513 = vunpack.c.l.b16 %v3417
      %v3514 = vpack.c.b16 %v3499, %v3498
      %v3515 = vpack.c.b16 %v3501, %v3500
      %v3516 = vpack.c.b16 %v3503, %v3502
      %v3517 = vpack.c.b16 %v3505, %v3504
      %v3518 = vpack.c.b16 %v3507, %v3506
      %v3519 = vpack.c.b16 %v3509, %v3508
      %v3520 = vpack.c.b16 %v3511, %v3510
      %v3521 = vpack.c.b16 %v3513, %v3512
      %3530 = vmatprep.subr.bf16.mxu0 0
      %3531 = vmatpush1.bf16.msra.mxu0 %v3514
      %3532 = vmatprep.subr.bf16.mxu0 0
      %3533 = vmatpush1.bf16.msra.mxu0 %v3515
      %3534 = vmatprep.subr.bf16.mxu0 0
      %3535 = vmatpush1.bf16.msra.mxu0 %v3516
      %3536 = vmatprep.subr.bf16.mxu0 0
      %3537 = vmatpush1.bf16.msra.mxu0 %v3517
      %3538 = vmatprep.subr.bf16.mxu0 0
      %3539 = vmatpush1.bf16.msra.mxu0 %v3518
      %3540 = vmatprep.subr.bf16.mxu0 0
      %3541 = vmatpush1.bf16.msra.mxu0 %v3519
      %3542 = vmatprep.subr.bf16.mxu0 0
      %3543 = vmatpush1.bf16.msra.mxu0 %v3520
      %3544 = vmatprep.subr.bf16.mxu0 0
      %3545 = vmatpush1.bf16.msra.mxu0 %v3521
      %3546 = vmatprep.subr.bf16.mxu0 0
      %3547 = vmatpush1.bf16.msra.mxu0 0
      %3548 = vmatprep.subr.bf16.mxu0 0
      %3549 = vmatpush1.bf16.msra.mxu0 0
      %3550 = vmatprep.subr.bf16.mxu0 0
      %3551 = vmatpush1.bf16.msra.mxu0 0
      %3552 = vmatprep.subr.bf16.mxu0 0
      %3553 = vmatpush1.bf16.msra.mxu0 0
      %3554 = vmatprep.subr.bf16.mxu0 0
      %3555 = vmatpush1.bf16.msra.mxu0 0
      %3556 = vmatprep.subr.bf16.mxu0 0
      %3557 = vmatpush1.bf16.msra.mxu0 0
      %3558 = vmatprep.subr.bf16.mxu0 0
      %3559 = vmatpush1.bf16.msra.mxu0 0
      %3560 = vmatprep.subr.bf16.mxu0 0
      %3561 = vmatpush1.bf16.msra.mxu0 0
      %3562 = vmatprep.mubr.bf16.mxu0 0
      %3563 = vmatmul.mubr.bf16.gmra.mrb[0].mxu0 %v3450
      %v3564 = vpop.f32.mrb[0].mxu0
      %v3565 = vadd.f32 0.0, %v3564
      %v3566 = vpop.f32.mrb[0].mxu0
      %v3567 = vpop.f32.mrb[0].mxu0
      %v3568 = vadd.f32 0.0, %v3567
      %v3569 = vpop.f32.mrb[0].mxu0
      %3570 = vmatprep.mubr.bf16.mxu0 0
      %3571 = vmatmul.mubr.bf16.gmra.mrb[0].mxu0 %v3451
      %v3572 = vpop.f32.mrb[0].mxu0
      %v3573 = vadd.f32 0.0, %v3572
      %v3574 = vpop.f32.mrb[0].mxu0
      %v3575 = vpop.f32.mrb[0].mxu0
      %v3576 = vadd.f32 0.0, %v3575
      %v3577 = vpop.f32.mrb[0].mxu0
      %3578 = vmatprep.mubr.bf16.mxu0 0
      %3579 = vmatmul.mubr.bf16.gmra.mrb[0].mxu0 %v3452
      %v3580 = vpop.f32.mrb[0].mxu0
      %v3581 = vadd.f32 0.0, %v3580
      %v3582 = vpop.f32.mrb[0].mxu0
      %v3583 = vpop.f32.mrb[0].mxu0
      %v3584 = vadd.f32 0.0, %v3583
      %v3585 = vpop.f32.mrb[0].mxu0
      %3586 = vmatprep.mubr.bf16.mxu0 0
      %3587 = vmatmul.mubr.bf16.gmra.mrb[0].mxu0 %v3453
      %v3588 = vpop.f32.mrb[0].mxu0
      %v3589 = vadd.f32 0.0, %v3588
      %v3590 = vpop.f32.mrb[0].mxu0
      %v3591 = vpop.f32.mrb[0].mxu0
      %v3592 = vadd.f32 0.0, %v3591
      %v3593 = vpop.f32.mrb[0].mxu0
      %3594 = vmatprep.mubr.bf16.mxu0 0
      %3595 = vmatmul.mubr.bf16.gmra.mrb[0].mxu0 %v3454
      %v3596 = vpop.f32.mrb[0].mxu0
      %v3597 = vadd.f32 0.0, %v3596
      %v3598 = vpop.f32.mrb[0].mxu0
      %v3599 = vpop.f32.mrb[0].mxu0
      %v3600 = vadd.f32 0.0, %v3599
      %v3601 = vpop.f32.mrb[0].mxu0
      %3602 = vmatprep.mubr.bf16.mxu0 0
      %3603 = vmatmul.mubr.bf16.gmra.mrb[0].mxu0 %v3455
      %v3604 = vpop.f32.mrb[0].mxu0
      %v3605 = vadd.f32 0.0, %v3604
      %v3606 = vpop.f32.mrb[0].mxu0
      %v3607 = vpop.f32.mrb[0].mxu0
      %v3608 = vadd.f32 0.0, %v3607
      %v3609 = vpop.f32.mrb[0].mxu0
      %3610 = vmatprep.mubr.bf16.mxu0 0
      %3611 = vmatmul.mubr.bf16.gmra.mrb[0].mxu0 %v3456
      %v3612 = vpop.f32.mrb[0].mxu0
      %v3613 = vadd.f32 0.0, %v3612
      %v3614 = vpop.f32.mrb[0].mxu0
      %v3615 = vpop.f32.mrb[0].mxu0
      %v3616 = vadd.f32 0.0, %v3615
      %v3617 = vpop.f32.mrb[0].mxu0
      %3618 = vmatprep.mubr.bf16.mxu0 0
      %3619 = vmatmul.mubr.bf16.gmra.mrb[0].mxu0 %v3457
      %v3620 = vpop.f32.mrb[0].mxu0
      %v3621 = vadd.f32 0.0, %v3620
      %v3622 = vpop.f32.mrb[0].mxu0
      %v3623 = vpop.f32.mrb[0].mxu0
      %v3624 = vadd.f32 0.0, %v3623
      %v3625 = vpop.f32.mrb[0].mxu0
      %3626 = vmatprep.mubr.bf16.mxu0 0
      %3627 = vmatmul.mubr.bf16.gmra.mrb[0].mxu0 %v3458
      %v3628 = vpop.f32.mrb[0].mxu0
      %v3629 = vadd.f32 0.0, %v3628
      %v3630 = vpop.f32.mrb[0].mxu0
      %v3631 = vpop.f32.mrb[0].mxu0
      %v3632 = vadd.f32 0.0, %v3631
      %v3633 = vpop.f32.mrb[0].mxu0
      %3634 = vmatprep.mubr.bf16.mxu0 0
      %3635 = vmatmul.mubr.bf16.gmra.mrb[0].mxu0 %v3459
      %v3636 = vpop.f32.mrb[0].mxu0
      %v3637 = vadd.f32 0.0, %v3636
      %v3638 = vpop.f32.mrb[0].mxu0
      %v3639 = vpop.f32.mrb[0].mxu0
      %v3640 = vadd.f32 0.0, %v3639
      %v3641 = vpop.f32.mrb[0].mxu0
      %3642 = vmatprep.mubr.bf16.mxu0 0
      %3643 = vmatmul.mubr.bf16.gmra.mrb[0].mxu0 %v3460
      %v3644 = vpop.f32.mrb[0].mxu0
      %v3645 = vadd.f32 0.0, %v3644
      %v3646 = vpop.f32.mrb[0].mxu0
      %v3647 = vpop.f32.mrb[0].mxu0
      %v3648 = vadd.f32 0.0, %v3647
      %v3649 = vpop.f32.mrb[0].mxu0
      %3650 = vmatprep.mubr.bf16.mxu0 0
      %3651 = vmatmul.mubr.bf16.gmra.mrb[0].mxu0 %v3461
      %v3652 = vpop.f32.mrb[0].mxu0
      %v3653 = vadd.f32 0.0, %v3652
      %v3654 = vpop.f32.mrb[0].mxu0
      %v3655 = vpop.f32.mrb[0].mxu0
      %v3656 = vadd.f32 0.0, %v3655
      %v3657 = vpop.f32.mrb[0].mxu0
      %3658 = vmatprep.mubr.bf16.mxu0 0
      %3659 = vmatmul.mubr.bf16.gmra.mrb[0].mxu0 %v3462
      %v3660 = vpop.f32.mrb[0].mxu0
      %v3661 = vadd.f32 0.0, %v3660
      %v3662 = vpop.f32.mrb[0].mxu0
      %v3663 = vpop.f32.mrb[0].mxu0
      %v3664 = vadd.f32 0.0, %v3663
      %v3665 = vpop.f32.mrb[0].mxu0
      %3666 = vmatprep.mubr.bf16.mxu0 0
      %3667 = vmatmul.mubr.bf16.gmra.mrb[0].mxu0 %v3463
      %v3668 = vpop.f32.mrb[0].mxu0
      %v3669 = vadd.f32 0.0, %v3668
      %v3670 = vpop.f32.mrb[0].mxu0
      %v3671 = vpop.f32.mrb[0].mxu0
      %v3672 = vadd.f32 0.0, %v3671
      %v3673 = vpop.f32.mrb[0].mxu0
      %3674 = vmatprep.mubr.bf16.mxu0 0
      %3675 = vmatmul.mubr.bf16.gmra.mrb[0].mxu0 %v3464
      %v3676 = vpop.f32.mrb[0].mxu0
      %v3677 = vadd.f32 0.0, %v3676
      %v3678 = vpop.f32.mrb[0].mxu0
      %v3679 = vpop.f32.mrb[0].mxu0
      %v3680 = vadd.f32 0.0, %v3679
      %v3681 = vpop.f32.mrb[0].mxu0
      %3682 = vmatprep.mubr.bf16.mxu0 0
      %3683 = vmatmul.mubr.bf16.gmra.mrb[0].mxu0 %v3465
      %v3684 = vpop.f32.mrb[0].mxu0
      %v3685 = vadd.f32 0.0, %v3684
      %v3686 = vpop.f32.mrb[0].mxu0
      %v3687 = vpop.f32.mrb[0].mxu0
      %v3688 = vadd.f32 0.0, %v3687
      %v3689 = vpop.f32.mrb[0].mxu0
      %3690 = vdwg.mxu0
      %v3691 = vadd.f32 %v2937, %v3565
      %v3692 = vadd.f32 %v2938, %v3568
      %v3693 = vadd.f32 %v2939, %v3573
      %v3694 = vadd.f32 %v2940, %v3576
      %v3695 = vadd.f32 %v2941, %v3581
      %v3696 = vadd.f32 %v2942, %v3584
      %v3697 = vadd.f32 %v2943, %v3589
      %v3698 = vadd.f32 %v2944, %v3592
      %v3699 = vadd.f32 %v2945, %v3597
      %v3700 = vadd.f32 %v2946, %v3600
      %v3701 = vadd.f32 %v2947, %v3605
      %v3702 = vadd.f32 %v2948, %v3608
      %v3703 = vadd.f32 %v2949, %v3613
      %v3704 = vadd.f32 %v2950, %v3616
      %v3705 = vadd.f32 %v2951, %v3621
      %v3706 = vadd.f32 %v2952, %v3624
      %v3707 = vadd.f32 %v2953, %v3629
      %v3708 = vadd.f32 %v2954, %v3632
      %v3709 = vadd.f32 %v2955, %v3637
      %v3710 = vadd.f32 %v2956, %v3640
      %v3711 = vadd.f32 %v2957, %v3645
      %v3712 = vadd.f32 %v2958, %v3648
      %v3713 = vadd.f32 %v2959, %v3653
      %v3714 = vadd.f32 %v2960, %v3656
      %v3715 = vadd.f32 %v2961, %v3661
      %v3716 = vadd.f32 %v2962, %v3664
      %v3717 = vadd.f32 %v2963, %v3669
      %v3718 = vadd.f32 %v2964, %v3672
      %v3719 = vadd.f32 %v2965, %v3677
      %v3720 = vadd.f32 %v2966, %v3680
      %v3721 = vadd.f32 %v2967, %v3685
      %v3722 = vadd.f32 %v2968, %v3688
      %v3723 = vld [vmem:[%s434] sm:$0xe]
      %v3724 = vld [vmem:[%s434 + $0xc] sm:$0xe]
      %v3725 = vld [vmem:[%s434 + $0x18] sm:$0xe]
      %v3726 = vld [vmem:[%s434 + $0x24] sm:$0xe]
      %v3727 = vld [vmem:[%s434 + $0x30] sm:$0xe]
      %v3728 = vld [vmem:[%s434 + $0x3c] sm:$0xe]
      %v3729 = vld [vmem:[%s434 + $0x48] sm:$0xe]
      %v3730 = vld [vmem:[%s434 + $0x54] sm:$0xe]
      %v3731 = vld [vmem:[%s434 + $0x60] sm:$0xe]
      %v3732 = vld [vmem:[%s434 + $0x6c] sm:$0xe]
      %v3733 = vld [vmem:[%s434 + $0x78] sm:$0xe]
      %v3734 = vld [vmem:[%s434 + $0x84] sm:$0xe]
      %v3735 = vld [vmem:[%s434 + $0x90] sm:$0xe]
      %v3736 = vld [vmem:[%s434 + $0x9c] sm:$0xe]
      %v3737 = vld [vmem:[%s434 + $0xa8] sm:$0xe]
      %v3738 = vld [vmem:[%s434 + $0xb4] sm:$0xe]
      %v3787 = vrot.slane %v3723, 5
      %v3788 = vrot.slane %v3787, 4
      %v3789 = vrot.slane %v2970, 5
      %v3790 = vsel %vm2148, %v3788, %v3789
      %v3791 = vrot.slane %v3789, 4
      %v3792 = vrot.slane %v2971, 5
      %v3793 = vsel %vm2148, %v3791, %v3792
      %v3794 = vrot.slane %v3724, 5
      %v3795 = vrot.slane %v3794, 4
      %v3796 = vrot.slane %v2973, 5
      %v3797 = vsel %vm2148, %v3795, %v3796
      %v3798 = vrot.slane %v3796, 4
      %v3799 = vrot.slane %v2974, 5
      %v3800 = vsel %vm2148, %v3798, %v3799
      %v3801 = vrot.slane %v3725, 5
      %v3802 = vrot.slane %v3801, 4
      %v3803 = vrot.slane %v2976, 5
      %v3804 = vsel %vm2148, %v3802, %v3803
      %v3805 = vrot.slane %v3803, 4
      %v3806 = vrot.slane %v2977, 5
      %v3807 = vsel %vm2148, %v3805, %v3806
      %v3808 = vrot.slane %v3726, 5
      %v3809 = vrot.slane %v3808, 4
      %v3810 = vrot.slane %v2979, 5
      %v3811 = vsel %vm2148, %v3809, %v3810
      %v3812 = vrot.slane %v3810, 4
      %v3813 = vrot.slane %v2980, 5
      %v3814 = vsel %vm2148, %v3812, %v3813
      %v3815 = vrot.slane %v3727, 5
      %v3816 = vrot.slane %v3815, 4
      %v3817 = vrot.slane %v2982, 5
      %v3818 = vsel %vm2148, %v3816, %v3817
      %v3819 = vrot.slane %v3817, 4
      %v3820 = vrot.slane %v2983, 5
      %v3821 = vsel %vm2148, %v3819, %v3820
      %v3822 = vrot.slane %v3728, 5
      %v3823 = vrot.slane %v3822, 4
      %v3824 = vrot.slane %v2985, 5
      %v3825 = vsel %vm2148, %v3823, %v3824
      %v3826 = vrot.slane %v3824, 4
      %v3827 = vrot.slane %v2986, 5
      %v3828 = vsel %vm2148, %v3826, %v3827
      %v3829 = vrot.slane %v3729, 5
      %v3830 = vrot.slane %v3829, 4
      %v3831 = vrot.slane %v2988, 5
      %v3832 = vsel %vm2148, %v3830, %v3831
      %v3833 = vrot.slane %v3831, 4
      %v3834 = vrot.slane %v2989, 5
      %v3835 = vsel %vm2148, %v3833, %v3834
      %v3836 = vrot.slane %v3730, 5
      %v3837 = vrot.slane %v3836, 4
      %v3838 = vrot.slane %v2991, 5
      %v3839 = vsel %vm2148, %v3837, %v3838
      %v3840 = vrot.slane %v3838, 4
      %v3841 = vrot.slane %v2992, 5
      %v3842 = vsel %vm2148, %v3840, %v3841
      %v3843 = vrot.slane %v3731, 5
      %v3844 = vrot.slane %v3843, 4
      %v3845 = vrot.slane %v2994, 5
      %v3846 = vsel %vm2148, %v3844, %v3845
      %v3847 = vrot.slane %v3845, 4
      %v3848 = vrot.slane %v2995, 5
      %v3849 = vsel %vm2148, %v3847, %v3848
      %v3850 = vrot.slane %v3732, 5
      %v3851 = vrot.slane %v3850, 4
      %v3852 = vrot.slane %v2997, 5
      %v3853 = vsel %vm2148, %v3851, %v3852
      %v3854 = vrot.slane %v3852, 4
      %v3855 = vrot.slane %v2998, 5
      %v3856 = vsel %vm2148, %v3854, %v3855
      %v3857 = vrot.slane %v3733, 5
      %v3858 = vrot.slane %v3857, 4
      %v3859 = vrot.slane %v3000, 5
      %v3860 = vsel %vm2148, %v3858, %v3859
      %v3861 = vrot.slane %v3859, 4
      %v3862 = vrot.slane %v3001, 5
      %v3863 = vsel %vm2148, %v3861, %v3862
      %v3864 = vrot.slane %v3734, 5
      %v3865 = vrot.slane %v3864, 4
      %v3866 = vrot.slane %v3003, 5
      %v3867 = vsel %vm2148, %v3865, %v3866
      %v3868 = vrot.slane %v3866, 4
      %v3869 = vrot.slane %v3004, 5
      %v3870 = vsel %vm2148, %v3868, %v3869
      %v3871 = vrot.slane %v3735, 5
      %v3872 = vrot.slane %v3871, 4
      %v3873 = vrot.slane %v3006, 5
      %v3874 = vsel %vm2148, %v3872, %v3873
      %v3875 = vrot.slane %v3873, 4
      %v3876 = vrot.slane %v3007, 5
      %v3877 = vsel %vm2148, %v3875, %v3876
      %v3878 = vrot.slane %v3736, 5
      %v3879 = vrot.slane %v3878, 4
      %v3880 = vrot.slane %v3009, 5
      %v3881 = vsel %vm2148, %v3879, %v3880
      %v3882 = vrot.slane %v3880, 4
      %v3883 = vrot.slane %v3010, 5
      %v3884 = vsel %vm2148, %v3882, %v3883
      %v3885 = vrot.slane %v3737, 5
      %v3886 = vrot.slane %v3885, 4
      %v3887 = vrot.slane %v3012, 5
      %v3888 = vsel %vm2148, %v3886, %v3887
      %v3889 = vrot.slane %v3887, 4
      %v3890 = vrot.slane %v3013, 5
      %v3891 = vsel %vm2148, %v3889, %v3890
      %v3892 = vrot.slane %v3738, 5
      %v3893 = vrot.slane %v3892, 4
      %v3894 = vrot.slane %v3015, 5
      %v3895 = vsel %vm2148, %v3893, %v3894
      %v3896 = vrot.slane %v3894, 4
      %v3897 = vrot.slane %v3016, 5
      %v3898 = vsel %vm2148, %v3896, %v3897
      %s3899 = scalar_lea.vmem %s3, 320
      %v3900 = vld [vmem:[%s3899] sm:$0xf]
      %v3901 = vld [vmem:[%s3899 + $0x4] sm:$0xf]
      %v3902 = vld [vmem:[%s3899 + $0x8] sm:$0xf]
      %v3903 = vld [vmem:[%s3899 + $0xc] sm:$0xf]
      %v3904 = vld [vmem:[%s3899 + $0x10] sm:$0xf]
      %v3905 = vld [vmem:[%s3899 + $0x14] sm:$0xf]
      %v3906 = vld [vmem:[%s3899 + $0x18] sm:$0xf]
      %v3907 = vld [vmem:[%s3899 + $0x1c] sm:$0xf]
      %v3908 = vld [vmem:[%s3899 + $0x20] sm:$0xf]
      %v3909 = vld [vmem:[%s3899 + $0x24] sm:$0xf]
      %v3910 = vld [vmem:[%s3899 + $0x28] sm:$0xf]
      %v3911 = vld [vmem:[%s3899 + $0x2c] sm:$0xf]
      %v3912 = vld [vmem:[%s3899 + $0x30] sm:$0xf]
      %v3913 = vld [vmem:[%s3899 + $0x34] sm:$0xf]
      %v3914 = vld [vmem:[%s3899 + $0x38] sm:$0xf]
      %v3915 = vld [vmem:[%s3899 + $0x3c] sm:$0xf]
      %v3916 = vunpack.c.l.b16 %v3790
      %v3917 = vunpack.c.l.b16 %v3793
      %v3918 = vunpack.c.l.b16 %v3797
      %v3919 = vunpack.c.l.b16 %v3800
      %v3920 = vunpack.c.l.b16 %v3804
      %v3921 = vunpack.c.l.b16 %v3807
      %v3922 = vunpack.c.l.b16 %v3811
      %v3923 = vunpack.c.l.b16 %v3814
      %v3924 = vunpack.c.l.b16 %v3818
      %v3925 = vunpack.c.l.b16 %v3821
      %v3926 = vunpack.c.l.b16 %v3825
      %v3927 = vunpack.c.l.b16 %v3828
      %v3928 = vunpack.c.l.b16 %v3832
      %v3929 = vunpack.c.l.b16 %v3835
      %v3930 = vunpack.c.l.b16 %v3839
      %v3931 = vunpack.c.l.b16 %v3842
      %v3932 = vunpack.c.l.b16 %v3846
      %v3933 = vunpack.c.l.b16 %v3849
      %v3934 = vunpack.c.l.b16 %v3853
      %v3935 = vunpack.c.l.b16 %v3856
      %v3936 = vunpack.c.l.b16 %v3860
      %v3937 = vunpack.c.l.b16 %v3863
      %v3938 = vunpack.c.l.b16 %v3867
      %v3939 = vunpack.c.l.b16 %v3870
      %v3940 = vunpack.c.l.b16 %v3874
      %v3941 = vunpack.c.l.b16 %v3877
      %v3942 = vunpack.c.l.b16 %v3881
      %v3943 = vunpack.c.l.b16 %v3884
      %v3944 = vunpack.c.l.b16 %v3888
      %v3945 = vunpack.c.l.b16 %v3891
      %v3946 = vunpack.c.l.b16 %v3895
      %v3947 = vunpack.c.l.b16 %v3898
      %v3948 = vpack.c.b16 %v3917, %v3916
      %v3949 = vpack.c.b16 %v3919, %v3918
      %v3950 = vpack.c.b16 %v3921, %v3920
      %v3951 = vpack.c.b16 %v3923, %v3922
      %v3952 = vpack.c.b16 %v3925, %v3924
      %v3953 = vpack.c.b16 %v3927, %v3926
      %v3954 = vpack.c.b16 %v3929, %v3928
      %v3955 = vpack.c.b16 %v3931, %v3930
      %v3956 = vpack.c.b16 %v3933, %v3932
      %v3957 = vpack.c.b16 %v3935, %v3934
      %v3958 = vpack.c.b16 %v3937, %v3936
      %v3959 = vpack.c.b16 %v3939, %v3938
      %v3960 = vpack.c.b16 %v3941, %v3940
      %v3961 = vpack.c.b16 %v3943, %v3942
      %v3962 = vpack.c.b16 %v3945, %v3944
      %v3963 = vpack.c.b16 %v3947, %v3946
      %v3996 = vunpack.c.l.b16 %v3900
      %v3997 = vunpack.c.l.b16 %v3901
      %v3998 = vunpack.c.l.b16 %v3902
      %v3999 = vunpack.c.l.b16 %v3903
      %v4000 = vunpack.c.l.b16 %v3904
      %v4001 = vunpack.c.l.b16 %v3905
      %v4002 = vunpack.c.l.b16 %v3906
      %v4003 = vunpack.c.l.b16 %v3907
      %v4004 = vunpack.c.l.b16 %v3908
      %v4005 = vunpack.c.l.b16 %v3909
      %v4006 = vunpack.c.l.b16 %v3910
      %v4007 = vunpack.c.l.b16 %v3911
      %v4008 = vunpack.c.l.b16 %v3912
      %v4009 = vunpack.c.l.b16 %v3913
      %v4010 = vunpack.c.l.b16 %v3914
      %v4011 = vunpack.c.l.b16 %v3915
      %v4012 = vpack.c.b16 %v3997, %v3996
      %v4013 = vpack.c.b16 %v3999, %v3998
      %v4014 = vpack.c.b16 %v4001, %v4000
      %v4015 = vpack.c.b16 %v4003, %v4002
      %v4016 = vpack.c.b16 %v4005, %v4004
      %v4017 = vpack.c.b16 %v4007, %v4006
      %v4018 = vpack.c.b16 %v4009, %v4008
      %v4019 = vpack.c.b16 %v4011, %v4010
      %4028 = vmatprep.subr.bf16.mxu0 0
      %4029 = vmatpush1.bf16.msra.mxu0 %v4012
      %4030 = vmatprep.subr.bf16.mxu0 0
      %4031 = vmatpush1.bf16.msra.mxu0 %v4013
      %4032 = vmatprep.subr.bf16.mxu0 0
      %4033 = vmatpush1.bf16.msra.mxu0 %v4014
      %4034 = vmatprep.subr.bf16.mxu0 0
      %4035 = vmatpush1.bf16.msra.mxu0 %v4015
      %4036 = vmatprep.subr.bf16.mxu0 0
      %4037 = vmatpush1.bf16.msra.mxu0 %v4016
      %4038 = vmatprep.subr.bf16.mxu0 0
      %4039 = vmatpush1.bf16.msra.mxu0 %v4017
      %4040 = vmatprep.subr.bf16.mxu0 0
      %4041 = vmatpush1.bf16.msra.mxu0 %v4018
      %4042 = vmatprep.subr.bf16.mxu0 0
      %4043 = vmatpush1.bf16.msra.mxu0 %v4019
      %4044 = vmatprep.subr.bf16.mxu0 0
      %4045 = vmatpush1.bf16.msra.mxu0 0
      %4046 = vmatprep.subr.bf16.mxu0 0
      %4047 = vmatpush1.bf16.msra.mxu0 0
      %4048 = vmatprep.subr.bf16.mxu0 0
      %4049 = vmatpush1.bf16.msra.mxu0 0
      %4050 = vmatprep.subr.bf16.mxu0 0
      %4051 = vmatpush1.bf16.msra.mxu0 0
      %4052 = vmatprep.subr.bf16.mxu0 0
      %4053 = vmatpush1.bf16.msra.mxu0 0
      %4054 = vmatprep.subr.bf16.mxu0 0
      %4055 = vmatpush1.bf16.msra.mxu0 0
      %4056 = vmatprep.subr.bf16.mxu0 0
      %4057 = vmatpush1.bf16.msra.mxu0 0
      %4058 = vmatprep.subr.bf16.mxu0 0
      %4059 = vmatpush1.bf16.msra.mxu0 0
      %4060 = vmatprep.mubr.bf16.mxu0 0
      %4061 = vmatmul.mubr.bf16.gmra.mrb[0].mxu0 %v3948
      %v4062 = vpop.f32.mrb[0].mxu0
      %v4063 = vadd.f32 0.0, %v4062
      %v4064 = vpop.f32.mrb[0].mxu0
      %v4065 = vpop.f32.mrb[0].mxu0
      %v4066 = vadd.f32 0.0, %v4065
      %v4067 = vpop.f32.mrb[0].mxu0
      %4068 = vmatprep.mubr.bf16.mxu0 0
      %4069 = vmatmul.mubr.bf16.gmra.mrb[0].mxu0 %v3949
      %v4070 = vpop.f32.mrb[0].mxu0
      %v4071 = vadd.f32 0.0, %v4070
      %v4072 = vpop.f32.mrb[0].mxu0
      %v4073 = vpop.f32.mrb[0].mxu0
      %v4074 = vadd.f32 0.0, %v4073
      %v4075 = vpop.f32.mrb[0].mxu0
      %4076 = vmatprep.mubr.bf16.mxu0 0
      %4077 = vmatmul.mubr.bf16.gmra.mrb[0].mxu0 %v3950
      %v4078 = vpop.f32.mrb[0].mxu0
      %v4079 = vadd.f32 0.0, %v4078
      %v4080 = vpop.f32.mrb[0].mxu0
      %v4081 = vpop.f32.mrb[0].mxu0
      %v4082 = vadd.f32 0.0, %v4081
      %v4083 = vpop.f32.mrb[0].mxu0
      %4084 = vmatprep.mubr.bf16.mxu0 0
      %4085 = vmatmul.mubr.bf16.gmra.mrb[0].mxu0 %v3951
      %v4086 = vpop.f32.mrb[0].mxu0
      %v4087 = vadd.f32 0.0, %v4086
      %v4088 = vpop.f32.mrb[0].mxu0
      %v4089 = vpop.f32.mrb[0].mxu0
      %v4090 = vadd.f32 0.0, %v4089
      %v4091 = vpop.f32.mrb[0].mxu0
      %4092 = vmatprep.mubr.bf16.mxu0 0
      %4093 = vmatmul.mubr.bf16.gmra.mrb[0].mxu0 %v3952
      %v4094 = vpop.f32.mrb[0].mxu0
      %v4095 = vadd.f32 0.0, %v4094
      %v4096 = vpop.f32.mrb[0].mxu0
      %v4097 = vpop.f32.mrb[0].mxu0
      %v4098 = vadd.f32 0.0, %v4097
      %v4099 = vpop.f32.mrb[0].mxu0
      %4100 = vmatprep.mubr.bf16.mxu0 0
      %4101 = vmatmul.mubr.bf16.gmra.mrb[0].mxu0 %v3953
      %v4102 = vpop.f32.mrb[0].mxu0
      %v4103 = vadd.f32 0.0, %v4102
      %v4104 = vpop.f32.mrb[0].mxu0
      %v4105 = vpop.f32.mrb[0].mxu0
      %v4106 = vadd.f32 0.0, %v4105
      %v4107 = vpop.f32.mrb[0].mxu0
      %4108 = vmatprep.mubr.bf16.mxu0 0
      %4109 = vmatmul.mubr.bf16.gmra.mrb[0].mxu0 %v3954
      %v4110 = vpop.f32.mrb[0].mxu0
      %v4111 = vadd.f32 0.0, %v4110
      %v4112 = vpop.f32.mrb[0].mxu0
      %v4113 = vpop.f32.mrb[0].mxu0
      %v4114 = vadd.f32 0.0, %v4113
      %v4115 = vpop.f32.mrb[0].mxu0
      %4116 = vmatprep.mubr.bf16.mxu0 0
      %4117 = vmatmul.mubr.bf16.gmra.mrb[0].mxu0 %v3955
      %v4118 = vpop.f32.mrb[0].mxu0
      %v4119 = vadd.f32 0.0, %v4118
      %v4120 = vpop.f32.mrb[0].mxu0
      %v4121 = vpop.f32.mrb[0].mxu0
      %v4122 = vadd.f32 0.0, %v4121
      %v4123 = vpop.f32.mrb[0].mxu0
      %4124 = vmatprep.mubr.bf16.mxu0 0
      %4125 = vmatmul.mubr.bf16.gmra.mrb[0].mxu0 %v3956
      %v4126 = vpop.f32.mrb[0].mxu0
      %v4127 = vadd.f32 0.0, %v4126
      %v4128 = vpop.f32.mrb[0].mxu0
      %v4129 = vpop.f32.mrb[0].mxu0
      %v4130 = vadd.f32 0.0, %v4129
      %v4131 = vpop.f32.mrb[0].mxu0
      %4132 = vmatprep.mubr.bf16.mxu0 0
      %4133 = vmatmul.mubr.bf16.gmra.mrb[0].mxu0 %v3957
      %v4134 = vpop.f32.mrb[0].mxu0
      %v4135 = vadd.f32 0.0, %v4134
      %v4136 = vpop.f32.mrb[0].mxu0
      %v4137 = vpop.f32.mrb[0].mxu0
      %v4138 = vadd.f32 0.0, %v4137
      %v4139 = vpop.f32.mrb[0].mxu0
      %4140 = vmatprep.mubr.bf16.mxu0 0
      %4141 = vmatmul.mubr.bf16.gmra.mrb[0].mxu0 %v3958
      %v4142 = vpop.f32.mrb[0].mxu0
      %v4143 = vadd.f32 0.0, %v4142
      %v4144 = vpop.f32.mrb[0].mxu0
      %v4145 = vpop.f32.mrb[0].mxu0
      %v4146 = vadd.f32 0.0, %v4145
      %v4147 = vpop.f32.mrb[0].mxu0
      %4148 = vmatprep.mubr.bf16.mxu0 0
      %4149 = vmatmul.mubr.bf16.gmra.mrb[0].mxu0 %v3959
      %v4150 = vpop.f32.mrb[0].mxu0
      %v4151 = vadd.f32 0.0, %v4150
      %v4152 = vpop.f32.mrb[0].mxu0
      %v4153 = vpop.f32.mrb[0].mxu0
      %v4154 = vadd.f32 0.0, %v4153
      %v4155 = vpop.f32.mrb[0].mxu0
      %4156 = vmatprep.mubr.bf16.mxu0 0
      %4157 = vmatmul.mubr.bf16.gmra.mrb[0].mxu0 %v3960
      %v4158 = vpop.f32.mrb[0].mxu0
      %v4159 = vadd.f32 0.0, %v4158
      %v4160 = vpop.f32.mrb[0].mxu0
      %v4161 = vpop.f32.mrb[0].mxu0
      %v4162 = vadd.f32 0.0, %v4161
      %v4163 = vpop.f32.mrb[0].mxu0
      %4164 = vmatprep.mubr.bf16.mxu0 0
      %4165 = vmatmul.mubr.bf16.gmra.mrb[0].mxu0 %v3961
      %v4166 = vpop.f32.mrb[0].mxu0
      %v4167 = vadd.f32 0.0, %v4166
      %v4168 = vpop.f32.mrb[0].mxu0
      %v4169 = vpop.f32.mrb[0].mxu0
      %v4170 = vadd.f32 0.0, %v4169
      %v4171 = vpop.f32.mrb[0].mxu0
      %4172 = vmatprep.mubr.bf16.mxu0 0
      %4173 = vmatmul.mubr.bf16.gmra.mrb[0].mxu0 %v3962
      %v4174 = vpop.f32.mrb[0].mxu0
      %v4175 = vadd.f32 0.0, %v4174
      %v4176 = vpop.f32.mrb[0].mxu0
      %v4177 = vpop.f32.mrb[0].mxu0
      %v4178 = vadd.f32 0.0, %v4177
      %v4179 = vpop.f32.mrb[0].mxu0
      %4180 = vmatprep.mubr.bf16.mxu0 0
      %4181 = vmatmul.mubr.bf16.gmra.mrb[0].mxu0 %v3963
      %v4182 = vpop.f32.mrb[0].mxu0
      %v4183 = vadd.f32 0.0, %v4182
      %v4184 = vpop.f32.mrb[0].mxu0
      %v4185 = vpop.f32.mrb[0].mxu0
      %v4186 = vadd.f32 0.0, %v4185
      %v4187 = vpop.f32.mrb[0].mxu0
      %4188 = vdwg.mxu0
      %v4189 = vadd.f32 %v3691, %v4063
      %v4190 = vadd.f32 %v3692, %v4066
      %v4191 = vadd.f32 %v3693, %v4071
      %v4192 = vadd.f32 %v3694, %v4074
      %v4193 = vadd.f32 %v3695, %v4079
      %v4194 = vadd.f32 %v3696, %v4082
      %v4195 = vadd.f32 %v3697, %v4087
      %v4196 = vadd.f32 %v3698, %v4090
      %v4197 = vadd.f32 %v3699, %v4095
      %v4198 = vadd.f32 %v3700, %v4098
      %v4199 = vadd.f32 %v3701, %v4103
      %v4200 = vadd.f32 %v3702, %v4106
      %v4201 = vadd.f32 %v3703, %v4111
      %v4202 = vadd.f32 %v3704, %v4114
      %v4203 = vadd.f32 %v3705, %v4119
      %v4204 = vadd.f32 %v3706, %v4122
      %v4205 = vadd.f32 %v3707, %v4127
      %v4206 = vadd.f32 %v3708, %v4130
      %v4207 = vadd.f32 %v3709, %v4135
      %v4208 = vadd.f32 %v3710, %v4138
      %v4209 = vadd.f32 %v3711, %v4143
      %v4210 = vadd.f32 %v3712, %v4146
      %v4211 = vadd.f32 %v3713, %v4151
      %v4212 = vadd.f32 %v3714, %v4154
      %v4213 = vadd.f32 %v3715, %v4159
      %v4214 = vadd.f32 %v3716, %v4162
      %v4215 = vadd.f32 %v3717, %v4167
      %v4216 = vadd.f32 %v3718, %v4170
      %v4217 = vadd.f32 %v3719, %v4175
      %v4218 = vadd.f32 %v3720, %v4178
      %v4219 = vadd.f32 %v3721, %v4183
      %v4220 = vadd.f32 %v3722, %v4186
      %s4221 = scalar_lea.vmem [#allocation2], 24
      %v4222 = vld [vmem:[%s4221] sm:$0xf]
      %v4223 = vld [vmem:[%s4221 + $0x4] sm:$0xf]
      %v4224 = vld [vmem:[%s4221 + $0xc] sm:$0xf]
      %v4225 = vld [vmem:[%s4221 + $0x10] sm:$0xf]
      %v4226 = vld [vmem:[%s4221 + $0x18] sm:$0xf]
      %v4227 = vld [vmem:[%s4221 + $0x1c] sm:$0xf]
      %v4228 = vld [vmem:[%s4221 + $0x24] sm:$0xf]
      %v4229 = vld [vmem:[%s4221 + $0x28] sm:$0xf]
      %v4230 = vld [vmem:[%s4221 + $0x30] sm:$0xf]
      %v4231 = vld [vmem:[%s4221 + $0x34] sm:$0xf]
      %v4232 = vld [vmem:[%s4221 + $0x3c] sm:$0xf]
      %v4233 = vld [vmem:[%s4221 + $0x40] sm:$0xf]
      %v4234 = vld [vmem:[%s4221 + $0x48] sm:$0xf]
      %v4235 = vld [vmem:[%s4221 + $0x4c] sm:$0xf]
      %v4236 = vld [vmem:[%s4221 + $0x54] sm:$0xf]
      %v4237 = vld [vmem:[%s4221 + $0x58] sm:$0xf]
      %v4238 = vld [vmem:[%s4221 + $0x60] sm:$0xf]
      %v4239 = vld [vmem:[%s4221 + $0x64] sm:$0xf]
      %v4240 = vld [vmem:[%s4221 + $0x6c] sm:$0xf]
      %v4241 = vld [vmem:[%s4221 + $0x70] sm:$0xf]
      %v4242 = vld [vmem:[%s4221 + $0x78] sm:$0xf]
      %v4243 = vld [vmem:[%s4221 + $0x7c] sm:$0xf]
      %v4244 = vld [vmem:[%s4221 + $0x84] sm:$0xf]
      %v4245 = vld [vmem:[%s4221 + $0x88] sm:$0xf]
      %v4246 = vld [vmem:[%s4221 + $0x90] sm:$0xf]
      %v4247 = vld [vmem:[%s4221 + $0x94] sm:$0xf]
      %v4248 = vld [vmem:[%s4221 + $0x9c] sm:$0xf]
      %v4249 = vld [vmem:[%s4221 + $0xa0] sm:$0xf]
      %v4250 = vld [vmem:[%s4221 + $0xa8] sm:$0xf]
      %v4251 = vld [vmem:[%s4221 + $0xac] sm:$0xf]
      %v4252 = vld [vmem:[%s4221 + $0xb4] sm:$0xf]
      %v4253 = vld [vmem:[%s4221 + $0xb8] sm:$0xf]
      %s4254 = scalar_lea.vmem %s3, 384
      %v4255 = vld [vmem:[%s4254] sm:$0xf]
      %v4256 = vld [vmem:[%s4254 + $0x4] sm:$0xf]
      %v4257 = vld [vmem:[%s4254 + $0x8] sm:$0xf]
      %v4258 = vld [vmem:[%s4254 + $0xc] sm:$0xf]
      %v4259 = vld [vmem:[%s4254 + $0x10] sm:$0xf]
      %v4260 = vld [vmem:[%s4254 + $0x14] sm:$0xf]
      %v4261 = vld [vmem:[%s4254 + $0x18] sm:$0xf]
      %v4262 = vld [vmem:[%s4254 + $0x1c] sm:$0xf]
      %v4263 = vld [vmem:[%s4254 + $0x20] sm:$0xf]
      %v4264 = vld [vmem:[%s4254 + $0x24] sm:$0xf]
      %v4265 = vld [vmem:[%s4254 + $0x28] sm:$0xf]
      %v4266 = vld [vmem:[%s4254 + $0x2c] sm:$0xf]
      %v4267 = vld [vmem:[%s4254 + $0x30] sm:$0xf]
      %v4268 = vld [vmem:[%s4254 + $0x34] sm:$0xf]
      %v4269 = vld [vmem:[%s4254 + $0x38] sm:$0xf]
      %v4270 = vld [vmem:[%s4254 + $0x3c] sm:$0xf]
      %v4303 = vunpack.c.l.b16 %v4222
      %v4304 = vunpack.c.l.b16 %v4223
      %v4305 = vunpack.c.l.b16 %v4224
      %v4306 = vunpack.c.l.b16 %v4225
      %v4307 = vunpack.c.l.b16 %v4226
      %v4308 = vunpack.c.l.b16 %v4227
      %v4309 = vunpack.c.l.b16 %v4228
      %v4310 = vunpack.c.l.b16 %v4229
      %v4311 = vunpack.c.l.b16 %v4230
      %v4312 = vunpack.c.l.b16 %v4231
      %v4313 = vunpack.c.l.b16 %v4232
      %v4314 = vunpack.c.l.b16 %v4233
      %v4315 = vunpack.c.l.b16 %v4234
      %v4316 = vunpack.c.l.b16 %v4235
      %v4317 = vunpack.c.l.b16 %v4236
      %v4318 = vunpack.c.l.b16 %v4237
      %v4319 = vunpack.c.l.b16 %v4238
      %v4320 = vunpack.c.l.b16 %v4239
      %v4321 = vunpack.c.l.b16 %v4240
      %v4322 = vunpack.c.l.b16 %v4241
      %v4323 = vunpack.c.l.b16 %v4242
      %v4324 = vunpack.c.l.b16 %v4243
      %v4325 = vunpack.c.l.b16 %v4244
      %v4326 = vunpack.c.l.b16 %v4245
      %v4327 = vunpack.c.l.b16 %v4246
      %v4328 = vunpack.c.l.b16 %v4247
      %v4329 = vunpack.c.l.b16 %v4248
      %v4330 = vunpack.c.l.b16 %v4249
      %v4331 = vunpack.c.l.b16 %v4250
      %v4332 = vunpack.c.l.b16 %v4251
      %v4333 = vunpack.c.l.b16 %v4252
      %v4334 = vunpack.c.l.b16 %v4253
      %v4335 = vpack.c.b16 %v4304, %v4303
      %v4336 = vpack.c.b16 %v4306, %v4305
      %v4337 = vpack.c.b16 %v4308, %v4307
      %v4338 = vpack.c.b16 %v4310, %v4309
      %v4339 = vpack.c.b16 %v4312, %v4311
      %v4340 = vpack.c.b16 %v4314, %v4313
      %v4341 = vpack.c.b16 %v4316, %v4315
      %v4342 = vpack.c.b16 %v4318, %v4317
      %v4343 = vpack.c.b16 %v4320, %v4319
      %v4344 = vpack.c.b16 %v4322, %v4321
      %v4345 = vpack.c.b16 %v4324, %v4323
      %v4346 = vpack.c.b16 %v4326, %v4325
      %v4347 = vpack.c.b16 %v4328, %v4327
      %v4348 = vpack.c.b16 %v4330, %v4329
      %v4349 = vpack.c.b16 %v4332, %v4331
      %v4350 = vpack.c.b16 %v4334, %v4333
      %v4383 = vunpack.c.l.b16 %v4255
      %v4384 = vunpack.c.l.b16 %v4256
      %v4385 = vunpack.c.l.b16 %v4257
      %v4386 = vunpack.c.l.b16 %v4258
      %v4387 = vunpack.c.l.b16 %v4259
      %v4388 = vunpack.c.l.b16 %v4260
      %v4389 = vunpack.c.l.b16 %v4261
      %v4390 = vunpack.c.l.b16 %v4262
      %v4391 = vunpack.c.l.b16 %v4263
      %v4392 = vunpack.c.l.b16 %v4264
      %v4393 = vunpack.c.l.b16 %v4265
      %v4394 = vunpack.c.l.b16 %v4266
      %v4395 = vunpack.c.l.b16 %v4267
      %v4396 = vunpack.c.l.b16 %v4268
      %v4397 = vunpack.c.l.b16 %v4269
      %v4398 = vunpack.c.l.b16 %v4270
      %v4399 = vpack.c.b16 %v4384, %v4383
      %v4400 = vpack.c.b16 %v4386, %v4385
      %v4401 = vpack.c.b16 %v4388, %v4387
      %v4402 = vpack.c.b16 %v4390, %v4389
      %v4403 = vpack.c.b16 %v4392, %v4391
      %v4404 = vpack.c.b16 %v4394, %v4393
      %v4405 = vpack.c.b16 %v4396, %v4395
      %v4406 = vpack.c.b16 %v4398, %v4397
      %4415 = vmatprep.subr.bf16.mxu0 0
      %4416 = vmatpush1.bf16.msra.mxu0 %v4399
      %4417 = vmatprep.subr.bf16.mxu0 0
      %4418 = vmatpush1.bf16.msra.mxu0 %v4400
      %4419 = vmatprep.subr.bf16.mxu0 0
      %4420 = vmatpush1.bf16.msra.mxu0 %v4401
      %4421 = vmatprep.subr.bf16.mxu0 0
      %4422 = vmatpush1.bf16.msra.mxu0 %v4402
      %4423 = vmatprep.subr.bf16.mxu0 0
      %4424 = vmatpush1.bf16.msra.mxu0 %v4403
      %4425 = vmatprep.subr.bf16.mxu0 0
      %4426 = vmatpush1.bf16.msra.mxu0 %v4404
      %4427 = vmatprep.subr.bf16.mxu0 0
      %4428 = vmatpush1.bf16.msra.mxu0 %v4405
      %4429 = vmatprep.subr.bf16.mxu0 0
      %4430 = vmatpush1.bf16.msra.mxu0 %v4406
      %4431 = vmatprep.subr.bf16.mxu0 0
      %4432 = vmatpush1.bf16.msra.mxu0 0
      %4433 = vmatprep.subr.bf16.mxu0 0
      %4434 = vmatpush1.bf16.msra.mxu0 0
      %4435 = vmatprep.subr.bf16.mxu0 0
      %4436 = vmatpush1.bf16.msra.mxu0 0
      %4437 = vmatprep.subr.bf16.mxu0 0
      %4438 = vmatpush1.bf16.msra.mxu0 0
      %4439 = vmatprep.subr.bf16.mxu0 0
      %4440 = vmatpush1.bf16.msra.mxu0 0
      %4441 = vmatprep.subr.bf16.mxu0 0
      %4442 = vmatpush1.bf16.msra.mxu0 0
      %4443 = vmatprep.subr.bf16.mxu0 0
      %4444 = vmatpush1.bf16.msra.mxu0 0
      %4445 = vmatprep.subr.bf16.mxu0 0
      %4446 = vmatpush1.bf16.msra.mxu0 0
      %4447 = vmatprep.mubr.bf16.mxu0 0
      %4448 = vmatmul.mubr.bf16.gmra.mrb[0].mxu0 %v4335
      %v4449 = vpop.f32.mrb[0].mxu0
      %v4450 = vadd.f32 0.0, %v4449
      %v4451 = vpop.f32.mrb[0].mxu0
      %v4452 = vpop.f32.mrb[0].mxu0
      %v4453 = vadd.f32 0.0, %v4452
      %v4454 = vpop.f32.mrb[0].mxu0
      %4455 = vmatprep.mubr.bf16.mxu0 0
      %4456 = vmatmul.mubr.bf16.gmra.mrb[0].mxu0 %v4336
      %v4457 = vpop.f32.mrb[0].mxu0
      %v4458 = vadd.f32 0.0, %v4457
      %v4459 = vpop.f32.mrb[0].mxu0
      %v4460 = vpop.f32.mrb[0].mxu0
      %v4461 = vadd.f32 0.0, %v4460
      %v4462 = vpop.f32.mrb[0].mxu0
      %4463 = vmatprep.mubr.bf16.mxu0 0
      %4464 = vmatmul.mubr.bf16.gmra.mrb[0].mxu0 %v4337
      %v4465 = vpop.f32.mrb[0].mxu0
      %v4466 = vadd.f32 0.0, %v4465
      %v4467 = vpop.f32.mrb[0].mxu0
      %v4468 = vpop.f32.mrb[0].mxu0
      %v4469 = vadd.f32 0.0, %v4468
      %v4470 = vpop.f32.mrb[0].mxu0
      %4471 = vmatprep.mubr.bf16.mxu0 0
      %4472 = vmatmul.mubr.bf16.gmra.mrb[0].mxu0 %v4338
      %v4473 = vpop.f32.mrb[0].mxu0
      %v4474 = vadd.f32 0.0, %v4473
      %v4475 = vpop.f32.mrb[0].mxu0
      %v4476 = vpop.f32.mrb[0].mxu0
      %v4477 = vadd.f32 0.0, %v4476
      %v4478 = vpop.f32.mrb[0].mxu0
      %4479 = vmatprep.mubr.bf16.mxu0 0
      %4480 = vmatmul.mubr.bf16.gmra.mrb[0].mxu0 %v4339
      %v4481 = vpop.f32.mrb[0].mxu0
      %v4482 = vadd.f32 0.0, %v4481
      %v4483 = vpop.f32.mrb[0].mxu0
      %v4484 = vpop.f32.mrb[0].mxu0
      %v4485 = vadd.f32 0.0, %v4484
      %v4486 = vpop.f32.mrb[0].mxu0
      %4487 = vmatprep.mubr.bf16.mxu0 0
      %4488 = vmatmul.mubr.bf16.gmra.mrb[0].mxu0 %v4340
      %v4489 = vpop.f32.mrb[0].mxu0
      %v4490 = vadd.f32 0.0, %v4489
      %v4491 = vpop.f32.mrb[0].mxu0
      %v4492 = vpop.f32.mrb[0].mxu0
      %v4493 = vadd.f32 0.0, %v4492
      %v4494 = vpop.f32.mrb[0].mxu0
      %4495 = vmatprep.mubr.bf16.mxu0 0
      %4496 = vmatmul.mubr.bf16.gmra.mrb[0].mxu0 %v4341
      %v4497 = vpop.f32.mrb[0].mxu0
      %v4498 = vadd.f32 0.0, %v4497
      %v4499 = vpop.f32.mrb[0].mxu0
      %v4500 = vpop.f32.mrb[0].mxu0
      %v4501 = vadd.f32 0.0, %v4500
      %v4502 = vpop.f32.mrb[0].mxu0
      %4503 = vmatprep.mubr.bf16.mxu0 0
      %4504 = vmatmul.mubr.bf16.gmra.mrb[0].mxu0 %v4342
      %v4505 = vpop.f32.mrb[0].mxu0
      %v4506 = vadd.f32 0.0, %v4505
      %v4507 = vpop.f32.mrb[0].mxu0
      %v4508 = vpop.f32.mrb[0].mxu0
      %v4509 = vadd.f32 0.0, %v4508
      %v4510 = vpop.f32.mrb[0].mxu0
      %4511 = vmatprep.mubr.bf16.mxu0 0
      %4512 = vmatmul.mubr.bf16.gmra.mrb[0].mxu0 %v4343
      %v4513 = vpop.f32.mrb[0].mxu0
      %v4514 = vadd.f32 0.0, %v4513
      %v4515 = vpop.f32.mrb[0].mxu0
      %v4516 = vpop.f32.mrb[0].mxu0
      %v4517 = vadd.f32 0.0, %v4516
      %v4518 = vpop.f32.mrb[0].mxu0
      %4519 = vmatprep.mubr.bf16.mxu0 0
      %4520 = vmatmul.mubr.bf16.gmra.mrb[0].mxu0 %v4344
      %v4521 = vpop.f32.mrb[0].mxu0
      %v4522 = vadd.f32 0.0, %v4521
      %v4523 = vpop.f32.mrb[0].mxu0
      %v4524 = vpop.f32.mrb[0].mxu0
      %v4525 = vadd.f32 0.0, %v4524
      %v4526 = vpop.f32.mrb[0].mxu0
      %4527 = vmatprep.mubr.bf16.mxu0 0
      %4528 = vmatmul.mubr.bf16.gmra.mrb[0].mxu0 %v4345
      %v4529 = vpop.f32.mrb[0].mxu0
      %v4530 = vadd.f32 0.0, %v4529
      %v4531 = vpop.f32.mrb[0].mxu0
      %v4532 = vpop.f32.mrb[0].mxu0
      %v4533 = vadd.f32 0.0, %v4532
      %v4534 = vpop.f32.mrb[0].mxu0
      %4535 = vmatprep.mubr.bf16.mxu0 0
      %4536 = vmatmul.mubr.bf16.gmra.mrb[0].mxu0 %v4346
      %v4537 = vpop.f32.mrb[0].mxu0
      %v4538 = vadd.f32 0.0, %v4537
      %v4539 = vpop.f32.mrb[0].mxu0
      %v4540 = vpop.f32.mrb[0].mxu0
      %v4541 = vadd.f32 0.0, %v4540
      %v4542 = vpop.f32.mrb[0].mxu0
      %4543 = vmatprep.mubr.bf16.mxu0 0
      %4544 = vmatmul.mubr.bf16.gmra.mrb[0].mxu0 %v4347
      %v4545 = vpop.f32.mrb[0].mxu0
      %v4546 = vadd.f32 0.0, %v4545
      %v4547 = vpop.f32.mrb[0].mxu0
      %v4548 = vpop.f32.mrb[0].mxu0
      %v4549 = vadd.f32 0.0, %v4548
      %v4550 = vpop.f32.mrb[0].mxu0
      %4551 = vmatprep.mubr.bf16.mxu0 0
      %4552 = vmatmul.mubr.bf16.gmra.mrb[0].mxu0 %v4348
      %v4553 = vpop.f32.mrb[0].mxu0
      %v4554 = vadd.f32 0.0, %v4553
      %v4555 = vpop.f32.mrb[0].mxu0
      %v4556 = vpop.f32.mrb[0].mxu0
      %v4557 = vadd.f32 0.0, %v4556
      %v4558 = vpop.f32.mrb[0].mxu0
      %4559 = vmatprep.mubr.bf16.mxu0 0
      %4560 = vmatmul.mubr.bf16.gmra.mrb[0].mxu0 %v4349
      %v4561 = vpop.f32.mrb[0].mxu0
      %v4562 = vadd.f32 0.0, %v4561
      %v4563 = vpop.f32.mrb[0].mxu0
      %v4564 = vpop.f32.mrb[0].mxu0
      %v4565 = vadd.f32 0.0, %v4564
      %v4566 = vpop.f32.mrb[0].mxu0
      %4567 = vmatprep.mubr.bf16.mxu0 0
      %4568 = vmatmul.mubr.bf16.gmra.mrb[0].mxu0 %v4350
      %v4569 = vpop.f32.mrb[0].mxu0
      %v4570 = vadd.f32 0.0, %v4569
      %v4571 = vpop.f32.mrb[0].mxu0
      %v4572 = vpop.f32.mrb[0].mxu0
      %v4573 = vadd.f32 0.0, %v4572
      %v4574 = vpop.f32.mrb[0].mxu0
      %4575 = vdwg.mxu0
      %v4576 = vadd.f32 %v4189, %v4450
      %v4577 = vadd.f32 %v4190, %v4453
      %v4578 = vadd.f32 %v4191, %v4458
      %v4579 = vadd.f32 %v4192, %v4461
      %v4580 = vadd.f32 %v4193, %v4466
      %v4581 = vadd.f32 %v4194, %v4469
      %v4582 = vadd.f32 %v4195, %v4474
      %v4583 = vadd.f32 %v4196, %v4477
      %v4584 = vadd.f32 %v4197, %v4482
      %v4585 = vadd.f32 %v4198, %v4485
      %v4586 = vadd.f32 %v4199, %v4490
      %v4587 = vadd.f32 %v4200, %v4493
      %v4588 = vadd.f32 %v4201, %v4498
      %v4589 = vadd.f32 %v4202, %v4501
      %v4590 = vadd.f32 %v4203, %v4506
      %v4591 = vadd.f32 %v4204, %v4509
      %v4592 = vadd.f32 %v4205, %v4514
      %v4593 = vadd.f32 %v4206, %v4517
      %v4594 = vadd.f32 %v4207, %v4522
      %v4595 = vadd.f32 %v4208, %v4525
      %v4596 = vadd.f32 %v4209, %v4530
      %v4597 = vadd.f32 %v4210, %v4533
      %v4598 = vadd.f32 %v4211, %v4538
      %v4599 = vadd.f32 %v4212, %v4541
      %v4600 = vadd.f32 %v4213, %v4546
      %v4601 = vadd.f32 %v4214, %v4549
      %v4602 = vadd.f32 %v4215, %v4554
      %v4603 = vadd.f32 %v4216, %v4557
      %v4604 = vadd.f32 %v4217, %v4562
      %v4605 = vadd.f32 %v4218, %v4565
      %v4606 = vadd.f32 %v4219, %v4570
      %v4607 = vadd.f32 %v4220, %v4573
      %v4608 = vld [vmem:[%s4221] sm:$0xf]
      %v4609 = vld [vmem:[%s4221 + $0x4] sm:$0xf]
      %v4610 = vld [vmem:[%s4221 + $0x8] sm:$0x1]
      %v4611 = vld [vmem:[%s4221 + $0xc] sm:$0xf]
      %v4612 = vld [vmem:[%s4221 + $0x10] sm:$0xf]
      %v4613 = vld [vmem:[%s4221 + $0x14] sm:$0x1]
      %v4614 = vld [vmem:[%s4221 + $0x18] sm:$0xf]
      %v4615 = vld [vmem:[%s4221 + $0x1c] sm:$0xf]
      %v4616 = vld [vmem:[%s4221 + $0x20] sm:$0x1]
      %v4617 = vld [vmem:[%s4221 + $0x24] sm:$0xf]
      %v4618 = vld [vmem:[%s4221 + $0x28] sm:$0xf]
      %v4619 = vld [vmem:[%s4221 + $0x2c] sm:$0x1]
      %v4620 = vld [vmem:[%s4221 + $0x30] sm:$0xf]
      %v4621 = vld [vmem:[%s4221 + $0x34] sm:$0xf]
      %v4622 = vld [vmem:[%s4221 + $0x38] sm:$0x1]
      %v4623 = vld [vmem:[%s4221 + $0x3c] sm:$0xf]
      %v4624 = vld [vmem:[%s4221 + $0x40] sm:$0xf]
      %v4625 = vld [vmem:[%s4221 + $0x44] sm:$0x1]
      %v4626 = vld [vmem:[%s4221 + $0x48] sm:$0xf]
      %v4627 = vld [vmem:[%s4221 + $0x4c] sm:$0xf]
      %v4628 = vld [vmem:[%s4221 + $0x50] sm:$0x1]
      %v4629 = vld [vmem:[%s4221 + $0x54] sm:$0xf]
      %v4630 = vld [vmem:[%s4221 + $0x58] sm:$0xf]
      %v4631 = vld [vmem:[%s4221 + $0x5c] sm:$0x1]
      %v4632 = vld [vmem:[%s4221 + $0x60] sm:$0xf]
      %v4633 = vld [vmem:[%s4221 + $0x64] sm:$0xf]
      %v4634 = vld [vmem:[%s4221 + $0x68] sm:$0x1]
      %v4635 = vld [vmem:[%s4221 + $0x6c] sm:$0xf]
      %v4636 = vld [vmem:[%s4221 + $0x70] sm:$0xf]
      %v4637 = vld [vmem:[%s4221 + $0x74] sm:$0x1]
      %v4638 = vld [vmem:[%s4221 + $0x78] sm:$0xf]
      %v4639 = vld [vmem:[%s4221 + $0x7c] sm:$0xf]
      %v4640 = vld [vmem:[%s4221 + $0x80] sm:$0x1]
      %v4641 = vld [vmem:[%s4221 + $0x84] sm:$0xf]
      %v4642 = vld [vmem:[%s4221 + $0x88] sm:$0xf]
      %v4643 = vld [vmem:[%s4221 + $0x8c] sm:$0x1]
      %v4644 = vld [vmem:[%s4221 + $0x90] sm:$0xf]
      %v4645 = vld [vmem:[%s4221 + $0x94] sm:$0xf]
      %v4646 = vld [vmem:[%s4221 + $0x98] sm:$0x1]
      %v4647 = vld [vmem:[%s4221 + $0x9c] sm:$0xf]
      %v4648 = vld [vmem:[%s4221 + $0xa0] sm:$0xf]
      %v4649 = vld [vmem:[%s4221 + $0xa4] sm:$0x1]
      %v4650 = vld [vmem:[%s4221 + $0xa8] sm:$0xf]
      %v4651 = vld [vmem:[%s4221 + $0xac] sm:$0xf]
      %v4652 = vld [vmem:[%s4221 + $0xb0] sm:$0x1]
      %v4653 = vld [vmem:[%s4221 + $0xb4] sm:$0xf]
      %v4654 = vld [vmem:[%s4221 + $0xb8] sm:$0xf]
      %v4655 = vld [vmem:[%s4221 + $0xbc] sm:$0x1]
      %v4657 = vshrl.u32 %v4608, 16
      %v4659 = vrot.slane %v4657, 4
      %v4660 = vshll.u32 %v4608, 16
      %v4662 = vrot.slane %v4660, 5
      %v4663 = vor.u32 %v4659, %v4662
      %v4664 = vrot.slane %v4663, 4
      %v4666 = vshll.u32 %v4609, 16
      %v4668 = vrot.slane %v4666, 5
      %v4669 = vsel %vm1118, %v4664, %v4668
      %v4670 = vshrl.u32 %v4609, 16
      %v4672 = vrot.slane %v4670, 4
      %v4673 = vor.u32 %v4672, %v4668
      %v4674 = vrot.slane %v4673, 4
      %v4676 = vshll.u32 %v4610, 16
      %v4678 = vrot.slane %v4676, 5
      %v4679 = vsel %vm1118, %v4674, %v4678
      %v4681 = vshrl.u32 %v4611, 16
      %v4683 = vrot.slane %v4681, 4
      %v4684 = vshll.u32 %v4611, 16
      %v4686 = vrot.slane %v4684, 5
      %v4687 = vor.u32 %v4683, %v4686
      %v4688 = vrot.slane %v4687, 4
      %v4690 = vshll.u32 %v4612, 16
      %v4692 = vrot.slane %v4690, 5
      %v4693 = vsel %vm1118, %v4688, %v4692
      %v4694 = vshrl.u32 %v4612, 16
      %v4696 = vrot.slane %v4694, 4
      %v4697 = vor.u32 %v4696, %v4692
      %v4698 = vrot.slane %v4697, 4
      %v4700 = vshll.u32 %v4613, 16
      %v4702 = vrot.slane %v4700, 5
      %v4703 = vsel %vm1118, %v4698, %v4702
      %v4705 = vshrl.u32 %v4614, 16
      %v4707 = vrot.slane %v4705, 4
      %v4708 = vshll.u32 %v4614, 16
      %v4710 = vrot.slane %v4708, 5
      %v4711 = vor.u32 %v4707, %v4710
      %v4712 = vrot.slane %v4711, 4
      %v4714 = vshll.u32 %v4615, 16
      %v4716 = vrot.slane %v4714, 5
      %v4717 = vsel %vm1118, %v4712, %v4716
      %v4718 = vshrl.u32 %v4615, 16
      %v4720 = vrot.slane %v4718, 4
      %v4721 = vor.u32 %v4720, %v4716
      %v4722 = vrot.slane %v4721, 4
      %v4724 = vshll.u32 %v4616, 16
      %v4726 = vrot.slane %v4724, 5
      %v4727 = vsel %vm1118, %v4722, %v4726
      %v4729 = vshrl.u32 %v4617, 16
      %v4731 = vrot.slane %v4729, 4
      %v4732 = vshll.u32 %v4617, 16
      %v4734 = vrot.slane %v4732, 5
      %v4735 = vor.u32 %v4731, %v4734
      %v4736 = vrot.slane %v4735, 4
      %v4738 = vshll.u32 %v4618, 16
      %v4740 = vrot.slane %v4738, 5
      %v4741 = vsel %vm1118, %v4736, %v4740
      %v4742 = vshrl.u32 %v4618, 16
      %v4744 = vrot.slane %v4742, 4
      %v4745 = vor.u32 %v4744, %v4740
      %v4746 = vrot.slane %v4745, 4
      %v4748 = vshll.u32 %v4619, 16
      %v4750 = vrot.slane %v4748, 5
      %v4751 = vsel %vm1118, %v4746, %v4750
      %v4753 = vshrl.u32 %v4620, 16
      %v4755 = vrot.slane %v4753, 4
      %v4756 = vshll.u32 %v4620, 16
      %v4758 = vrot.slane %v4756, 5
      %v4759 = vor.u32 %v4755, %v4758
      %v4760 = vrot.slane %v4759, 4
      %v4762 = vshll.u32 %v4621, 16
      %v4764 = vrot.slane %v4762, 5
      %v4765 = vsel %vm1118, %v4760, %v4764
      %v4766 = vshrl.u32 %v4621, 16
      %v4768 = vrot.slane %v4766, 4
      %v4769 = vor.u32 %v4768, %v4764
      %v4770 = vrot.slane %v4769, 4
      %v4772 = vshll.u32 %v4622, 16
      %v4774 = vrot.slane %v4772, 5
      %v4775 = vsel %vm1118, %v4770, %v4774
      %v4777 = vshrl.u32 %v4623, 16
      %v4779 = vrot.slane %v4777, 4
      %v4780 = vshll.u32 %v4623, 16
      %v4782 = vrot.slane %v4780, 5
      %v4783 = vor.u32 %v4779, %v4782
      %v4784 = vrot.slane %v4783, 4
      %v4786 = vshll.u32 %v4624, 16
      %v4788 = vrot.slane %v4786, 5
      %v4789 = vsel %vm1118, %v4784, %v4788
      %v4790 = vshrl.u32 %v4624, 16
      %v4792 = vrot.slane %v4790, 4
      %v4793 = vor.u32 %v4792, %v4788
      %v4794 = vrot.slane %v4793, 4
      %v4796 = vshll.u32 %v4625, 16
      %v4798 = vrot.slane %v4796, 5
      %v4799 = vsel %vm1118, %v4794, %v4798
      %v4801 = vshrl.u32 %v4626, 16
      %v4803 = vrot.slane %v4801, 4
      %v4804 = vshll.u32 %v4626, 16
      %v4806 = vrot.slane %v4804, 5
      %v4807 = vor.u32 %v4803, %v4806
      %v4808 = vrot.slane %v4807, 4
      %v4810 = vshll.u32 %v4627, 16
      %v4812 = vrot.slane %v4810, 5
      %v4813 = vsel %vm1118, %v4808, %v4812
      %v4814 = vshrl.u32 %v4627, 16
      %v4816 = vrot.slane %v4814, 4
      %v4817 = vor.u32 %v4816, %v4812
      %v4818 = vrot.slane %v4817, 4
      %v4820 = vshll.u32 %v4628, 16
      %v4822 = vrot.slane %v4820, 5
      %v4823 = vsel %vm1118, %v4818, %v4822
      %v4825 = vshrl.u32 %v4629, 16
      %v4827 = vrot.slane %v4825, 4
      %v4828 = vshll.u32 %v4629, 16
      %v4830 = vrot.slane %v4828, 5
      %v4831 = vor.u32 %v4827, %v4830
      %v4832 = vrot.slane %v4831, 4
      %v4834 = vshll.u32 %v4630, 16
      %v4836 = vrot.slane %v4834, 5
      %v4837 = vsel %vm1118, %v4832, %v4836
      %v4838 = vshrl.u32 %v4630, 16
      %v4840 = vrot.slane %v4838, 4
      %v4841 = vor.u32 %v4840, %v4836
      %v4842 = vrot.slane %v4841, 4
      %v4844 = vshll.u32 %v4631, 16
      %v4846 = vrot.slane %v4844, 5
      %v4847 = vsel %vm1118, %v4842, %v4846
      %v4849 = vshrl.u32 %v4632, 16
      %v4851 = vrot.slane %v4849, 4
      %v4852 = vshll.u32 %v4632, 16
      %v4854 = vrot.slane %v4852, 5
      %v4855 = vor.u32 %v4851, %v4854
      %v4856 = vrot.slane %v4855, 4
      %v4858 = vshll.u32 %v4633, 16
      %v4860 = vrot.slane %v4858, 5
      %v4861 = vsel %vm1118, %v4856, %v4860
      %v4862 = vshrl.u32 %v4633, 16
      %v4864 = vrot.slane %v4862, 4
      %v4865 = vor.u32 %v4864, %v4860
      %v4866 = vrot.slane %v4865, 4
      %v4868 = vshll.u32 %v4634, 16
      %v4870 = vrot.slane %v4868, 5
      %v4871 = vsel %vm1118, %v4866, %v4870
      %v4873 = vshrl.u32 %v4635, 16
      %v4875 = vrot.slane %v4873, 4
      %v4876 = vshll.u32 %v4635, 16
      %v4878 = vrot.slane %v4876, 5
      %v4879 = vor.u32 %v4875, %v4878
      %v4880 = vrot.slane %v4879, 4
      %v4882 = vshll.u32 %v4636, 16
      %v4884 = vrot.slane %v4882, 5
      %v4885 = vsel %vm1118, %v4880, %v4884
      %v4886 = vshrl.u32 %v4636, 16
      %v4888 = vrot.slane %v4886, 4
      %v4889 = vor.u32 %v4888, %v4884
      %v4890 = vrot.slane %v4889, 4
      %v4892 = vshll.u32 %v4637, 16
      %v4894 = vrot.slane %v4892, 5
      %v4895 = vsel %vm1118, %v4890, %v4894
      %v4897 = vshrl.u32 %v4638, 16
      %v4899 = vrot.slane %v4897, 4
      %v4900 = vshll.u32 %v4638, 16
      %v4902 = vrot.slane %v4900, 5
      %v4903 = vor.u32 %v4899, %v4902
      %v4904 = vrot.slane %v4903, 4
      %v4906 = vshll.u32 %v4639, 16
      %v4908 = vrot.slane %v4906, 5
      %v4909 = vsel %vm1118, %v4904, %v4908
      %v4910 = vshrl.u32 %v4639, 16
      %v4912 = vrot.slane %v4910, 4
      %v4913 = vor.u32 %v4912, %v4908
      %v4914 = vrot.slane %v4913, 4
      %v4916 = vshll.u32 %v4640, 16
      %v4918 = vrot.slane %v4916, 5
      %v4919 = vsel %vm1118, %v4914, %v4918
      %v4921 = vshrl.u32 %v4641, 16
      %v4923 = vrot.slane %v4921, 4
      %v4924 = vshll.u32 %v4641, 16
      %v4926 = vrot.slane %v4924, 5
      %v4927 = vor.u32 %v4923, %v4926
      %v4928 = vrot.slane %v4927, 4
      %v4930 = vshll.u32 %v4642, 16
      %v4932 = vrot.slane %v4930, 5
      %v4933 = vsel %vm1118, %v4928, %v4932
      %v4934 = vshrl.u32 %v4642, 16
      %v4936 = vrot.slane %v4934, 4
      %v4937 = vor.u32 %v4936, %v4932
      %v4938 = vrot.slane %v4937, 4
      %v4940 = vshll.u32 %v4643, 16
      %v4942 = vrot.slane %v4940, 5
      %v4943 = vsel %vm1118, %v4938, %v4942
      %v4945 = vshrl.u32 %v4644, 16
      %v4947 = vrot.slane %v4945, 4
      %v4948 = vshll.u32 %v4644, 16
      %v4950 = vrot.slane %v4948, 5
      %v4951 = vor.u32 %v4947, %v4950
      %v4952 = vrot.slane %v4951, 4
      %v4954 = vshll.u32 %v4645, 16
      %v4956 = vrot.slane %v4954, 5
      %v4957 = vsel %vm1118, %v4952, %v4956
      %v4958 = vshrl.u32 %v4645, 16
      %v4960 = vrot.slane %v4958, 4
      %v4961 = vor.u32 %v4960, %v4956
      %v4962 = vrot.slane %v4961, 4
      %v4964 = vshll.u32 %v4646, 16
      %v4966 = vrot.slane %v4964, 5
      %v4967 = vsel %vm1118, %v4962, %v4966
      %v4969 = vshrl.u32 %v4647, 16
      %v4971 = vrot.slane %v4969, 4
      %v4972 = vshll.u32 %v4647, 16
      %v4974 = vrot.slane %v4972, 5
      %v4975 = vor.u32 %v4971, %v4974
      %v4976 = vrot.slane %v4975, 4
      %v4978 = vshll.u32 %v4648, 16
      %v4980 = vrot.slane %v4978, 5
      %v4981 = vsel %vm1118, %v4976, %v4980
      %v4982 = vshrl.u32 %v4648, 16
      %v4984 = vrot.slane %v4982, 4
      %v4985 = vor.u32 %v4984, %v4980
      %v4986 = vrot.slane %v4985, 4
      %v4988 = vshll.u32 %v4649, 16
      %v4990 = vrot.slane %v4988, 5
      %v4991 = vsel %vm1118, %v4986, %v4990
      %v4993 = vshrl.u32 %v4650, 16
      %v4995 = vrot.slane %v4993, 4
      %v4996 = vshll.u32 %v4650, 16
      %v4998 = vrot.slane %v4996, 5
      %v4999 = vor.u32 %v4995, %v4998
      %v5000 = vrot.slane %v4999, 4
      %v5002 = vshll.u32 %v4651, 16
      %v5004 = vrot.slane %v5002, 5
      %v5005 = vsel %vm1118, %v5000, %v5004
      %v5006 = vshrl.u32 %v4651, 16
      %v5008 = vrot.slane %v5006, 4
      %v5009 = vor.u32 %v5008, %v5004
      %v5010 = vrot.slane %v5009, 4
      %v5012 = vshll.u32 %v4652, 16
      %v5014 = vrot.slane %v5012, 5
      %v5015 = vsel %vm1118, %v5010, %v5014
      %v5017 = vshrl.u32 %v4653, 16
      %v5019 = vrot.slane %v5017, 4
      %v5020 = vshll.u32 %v4653, 16
      %v5022 = vrot.slane %v5020, 5
      %v5023 = vor.u32 %v5019, %v5022
      %v5024 = vrot.slane %v5023, 4
      %v5026 = vshll.u32 %v4654, 16
      %v5028 = vrot.slane %v5026, 5
      %v5029 = vsel %vm1118, %v5024, %v5028
      %v5030 = vshrl.u32 %v4654, 16
      %v5032 = vrot.slane %v5030, 4
      %v5033 = vor.u32 %v5032, %v5028
      %v5034 = vrot.slane %v5033, 4
      %v5036 = vshll.u32 %v4655, 16
      %v5038 = vrot.slane %v5036, 5
      %v5039 = vsel %vm1118, %v5034, %v5038
      %s5040 = scalar_lea.vmem %s3, 448
      %v5041 = vld [vmem:[%s5040] sm:$0xf]
      %v5042 = vld [vmem:[%s5040 + $0x4] sm:$0xf]
      %v5043 = vld [vmem:[%s5040 + $0x8] sm:$0xf]
      %v5044 = vld [vmem:[%s5040 + $0xc] sm:$0xf]
      %v5045 = vld [vmem:[%s5040 + $0x10] sm:$0xf]
      %v5046 = vld [vmem:[%s5040 + $0x14] sm:$0xf]
      %v5047 = vld [vmem:[%s5040 + $0x18] sm:$0xf]
      %v5048 = vld [vmem:[%s5040 + $0x1c] sm:$0xf]
      %v5049 = vld [vmem:[%s5040 + $0x20] sm:$0xf]
      %v5050 = vld [vmem:[%s5040 + $0x24] sm:$0xf]
      %v5051 = vld [vmem:[%s5040 + $0x28] sm:$0xf]
      %v5052 = vld [vmem:[%s5040 + $0x2c] sm:$0xf]
      %v5053 = vld [vmem:[%s5040 + $0x30] sm:$0xf]
      %v5054 = vld [vmem:[%s5040 + $0x34] sm:$0xf]
      %v5055 = vld [vmem:[%s5040 + $0x38] sm:$0xf]
      %v5056 = vld [vmem:[%s5040 + $0x3c] sm:$0xf]
      %v5057 = vunpack.c.l.b16 %v4669
      %v5058 = vunpack.c.l.b16 %v4679
      %v5059 = vunpack.c.l.b16 %v4693
      %v5060 = vunpack.c.l.b16 %v4703
      %v5061 = vunpack.c.l.b16 %v4717
      %v5062 = vunpack.c.l.b16 %v4727
      %v5063 = vunpack.c.l.b16 %v4741
      %v5064 = vunpack.c.l.b16 %v4751
      %v5065 = vunpack.c.l.b16 %v4765
      %v5066 = vunpack.c.l.b16 %v4775
      %v5067 = vunpack.c.l.b16 %v4789
      %v5068 = vunpack.c.l.b16 %v4799
      %v5069 = vunpack.c.l.b16 %v4813
      %v5070 = vunpack.c.l.b16 %v4823
      %v5071 = vunpack.c.l.b16 %v4837
      %v5072 = vunpack.c.l.b16 %v4847
      %v5073 = vunpack.c.l.b16 %v4861
      %v5074 = vunpack.c.l.b16 %v4871
      %v5075 = vunpack.c.l.b16 %v4885
      %v5076 = vunpack.c.l.b16 %v4895
      %v5077 = vunpack.c.l.b16 %v4909
      %v5078 = vunpack.c.l.b16 %v4919
      %v5079 = vunpack.c.l.b16 %v4933
      %v5080 = vunpack.c.l.b16 %v4943
      %v5081 = vunpack.c.l.b16 %v4957
      %v5082 = vunpack.c.l.b16 %v4967
      %v5083 = vunpack.c.l.b16 %v4981
      %v5084 = vunpack.c.l.b16 %v4991
      %v5085 = vunpack.c.l.b16 %v5005
      %v5086 = vunpack.c.l.b16 %v5015
      %v5087 = vunpack.c.l.b16 %v5029
      %v5088 = vunpack.c.l.b16 %v5039
      %v5089 = vpack.c.b16 %v5058, %v5057
      %v5090 = vpack.c.b16 %v5060, %v5059
      %v5091 = vpack.c.b16 %v5062, %v5061
      %v5092 = vpack.c.b16 %v5064, %v5063
      %v5093 = vpack.c.b16 %v5066, %v5065
      %v5094 = vpack.c.b16 %v5068, %v5067
      %v5095 = vpack.c.b16 %v5070, %v5069
      %v5096 = vpack.c.b16 %v5072, %v5071
      %v5097 = vpack.c.b16 %v5074, %v5073
      %v5098 = vpack.c.b16 %v5076, %v5075
      %v5099 = vpack.c.b16 %v5078, %v5077
      %v5100 = vpack.c.b16 %v5080, %v5079
      %v5101 = vpack.c.b16 %v5082, %v5081
      %v5102 = vpack.c.b16 %v5084, %v5083
      %v5103 = vpack.c.b16 %v5086, %v5085
      %v5104 = vpack.c.b16 %v5088, %v5087
      %v5137 = vunpack.c.l.b16 %v5041
      %v5138 = vunpack.c.l.b16 %v5042
      %v5139 = vunpack.c.l.b16 %v5043
      %v5140 = vunpack.c.l.b16 %v5044
      %v5141 = vunpack.c.l.b16 %v5045
      %v5142 = vunpack.c.l.b16 %v5046
      %v5143 = vunpack.c.l.b16 %v5047
      %v5144 = vunpack.c.l.b16 %v5048
      %v5145 = vunpack.c.l.b16 %v5049
      %v5146 = vunpack.c.l.b16 %v5050
      %v5147 = vunpack.c.l.b16 %v5051
      %v5148 = vunpack.c.l.b16 %v5052
      %v5149 = vunpack.c.l.b16 %v5053
      %v5150 = vunpack.c.l.b16 %v5054
      %v5151 = vunpack.c.l.b16 %v5055
      %v5152 = vunpack.c.l.b16 %v5056
      %v5153 = vpack.c.b16 %v5138, %v5137
      %v5154 = vpack.c.b16 %v5140, %v5139
      %v5155 = vpack.c.b16 %v5142, %v5141
      %v5156 = vpack.c.b16 %v5144, %v5143
      %v5157 = vpack.c.b16 %v5146, %v5145
      %v5158 = vpack.c.b16 %v5148, %v5147
      %v5159 = vpack.c.b16 %v5150, %v5149
      %v5160 = vpack.c.b16 %v5152, %v5151
      %5169 = vmatprep.subr.bf16.mxu0 0
      %5170 = vmatpush1.bf16.msra.mxu0 %v5153
      %5171 = vmatprep.subr.bf16.mxu0 0
      %5172 = vmatpush1.bf16.msra.mxu0 %v5154
      %5173 = vmatprep.subr.bf16.mxu0 0
      %5174 = vmatpush1.bf16.msra.mxu0 %v5155
      %5175 = vmatprep.subr.bf16.mxu0 0
      %5176 = vmatpush1.bf16.msra.mxu0 %v5156
      %5177 = vmatprep.subr.bf16.mxu0 0
      %5178 = vmatpush1.bf16.msra.mxu0 %v5157
      %5179 = vmatprep.subr.bf16.mxu0 0
      %5180 = vmatpush1.bf16.msra.mxu0 %v5158
      %5181 = vmatprep.subr.bf16.mxu0 0
      %5182 = vmatpush1.bf16.msra.mxu0 %v5159
      %5183 = vmatprep.subr.bf16.mxu0 0
      %5184 = vmatpush1.bf16.msra.mxu0 %v5160
      %5185 = vmatprep.subr.bf16.mxu0 0
      %5186 = vmatpush1.bf16.msra.mxu0 0
      %5187 = vmatprep.subr.bf16.mxu0 0
      %5188 = vmatpush1.bf16.msra.mxu0 0
      %5189 = vmatprep.subr.bf16.mxu0 0
      %5190 = vmatpush1.bf16.msra.mxu0 0
      %5191 = vmatprep.subr.bf16.mxu0 0
      %5192 = vmatpush1.bf16.msra.mxu0 0
      %5193 = vmatprep.subr.bf16.mxu0 0
      %5194 = vmatpush1.bf16.msra.mxu0 0
      %5195 = vmatprep.subr.bf16.mxu0 0
      %5196 = vmatpush1.bf16.msra.mxu0 0
      %5197 = vmatprep.subr.bf16.mxu0 0
      %5198 = vmatpush1.bf16.msra.mxu0 0
      %5199 = vmatprep.subr.bf16.mxu0 0
      %5200 = vmatpush1.bf16.msra.mxu0 0
      %5201 = vmatprep.mubr.bf16.mxu0 0
      %5202 = vmatmul.mubr.bf16.gmra.mrb[0].mxu0 %v5089
      %v5203 = vpop.f32.mrb[0].mxu0
      %v5204 = vadd.f32 0.0, %v5203
      %v5205 = vpop.f32.mrb[0].mxu0
      %v5206 = vpop.f32.mrb[0].mxu0
      %v5207 = vadd.f32 0.0, %v5206
      %v5208 = vpop.f32.mrb[0].mxu0
      %5209 = vmatprep.mubr.bf16.mxu0 0
      %5210 = vmatmul.mubr.bf16.gmra.mrb[0].mxu0 %v5090
      %v5211 = vpop.f32.mrb[0].mxu0
      %v5212 = vadd.f32 0.0, %v5211
      %v5213 = vpop.f32.mrb[0].mxu0
      %v5214 = vpop.f32.mrb[0].mxu0
      %v5215 = vadd.f32 0.0, %v5214
      %v5216 = vpop.f32.mrb[0].mxu0
      %5217 = vmatprep.mubr.bf16.mxu0 0
      %5218 = vmatmul.mubr.bf16.gmra.mrb[0].mxu0 %v5091
      %v5219 = vpop.f32.mrb[0].mxu0
      %v5220 = vadd.f32 0.0, %v5219
      %v5221 = vpop.f32.mrb[0].mxu0
      %v5222 = vpop.f32.mrb[0].mxu0
      %v5223 = vadd.f32 0.0, %v5222
      %v5224 = vpop.f32.mrb[0].mxu0
      %5225 = vmatprep.mubr.bf16.mxu0 0
      %5226 = vmatmul.mubr.bf16.gmra.mrb[0].mxu0 %v5092
      %v5227 = vpop.f32.mrb[0].mxu0
      %v5228 = vadd.f32 0.0, %v5227
      %v5229 = vpop.f32.mrb[0].mxu0
      %v5230 = vpop.f32.mrb[0].mxu0
      %v5231 = vadd.f32 0.0, %v5230
      %v5232 = vpop.f32.mrb[0].mxu0
      %5233 = vmatprep.mubr.bf16.mxu0 0
      %5234 = vmatmul.mubr.bf16.gmra.mrb[0].mxu0 %v5093
      %v5235 = vpop.f32.mrb[0].mxu0
      %v5236 = vadd.f32 0.0, %v5235
      %v5237 = vpop.f32.mrb[0].mxu0
      %v5238 = vpop.f32.mrb[0].mxu0
      %v5239 = vadd.f32 0.0, %v5238
      %v5240 = vpop.f32.mrb[0].mxu0
      %5241 = vmatprep.mubr.bf16.mxu0 0
      %5242 = vmatmul.mubr.bf16.gmra.mrb[0].mxu0 %v5094
      %v5243 = vpop.f32.mrb[0].mxu0
      %v5244 = vadd.f32 0.0, %v5243
      %v5245 = vpop.f32.mrb[0].mxu0
      %v5246 = vpop.f32.mrb[0].mxu0
      %v5247 = vadd.f32 0.0, %v5246
      %v5248 = vpop.f32.mrb[0].mxu0
      %5249 = vmatprep.mubr.bf16.mxu0 0
      %5250 = vmatmul.mubr.bf16.gmra.mrb[0].mxu0 %v5095
      %v5251 = vpop.f32.mrb[0].mxu0
      %v5252 = vadd.f32 0.0, %v5251
      %v5253 = vpop.f32.mrb[0].mxu0
      %v5254 = vpop.f32.mrb[0].mxu0
      %v5255 = vadd.f32 0.0, %v5254
      %v5256 = vpop.f32.mrb[0].mxu0
      %5257 = vmatprep.mubr.bf16.mxu0 0
      %5258 = vmatmul.mubr.bf16.gmra.mrb[0].mxu0 %v5096
      %v5259 = vpop.f32.mrb[0].mxu0
      %v5260 = vadd.f32 0.0, %v5259
      %v5261 = vpop.f32.mrb[0].mxu0
      %v5262 = vpop.f32.mrb[0].mxu0
      %v5263 = vadd.f32 0.0, %v5262
      %v5264 = vpop.f32.mrb[0].mxu0
      %5265 = vmatprep.mubr.bf16.mxu0 0
      %5266 = vmatmul.mubr.bf16.gmra.mrb[0].mxu0 %v5097
      %v5267 = vpop.f32.mrb[0].mxu0
      %v5268 = vadd.f32 0.0, %v5267
      %v5269 = vpop.f32.mrb[0].mxu0
      %v5270 = vpop.f32.mrb[0].mxu0
      %v5271 = vadd.f32 0.0, %v5270
      %v5272 = vpop.f32.mrb[0].mxu0
      %5273 = vmatprep.mubr.bf16.mxu0 0
      %5274 = vmatmul.mubr.bf16.gmra.mrb[0].mxu0 %v5098
      %v5275 = vpop.f32.mrb[0].mxu0
      %v5276 = vadd.f32 0.0, %v5275
      %v5277 = vpop.f32.mrb[0].mxu0
      %v5278 = vpop.f32.mrb[0].mxu0
      %v5279 = vadd.f32 0.0, %v5278
      %v5280 = vpop.f32.mrb[0].mxu0
      %5281 = vmatprep.mubr.bf16.mxu0 0
      %5282 = vmatmul.mubr.bf16.gmra.mrb[0].mxu0 %v5099
      %v5283 = vpop.f32.mrb[0].mxu0
      %v5284 = vadd.f32 0.0, %v5283
      %v5285 = vpop.f32.mrb[0].mxu0
      %v5286 = vpop.f32.mrb[0].mxu0
      %v5287 = vadd.f32 0.0, %v5286
      %v5288 = vpop.f32.mrb[0].mxu0
      %5289 = vmatprep.mubr.bf16.mxu0 0
      %5290 = vmatmul.mubr.bf16.gmra.mrb[0].mxu0 %v5100
      %v5291 = vpop.f32.mrb[0].mxu0
      %v5292 = vadd.f32 0.0, %v5291
      %v5293 = vpop.f32.mrb[0].mxu0
      %v5294 = vpop.f32.mrb[0].mxu0
      %v5295 = vadd.f32 0.0, %v5294
      %v5296 = vpop.f32.mrb[0].mxu0
      %5297 = vmatprep.mubr.bf16.mxu0 0
      %5298 = vmatmul.mubr.bf16.gmra.mrb[0].mxu0 %v5101
      %v5299 = vpop.f32.mrb[0].mxu0
      %v5300 = vadd.f32 0.0, %v5299
      %v5301 = vpop.f32.mrb[0].mxu0
      %v5302 = vpop.f32.mrb[0].mxu0
      %v5303 = vadd.f32 0.0, %v5302
      %v5304 = vpop.f32.mrb[0].mxu0
      %5305 = vmatprep.mubr.bf16.mxu0 0
      %5306 = vmatmul.mubr.bf16.gmra.mrb[0].mxu0 %v5102
      %v5307 = vpop.f32.mrb[0].mxu0
      %v5308 = vadd.f32 0.0, %v5307
      %v5309 = vpop.f32.mrb[0].mxu0
      %v5310 = vpop.f32.mrb[0].mxu0
      %v5311 = vadd.f32 0.0, %v5310
      %v5312 = vpop.f32.mrb[0].mxu0
      %5313 = vmatprep.mubr.bf16.mxu0 0
      %5314 = vmatmul.mubr.bf16.gmra.mrb[0].mxu0 %v5103
      %v5315 = vpop.f32.mrb[0].mxu0
      %v5316 = vadd.f32 0.0, %v5315
      %v5317 = vpop.f32.mrb[0].mxu0
      %v5318 = vpop.f32.mrb[0].mxu0
      %v5319 = vadd.f32 0.0, %v5318
      %v5320 = vpop.f32.mrb[0].mxu0
      %5321 = vmatprep.mubr.bf16.mxu0 0
      %5322 = vmatmul.mubr.bf16.gmra.mrb[0].mxu0 %v5104
      %v5323 = vpop.f32.mrb[0].mxu0
      %v5324 = vadd.f32 0.0, %v5323
      %v5325 = vpop.f32.mrb[0].mxu0
      %v5326 = vpop.f32.mrb[0].mxu0
      %v5327 = vadd.f32 0.0, %v5326
      %v5328 = vpop.f32.mrb[0].mxu0
      %5329 = vdwg.mxu0
      %v5330 = vadd.f32 %v4576, %v5204
      %v5331 = vadd.f32 %v4577, %v5207
      %v5332 = vadd.f32 %v4578, %v5212
      %v5333 = vadd.f32 %v4579, %v5215
      %v5334 = vadd.f32 %v4580, %v5220
      %v5335 = vadd.f32 %v4581, %v5223
      %v5336 = vadd.f32 %v4582, %v5228
      %v5337 = vadd.f32 %v4583, %v5231
      %v5338 = vadd.f32 %v4584, %v5236
      %v5339 = vadd.f32 %v4585, %v5239
      %v5340 = vadd.f32 %v4586, %v5244
      %v5341 = vadd.f32 %v4587, %v5247
      %v5342 = vadd.f32 %v4588, %v5252
      %v5343 = vadd.f32 %v4589, %v5255
      %v5344 = vadd.f32 %v4590, %v5260
      %v5345 = vadd.f32 %v4591, %v5263
      %v5346 = vadd.f32 %v4592, %v5268
      %v5347 = vadd.f32 %v4593, %v5271
      %v5348 = vadd.f32 %v4594, %v5276
      %v5349 = vadd.f32 %v4595, %v5279
      %v5350 = vadd.f32 %v4596, %v5284
      %v5351 = vadd.f32 %v4597, %v5287
      %v5352 = vadd.f32 %v4598, %v5292
      %v5353 = vadd.f32 %v4599, %v5295
      %v5354 = vadd.f32 %v4600, %v5300
      %v5355 = vadd.f32 %v4601, %v5303
      %v5356 = vadd.f32 %v4602, %v5308
      %v5357 = vadd.f32 %v4603, %v5311
      %v5358 = vadd.f32 %v4604, %v5316
      %v5359 = vadd.f32 %v4605, %v5319
      %v5360 = vadd.f32 %v4606, %v5324
      %v5361 = vadd.f32 %v4607, %v5327
      %v5362 = vld [vmem:[%s4221] sm:$0xe]
      %v5363 = vld [vmem:[%s4221 + $0xc] sm:$0xe]
      %v5364 = vld [vmem:[%s4221 + $0x18] sm:$0xe]
      %v5365 = vld [vmem:[%s4221 + $0x24] sm:$0xe]
      %v5366 = vld [vmem:[%s4221 + $0x30] sm:$0xe]
      %v5367 = vld [vmem:[%s4221 + $0x3c] sm:$0xe]
      %v5368 = vld [vmem:[%s4221 + $0x48] sm:$0xe]
      %v5369 = vld [vmem:[%s4221 + $0x54] sm:$0xe]
      %v5370 = vld [vmem:[%s4221 + $0x60] sm:$0xe]
      %v5371 = vld [vmem:[%s4221 + $0x6c] sm:$0xe]
      %v5372 = vld [vmem:[%s4221 + $0x78] sm:$0xe]
      %v5373 = vld [vmem:[%s4221 + $0x84] sm:$0xe]
      %v5374 = vld [vmem:[%s4221 + $0x90] sm:$0xe]
      %v5375 = vld [vmem:[%s4221 + $0x9c] sm:$0xe]
      %v5376 = vld [vmem:[%s4221 + $0xa8] sm:$0xe]
      %v5377 = vld [vmem:[%s4221 + $0xb4] sm:$0xe]
      %v5426 = vrot.slane %v5362, 5
      %v5427 = vrot.slane %v5426, 4
      %v5428 = vrot.slane %v4609, 5
      %v5429 = vsel %vm2148, %v5427, %v5428
      %v5430 = vrot.slane %v5428, 4
      %v5431 = vrot.slane %v4610, 5
      %v5432 = vsel %vm2148, %v5430, %v5431
      %v5433 = vrot.slane %v5363, 5
      %v5434 = vrot.slane %v5433, 4
      %v5435 = vrot.slane %v4612, 5
      %v5436 = vsel %vm2148, %v5434, %v5435
      %v5437 = vrot.slane %v5435, 4
      %v5438 = vrot.slane %v4613, 5
      %v5439 = vsel %vm2148, %v5437, %v5438
      %v5440 = vrot.slane %v5364, 5
      %v5441 = vrot.slane %v5440, 4
      %v5442 = vrot.slane %v4615, 5
      %v5443 = vsel %vm2148, %v5441, %v5442
      %v5444 = vrot.slane %v5442, 4
      %v5445 = vrot.slane %v4616, 5
      %v5446 = vsel %vm2148, %v5444, %v5445
      %v5447 = vrot.slane %v5365, 5
      %v5448 = vrot.slane %v5447, 4
      %v5449 = vrot.slane %v4618, 5
      %v5450 = vsel %vm2148, %v5448, %v5449
      %v5451 = vrot.slane %v5449, 4
      %v5452 = vrot.slane %v4619, 5
      %v5453 = vsel %vm2148, %v5451, %v5452
      %v5454 = vrot.slane %v5366, 5
      %v5455 = vrot.slane %v5454, 4
      %v5456 = vrot.slane %v4621, 5
      %v5457 = vsel %vm2148, %v5455, %v5456
      %v5458 = vrot.slane %v5456, 4
      %v5459 = vrot.slane %v4622, 5
      %v5460 = vsel %vm2148, %v5458, %v5459
      %v5461 = vrot.slane %v5367, 5
      %v5462 = vrot.slane %v5461, 4
      %v5463 = vrot.slane %v4624, 5
      %v5464 = vsel %vm2148, %v5462, %v5463
      %v5465 = vrot.slane %v5463, 4
      %v5466 = vrot.slane %v4625, 5
      %v5467 = vsel %vm2148, %v5465, %v5466
      %v5468 = vrot.slane %v5368, 5
      %v5469 = vrot.slane %v5468, 4
      %v5470 = vrot.slane %v4627, 5
      %v5471 = vsel %vm2148, %v5469, %v5470
      %v5472 = vrot.slane %v5470, 4
      %v5473 = vrot.slane %v4628, 5
      %v5474 = vsel %vm2148, %v5472, %v5473
      %v5475 = vrot.slane %v5369, 5
      %v5476 = vrot.slane %v5475, 4
      %v5477 = vrot.slane %v4630, 5
      %v5478 = vsel %vm2148, %v5476, %v5477
      %v5479 = vrot.slane %v5477, 4
      %v5480 = vrot.slane %v4631, 5
      %v5481 = vsel %vm2148, %v5479, %v5480
      %v5482 = vrot.slane %v5370, 5
      %v5483 = vrot.slane %v5482, 4
      %v5484 = vrot.slane %v4633, 5
      %v5485 = vsel %vm2148, %v5483, %v5484
      %v5486 = vrot.slane %v5484, 4
      %v5487 = vrot.slane %v4634, 5
      %v5488 = vsel %vm2148, %v5486, %v5487
      %v5489 = vrot.slane %v5371, 5
      %v5490 = vrot.slane %v5489, 4
      %v5491 = vrot.slane %v4636, 5
      %v5492 = vsel %vm2148, %v5490, %v5491
      %v5493 = vrot.slane %v5491, 4
      %v5494 = vrot.slane %v4637, 5
      %v5495 = vsel %vm2148, %v5493, %v5494
      %v5496 = vrot.slane %v5372, 5
      %v5497 = vrot.slane %v5496, 4
      %v5498 = vrot.slane %v4639, 5
      %v5499 = vsel %vm2148, %v5497, %v5498
      %v5500 = vrot.slane %v5498, 4
      %v5501 = vrot.slane %v4640, 5
      %v5502 = vsel %vm2148, %v5500, %v5501
      %v5503 = vrot.slane %v5373, 5
      %v5504 = vrot.slane %v5503, 4
      %v5505 = vrot.slane %v4642, 5
      %v5506 = vsel %vm2148, %v5504, %v5505
      %v5507 = vrot.slane %v5505, 4
      %v5508 = vrot.slane %v4643, 5
      %v5509 = vsel %vm2148, %v5507, %v5508
      %v5510 = vrot.slane %v5374, 5
      %v5511 = vrot.slane %v5510, 4
      %v5512 = vrot.slane %v4645, 5
      %v5513 = vsel %vm2148, %v5511, %v5512
      %v5514 = vrot.slane %v5512, 4
      %v5515 = vrot.slane %v4646, 5
      %v5516 = vsel %vm2148, %v5514, %v5515
      %v5517 = vrot.slane %v5375, 5
      %v5518 = vrot.slane %v5517, 4
      %v5519 = vrot.slane %v4648, 5
      %v5520 = vsel %vm2148, %v5518, %v5519
      %v5521 = vrot.slane %v5519, 4
      %v5522 = vrot.slane %v4649, 5
      %v5523 = vsel %vm2148, %v5521, %v5522
      %v5524 = vrot.slane %v5376, 5
      %v5525 = vrot.slane %v5524, 4
      %v5526 = vrot.slane %v4651, 5
      %v5527 = vsel %vm2148, %v5525, %v5526
      %v5528 = vrot.slane %v5526, 4
      %v5529 = vrot.slane %v4652, 5
      %v5530 = vsel %vm2148, %v5528, %v5529
      %v5531 = vrot.slane %v5377, 5
      %v5532 = vrot.slane %v5531, 4
      %v5533 = vrot.slane %v4654, 5
      %v5534 = vsel %vm2148, %v5532, %v5533
      %v5535 = vrot.slane %v5533, 4
      %v5536 = vrot.slane %v4655, 5
      %v5537 = vsel %vm2148, %v5535, %v5536
      %s5538 = scalar_lea.vmem %s3, 512
      %v5539 = vld [vmem:[%s5538] sm:$0xf]
      %v5540 = vld [vmem:[%s5538 + $0x4] sm:$0xf]
      %v5541 = vld [vmem:[%s5538 + $0x8] sm:$0xf]
      %v5542 = vld [vmem:[%s5538 + $0xc] sm:$0xf]
      %v5543 = vld [vmem:[%s5538 + $0x10] sm:$0xf]
      %v5544 = vld [vmem:[%s5538 + $0x14] sm:$0xf]
      %v5545 = vld [vmem:[%s5538 + $0x18] sm:$0xf]
      %v5546 = vld [vmem:[%s5538 + $0x1c] sm:$0xf]
      %v5547 = vld [vmem:[%s5538 + $0x20] sm:$0xf]
      %v5548 = vld [vmem:[%s5538 + $0x24] sm:$0xf]
      %v5549 = vld [vmem:[%s5538 + $0x28] sm:$0xf]
      %v5550 = vld [vmem:[%s5538 + $0x2c] sm:$0xf]
      %v5551 = vld [vmem:[%s5538 + $0x30] sm:$0xf]
      %v5552 = vld [vmem:[%s5538 + $0x34] sm:$0xf]
      %v5553 = vld [vmem:[%s5538 + $0x38] sm:$0xf]
      %v5554 = vld [vmem:[%s5538 + $0x3c] sm:$0xf]
      %v5555 = vunpack.c.l.b16 %v5429
      %v5556 = vunpack.c.l.b16 %v5432
      %v5557 = vunpack.c.l.b16 %v5436
      %v5558 = vunpack.c.l.b16 %v5439
      %v5559 = vunpack.c.l.b16 %v5443
      %v5560 = vunpack.c.l.b16 %v5446
      %v5561 = vunpack.c.l.b16 %v5450
      %v5562 = vunpack.c.l.b16 %v5453
      %v5563 = vunpack.c.l.b16 %v5457
      %v5564 = vunpack.c.l.b16 %v5460
      %v5565 = vunpack.c.l.b16 %v5464
      %v5566 = vunpack.c.l.b16 %v5467
      %v5567 = vunpack.c.l.b16 %v5471
      %v5568 = vunpack.c.l.b16 %v5474
      %v5569 = vunpack.c.l.b16 %v5478
      %v5570 = vunpack.c.l.b16 %v5481
      %v5571 = vunpack.c.l.b16 %v5485
      %v5572 = vunpack.c.l.b16 %v5488
      %v5573 = vunpack.c.l.b16 %v5492
      %v5574 = vunpack.c.l.b16 %v5495
      %v5575 = vunpack.c.l.b16 %v5499
      %v5576 = vunpack.c.l.b16 %v5502
      %v5577 = vunpack.c.l.b16 %v5506
      %v5578 = vunpack.c.l.b16 %v5509
      %v5579 = vunpack.c.l.b16 %v5513
      %v5580 = vunpack.c.l.b16 %v5516
      %v5581 = vunpack.c.l.b16 %v5520
      %v5582 = vunpack.c.l.b16 %v5523
      %v5583 = vunpack.c.l.b16 %v5527
      %v5584 = vunpack.c.l.b16 %v5530
      %v5585 = vunpack.c.l.b16 %v5534
      %v5586 = vunpack.c.l.b16 %v5537
      %v5587 = vpack.c.b16 %v5556, %v5555
      %v5588 = vpack.c.b16 %v5558, %v5557
      %v5589 = vpack.c.b16 %v5560, %v5559
      %v5590 = vpack.c.b16 %v5562, %v5561
      %v5591 = vpack.c.b16 %v5564, %v5563
      %v5592 = vpack.c.b16 %v5566, %v5565
      %v5593 = vpack.c.b16 %v5568, %v5567
      %v5594 = vpack.c.b16 %v5570, %v5569
      %v5595 = vpack.c.b16 %v5572, %v5571
      %v5596 = vpack.c.b16 %v5574, %v5573
      %v5597 = vpack.c.b16 %v5576, %v5575
      %v5598 = vpack.c.b16 %v5578, %v5577
      %v5599 = vpack.c.b16 %v5580, %v5579
      %v5600 = vpack.c.b16 %v5582, %v5581
      %v5601 = vpack.c.b16 %v5584, %v5583
      %v5602 = vpack.c.b16 %v5586, %v5585
      %v5635 = vunpack.c.l.b16 %v5539
      %v5636 = vunpack.c.l.b16 %v5540
      %v5637 = vunpack.c.l.b16 %v5541
      %v5638 = vunpack.c.l.b16 %v5542
      %v5639 = vunpack.c.l.b16 %v5543
      %v5640 = vunpack.c.l.b16 %v5544
      %v5641 = vunpack.c.l.b16 %v5545
      %v5642 = vunpack.c.l.b16 %v5546
      %v5643 = vunpack.c.l.b16 %v5547
      %v5644 = vunpack.c.l.b16 %v5548
      %v5645 = vunpack.c.l.b16 %v5549
      %v5646 = vunpack.c.l.b16 %v5550
      %v5647 = vunpack.c.l.b16 %v5551
      %v5648 = vunpack.c.l.b16 %v5552
      %v5649 = vunpack.c.l.b16 %v5553
      %v5650 = vunpack.c.l.b16 %v5554
      %v5651 = vpack.c.b16 %v5636, %v5635
      %v5652 = vpack.c.b16 %v5638, %v5637
      %v5653 = vpack.c.b16 %v5640, %v5639
      %v5654 = vpack.c.b16 %v5642, %v5641
      %v5655 = vpack.c.b16 %v5644, %v5643
      %v5656 = vpack.c.b16 %v5646, %v5645
      %v5657 = vpack.c.b16 %v5648, %v5647
      %v5658 = vpack.c.b16 %v5650, %v5649
      %5667 = vmatprep.subr.bf16.mxu0 0
      %5668 = vmatpush1.bf16.msra.mxu0 %v5651
      %5669 = vmatprep.subr.bf16.mxu0 0
      %5670 = vmatpush1.bf16.msra.mxu0 %v5652
      %5671 = vmatprep.subr.bf16.mxu0 0
      %5672 = vmatpush1.bf16.msra.mxu0 %v5653
      %5673 = vmatprep.subr.bf16.mxu0 0
      %5674 = vmatpush1.bf16.msra.mxu0 %v5654
      %5675 = vmatprep.subr.bf16.mxu0 0
      %5676 = vmatpush1.bf16.msra.mxu0 %v5655
      %5677 = vmatprep.subr.bf16.mxu0 0
      %5678 = vmatpush1.bf16.msra.mxu0 %v5656
      %5679 = vmatprep.subr.bf16.mxu0 0
      %5680 = vmatpush1.bf16.msra.mxu0 %v5657
      %5681 = vmatprep.subr.bf16.mxu0 0
      %5682 = vmatpush1.bf16.msra.mxu0 %v5658
      %5683 = vmatprep.subr.bf16.mxu0 0
      %5684 = vmatpush1.bf16.msra.mxu0 0
      %5685 = vmatprep.subr.bf16.mxu0 0
      %5686 = vmatpush1.bf16.msra.mxu0 0
      %5687 = vmatprep.subr.bf16.mxu0 0
      %5688 = vmatpush1.bf16.msra.mxu0 0
      %5689 = vmatprep.subr.bf16.mxu0 0
      %5690 = vmatpush1.bf16.msra.mxu0 0
      %5691 = vmatprep.subr.bf16.mxu0 0
      %5692 = vmatpush1.bf16.msra.mxu0 0
      %5693 = vmatprep.subr.bf16.mxu0 0
      %5694 = vmatpush1.bf16.msra.mxu0 0
      %5695 = vmatprep.subr.bf16.mxu0 0
      %5696 = vmatpush1.bf16.msra.mxu0 0
      %5697 = vmatprep.subr.bf16.mxu0 0
      %5698 = vmatpush1.bf16.msra.mxu0 0
      %5699 = vmatprep.mubr.bf16.mxu0 0
      %5700 = vmatmul.mubr.bf16.gmra.mrb[0].mxu0 %v5587
      %v5701 = vpop.f32.mrb[0].mxu0
      %v5702 = vadd.f32 0.0, %v5701
      %v5703 = vpop.f32.mrb[0].mxu0
      %v5704 = vpop.f32.mrb[0].mxu0
      %v5705 = vadd.f32 0.0, %v5704
      %v5706 = vpop.f32.mrb[0].mxu0
      %5707 = vmatprep.mubr.bf16.mxu0 0
      %5708 = vmatmul.mubr.bf16.gmra.mrb[0].mxu0 %v5588
      %v5709 = vpop.f32.mrb[0].mxu0
      %v5710 = vadd.f32 0.0, %v5709
      %v5711 = vpop.f32.mrb[0].mxu0
      %v5712 = vpop.f32.mrb[0].mxu0
      %v5713 = vadd.f32 0.0, %v5712
      %v5714 = vpop.f32.mrb[0].mxu0
      %5715 = vmatprep.mubr.bf16.mxu0 0
      %5716 = vmatmul.mubr.bf16.gmra.mrb[0].mxu0 %v5589
      %v5717 = vpop.f32.mrb[0].mxu0
      %v5718 = vadd.f32 0.0, %v5717
      %v5719 = vpop.f32.mrb[0].mxu0
      %v5720 = vpop.f32.mrb[0].mxu0
      %v5721 = vadd.f32 0.0, %v5720
      %v5722 = vpop.f32.mrb[0].mxu0
      %5723 = vmatprep.mubr.bf16.mxu0 0
      %5724 = vmatmul.mubr.bf16.gmra.mrb[0].mxu0 %v5590
      %v5725 = vpop.f32.mrb[0].mxu0
      %v5726 = vadd.f32 0.0, %v5725
      %v5727 = vpop.f32.mrb[0].mxu0
      %v5728 = vpop.f32.mrb[0].mxu0
      %v5729 = vadd.f32 0.0, %v5728
      %v5730 = vpop.f32.mrb[0].mxu0
      %5731 = vmatprep.mubr.bf16.mxu0 0
      %5732 = vmatmul.mubr.bf16.gmra.mrb[0].mxu0 %v5591
      %v5733 = vpop.f32.mrb[0].mxu0
      %v5734 = vadd.f32 0.0, %v5733
      %v5735 = vpop.f32.mrb[0].mxu0
      %v5736 = vpop.f32.mrb[0].mxu0
      %v5737 = vadd.f32 0.0, %v5736
      %v5738 = vpop.f32.mrb[0].mxu0
      %5739 = vmatprep.mubr.bf16.mxu0 0
      %5740 = vmatmul.mubr.bf16.gmra.mrb[0].mxu0 %v5592
      %v5741 = vpop.f32.mrb[0].mxu0
      %v5742 = vadd.f32 0.0, %v5741
      %v5743 = vpop.f32.mrb[0].mxu0
      %v5744 = vpop.f32.mrb[0].mxu0
      %v5745 = vadd.f32 0.0, %v5744
      %v5746 = vpop.f32.mrb[0].mxu0
      %5747 = vmatprep.mubr.bf16.mxu0 0
      %5748 = vmatmul.mubr.bf16.gmra.mrb[0].mxu0 %v5593
      %v5749 = vpop.f32.mrb[0].mxu0
      %v5750 = vadd.f32 0.0, %v5749
      %v5751 = vpop.f32.mrb[0].mxu0
      %v5752 = vpop.f32.mrb[0].mxu0
      %v5753 = vadd.f32 0.0, %v5752
      %v5754 = vpop.f32.mrb[0].mxu0
      %5755 = vmatprep.mubr.bf16.mxu0 0
      %5756 = vmatmul.mubr.bf16.gmra.mrb[0].mxu0 %v5594
      %v5757 = vpop.f32.mrb[0].mxu0
      %v5758 = vadd.f32 0.0, %v5757
      %v5759 = vpop.f32.mrb[0].mxu0
      %v5760 = vpop.f32.mrb[0].mxu0
      %v5761 = vadd.f32 0.0, %v5760
      %v5762 = vpop.f32.mrb[0].mxu0
      %5763 = vmatprep.mubr.bf16.mxu0 0
      %5764 = vmatmul.mubr.bf16.gmra.mrb[0].mxu0 %v5595
      %v5765 = vpop.f32.mrb[0].mxu0
      %v5766 = vadd.f32 0.0, %v5765
      %v5767 = vpop.f32.mrb[0].mxu0
      %v5768 = vpop.f32.mrb[0].mxu0
      %v5769 = vadd.f32 0.0, %v5768
      %v5770 = vpop.f32.mrb[0].mxu0
      %5771 = vmatprep.mubr.bf16.mxu0 0
      %5772 = vmatmul.mubr.bf16.gmra.mrb[0].mxu0 %v5596
      %v5773 = vpop.f32.mrb[0].mxu0
      %v5774 = vadd.f32 0.0, %v5773
      %v5775 = vpop.f32.mrb[0].mxu0
      %v5776 = vpop.f32.mrb[0].mxu0
      %v5777 = vadd.f32 0.0, %v5776
      %v5778 = vpop.f32.mrb[0].mxu0
      %5779 = vmatprep.mubr.bf16.mxu0 0
      %5780 = vmatmul.mubr.bf16.gmra.mrb[0].mxu0 %v5597
      %v5781 = vpop.f32.mrb[0].mxu0
      %v5782 = vadd.f32 0.0, %v5781
      %v5783 = vpop.f32.mrb[0].mxu0
      %v5784 = vpop.f32.mrb[0].mxu0
      %v5785 = vadd.f32 0.0, %v5784
      %v5786 = vpop.f32.mrb[0].mxu0
      %5787 = vmatprep.mubr.bf16.mxu0 0
      %5788 = vmatmul.mubr.bf16.gmra.mrb[0].mxu0 %v5598
      %v5789 = vpop.f32.mrb[0].mxu0
      %v5790 = vadd.f32 0.0, %v5789
      %v5791 = vpop.f32.mrb[0].mxu0
      %v5792 = vpop.f32.mrb[0].mxu0
      %v5793 = vadd.f32 0.0, %v5792
      %v5794 = vpop.f32.mrb[0].mxu0
      %5795 = vmatprep.mubr.bf16.mxu0 0
      %5796 = vmatmul.mubr.bf16.gmra.mrb[0].mxu0 %v5599
      %v5797 = vpop.f32.mrb[0].mxu0
      %v5798 = vadd.f32 0.0, %v5797
      %v5799 = vpop.f32.mrb[0].mxu0
      %v5800 = vpop.f32.mrb[0].mxu0
      %v5801 = vadd.f32 0.0, %v5800
      %v5802 = vpop.f32.mrb[0].mxu0
      %5803 = vmatprep.mubr.bf16.mxu0 0
      %5804 = vmatmul.mubr.bf16.gmra.mrb[0].mxu0 %v5600
      %v5805 = vpop.f32.mrb[0].mxu0
      %v5806 = vadd.f32 0.0, %v5805
      %v5807 = vpop.f32.mrb[0].mxu0
      %v5808 = vpop.f32.mrb[0].mxu0
      %v5809 = vadd.f32 0.0, %v5808
      %v5810 = vpop.f32.mrb[0].mxu0
      %5811 = vmatprep.mubr.bf16.mxu0 0
      %5812 = vmatmul.mubr.bf16.gmra.mrb[0].mxu0 %v5601
      %v5813 = vpop.f32.mrb[0].mxu0
      %v5814 = vadd.f32 0.0, %v5813
      %v5815 = vpop.f32.mrb[0].mxu0
      %v5816 = vpop.f32.mrb[0].mxu0
      %v5817 = vadd.f32 0.0, %v5816
      %v5818 = vpop.f32.mrb[0].mxu0
      %5819 = vmatprep.mubr.bf16.mxu0 0
      %5820 = vmatmul.mubr.bf16.gmra.mrb[0].mxu0 %v5602
      %v5821 = vpop.f32.mrb[0].mxu0
      %v5822 = vadd.f32 0.0, %v5821
      %v5823 = vpop.f32.mrb[0].mxu0
      %v5824 = vpop.f32.mrb[0].mxu0
      %v5825 = vadd.f32 0.0, %v5824
      %v5826 = vpop.f32.mrb[0].mxu0
      %5827 = vdwg.mxu0
      %v5828 = vadd.f32 %v5330, %v5702
      %v5829 = vadd.f32 %v5331, %v5705
      %v5830 = vadd.f32 %v5332, %v5710
      %v5831 = vadd.f32 %v5333, %v5713
      %v5832 = vadd.f32 %v5334, %v5718
      %v5833 = vadd.f32 %v5335, %v5721
      %v5834 = vadd.f32 %v5336, %v5726
      %v5835 = vadd.f32 %v5337, %v5729
      %v5836 = vadd.f32 %v5338, %v5734
      %v5837 = vadd.f32 %v5339, %v5737
      %v5838 = vadd.f32 %v5340, %v5742
      %v5839 = vadd.f32 %v5341, %v5745
      %v5840 = vadd.f32 %v5342, %v5750
      %v5841 = vadd.f32 %v5343, %v5753
      %v5842 = vadd.f32 %v5344, %v5758
      %v5843 = vadd.f32 %v5345, %v5761
      %v5844 = vadd.f32 %v5346, %v5766
      %v5845 = vadd.f32 %v5347, %v5769
      %v5846 = vadd.f32 %v5348, %v5774
      %v5847 = vadd.f32 %v5349, %v5777
      %v5848 = vadd.f32 %v5350, %v5782
      %v5849 = vadd.f32 %v5351, %v5785
      %v5850 = vadd.f32 %v5352, %v5790
      %v5851 = vadd.f32 %v5353, %v5793
      %v5852 = vadd.f32 %v5354, %v5798
      %v5853 = vadd.f32 %v5355, %v5801
      %v5854 = vadd.f32 %v5356, %v5806
      %v5855 = vadd.f32 %v5357, %v5809
      %v5856 = vadd.f32 %v5358, %v5814
      %v5857 = vadd.f32 %v5359, %v5817
      %v5858 = vadd.f32 %v5360, %v5822
      %v5859 = vadd.f32 %v5361, %v5825
      %v5860 = vpack.c.bf16 %v5829, %v5828
      %v5861 = vpack.c.bf16 %v5831, %v5830
      %v5862 = vpack.c.bf16 %v5833, %v5832
      %v5863 = vpack.c.bf16 %v5835, %v5834
      %v5864 = vpack.c.bf16 %v5837, %v5836
      %v5865 = vpack.c.bf16 %v5839, %v5838
      %v5866 = vpack.c.bf16 %v5841, %v5840
      %v5867 = vpack.c.bf16 %v5843, %v5842
      %v5868 = vpack.c.bf16 %v5845, %v5844
      %v5869 = vpack.c.bf16 %v5847, %v5846
      %v5870 = vpack.c.bf16 %v5849, %v5848
      %v5871 = vpack.c.bf16 %v5851, %v5850
      %v5872 = vpack.c.bf16 %v5853, %v5852
      %v5873 = vpack.c.bf16 %v5855, %v5854
      %v5874 = vpack.c.bf16 %v5857, %v5856
      %v5875 = vpack.c.bf16 %v5859, %v5858
      %v5892 = vunpack.c.l.b16 %v5860
      %v5893 = vunpack.c.h.b16 %v5860
      %v5894 = vunpack.c.l.b16 %v5861
      %v5895 = vunpack.c.h.b16 %v5861
      %v5896 = vunpack.c.l.b16 %v5862
      %v5897 = vunpack.c.h.b16 %v5862
      %v5898 = vunpack.c.l.b16 %v5863
      %v5899 = vunpack.c.h.b16 %v5863
      %v5900 = vunpack.c.l.b16 %v5864
      %v5901 = vunpack.c.h.b16 %v5864
      %v5902 = vunpack.c.l.b16 %v5865
      %v5903 = vunpack.c.h.b16 %v5865
      %v5904 = vunpack.c.l.b16 %v5866
      %v5905 = vunpack.c.h.b16 %v5866
      %v5906 = vunpack.c.l.b16 %v5867
      %v5907 = vunpack.c.h.b16 %v5867
      %v5908 = vunpack.c.l.b16 %v5868
      %v5909 = vunpack.c.h.b16 %v5868
      %v5910 = vunpack.c.l.b16 %v5869
      %v5911 = vunpack.c.h.b16 %v5869
      %v5912 = vunpack.c.l.b16 %v5870
      %v5913 = vunpack.c.h.b16 %v5870
      %v5914 = vunpack.c.l.b16 %v5871
      %v5915 = vunpack.c.h.b16 %v5871
      %v5916 = vunpack.c.l.b16 %v5872
      %v5917 = vunpack.c.h.b16 %v5872
      %v5918 = vunpack.c.l.b16 %v5873
      %v5919 = vunpack.c.h.b16 %v5873
      %v5920 = vunpack.c.l.b16 %v5874
      %v5921 = vunpack.c.h.b16 %v5874
      %v5922 = vunpack.c.l.b16 %v5875
      %v5923 = vunpack.c.h.b16 %v5875
      %v5924 = vpack.c.b16 %v5892, %v5892
      %v5925 = vpack.c.b16 %v5893, %v5893
      %v5926 = vpack.c.b16 %v5894, %v5894
      %v5927 = vpack.c.b16 %v5895, %v5895
      %v5928 = vpack.c.b16 %v5896, %v5896
      %v5929 = vpack.c.b16 %v5897, %v5897
      %v5930 = vpack.c.b16 %v5898, %v5898
      %v5931 = vpack.c.b16 %v5899, %v5899
      %v5932 = vpack.c.b16 %v5900, %v5900
      %v5933 = vpack.c.b16 %v5901, %v5901
      %v5934 = vpack.c.b16 %v5902, %v5902
      %v5935 = vpack.c.b16 %v5903, %v5903
      %v5936 = vpack.c.b16 %v5904, %v5904
      %v5937 = vpack.c.b16 %v5905, %v5905
      %v5938 = vpack.c.b16 %v5906, %v5906
      %v5939 = vpack.c.b16 %v5907, %v5907
      %v5940 = vpack.c.b16 %v5908, %v5908
      %v5941 = vpack.c.b16 %v5909, %v5909
      %v5942 = vpack.c.b16 %v5910, %v5910
      %v5943 = vpack.c.b16 %v5911, %v5911
      %v5944 = vpack.c.b16 %v5912, %v5912
      %v5945 = vpack.c.b16 %v5913, %v5913
      %v5946 = vpack.c.b16 %v5914, %v5914
      %v5947 = vpack.c.b16 %v5915, %v5915
      %v5948 = vpack.c.b16 %v5916, %v5916
      %v5949 = vpack.c.b16 %v5917, %v5917
      %v5950 = vpack.c.b16 %v5918, %v5918
      %v5951 = vpack.c.b16 %v5919, %v5919
      %v5952 = vpack.c.b16 %v5920, %v5920
      %v5953 = vpack.c.b16 %v5921, %v5921
      %v5954 = vpack.c.b16 %v5922, %v5922
      %v5955 = vpack.c.b16 %v5923, %v5923
      %5988 = vst [vmem:[%s231] sm:$0xf] %v5924
      %5989 = vst [vmem:[%s231 + $0x4] sm:$0xf] %v5925
      %5990 = vst [vmem:[%s231 + $0x8] sm:$0xf] %v5926
      %5991 = vst [vmem:[%s231 + $0xc] sm:$0xf] %v5927
      %5992 = vst [vmem:[%s231 + $0x10] sm:$0xf] %v5928
      %5993 = vst [vmem:[%s231 + $0x14] sm:$0xf] %v5929
      %5994 = vst [vmem:[%s231 + $0x18] sm:$0xf] %v5930
      %5995 = vst [vmem:[%s231 + $0x1c] sm:$0xf] %v5931
      %5996 = vst [vmem:[%s231 + $0x20] sm:$0xf] %v5932
      %5997 = vst [vmem:[%s231 + $0x24] sm:$0xf] %v5933
      %5998 = vst [vmem:[%s231 + $0x28] sm:$0xf] %v5934
      %5999 = vst [vmem:[%s231 + $0x2c] sm:$0xf] %v5935
      %6000 = vst [vmem:[%s231 + $0x30] sm:$0xf] %v5936
      %6001 = vst [vmem:[%s231 + $0x34] sm:$0xf] %v5937
      %6002 = vst [vmem:[%s231 + $0x38] sm:$0xf] %v5938
      %6003 = vst [vmem:[%s231 + $0x3c] sm:$0xf] %v5939
      %6004 = vst [vmem:[%s231 + $0x40] sm:$0xf] %v5940
      %6005 = vst [vmem:[%s231 + $0x44] sm:$0xf] %v5941
      %6006 = vst [vmem:[%s231 + $0x48] sm:$0xf] %v5942
      %6007 = vst [vmem:[%s231 + $0x4c] sm:$0xf] %v5943
      %6008 = vst [vmem:[%s231 + $0x50] sm:$0xf] %v5944
      %6009 = vst [vmem:[%s231 + $0x54] sm:$0xf] %v5945
      %6010 = vst [vmem:[%s231 + $0x58] sm:$0xf] %v5946
      %6011 = vst [vmem:[%s231 + $0x5c] sm:$0xf] %v5947
      %6012 = vst [vmem:[%s231 + $0x60] sm:$0xf] %v5948
      %6013 = vst [vmem:[%s231 + $0x64] sm:$0xf] %v5949
      %6014 = vst [vmem:[%s231 + $0x68] sm:$0xf] %v5950
      %6015 = vst [vmem:[%s231 + $0x6c] sm:$0xf] %v5951
      %6016 = vst [vmem:[%s231 + $0x70] sm:$0xf] %v5952
      %6017 = vst [vmem:[%s231 + $0x74] sm:$0xf] %v5953
      %6018 = vst [vmem:[%s231 + $0x78] sm:$0xf] %v5954
      %6019 = vst [vmem:[%s231 + $0x7c] sm:$0xf] %v5955
      %v6020 = vadd.f32 %v5828, %v5829
      %v6021 = vadd.f32 %v6020, %v5830
      %v6022 = vadd.f32 %v6021, %v5831
      %v6023 = vadd.f32 %v6022, %v5832
      %v6024 = vadd.f32 %v6023, %v5833
      %v6025 = vadd.f32 %v6024, %v5834
      %v6026 = vadd.f32 %v6025, %v5835
      %v6027 = vadd.f32 %v6026, %v5836
      %v6028 = vadd.f32 %v6027, %v5837
      %v6029 = vadd.f32 %v6028, %v5838
      %v6030 = vadd.f32 %v6029, %v5839
      %v6031 = vadd.f32 %v6030, %v5840
      %v6032 = vadd.f32 %v6031, %v5841
      %v6033 = vadd.f32 %v6032, %v5842
      %v6034 = vadd.f32 %v6033, %v5843
      %v6035 = vadd.f32 %v6034, %v5844
      %v6036 = vadd.f32 %v6035, %v5845
      %v6037 = vadd.f32 %v6036, %v5846
      %v6038 = vadd.f32 %v6037, %v5847
      %v6039 = vadd.f32 %v6038, %v5848
      %v6040 = vadd.f32 %v6039, %v5849
      %v6041 = vadd.f32 %v6040, %v5850
      %v6042 = vadd.f32 %v6041, %v5851
      %v6043 = vadd.f32 %v6042, %v5852
      %v6044 = vadd.f32 %v6043, %v5853
      %v6045 = vadd.f32 %v6044, %v5854
      %v6046 = vadd.f32 %v6045, %v5855
      %v6047 = vadd.f32 %v6046, %v5856
      %v6048 = vadd.f32 %v6047, %v5857
      %v6049 = vadd.f32 %v6048, %v5858
      %v6050 = vadd.f32 %v6049, %v5859
      %v6051 = vrot.slane %v6050, 4
      %v6052 = vadd.f32 %v6050, %v6051
      %v6053 = vrot.slane %v6052, 2
      %v6054 = vadd.f32 %v6052, %v6053
      %v6055 = vrot.slane %v6054, 1
      %v6056 = vadd.f32 %v6054, %v6055
      %6057 = vst [vmem:[%s235] sm:$0x1] %v6056
      %v6058 = vmul.f32 %v5828, %v5828
      %v6059 = vmul.f32 %v5829, %v5829
      %v6060 = vmul.f32 %v5830, %v5830
      %v6061 = vmul.f32 %v5831, %v5831
      %v6062 = vmul.f32 %v5832, %v5832
      %v6063 = vmul.f32 %v5833, %v5833
      %v6064 = vmul.f32 %v5834, %v5834
      %v6065 = vmul.f32 %v5835, %v5835
      %v6066 = vmul.f32 %v5836, %v5836
      %v6067 = vmul.f32 %v5837, %v5837
      %v6068 = vmul.f32 %v5838, %v5838
      %v6069 = vmul.f32 %v5839, %v5839
      %v6070 = vmul.f32 %v5840, %v5840
      %v6071 = vmul.f32 %v5841, %v5841
      %v6072 = vmul.f32 %v5842, %v5842
      %v6073 = vmul.f32 %v5843, %v5843
      %v6074 = vmul.f32 %v5844, %v5844
      %v6075 = vmul.f32 %v5845, %v5845
      %v6076 = vmul.f32 %v5846, %v5846
      %v6077 = vmul.f32 %v5847, %v5847
      %v6078 = vmul.f32 %v5848, %v5848
      %v6079 = vmul.f32 %v5849, %v5849
      %v6080 = vmul.f32 %v5850, %v5850
      %v6081 = vmul.f32 %v5851, %v5851
      %v6082 = vmul.f32 %v5852, %v5852
      %v6083 = vmul.f32 %v5853, %v5853
      %v6084 = vmul.f32 %v5854, %v5854
      %v6085 = vmul.f32 %v5855, %v5855
      %v6086 = vmul.f32 %v5856, %v5856
      %v6087 = vmul.f32 %v5857, %v5857
      %v6088 = vmul.f32 %v5858, %v5858
      %v6089 = vmul.f32 %v5859, %v5859
      %v6090 = vadd.f32 %v6058, %v6059
      %v6091 = vadd.f32 %v6090, %v6060
      %v6092 = vadd.f32 %v6091, %v6061
      %v6093 = vadd.f32 %v6092, %v6062
      %v6094 = vadd.f32 %v6093, %v6063
      %v6095 = vadd.f32 %v6094, %v6064
      %v6096 = vadd.f32 %v6095, %v6065
      %v6097 = vadd.f32 %v6096, %v6066
      %v6098 = vadd.f32 %v6097, %v6067
      %v6099 = vadd.f32 %v6098, %v6068
      %v6100 = vadd.f32 %v6099, %v6069
      %v6101 = vadd.f32 %v6100, %v6070
      %v6102 = vadd.f32 %v6101, %v6071
      %v6103 = vadd.f32 %v6102, %v6072
      %v6104 = vadd.f32 %v6103, %v6073
      %v6105 = vadd.f32 %v6104, %v6074
      %v6106 = vadd.f32 %v6105, %v6075
      %v6107 = vadd.f32 %v6106, %v6076
      %v6108 = vadd.f32 %v6107, %v6077
      %v6109 = vadd.f32 %v6108, %v6078
      %v6110 = vadd.f32 %v6109, %v6079
      %v6111 = vadd.f32 %v6110, %v6080
      %v6112 = vadd.f32 %v6111, %v6081
      %v6113 = vadd.f32 %v6112, %v6082
      %v6114 = vadd.f32 %v6113, %v6083
      %v6115 = vadd.f32 %v6114, %v6084
      %v6116 = vadd.f32 %v6115, %v6085
      %v6117 = vadd.f32 %v6116, %v6086
      %v6118 = vadd.f32 %v6117, %v6087
      %v6119 = vadd.f32 %v6118, %v6088
      %v6120 = vadd.f32 %v6119, %v6089
      %v6121 = vrot.slane %v6120, 4
      %v6122 = vadd.f32 %v6120, %v6121
      %v6123 = vrot.slane %v6122, 2
      %v6124 = vadd.f32 %v6122, %v6123
      %v6125 = vrot.slane %v6124, 1
      %v6126 = vadd.f32 %v6124, %v6125
      %6127 = vst [vmem:[%s235 + $0x1] sm:$0x1] %v6126
      %p6128 = scmp.lt.s32.totalorder %s17, 1
      %s6129 = scalar_select %p6128, %s17, 1
      %s6130 = smul.addr %s6129, 32
      %s6131 = smul.addr %s6130, 4
      %s6132 = scalar_lea.vmem %s4, %s6131
      %p6133 = scmp.lt.s32.totalorder %s17, 1
      %s6134 = scalar_select %p6133, %s17, 1
      %s6135 = smul.addr %s6134, 2
      %s6136 = scalar_lea.vmem %s5, %s6135
      // Predicated region
      $region37: #{double_conv.4} parent=35 // pred_check
        %p6137 = pneg %p124
      $region38: #{double_conv.4} parent=35 // pred_check_branch
        %6139 = sbr.rel (%p6137) target = $region40
      $region39: #{double_conv.4} parent=35 // pred_region
        _
      $region40: #{double_conv.4} parent=35 // pred_fallthru
        _
      // Predicated region
      $region41: #{double_conv.4} parent=35 // pred_check
        %p6140 = pneg %p150
      $region42: #{double_conv.4} parent=35 // pred_check_branch
        %6142 = sbr.rel (%p6140) target = $region44
      $region43: #{double_conv.4} parent=35 // pred_region
        _
      $region44: #{double_conv.4} parent=35 // pred_fallthru
        _
    $region36: #{double_conv.4} parent=5 // pred_fallthru
      _
    %p6143 = scmp.le.s32.totalorder 2, %s12
    // Predicated region
    $region45: #{double_conv.4} parent=5 // pred_check
      %p6144 = pneg %p6143
    $region46: #{double_conv.4} parent=5 // pred_check_branch
      %6146 = sbr.rel (%p6144) target = $region48
    $region47: #{double_conv.4} parent=5 // pred_region
      %s6147 = ssub.s32 %s12, 2
      // Predicated region
      $region49: #{double_conv.4} parent=47 // pred_check
        %p6148 = pneg %p130
      $region50: #{double_conv.4} parent=47 // pred_check_branch
        %6150 = sbr.rel (%p6148) target = $region52
      $region51: #{double_conv.4} parent=47 // pred_region
        %p6151 = scmp.lt.s32.totalorder %s18, 1
        %s6152 = scalar_select %p6151, %s18, 1
        %s6153 = smul.addr %s6152, 32
        %s6154 = smul.addr %s6153, 4
        %s6155 = scalar_lea.vmem %s4, %s6154
      $region52: #{double_conv.4} parent=47 // pred_fallthru
        _
      // Predicated region
      $region53: #{double_conv.4} parent=47 // pred_check
        %p6156 = pneg %p156
      $region54: #{double_conv.4} parent=47 // pred_check_branch
        %6158 = sbr.rel (%p6156) target = $region56
      $region55: #{double_conv.4} parent=47 // pred_region
        %p6159 = scmp.lt.s32.totalorder %s18, 1
        %s6160 = scalar_select %p6159, %s18, 1
        %s6161 = smul.addr %s6160, 2
        %s6162 = scalar_lea.vmem %s5, %s6161
      $region56: #{double_conv.4} parent=47 // pred_fallthru
        _
    $region48: #{double_conv.4} parent=5 // pred_fallthru
      _
  $region6: #{double_conv.4} parent=0 // loop_footer
    %s16 = sadd.s32 1, %s12
  $region7: #{double_conv.4} parent=0 // loop_footer_branch
    %11 = sbr.rel target = $region3
  $region8: #{double_conv.4} parent=0 // loop_exit
    _

// kernel: double_conv.3
$region0: #{double_conv.3}
  #allocation0 [shape = 'u32[]', space=smem, size = 0x4, offset = 0x4, fixed_abs, tag = 'smem constant byte address 0x4 - core index']
  #allocation1 [shape = 'u32[144,128]{1,0:T(1,128)}', space=vmem, size = 0x12000, scoped, tag = 'internal scratch']
  #allocation2 [shape = 'bf16[18,18,4]{2,1,0:T(8,128)(2,1)}', space=vmem, size = 0x1b000, scoped, tag = 'scratch operand']
  %s0 = inlined_call_operand.vmem [shape: f32[1,4], index: 0, kind: input, shape index: {}]
  %s1 = inlined_call_operand.vmem [shape: f32[1,4], index: 1, kind: input, shape index: {}]
  %s2 = inlined_call_operand.vmem [shape: f32[2,16,16,4], index: 2, kind: input, shape index: {}]
  %s3 = inlined_call_operand.vmem [shape: bf16[9,4,128], index: 3, kind: input, shape index: {}]
  %s4 = inlined_call_operand.vmem [shape: bf16[2,16,16,128], index: 4, kind: output, shape index: {0}]
  %s5 = inlined_call_operand.vmem [shape: f32[2,2,128], index: 5, kind: output, shape index: {1}]
  %6 = xla_tuple %s4, %s5
  %s7 = sld [smem:[#allocation0]]
  $region57: #{double_conv.3} parent=0
    _
  %s9 = ssub.s32 1, %s7
  %s10 = scalar_select 0, %s9, %s7
  loop: start=0, step=1, limit=4
  $region2: #{double_conv.3} parent=0 // loop_pre_header
    _
  $region3: #{double_conv.3} parent=0 // loop_header
    %s12 = sphi 0, %s16
    %p13 = scmp.ge.s32.totalorder %s12, 4
    %s20 = sphi 0, %s20
    %s22 = sphi 0, %s20
    %s23 = sphi 0, %s22
    %s37 = sphi 0, %s23
    %s41 = sphi 0, %s41
    %s43 = sphi 0, %s41
    %s44 = sphi 0, %s43
    %s58 = sphi 0, %s44
    %s64 = sphi 0, %s66
    %s67 = sphi 0, %s64
    %s68 = sphi 0, %s67
    %s84 = sphi 0, %s68
    %s88 = sphi 0, %s88
    %s90 = sphi 0, %s88
    %s91 = sphi 0, %s90
    %s105 = sphi 0, %s91
    %s111 = sphi 0, %s113
    %s114 = sphi 0, %s111
    %s115 = sphi 0, %s114
    %s131 = sphi 0, %s115
    %s137 = sphi 0, %s139
    %s140 = sphi 0, %s137
    %s141 = sphi 0, %s140
    %s157 = sphi 0, %s141
  $region4: #{double_conv.3} parent=0 // loop_header_branch
    %15 = sbr.rel (%p13) target = $region8
  $region5: #{double_conv.3} parent=0 // loop_body
    %s17 = ssub.s32 %s12, 1
    %s18 = ssub.s32 %s12, 2
    %s19 = sadd.s32 %s12, 1
    %s21 = sadd.s32 %s20, 1
    %p24 = scmp.eq.s32.totalorder %s12, 1
    %p25 = scmp.ne.s32.totalorder %s20, %s22
    %p26 = scmp.eq.s32.totalorder %s12, 0
    %p27 = por %p25, %p26
    %p28 = scmp.ne.s32.totalorder %s20, %s22
    %p29 = scmp.eq.s32.totalorder %s17, 1
    %p30 = por %p28, %p29
    %p31 = scmp.ne.s32.totalorder %s22, %s23
    %p32 = scmp.eq.s32.totalorder %s17, 0
    %p33 = por %p31, %p32
    %p34 = scmp.ne.s32.totalorder %s22, %s23
    %p35 = scmp.eq.s32.totalorder %s18, 1
    %p36 = por %p34, %p35
    %p38 = scmp.ne.s32.totalorder %s23, %s37
    %p39 = scmp.eq.s32.totalorder %s18, 0
    %p40 = por %p38, %p39
    %s42 = sadd.s32 %s41, 1
    %p45 = scmp.eq.s32.totalorder %s12, 1
    %p46 = scmp.ne.s32.totalorder %s41, %s43
    %p47 = scmp.eq.s32.totalorder %s12, 0
    %p48 = por %p46, %p47
    %p49 = scmp.ne.s32.totalorder %s41, %s43
    %p50 = scmp.eq.s32.totalorder %s17, 1
    %p51 = por %p49, %p50
    %p52 = scmp.ne.s32.totalorder %s43, %s44
    %p53 = scmp.eq.s32.totalorder %s17, 0
    %p54 = por %p52, %p53
    %p55 = scmp.ne.s32.totalorder %s43, %s44
    %p56 = scmp.eq.s32.totalorder %s18, 1
    %p57 = por %p55, %p56
    %p59 = scmp.ne.s32.totalorder %s44, %s58
    %p60 = scmp.eq.s32.totalorder %s18, 0
    %p61 = por %p59, %p60
    %s62 = ssub.s32 %s12, %s19
    %p63 = scmp.eq.s32.totalorder %s62, 0
    %s65 = sadd.s32 %s64, 1
    %s66 = scalar_select %p63, %s64, %s65
    %p69 = pneg %p63
    %p70 = scmp.eq.s32.totalorder %s12, 1
    %p71 = por %p69, %p70
    %p72 = scmp.ne.s32.totalorder %s64, %s67
    %p73 = scmp.eq.s32.totalorder %s12, 0
    %p74 = por %p72, %p73
    %p75 = scmp.ne.s32.totalorder %s64, %s67
    %p76 = scmp.eq.s32.totalorder %s17, 1
    %p77 = por %p75, %p76
    %p78 = scmp.ne.s32.totalorder %s67, %s68
    %p79 = scmp.eq.s32.totalorder %s17, 0
    %p80 = por %p78, %p79
    %p81 = scmp.ne.s32.totalorder %s67, %s68
    %p82 = scmp.eq.s32.totalorder %s18, 1
    %p83 = por %p81, %p82
    %p85 = scmp.ne.s32.totalorder %s68, %s84
    %p86 = scmp.eq.s32.totalorder %s18, 0
    %p87 = por %p85, %p86
    %s89 = sadd.s32 %s88, 1
    %p92 = scmp.eq.s32.totalorder %s12, 1
    %p93 = scmp.ne.s32.totalorder %s88, %s90
    %p94 = scmp.eq.s32.totalorder %s12, 0
    %p95 = por %p93, %p94
    %p96 = scmp.ne.s32.totalorder %s88, %s90
    %p97 = scmp.eq.s32.totalorder %s17, 1
    %p98 = por %p96, %p97
    %p99 = scmp.ne.s32.totalorder %s90, %s91
    %p100 = scmp.eq.s32.totalorder %s17, 0
    %p101 = por %p99, %p100
    %p102 = scmp.ne.s32.totalorder %s90, %s91
    %p103 = scmp.eq.s32.totalorder %s18, 1
    %p104 = por %p102, %p103
    %p106 = scmp.ne.s32.totalorder %s91, %s105
    %p107 = scmp.eq.s32.totalorder %s18, 0
    %p108 = por %p106, %p107
    %s109 = ssub.s32 %s12, %s19
    %p110 = scmp.eq.s32.totalorder %s109, 0
    %s112 = sadd.s32 %s111, 1
    %s113 = scalar_select %p110, %s111, %s112
    %p116 = pneg %p110
    %p117 = scmp.eq.s32.totalorder %s12, 1
    %p118 = por %p116, %p117
    %p119 = scmp.ne.s32.totalorder %s111, %s114
    %p120 = scmp.eq.s32.totalorder %s12, 0
    %p121 = por %p119, %p120
    %p122 = scmp.ne.s32.totalorder %s111, %s114
    %p123 = scmp.eq.s32.totalorder %s17, 1
    %p124 = por %p122, %p123
    %p125 = scmp.ne.s32.totalorder %s114, %s115
    %p126 = scmp.eq.s32.totalorder %s17, 0
    %p127 = por %p125, %p126
    %p128 = scmp.ne.s32.totalorder %s114, %s115
    %p129 = scmp.eq.s32.totalorder %s18, 1
    %p130 = por %p128, %p129
    %p132 = scmp.ne.s32.totalorder %s115, %s131
    %p133 = scmp.eq.s32.totalorder %s18, 0
    %p134 = por %p132, %p133
    %s135 = ssub.s32 %s12, %s19
    %p136 = scmp.eq.s32.totalorder %s135, 0
    %s138 = sadd.s32 %s137, 1
    %s139 = scalar_select %p136, %s137, %s138
    %p142 = pneg %p136
    %p143 = scmp.eq.s32.totalorder %s12, 1
    %p144 = por %p142, %p143
    %p145 = scmp.ne.s32.totalorder %s137, %s140
    %p146 = scmp.eq.s32.totalorder %s12, 0
    %p147 = por %p145, %p146
    %p148 = scmp.ne.s32.totalorder %s137, %s140
    %p149 = scmp.eq.s32.totalorder %s17, 1
    %p150 = por %p148, %p149
    %p151 = scmp.ne.s32.totalorder %s140, %s141
    %p152 = scmp.eq.s32.totalorder %s17, 0
    %p153 = por %p151, %p152
    %p154 = scmp.ne.s32.totalorder %s140, %s141
    %p155 = scmp.eq.s32.totalorder %s18, 1
    %p156 = por %p154, %p155
    %p158 = scmp.ne.s32.totalorder %s141, %s157
    %p159 = scmp.eq.s32.totalorder %s18, 0
    %p160 = por %p158, %p159
    %p161 = scmp.le.s32.totalorder 1, %s12
    %p162 = scmp.lt.s32.totalorder %s12, 3
    %p163 = pnand %p161, %p162
    %p164 = pneg %p163
    // Predicated region
    $region9: #{double_conv.3} parent=5 // pred_check
      _
    $region10: #{double_conv.3} parent=5 // pred_check_branch
      %166 = sbr.rel (%p163) target = $region12
    $region11: #{double_conv.3} parent=5 // pred_region
      %s167 = ssub.s32 %s12, 1
      // Predicated region
      $region13: #{double_conv.3} parent=11 // pred_check
        %p168 = pneg %p33
      $region14: #{double_conv.3} parent=11 // pred_check_branch
        %170 = sbr.rel (%p168) target = $region16
      $region15: #{double_conv.3} parent=11 // pred_region
        _
      $region16: #{double_conv.3} parent=11 // pred_fallthru
        _
      // Predicated region
      $region17: #{double_conv.3} parent=11 // pred_check
        %p171 = pneg %p54
      $region18: #{double_conv.3} parent=11 // pred_check_branch
        %173 = sbr.rel (%p171) target = $region20
      $region19: #{double_conv.3} parent=11 // pred_region
        _
      $region20: #{double_conv.3} parent=11 // pred_fallthru
        _
      // Predicated region
      $region21: #{double_conv.3} parent=11 // pred_check
        %p174 = pneg %p101
      $region22: #{double_conv.3} parent=11 // pred_check_branch
        %176 = sbr.rel (%p174) target = $region24
      $region23: #{double_conv.3} parent=11 // pred_region
        _
      $region24: #{double_conv.3} parent=11 // pred_fallthru
        _
    $region12: #{double_conv.3} parent=5 // pred_fallthru
      _
    %p177 = scmp.lt.s32.totalorder %s12, 2
    // Predicated region
    $region25: #{double_conv.3} parent=5 // pred_check
      %p178 = pneg %p177
    $region26: #{double_conv.3} parent=5 // pred_check_branch
      %180 = sbr.rel (%p178) target = $region28
    $region27: #{double_conv.3} parent=5 // pred_region
      // Predicated region
      $region29: #{double_conv.3} parent=27 // pred_check
        %p181 = pneg %p74
      $region30: #{double_conv.3} parent=27 // pred_check_branch
        %183 = sbr.rel (%p181) target = $region32
      $region31: #{double_conv.3} parent=27 // pred_region
        %p184 = scmp.lt.s32.totalorder %s12, 1
        %s185 = scalar_select %p184, %s12, 1
        %s186 = smul.addr %s185, 32
        %s187 = smul.addr %s186, 8
        %s188 = scalar_lea.vmem %s2, %s187
      $region32: #{double_conv.3} parent=27 // pred_fallthru
        _
    $region28: #{double_conv.3} parent=5 // pred_fallthru
      _
    %p189 = scmp.le.s32.totalorder 1, %s12
    %p190 = scmp.lt.s32.totalorder %s12, 3
    %p191 = pnand %p189, %p190
    %p192 = pneg %p191
    // Predicated region
    $region33: #{double_conv.3} parent=5 // pred_check
      _
    $region34: #{double_conv.3} parent=5 // pred_check_branch
      %194 = sbr.rel (%p191) target = $region36
    $region35: #{double_conv.3} parent=5 // pred_region
      %s195 = ssub.s32 %s12, 1
      %p196 = pneg %p33
      %p197 = pneg %p30
      %p198 = pneg %p54
      %p199 = pneg %p51
      %p200 = scmp.lt.s32.totalorder %s17, 1
      %s201 = scalar_select %p200, %s17, 1
      %s202 = smul.addr %s201, 32
      %s203 = smul.addr %s202, 8
      %s204 = scalar_lea.vmem %s2, %s203
      %p205 = pneg %p80
      %p206 = pneg %p77
      %p207 = pneg %p101
      %p208 = pneg %p98
      %p209 = pneg %p127
      %p210 = pneg %p124
      %p211 = scmp.lt.s32.totalorder %s17, 1
      %s212 = scalar_select %p211, %s17, 1
      %s213 = smul.addr %s212, 32
      %s214 = smul.addr %s213, 4
      %s215 = scalar_lea.vmem %s4, %s214
      %p216 = pneg %p153
      %p217 = pneg %p150
      %p218 = scmp.lt.s32.totalorder %s17, 1
      %s219 = scalar_select %p218, %s17, 1
      %s220 = smul.addr %s219, 2
      %s221 = scalar_lea.vmem %s5, %s220
      %p222 = scmp.lt.s32.totalorder %s17, 1
      %s223 = scalar_select %p222, %s17, 1
      %s224 = smul.addr %s223, 32
      %s225 = smul.addr %s224, 8
      %s226 = scalar_lea.vmem %s2, %s225
      %p227 = scmp.lt.s32.totalorder %s17, 1
      %s228 = scalar_select %p227, %s17, 1
      %s229 = smul.addr %s228, 32
      %s230 = smul.addr %s229, 4
      %s231 = scalar_lea.vmem %s4, %s230
      %p232 = scmp.lt.s32.totalorder %s17, 1
      %s233 = scalar_select %p232, %s17, 1
      %s234 = smul.addr %s233, 2
      %s235 = scalar_lea.vmem %s5, %s234
      %v237 = vld [vmem:[%s226] sm:$0xff]
      %v238 = vld [vmem:[%s226 + $0x8] sm:$0xff]
      %v239 = vld [vmem:[%s226 + $0x10] sm:$0xff]
      %v240 = vld [vmem:[%s226 + $0x18] sm:$0xff]
      %v241 = vld [vmem:[%s226 + $0x20] sm:$0xff]
      %v242 = vld [vmem:[%s226 + $0x28] sm:$0xff]
      %v243 = vld [vmem:[%s226 + $0x30] sm:$0xff]
      %v244 = vld [vmem:[%s226 + $0x38] sm:$0xff]
      %v245 = vld [vmem:[%s226 + $0x40] sm:$0xff]
      %v246 = vld [vmem:[%s226 + $0x48] sm:$0xff]
      %v247 = vld [vmem:[%s226 + $0x50] sm:$0xff]
      %v248 = vld [vmem:[%s226 + $0x58] sm:$0xff]
      %v249 = vld [vmem:[%s226 + $0x60] sm:$0xff]
      %v250 = vld [vmem:[%s226 + $0x68] sm:$0xff]
      %v251 = vld [vmem:[%s226 + $0x70] sm:$0xff]
      %v252 = vld [vmem:[%s226 + $0x78] sm:$0xff]
      %v253 = vld [vmem:[%s226 + $0x80] sm:$0xff]
      %v254 = vld [vmem:[%s226 + $0x88] sm:$0xff]
      %v255 = vld [vmem:[%s226 + $0x90] sm:$0xff]
      %v256 = vld [vmem:[%s226 + $0x98] sm:$0xff]
      %v257 = vld [vmem:[%s226 + $0xa0] sm:$0xff]
      %v258 = vld [vmem:[%s226 + $0xa8] sm:$0xff]
      %v259 = vld [vmem:[%s226 + $0xb0] sm:$0xff]
      %v260 = vld [vmem:[%s226 + $0xb8] sm:$0xff]
      %v261 = vld [vmem:[%s226 + $0xc0] sm:$0xff]
      %v262 = vld [vmem:[%s226 + $0xc8] sm:$0xff]
      %v263 = vld [vmem:[%s226 + $0xd0] sm:$0xff]
      %v264 = vld [vmem:[%s226 + $0xd8] sm:$0xff]
      %v265 = vld [vmem:[%s226 + $0xe0] sm:$0xff]
      %v266 = vld [vmem:[%s226 + $0xe8] sm:$0xff]
      %v267 = vld [vmem:[%s226 + $0xf0] sm:$0xff]
      %v268 = vld [vmem:[%s226 + $0xf8] sm:$0xff]
      %v269 = vpack.c.bf16 %v238, %v237
      %v270 = vpack.c.bf16 %v240, %v239
      %v271 = vpack.c.bf16 %v242, %v241
      %v272 = vpack.c.bf16 %v244, %v243
      %v273 = vpack.c.bf16 %v246, %v245
      %v274 = vpack.c.bf16 %v248, %v247
      %v275 = vpack.c.bf16 %v250, %v249
      %v276 = vpack.c.bf16 %v252, %v251
      %v277 = vpack.c.bf16 %v254, %v253
      %v278 = vpack.c.bf16 %v256, %v255
      %v279 = vpack.c.bf16 %v258, %v257
      %v280 = vpack.c.bf16 %v260, %v259
      %v281 = vpack.c.bf16 %v262, %v261
      %v282 = vpack.c.bf16 %v264, %v263
      %v283 = vpack.c.bf16 %v266, %v265
      %v284 = vpack.c.bf16 %v268, %v267
      %vm285 = vcmask 27648
      %286 = vst.msk [vmem:[#allocation2] sm:$0xf] %vm285, 0
      %287 = vst.msk [vmem:[#allocation2 + $0x4] sm:$0xf] %vm285, 0
      %vm288 = vcmask 24576
      %289 = vst.msk [vmem:[#allocation2 + $0x8] sm:$0x1] %vm288, 0
      %s290 = scalar_lea.vmem [#allocation2], 204
      %291 = vst.msk [vmem:[%s290] sm:$0xf] %vm285, 0
      %292 = vst.msk [vmem:[%s290 + $0x4] sm:$0xf] %vm285, 0
      %293 = vst.msk [vmem:[%s290 + $0x8] sm:$0x1] %vm288, 0
      %s294 = scalar_lea.vmem [#allocation2], 12
      %vm295 = vcmask 24576
      %vm296 = vsmask.f32 256
      %vm297 = vmand %vm295, %vm296
      %v298 = vld [vmem:[%s294] sm:$0x1]
      %v299 = vsel %vm297, 0, %v298
      %300 = vst [vmem:[%s294] sm:$0x1] %v299
      %v301 = vld [vmem:[%s294 + $0xc] sm:$0x1]
      %v302 = vsel %vm297, 0, %v301
      %303 = vst [vmem:[%s294 + $0xc] sm:$0x1] %v302
      %v304 = vld [vmem:[%s294 + $0x18] sm:$0x1]
      %v305 = vsel %vm297, 0, %v304
      %306 = vst [vmem:[%s294 + $0x18] sm:$0x1] %v305
      %v307 = vld [vmem:[%s294 + $0x24] sm:$0x1]
      %v308 = vsel %vm297, 0, %v307
      %309 = vst [vmem:[%s294 + $0x24] sm:$0x1] %v308
      %v310 = vld [vmem:[%s294 + $0x30] sm:$0x1]
      %v311 = vsel %vm297, 0, %v310
      %312 = vst [vmem:[%s294 + $0x30] sm:$0x1] %v311
      %v313 = vld [vmem:[%s294 + $0x3c] sm:$0x1]
      %v314 = vsel %vm297, 0, %v313
      %315 = vst [vmem:[%s294 + $0x3c] sm:$0x1] %v314
      %v316 = vld [vmem:[%s294 + $0x48] sm:$0x1]
      %v317 = vsel %vm297, 0, %v316
      %318 = vst [vmem:[%s294 + $0x48] sm:$0x1] %v317
      %v319 = vld [vmem:[%s294 + $0x54] sm:$0x1]
      %v320 = vsel %vm297, 0, %v319
      %321 = vst [vmem:[%s294 + $0x54] sm:$0x1] %v320
      %v322 = vld [vmem:[%s294 + $0x60] sm:$0x1]
      %v323 = vsel %vm297, 0, %v322
      %324 = vst [vmem:[%s294 + $0x60] sm:$0x1] %v323
      %v325 = vld [vmem:[%s294 + $0x6c] sm:$0x1]
      %v326 = vsel %vm297, 0, %v325
      %327 = vst [vmem:[%s294 + $0x6c] sm:$0x1] %v326
      %v328 = vld [vmem:[%s294 + $0x78] sm:$0x1]
      %v329 = vsel %vm297, 0, %v328
      %330 = vst [vmem:[%s294 + $0x78] sm:$0x1] %v329
      %v331 = vld [vmem:[%s294 + $0x84] sm:$0x1]
      %v332 = vsel %vm297, 0, %v331
      %333 = vst [vmem:[%s294 + $0x84] sm:$0x1] %v332
      %v334 = vld [vmem:[%s294 + $0x90] sm:$0x1]
      %v335 = vsel %vm297, 0, %v334
      %336 = vst [vmem:[%s294 + $0x90] sm:$0x1] %v335
      %v337 = vld [vmem:[%s294 + $0x9c] sm:$0x1]
      %v338 = vsel %vm297, 0, %v337
      %339 = vst [vmem:[%s294 + $0x9c] sm:$0x1] %v338
      %v340 = vld [vmem:[%s294 + $0xa8] sm:$0x1]
      %v341 = vsel %vm297, 0, %v340
      %342 = vst [vmem:[%s294 + $0xa8] sm:$0x1] %v341
      %v343 = vld [vmem:[%s294 + $0xb4] sm:$0x1]
      %v344 = vsel %vm297, 0, %v343
      %345 = vst [vmem:[%s294 + $0xb4] sm:$0x1] %v344
      %vm346 = vsmask.f32 7938
      %vm347 = vmand %vm295, %vm346
      %v348 = vld [vmem:[%s294 + $0x8] sm:$0x1]
      %v349 = vsel %vm347, 0, %v348
      %350 = vst [vmem:[%s294 + $0x8] sm:$0x1] %v349
      %v351 = vld [vmem:[%s294 + $0x14] sm:$0x1]
      %v352 = vsel %vm347, 0, %v351
      %353 = vst [vmem:[%s294 + $0x14] sm:$0x1] %v352
      %v354 = vld [vmem:[%s294 + $0x20] sm:$0x1]
      %v355 = vsel %vm347, 0, %v354
      %356 = vst [vmem:[%s294 + $0x20] sm:$0x1] %v355
      %v357 = vld [vmem:[%s294 + $0x2c] sm:$0x1]
      %v358 = vsel %vm347, 0, %v357
      %359 = vst [vmem:[%s294 + $0x2c] sm:$0x1] %v358
      %v360 = vld [vmem:[%s294 + $0x38] sm:$0x1]
      %v361 = vsel %vm347, 0, %v360
      %362 = vst [vmem:[%s294 + $0x38] sm:$0x1] %v361
      %v363 = vld [vmem:[%s294 + $0x44] sm:$0x1]
      %v364 = vsel %vm347, 0, %v363
      %365 = vst [vmem:[%s294 + $0x44] sm:$0x1] %v364
      %v366 = vld [vmem:[%s294 + $0x50] sm:$0x1]
      %v367 = vsel %vm347, 0, %v366
      %368 = vst [vmem:[%s294 + $0x50] sm:$0x1] %v367
      %v369 = vld [vmem:[%s294 + $0x5c] sm:$0x1]
      %v370 = vsel %vm347, 0, %v369
      %371 = vst [vmem:[%s294 + $0x5c] sm:$0x1] %v370
      %v372 = vld [vmem:[%s294 + $0x68] sm:$0x1]
      %v373 = vsel %vm347, 0, %v372
      %374 = vst [vmem:[%s294 + $0x68] sm:$0x1] %v373
      %v375 = vld [vmem:[%s294 + $0x74] sm:$0x1]
      %v376 = vsel %vm347, 0, %v375
      %377 = vst [vmem:[%s294 + $0x74] sm:$0x1] %v376
      %v378 = vld [vmem:[%s294 + $0x80] sm:$0x1]
      %v379 = vsel %vm347, 0, %v378
      %380 = vst [vmem:[%s294 + $0x80] sm:$0x1] %v379
      %v381 = vld [vmem:[%s294 + $0x8c] sm:$0x1]
      %v382 = vsel %vm347, 0, %v381
      %383 = vst [vmem:[%s294 + $0x8c] sm:$0x1] %v382
      %v384 = vld [vmem:[%s294 + $0x98] sm:$0x1]
      %v385 = vsel %vm347, 0, %v384
      %386 = vst [vmem:[%s294 + $0x98] sm:$0x1] %v385
      %v387 = vld [vmem:[%s294 + $0xa4] sm:$0x1]
      %v388 = vsel %vm347, 0, %v387
      %389 = vst [vmem:[%s294 + $0xa4] sm:$0x1] %v388
      %v390 = vld [vmem:[%s294 + $0xb0] sm:$0x1]
      %v391 = vsel %vm347, 0, %v390
      %392 = vst [vmem:[%s294 + $0xb0] sm:$0x1] %v391
      %v393 = vld [vmem:[%s294 + $0xbc] sm:$0x1]
      %v394 = vsel %vm347, 0, %v393
      %395 = vst [vmem:[%s294 + $0xbc] sm:$0x1] %v394
      %v412 = vunpack.c.l.b16 %v269
      %v413 = vunpack.c.h.b16 %v269
      %v414 = vunpack.c.l.b16 %v270
      %v415 = vunpack.c.h.b16 %v270
      %v416 = vunpack.c.l.b16 %v271
      %v417 = vunpack.c.h.b16 %v271
      %v418 = vunpack.c.l.b16 %v272
      %v419 = vunpack.c.h.b16 %v272
      %v420 = vunpack.c.l.b16 %v273
      %v421 = vunpack.c.h.b16 %v273
      %v422 = vunpack.c.l.b16 %v274
      %v423 = vunpack.c.h.b16 %v274
      %v424 = vunpack.c.l.b16 %v275
      %v425 = vunpack.c.h.b16 %v275
      %v426 = vunpack.c.l.b16 %v276
      %v427 = vunpack.c.h.b16 %v276
      %v428 = vunpack.c.l.b16 %v277
      %v429 = vunpack.c.h.b16 %v277
      %v430 = vunpack.c.l.b16 %v278
      %v431 = vunpack.c.h.b16 %v278
      %v432 = vunpack.c.l.b16 %v279
      %v433 = vunpack.c.h.b16 %v279
      %v434 = vunpack.c.l.b16 %v280
      %v435 = vunpack.c.h.b16 %v280
      %v436 = vunpack.c.l.b16 %v281
      %v437 = vunpack.c.h.b16 %v281
      %v438 = vunpack.c.l.b16 %v282
      %v439 = vunpack.c.h.b16 %v282
      %v440 = vunpack.c.l.b16 %v283
      %v441 = vunpack.c.h.b16 %v283
      %v442 = vunpack.c.l.b16 %v284
      %v443 = vunpack.c.h.b16 %v284
      %v444 = vpack.c.b16 %v412, %v412
      %v445 = vpack.c.b16 %v413, %v413
      %v446 = vpack.c.b16 %v414, %v414
      %v447 = vpack.c.b16 %v415, %v415
      %v448 = vpack.c.b16 %v416, %v416
      %v449 = vpack.c.b16 %v417, %v417
      %v450 = vpack.c.b16 %v418, %v418
      %v451 = vpack.c.b16 %v419, %v419
      %v452 = vpack.c.b16 %v420, %v420
      %v453 = vpack.c.b16 %v421, %v421
      %v454 = vpack.c.b16 %v422, %v422
      %v455 = vpack.c.b16 %v423, %v423
      %v456 = vpack.c.b16 %v424, %v424
      %v457 = vpack.c.b16 %v425, %v425
      %v458 = vpack.c.b16 %v426, %v426
      %v459 = vpack.c.b16 %v427, %v427
      %v460 = vpack.c.b16 %v428, %v428
      %v461 = vpack.c.b16 %v429, %v429
      %v462 = vpack.c.b16 %v430, %v430
      %v463 = vpack.c.b16 %v431, %v431
      %v464 = vpack.c.b16 %v432, %v432
      %v465 = vpack.c.b16 %v433, %v433
      %v466 = vpack.c.b16 %v434, %v434
      %v467 = vpack.c.b16 %v435, %v435
      %v468 = vpack.c.b16 %v436, %v436
      %v469 = vpack.c.b16 %v437, %v437
      %v470 = vpack.c.b16 %v438, %v438
      %v471 = vpack.c.b16 %v439, %v439
      %v472 = vpack.c.b16 %v440, %v440
      %v473 = vpack.c.b16 %v441, %v441
      %v474 = vpack.c.b16 %v442, %v442
      %v475 = vpack.c.b16 %v443, %v443
      %vm476 = vsmask.f32 4368
      %vm477 = vmor %vm296, %vm476
      %v479 = vshrl.u32 %v444, 16
      %v481 = vrot.slane %v479, 7
      %v482 = vshll.u32 %v444, 16
      %v484 = vor.u32 %v481, %v482
      %v485 = vrot.slane %v481, 4
      %v487 = vshrl.u32 %v445, 16
      %v489 = vrot.slane %v487, 7
      %v490 = vshll.u32 %v445, 16
      %v492 = vor.u32 %v489, %v490
      %v493 = vsel %vm477, %v485, %v492
      %v494 = vrot.slane %v489, 4
      %v496 = vshrl.u32 %v446, 16
      %v498 = vrot.slane %v496, 7
      %v499 = vshll.u32 %v446, 16
      %v501 = vor.u32 %v498, %v499
      %v502 = vrot.slane %v498, 4
      %v504 = vshrl.u32 %v447, 16
      %v506 = vrot.slane %v504, 7
      %v507 = vshll.u32 %v447, 16
      %v509 = vor.u32 %v506, %v507
      %v510 = vsel %vm477, %v502, %v509
      %v511 = vrot.slane %v506, 4
      %v513 = vshrl.u32 %v448, 16
      %v515 = vrot.slane %v513, 7
      %v516 = vshll.u32 %v448, 16
      %v518 = vor.u32 %v515, %v516
      %v519 = vrot.slane %v515, 4
      %v521 = vshrl.u32 %v449, 16
      %v523 = vrot.slane %v521, 7
      %v524 = vshll.u32 %v449, 16
      %v526 = vor.u32 %v523, %v524
      %v527 = vsel %vm477, %v519, %v526
      %v528 = vrot.slane %v523, 4
      %v530 = vshrl.u32 %v450, 16
      %v532 = vrot.slane %v530, 7
      %v533 = vshll.u32 %v450, 16
      %v535 = vor.u32 %v532, %v533
      %v536 = vrot.slane %v532, 4
      %v538 = vshrl.u32 %v451, 16
      %v540 = vrot.slane %v538, 7
      %v541 = vshll.u32 %v451, 16
      %v543 = vor.u32 %v540, %v541
      %v544 = vsel %vm477, %v536, %v543
      %v545 = vrot.slane %v540, 4
      %v547 = vshrl.u32 %v452, 16
      %v549 = vrot.slane %v547, 7
      %v550 = vshll.u32 %v452, 16
      %v552 = vor.u32 %v549, %v550
      %v553 = vrot.slane %v549, 4
      %v555 = vshrl.u32 %v453, 16
      %v557 = vrot.slane %v555, 7
      %v558 = vshll.u32 %v453, 16
      %v560 = vor.u32 %v557, %v558
      %v561 = vsel %vm477, %v553, %v560
      %v562 = vrot.slane %v557, 4
      %v564 = vshrl.u32 %v454, 16
      %v566 = vrot.slane %v564, 7
      %v567 = vshll.u32 %v454, 16
      %v569 = vor.u32 %v566, %v567
      %v570 = vrot.slane %v566, 4
      %v572 = vshrl.u32 %v455, 16
      %v574 = vrot.slane %v572, 7
      %v575 = vshll.u32 %v455, 16
      %v577 = vor.u32 %v574, %v575
      %v578 = vsel %vm477, %v570, %v577
      %v579 = vrot.slane %v574, 4
      %v581 = vshrl.u32 %v456, 16
      %v583 = vrot.slane %v581, 7
      %v584 = vshll.u32 %v456, 16
      %v586 = vor.u32 %v583, %v584
      %v587 = vrot.slane %v583, 4
      %v589 = vshrl.u32 %v457, 16
      %v591 = vrot.slane %v589, 7
      %v592 = vshll.u32 %v457, 16
      %v594 = vor.u32 %v591, %v592
      %v595 = vsel %vm477, %v587, %v594
      %v596 = vrot.slane %v591, 4
      %v598 = vshrl.u32 %v458, 16
      %v600 = vrot.slane %v598, 7
      %v601 = vshll.u32 %v458, 16
      %v603 = vor.u32 %v600, %v601
      %v604 = vrot.slane %v600, 4
      %v606 = vshrl.u32 %v459, 16
      %v608 = vrot.slane %v606, 7
      %v609 = vshll.u32 %v459, 16
      %v611 = vor.u32 %v608, %v609
      %v612 = vsel %vm477, %v604, %v611
      %v613 = vrot.slane %v608, 4
      %v615 = vshrl.u32 %v460, 16
      %v617 = vrot.slane %v615, 7
      %v618 = vshll.u32 %v460, 16
      %v620 = vor.u32 %v617, %v618
      %v621 = vrot.slane %v617, 4
      %v623 = vshrl.u32 %v461, 16
      %v625 = vrot.slane %v623, 7
      %v626 = vshll.u32 %v461, 16
      %v628 = vor.u32 %v625, %v626
      %v629 = vsel %vm477, %v621, %v628
      %v630 = vrot.slane %v625, 4
      %v632 = vshrl.u32 %v462, 16
      %v634 = vrot.slane %v632, 7
      %v635 = vshll.u32 %v462, 16
      %v637 = vor.u32 %v634, %v635
      %v638 = vrot.slane %v634, 4
      %v640 = vshrl.u32 %v463, 16
      %v642 = vrot.slane %v640, 7
      %v643 = vshll.u32 %v463, 16
      %v645 = vor.u32 %v642, %v643
      %v646 = vsel %vm477, %v638, %v645
      %v647 = vrot.slane %v642, 4
      %v649 = vshrl.u32 %v464, 16
      %v651 = vrot.slane %v649, 7
      %v652 = vshll.u32 %v464, 16
      %v654 = vor.u32 %v651, %v652
      %v655 = vrot.slane %v651, 4
      %v657 = vshrl.u32 %v465, 16
      %v659 = vrot.slane %v657, 7
      %v660 = vshll.u32 %v465, 16
      %v662 = vor.u32 %v659, %v660
      %v663 = vsel %vm477, %v655, %v662
      %v664 = vrot.slane %v659, 4
      %v666 = vshrl.u32 %v466, 16
      %v668 = vrot.slane %v666, 7
      %v669 = vshll.u32 %v466, 16
      %v671 = vor.u32 %v668, %v669
      %v672 = vrot.slane %v668, 4
      %v674 = vshrl.u32 %v467, 16
      %v676 = vrot.slane %v674, 7
      %v677 = vshll.u32 %v467, 16
      %v679 = vor.u32 %v676, %v677
      %v680 = vsel %vm477, %v672, %v679
      %v681 = vrot.slane %v676, 4
      %v683 = vshrl.u32 %v468, 16
      %v685 = vrot.slane %v683, 7
      %v686 = vshll.u32 %v468, 16
      %v688 = vor.u32 %v685, %v686
      %v689 = vrot.slane %v685, 4
      %v691 = vshrl.u32 %v469, 16
      %v693 = vrot.slane %v691, 7
      %v694 = vshll.u32 %v469, 16
      %v696 = vor.u32 %v693, %v694
      %v697 = vsel %vm477, %v689, %v696
      %v698 = vrot.slane %v693, 4
      %v700 = vshrl.u32 %v470, 16
      %v702 = vrot.slane %v700, 7
      %v703 = vshll.u32 %v470, 16
      %v705 = vor.u32 %v702, %v703
      %v706 = vrot.slane %v702, 4
      %v708 = vshrl.u32 %v471, 16
      %v710 = vrot.slane %v708, 7
      %v711 = vshll.u32 %v471, 16
      %v713 = vor.u32 %v710, %v711
      %v714 = vsel %vm477, %v706, %v713
      %v715 = vrot.slane %v710, 4
      %v717 = vshrl.u32 %v472, 16
      %v719 = vrot.slane %v717, 7
      %v720 = vshll.u32 %v472, 16
      %v722 = vor.u32 %v719, %v720
      %v723 = vrot.slane %v719, 4
      %v725 = vshrl.u32 %v473, 16
      %v727 = vrot.slane %v725, 7
      %v728 = vshll.u32 %v473, 16
      %v730 = vor.u32 %v727, %v728
      %v731 = vsel %vm477, %v723, %v730
      %v732 = vrot.slane %v727, 4
      %v734 = vshrl.u32 %v474, 16
      %v736 = vrot.slane %v734, 7
      %v737 = vshll.u32 %v474, 16
      %v739 = vor.u32 %v736, %v737
      %v740 = vrot.slane %v736, 4
      %v742 = vshrl.u32 %v475, 16
      %v744 = vrot.slane %v742, 7
      %v745 = vshll.u32 %v475, 16
      %v747 = vor.u32 %v744, %v745
      %v748 = vsel %vm477, %v740, %v747
      %v749 = vrot.slane %v744, 4
      %vm798 = vcmask 27648
      %vm799 = vmand %vm798, %vm346
      %v800 = vld [vmem:[%s294] sm:$0xf]
      %v801 = vsel %vm799, %v484, %v800
      %802 = vst [vmem:[%s294] sm:$0xf] %v801
      %803 = vst.msk [vmem:[%s294 + $0x4] sm:$0xf] %vm285, %v493
      %v804 = vld [vmem:[%s294 + $0x8] sm:$0x1]
      %v805 = vsel %vm297, %v494, %v804
      %806 = vst [vmem:[%s294 + $0x8] sm:$0x1] %v805
      %v807 = vld [vmem:[%s294 + $0xc] sm:$0xf]
      %v808 = vsel %vm799, %v501, %v807
      %809 = vst [vmem:[%s294 + $0xc] sm:$0xf] %v808
      %810 = vst.msk [vmem:[%s294 + $0x10] sm:$0xf] %vm285, %v510
      %v811 = vld [vmem:[%s294 + $0x14] sm:$0x1]
      %v812 = vsel %vm297, %v511, %v811
      %813 = vst [vmem:[%s294 + $0x14] sm:$0x1] %v812
      %v814 = vld [vmem:[%s294 + $0x18] sm:$0xf]
      %v815 = vsel %vm799, %v518, %v814
      %816 = vst [vmem:[%s294 + $0x18] sm:$0xf] %v815
      %817 = vst.msk [vmem:[%s294 + $0x1c] sm:$0xf] %vm285, %v527
      %v818 = vld [vmem:[%s294 + $0x20] sm:$0x1]
      %v819 = vsel %vm297, %v528, %v818
      %820 = vst [vmem:[%s294 + $0x20] sm:$0x1] %v819
      %v821 = vld [vmem:[%s294 + $0x24] sm:$0xf]
      %v822 = vsel %vm799, %v535, %v821
      %823 = vst [vmem:[%s294 + $0x24] sm:$0xf] %v822
      %824 = vst.msk [vmem:[%s294 + $0x28] sm:$0xf] %vm285, %v544
      %v825 = vld [vmem:[%s294 + $0x2c] sm:$0x1]
      %v826 = vsel %vm297, %v545, %v825
      %827 = vst [vmem:[%s294 + $0x2c] sm:$0x1] %v826
      %v828 = vld [vmem:[%s294 + $0x30] sm:$0xf]
      %v829 = vsel %vm799, %v552, %v828
      %830 = vst [vmem:[%s294 + $0x30] sm:$0xf] %v829
      %831 = vst.msk [vmem:[%s294 + $0x34] sm:$0xf] %vm285, %v561
      %v832 = vld [vmem:[%s294 + $0x38] sm:$0x1]
      %v833 = vsel %vm297, %v562, %v832
      %834 = vst [vmem:[%s294 + $0x38] sm:$0x1] %v833
      %v835 = vld [vmem:[%s294 + $0x3c] sm:$0xf]
      %v836 = vsel %vm799, %v569, %v835
      %837 = vst [vmem:[%s294 + $0x3c] sm:$0xf] %v836
      %838 = vst.msk [vmem:[%s294 + $0x40] sm:$0xf] %vm285, %v578
      %v839 = vld [vmem:[%s294 + $0x44] sm:$0x1]
      %v840 = vsel %vm297, %v579, %v839
      %841 = vst [vmem:[%s294 + $0x44] sm:$0x1] %v840
      %v842 = vld [vmem:[%s294 + $0x48] sm:$0xf]
      %v843 = vsel %vm799, %v586, %v842
      %844 = vst [vmem:[%s294 + $0x48] sm:$0xf] %v843
      %845 = vst.msk [vmem:[%s294 + $0x4c] sm:$0xf] %vm285, %v595
      %v846 = vld [vmem:[%s294 + $0x50] sm:$0x1]
      %v847 = vsel %vm297, %v596, %v846
      %848 = vst [vmem:[%s294 + $0x50] sm:$0x1] %v847
      %v849 = vld [vmem:[%s294 + $0x54] sm:$0xf]
      %v850 = vsel %vm799, %v603, %v849
      %851 = vst [vmem:[%s294 + $0x54] sm:$0xf] %v850
      %852 = vst.msk [vmem:[%s294 + $0x58] sm:$0xf] %vm285, %v612
      %v853 = vld [vmem:[%s294 + $0x5c] sm:$0x1]
      %v854 = vsel %vm297, %v613, %v853
      %855 = vst [vmem:[%s294 + $0x5c] sm:$0x1] %v854
      %v856 = vld [vmem:[%s294 + $0x60] sm:$0xf]
      %v857 = vsel %vm799, %v620, %v856
      %858 = vst [vmem:[%s294 + $0x60] sm:$0xf] %v857
      %859 = vst.msk [vmem:[%s294 + $0x64] sm:$0xf] %vm285, %v629
      %v860 = vld [vmem:[%s294 + $0x68] sm:$0x1]
      %v861 = vsel %vm297, %v630, %v860
      %862 = vst [vmem:[%s294 + $0x68] sm:$0x1] %v861
      %v863 = vld [vmem:[%s294 + $0x6c] sm:$0xf]
      %v864 = vsel %vm799, %v637, %v863
      %865 = vst [vmem:[%s294 + $0x6c] sm:$0xf] %v864
      %866 = vst.msk [vmem:[%s294 + $0x70] sm:$0xf] %vm285, %v646
      %v867 = vld [vmem:[%s294 + $0x74] sm:$0x1]
      %v868 = vsel %vm297, %v647, %v867
      %869 = vst [vmem:[%s294 + $0x74] sm:$0x1] %v868
      %v870 = vld [vmem:[%s294 + $0x78] sm:$0xf]
      %v871 = vsel %vm799, %v654, %v870
      %872 = vst [vmem:[%s294 + $0x78] sm:$0xf] %v871
      %873 = vst.msk [vmem:[%s294 + $0x7c] sm:$0xf] %vm285, %v663
      %v874 = vld [vmem:[%s294 + $0x80] sm:$0x1]
      %v875 = vsel %vm297, %v664, %v874
      %876 = vst [vmem:[%s294 + $0x80] sm:$0x1] %v875
      %v877 = vld [vmem:[%s294 + $0x84] sm:$0xf]
      %v878 = vsel %vm799, %v671, %v877
      %879 = vst [vmem:[%s294 + $0x84] sm:$0xf] %v878
      %880 = vst.msk [vmem:[%s294 + $0x88] sm:$0xf] %vm285, %v680
      %v881 = vld [vmem:[%s294 + $0x8c] sm:$0x1]
      %v882 = vsel %vm297, %v681, %v881
      %883 = vst [vmem:[%s294 + $0x8c] sm:$0x1] %v882
      %v884 = vld [vmem:[%s294 + $0x90] sm:$0xf]
      %v885 = vsel %vm799, %v688, %v884
      %886 = vst [vmem:[%s294 + $0x90] sm:$0xf] %v885
      %887 = vst.msk [vmem:[%s294 + $0x94] sm:$0xf] %vm285, %v697
      %v888 = vld [vmem:[%s294 + $0x98] sm:$0x1]
      %v889 = vsel %vm297, %v698, %v888
      %890 = vst [vmem:[%s294 + $0x98] sm:$0x1] %v889
      %v891 = vld [vmem:[%s294 + $0x9c] sm:$0xf]
      %v892 = vsel %vm799, %v705, %v891
      %893 = vst [vmem:[%s294 + $0x9c] sm:$0xf] %v892
      %894 = vst.msk [vmem:[%s294 + $0xa0] sm:$0xf] %vm285, %v714
      %v895 = vld [vmem:[%s294 + $0xa4] sm:$0x1]
      %v896 = vsel %vm297, %v715, %v895
      %897 = vst [vmem:[%s294 + $0xa4] sm:$0x1] %v896
      %v898 = vld [vmem:[%s294 + $0xa8] sm:$0xf]
      %v899 = vsel %vm799, %v722, %v898
      %900 = vst [vmem:[%s294 + $0xa8] sm:$0xf] %v899
      %901 = vst.msk [vmem:[%s294 + $0xac] sm:$0xf] %vm285, %v731
      %v902 = vld [vmem:[%s294 + $0xb0] sm:$0x1]
      %v903 = vsel %vm297, %v732, %v902
      %904 = vst [vmem:[%s294 + $0xb0] sm:$0x1] %v903
      %v905 = vld [vmem:[%s294 + $0xb4] sm:$0xf]
      %v906 = vsel %vm799, %v739, %v905
      %907 = vst [vmem:[%s294 + $0xb4] sm:$0xf] %v906
      %908 = vst.msk [vmem:[%s294 + $0xb8] sm:$0xf] %vm285, %v748
      %v909 = vld [vmem:[%s294 + $0xbc] sm:$0x1]
      %v910 = vsel %vm297, %v749, %v909
      %911 = vst [vmem:[%s294 + $0xbc] sm:$0x1] %v910
      %v912 = vld [vmem:[#allocation2] sm:$0xf]
      %v913 = vld [vmem:[#allocation2 + $0x4] sm:$0xf]
      %v914 = vld [vmem:[#allocation2 + $0xc] sm:$0xf]
      %v915 = vld [vmem:[#allocation2 + $0x10] sm:$0xf]
      %v916 = vld [vmem:[#allocation2 + $0x18] sm:$0xf]
      %v917 = vld [vmem:[#allocation2 + $0x1c] sm:$0xf]
      %v918 = vld [vmem:[#allocation2 + $0x24] sm:$0xf]
      %v919 = vld [vmem:[#allocation2 + $0x28] sm:$0xf]
      %v920 = vld [vmem:[#allocation2 + $0x30] sm:$0xf]
      %v921 = vld [vmem:[#allocation2 + $0x34] sm:$0xf]
      %v922 = vld [vmem:[#allocation2 + $0x3c] sm:$0xf]
      %v923 = vld [vmem:[#allocation2 + $0x40] sm:$0xf]
      %v924 = vld [vmem:[#allocation2 + $0x48] sm:$0xf]
      %v925 = vld [vmem:[#allocation2 + $0x4c] sm:$0xf]
      %v926 = vld [vmem:[#allocation2 + $0x54] sm:$0xf]
      %v927 = vld [vmem:[#allocation2 + $0x58] sm:$0xf]
      %v928 = vld [vmem:[#allocation2 + $0x60] sm:$0xf]
      %v929 = vld [vmem:[#allocation2 + $0x64] sm:$0xf]
      %v930 = vld [vmem:[#allocation2 + $0x6c] sm:$0xf]
      %v931 = vld [vmem:[#allocation2 + $0x70] sm:$0xf]
      %v932 = vld [vmem:[#allocation2 + $0x78] sm:$0xf]
      %v933 = vld [vmem:[#allocation2 + $0x7c] sm:$0xf]
      %v934 = vld [vmem:[#allocation2 + $0x84] sm:$0xf]
      %v935 = vld [vmem:[#allocation2 + $0x88] sm:$0xf]
      %v936 = vld [vmem:[#allocation2 + $0x90] sm:$0xf]
      %v937 = vld [vmem:[#allocation2 + $0x94] sm:$0xf]
      %v938 = vld [vmem:[#allocation2 + $0x9c] sm:$0xf]
      %v939 = vld [vmem:[#allocation2 + $0xa0] sm:$0xf]
      %v940 = vld [vmem:[#allocation2 + $0xa8] sm:$0xf]
      %v941 = vld [vmem:[#allocation2 + $0xac] sm:$0xf]
      %v942 = vld [vmem:[#allocation2 + $0xb4] sm:$0xf]
      %v943 = vld [vmem:[#allocation2 + $0xb8] sm:$0xf]
      %v944 = vld [vmem:[%s3] sm:$0x3]
      %v945 = vld [vmem:[#allocation2 + $0x8] sm:$0x1]
      %v946 = vld [vmem:[#allocation2 + $0x14] sm:$0x1]
      %v947 = vld [vmem:[#allocation2 + $0x20] sm:$0x1]
      %v948 = vld [vmem:[#allocation2 + $0x2c] sm:$0x1]
      %v949 = vld [vmem:[#allocation2 + $0x38] sm:$0x1]
      %v950 = vld [vmem:[#allocation2 + $0x44] sm:$0x1]
      %v951 = vld [vmem:[#allocation2 + $0x50] sm:$0x1]
      %v952 = vld [vmem:[#allocation2 + $0x5c] sm:$0x1]
      %v953 = vld [vmem:[#allocation2 + $0x68] sm:$0x1]
      %v954 = vld [vmem:[#allocation2 + $0x74] sm:$0x1]
      %v955 = vld [vmem:[#allocation2 + $0x80] sm:$0x1]
      %v956 = vld [vmem:[#allocation2 + $0x8c] sm:$0x1]
      %v957 = vld [vmem:[#allocation2 + $0x98] sm:$0x1]
      %v958 = vld [vmem:[#allocation2 + $0xa4] sm:$0x1]
      %v959 = vld [vmem:[#allocation2 + $0xb0] sm:$0x1]
      %v960 = vld [vmem:[#allocation2 + $0xbc] sm:$0x1]
      %vm961 = vsmask.f32 3328
      %vm962 = vsmask.f32 7440
      %vm963 = vmor %vm961, %vm962
      %v965 = vshrl.u32 %v912, 16
      %v967 = vrot.slane %v965, 4
      %v968 = vshll.u32 %v912, 16
      %v970 = vrot.slane %v968, 5
      %v971 = vor.u32 %v967, %v970
      %v972 = vrot.slane %v971, 4
      %v974 = vshll.u32 %v913, 16
      %v976 = vrot.slane %v974, 5
      %v977 = vsel %vm963, %v972, %v976
      %v978 = vshrl.u32 %v913, 16
      %v980 = vrot.slane %v978, 4
      %v981 = vor.u32 %v980, %v976
      %v982 = vrot.slane %v981, 4
      %v984 = vshll.u32 %v945, 16
      %v986 = vrot.slane %v984, 5
      %v987 = vsel %vm963, %v982, %v986
      %v989 = vshrl.u32 %v914, 16
      %v991 = vrot.slane %v989, 4
      %v992 = vshll.u32 %v914, 16
      %v994 = vrot.slane %v992, 5
      %v995 = vor.u32 %v991, %v994
      %v996 = vrot.slane %v995, 4
      %v998 = vshll.u32 %v915, 16
      %v1000 = vrot.slane %v998, 5
      %v1001 = vsel %vm963, %v996, %v1000
      %v1002 = vshrl.u32 %v915, 16
      %v1004 = vrot.slane %v1002, 4
      %v1005 = vor.u32 %v1004, %v1000
      %v1006 = vrot.slane %v1005, 4
      %v1008 = vshll.u32 %v946, 16
      %v1010 = vrot.slane %v1008, 5
      %v1011 = vsel %vm963, %v1006, %v1010
      %v1013 = vshrl.u32 %v916, 16
      %v1015 = vrot.slane %v1013, 4
      %v1016 = vshll.u32 %v916, 16
      %v1018 = vrot.slane %v1016, 5
      %v1019 = vor.u32 %v1015, %v1018
      %v1020 = vrot.slane %v1019, 4
      %v1022 = vshll.u32 %v917, 16
      %v1024 = vrot.slane %v1022, 5
      %v1025 = vsel %vm963, %v1020, %v1024
      %v1026 = vshrl.u32 %v917, 16
      %v1028 = vrot.slane %v1026, 4
      %v1029 = vor.u32 %v1028, %v1024
      %v1030 = vrot.slane %v1029, 4
      %v1032 = vshll.u32 %v947, 16
      %v1034 = vrot.slane %v1032, 5
      %v1035 = vsel %vm963, %v1030, %v1034
      %v1037 = vshrl.u32 %v918, 16
      %v1039 = vrot.slane %v1037, 4
      %v1040 = vshll.u32 %v918, 16
      %v1042 = vrot.slane %v1040, 5
      %v1043 = vor.u32 %v1039, %v1042
      %v1044 = vrot.slane %v1043, 4
      %v1046 = vshll.u32 %v919, 16
      %v1048 = vrot.slane %v1046, 5
      %v1049 = vsel %vm963, %v1044, %v1048
      %v1050 = vshrl.u32 %v919, 16
      %v1052 = vrot.slane %v1050, 4
      %v1053 = vor.u32 %v1052, %v1048
      %v1054 = vrot.slane %v1053, 4
      %v1056 = vshll.u32 %v948, 16
      %v1058 = vrot.slane %v1056, 5
      %v1059 = vsel %vm963, %v1054, %v1058
      %v1061 = vshrl.u32 %v920, 16
      %v1063 = vrot.slane %v1061, 4
      %v1064 = vshll.u32 %v920, 16
      %v1066 = vrot.slane %v1064, 5
      %v1067 = vor.u32 %v1063, %v1066
      %v1068 = vrot.slane %v1067, 4
      %v1070 = vshll.u32 %v921, 16
      %v1072 = vrot.slane %v1070, 5
      %v1073 = vsel %vm963, %v1068, %v1072
      %v1074 = vshrl.u32 %v921, 16
      %v1076 = vrot.slane %v1074, 4
      %v1077 = vor.u32 %v1076, %v1072
      %v1078 = vrot.slane %v1077, 4
      %v1080 = vshll.u32 %v949, 16
      %v1082 = vrot.slane %v1080, 5
      %v1083 = vsel %vm963, %v1078, %v1082
      %v1085 = vshrl.u32 %v922, 16
      %v1087 = vrot.slane %v1085, 4
      %v1088 = vshll.u32 %v922, 16
      %v1090 = vrot.slane %v1088, 5
      %v1091 = vor.u32 %v1087, %v1090
      %v1092 = vrot.slane %v1091, 4
      %v1094 = vshll.u32 %v923, 16
      %v1096 = vrot.slane %v1094, 5
      %v1097 = vsel %vm963, %v1092, %v1096
      %v1098 = vshrl.u32 %v923, 16
      %v1100 = vrot.slane %v1098, 4
      %v1101 = vor.u32 %v1100, %v1096
      %v1102 = vrot.slane %v1101, 4
      %v1104 = vshll.u32 %v950, 16
      %v1106 = vrot.slane %v1104, 5
      %v1107 = vsel %vm963, %v1102, %v1106
      %v1109 = vshrl.u32 %v924, 16
      %v1111 = vrot.slane %v1109, 4
      %v1112 = vshll.u32 %v924, 16
      %v1114 = vrot.slane %v1112, 5
      %v1115 = vor.u32 %v1111, %v1114
      %v1116 = vrot.slane %v1115, 4
      %v1118 = vshll.u32 %v925, 16
      %v1120 = vrot.slane %v1118, 5
      %v1121 = vsel %vm963, %v1116, %v1120
      %v1122 = vshrl.u32 %v925, 16
      %v1124 = vrot.slane %v1122, 4
      %v1125 = vor.u32 %v1124, %v1120
      %v1126 = vrot.slane %v1125, 4
      %v1128 = vshll.u32 %v951, 16
      %v1130 = vrot.slane %v1128, 5
      %v1131 = vsel %vm963, %v1126, %v1130
      %v1133 = vshrl.u32 %v926, 16
      %v1135 = vrot.slane %v1133, 4
      %v1136 = vshll.u32 %v926, 16
      %v1138 = vrot.slane %v1136, 5
      %v1139 = vor.u32 %v1135, %v1138
      %v1140 = vrot.slane %v1139, 4
      %v1142 = vshll.u32 %v927, 16
      %v1144 = vrot.slane %v1142, 5
      %v1145 = vsel %vm963, %v1140, %v1144
      %v1146 = vshrl.u32 %v927, 16
      %v1148 = vrot.slane %v1146, 4
      %v1149 = vor.u32 %v1148, %v1144
      %v1150 = vrot.slane %v1149, 4
      %v1152 = vshll.u32 %v952, 16
      %v1154 = vrot.slane %v1152, 5
      %v1155 = vsel %vm963, %v1150, %v1154
      %v1157 = vshrl.u32 %v928, 16
      %v1159 = vrot.slane %v1157, 4
      %v1160 = vshll.u32 %v928, 16
      %v1162 = vrot.slane %v1160, 5
      %v1163 = vor.u32 %v1159, %v1162
      %v1164 = vrot.slane %v1163, 4
      %v1166 = vshll.u32 %v929, 16
      %v1168 = vrot.slane %v1166, 5
      %v1169 = vsel %vm963, %v1164, %v1168
      %v1170 = vshrl.u32 %v929, 16
      %v1172 = vrot.slane %v1170, 4
      %v1173 = vor.u32 %v1172, %v1168
      %v1174 = vrot.slane %v1173, 4
      %v1176 = vshll.u32 %v953, 16
      %v1178 = vrot.slane %v1176, 5
      %v1179 = vsel %vm963, %v1174, %v1178
      %v1181 = vshrl.u32 %v930, 16
      %v1183 = vrot.slane %v1181, 4
      %v1184 = vshll.u32 %v930, 16
      %v1186 = vrot.slane %v1184, 5
      %v1187 = vor.u32 %v1183, %v1186
      %v1188 = vrot.slane %v1187, 4
      %v1190 = vshll.u32 %v931, 16
      %v1192 = vrot.slane %v1190, 5
      %v1193 = vsel %vm963, %v1188, %v1192
      %v1194 = vshrl.u32 %v931, 16
      %v1196 = vrot.slane %v1194, 4
      %v1197 = vor.u32 %v1196, %v1192
      %v1198 = vrot.slane %v1197, 4
      %v1200 = vshll.u32 %v954, 16
      %v1202 = vrot.slane %v1200, 5
      %v1203 = vsel %vm963, %v1198, %v1202
      %v1205 = vshrl.u32 %v932, 16
      %v1207 = vrot.slane %v1205, 4
      %v1208 = vshll.u32 %v932, 16
      %v1210 = vrot.slane %v1208, 5
      %v1211 = vor.u32 %v1207, %v1210
      %v1212 = vrot.slane %v1211, 4
      %v1214 = vshll.u32 %v933, 16
      %v1216 = vrot.slane %v1214, 5
      %v1217 = vsel %vm963, %v1212, %v1216
      %v1218 = vshrl.u32 %v933, 16
      %v1220 = vrot.slane %v1218, 4
      %v1221 = vor.u32 %v1220, %v1216
      %v1222 = vrot.slane %v1221, 4
      %v1224 = vshll.u32 %v955, 16
      %v1226 = vrot.slane %v1224, 5
      %v1227 = vsel %vm963, %v1222, %v1226
      %v1229 = vshrl.u32 %v934, 16
      %v1231 = vrot.slane %v1229, 4
      %v1232 = vshll.u32 %v934, 16
      %v1234 = vrot.slane %v1232, 5
      %v1235 = vor.u32 %v1231, %v1234
      %v1236 = vrot.slane %v1235, 4
      %v1238 = vshll.u32 %v935, 16
      %v1240 = vrot.slane %v1238, 5
      %v1241 = vsel %vm963, %v1236, %v1240
      %v1242 = vshrl.u32 %v935, 16
      %v1244 = vrot.slane %v1242, 4
      %v1245 = vor.u32 %v1244, %v1240
      %v1246 = vrot.slane %v1245, 4
      %v1248 = vshll.u32 %v956, 16
      %v1250 = vrot.slane %v1248, 5
      %v1251 = vsel %vm963, %v1246, %v1250
      %v1253 = vshrl.u32 %v936, 16
      %v1255 = vrot.slane %v1253, 4
      %v1256 = vshll.u32 %v936, 16
      %v1258 = vrot.slane %v1256, 5
      %v1259 = vor.u32 %v1255, %v1258
      %v1260 = vrot.slane %v1259, 4
      %v1262 = vshll.u32 %v937, 16
      %v1264 = vrot.slane %v1262, 5
      %v1265 = vsel %vm963, %v1260, %v1264
      %v1266 = vshrl.u32 %v937, 16
      %v1268 = vrot.slane %v1266, 4
      %v1269 = vor.u32 %v1268, %v1264
      %v1270 = vrot.slane %v1269, 4
      %v1272 = vshll.u32 %v957, 16
      %v1274 = vrot.slane %v1272, 5
      %v1275 = vsel %vm963, %v1270, %v1274
      %v1277 = vshrl.u32 %v938, 16
      %v1279 = vrot.slane %v1277, 4
      %v1280 = vshll.u32 %v938, 16
      %v1282 = vrot.slane %v1280, 5
      %v1283 = vor.u32 %v1279, %v1282
      %v1284 = vrot.slane %v1283, 4
      %v1286 = vshll.u32 %v939, 16
      %v1288 = vrot.slane %v1286, 5
      %v1289 = vsel %vm963, %v1284, %v1288
      %v1290 = vshrl.u32 %v939, 16
      %v1292 = vrot.slane %v1290, 4
      %v1293 = vor.u32 %v1292, %v1288
      %v1294 = vrot.slane %v1293, 4
      %v1296 = vshll.u32 %v958, 16
      %v1298 = vrot.slane %v1296, 5
      %v1299 = vsel %vm963, %v1294, %v1298
      %v1301 = vshrl.u32 %v940, 16
      %v1303 = vrot.slane %v1301, 4
      %v1304 = vshll.u32 %v940, 16
      %v1306 = vrot.slane %v1304, 5
      %v1307 = vor.u32 %v1303, %v1306
      %v1308 = vrot.slane %v1307, 4
      %v1310 = vshll.u32 %v941, 16
      %v1312 = vrot.slane %v1310, 5
      %v1313 = vsel %vm963, %v1308, %v1312
      %v1314 = vshrl.u32 %v941, 16
      %v1316 = vrot.slane %v1314, 4
      %v1317 = vor.u32 %v1316, %v1312
      %v1318 = vrot.slane %v1317, 4
      %v1320 = vshll.u32 %v959, 16
      %v1322 = vrot.slane %v1320, 5
      %v1323 = vsel %vm963, %v1318, %v1322
      %v1325 = vshrl.u32 %v942, 16
      %v1327 = vrot.slane %v1325, 4
      %v1328 = vshll.u32 %v942, 16
      %v1330 = vrot.slane %v1328, 5
      %v1331 = vor.u32 %v1327, %v1330
      %v1332 = vrot.slane %v1331, 4
      %v1334 = vshll.u32 %v943, 16
      %v1336 = vrot.slane %v1334, 5
      %v1337 = vsel %vm963, %v1332, %v1336
      %v1338 = vshrl.u32 %v943, 16
      %v1340 = vrot.slane %v1338, 4
      %v1341 = vor.u32 %v1340, %v1336
      %v1342 = vrot.slane %v1341, 4
      %v1344 = vshll.u32 %v960, 16
      %v1346 = vrot.slane %v1344, 5
      %v1347 = vsel %vm963, %v1342, %v1346
      %s1348 = scalar_lea.vmem %s3, 2
      %v1349 = vld [vmem:[%s1348] sm:$0x3]
      %v1350 = vunpack.c.l.b16 %v977
      %v1351 = vunpack.c.l.b16 %v987
      %v1352 = vunpack.c.l.b16 %v1001
      %v1353 = vunpack.c.l.b16 %v1011
      %v1354 = vunpack.c.l.b16 %v1025
      %v1355 = vunpack.c.l.b16 %v1035
      %v1356 = vunpack.c.l.b16 %v1049
      %v1357 = vunpack.c.l.b16 %v1059
      %v1358 = vunpack.c.l.b16 %v1073
      %v1359 = vunpack.c.l.b16 %v1083
      %v1360 = vunpack.c.l.b16 %v1097
      %v1361 = vunpack.c.l.b16 %v1107
      %v1362 = vunpack.c.l.b16 %v1121
      %v1363 = vunpack.c.l.b16 %v1131
      %v1364 = vunpack.c.l.b16 %v1145
      %v1365 = vunpack.c.l.b16 %v1155
      %v1366 = vunpack.c.l.b16 %v1169
      %v1367 = vunpack.c.l.b16 %v1179
      %v1368 = vunpack.c.l.b16 %v1193
      %v1369 = vunpack.c.l.b16 %v1203
      %v1370 = vunpack.c.l.b16 %v1217
      %v1371 = vunpack.c.l.b16 %v1227
      %v1372 = vunpack.c.l.b16 %v1241
      %v1373 = vunpack.c.l.b16 %v1251
      %v1374 = vunpack.c.l.b16 %v1265
      %v1375 = vunpack.c.l.b16 %v1275
      %v1376 = vunpack.c.l.b16 %v1289
      %v1377 = vunpack.c.l.b16 %v1299
      %v1378 = vunpack.c.l.b16 %v1313
      %v1379 = vunpack.c.l.b16 %v1323
      %v1380 = vunpack.c.l.b16 %v1337
      %v1381 = vunpack.c.l.b16 %v1347
      %v1382 = vpack.c.b16 %v1351, %v1350
      %v1383 = vpack.c.b16 %v1353, %v1352
      %v1384 = vpack.c.b16 %v1355, %v1354
      %v1385 = vpack.c.b16 %v1357, %v1356
      %v1386 = vpack.c.b16 %v1359, %v1358
      %v1387 = vpack.c.b16 %v1361, %v1360
      %v1388 = vpack.c.b16 %v1363, %v1362
      %v1389 = vpack.c.b16 %v1365, %v1364
      %v1390 = vpack.c.b16 %v1367, %v1366
      %v1391 = vpack.c.b16 %v1369, %v1368
      %v1392 = vpack.c.b16 %v1371, %v1370
      %v1393 = vpack.c.b16 %v1373, %v1372
      %v1394 = vpack.c.b16 %v1375, %v1374
      %v1395 = vpack.c.b16 %v1377, %v1376
      %v1396 = vpack.c.b16 %v1379, %v1378
      %v1397 = vpack.c.b16 %v1381, %v1380
      %vm1398 = vcmask 31744
      %v1400 = vsel %vm1398, %v1382, 0
      %v1403 = vsel %vm1398, %v1383, 0
      %v1406 = vsel %vm1398, %v1384, 0
      %v1409 = vsel %vm1398, %v1385, 0
      %v1412 = vsel %vm1398, %v1386, 0
      %v1415 = vsel %vm1398, %v1387, 0
      %v1418 = vsel %vm1398, %v1388, 0
      %v1421 = vsel %vm1398, %v1389, 0
      %v1424 = vsel %vm1398, %v1390, 0
      %v1427 = vsel %vm1398, %v1391, 0
      %v1430 = vsel %vm1398, %v1392, 0
      %v1433 = vsel %vm1398, %v1393, 0
      %v1436 = vsel %vm1398, %v1394, 0
      %v1439 = vsel %vm1398, %v1395, 0
      %v1442 = vsel %vm1398, %v1396, 0
      %v1445 = vsel %vm1398, %v1397, 0
      %vm1447 = vcmask 1041408
      %v1449 = vsel %vm1447, %v1349, 0
      %1451 = vmatprep.subr.bf16.mxu0 0
      %1452 = vmatpush1.bf16.msra.mxu0 %v1449
      %1453 = vmatprep.subr.bf16.mxu0 0
      %1454 = vmatpush1.bf16.msra.mxu0 0
      %1455 = vmatprep.subr.bf16.mxu0 0
      %1456 = vmatpush1.bf16.msra.mxu0 0
      %1457 = vmatprep.subr.bf16.mxu0 0
      %1458 = vmatpush1.bf16.msra.mxu0 0
      %1459 = vmatprep.subr.bf16.mxu0 0
      %1460 = vmatpush1.bf16.msra.mxu0 0
      %1461 = vmatprep.subr.bf16.mxu0 0
      %1462 = vmatpush1.bf16.msra.mxu0 0
      %1463 = vmatprep.subr.bf16.mxu0 0
      %1464 = vmatpush1.bf16.msra.mxu0 0
      %1465 = vmatprep.subr.bf16.mxu0 0
      %1466 = vmatpush1.bf16.msra.mxu0 0
      %1467 = vmatprep.subr.bf16.mxu0 0
      %1468 = vmatpush1.bf16.msra.mxu0 0
      %1469 = vmatprep.subr.bf16.mxu0 0
      %1470 = vmatpush1.bf16.msra.mxu0 0
      %1471 = vmatprep.subr.bf16.mxu0 0
      %1472 = vmatpush1.bf16.msra.mxu0 0
      %1473 = vmatprep.subr.bf16.mxu0 0
      %1474 = vmatpush1.bf16.msra.mxu0 0
      %1475 = vmatprep.subr.bf16.mxu0 0
      %1476 = vmatpush1.bf16.msra.mxu0 0
      %1477 = vmatprep.subr.bf16.mxu0 0
      %1478 = vmatpush1.bf16.msra.mxu0 0
      %1479 = vmatprep.subr.bf16.mxu0 0
      %1480 = vmatpush1.bf16.msra.mxu0 0
      %1481 = vmatprep.subr.bf16.mxu0 0
      %1482 = vmatpush1.bf16.msra.mxu0 0
      %1483 = vmatprep.mubr.bf16.mxu0 0
      %1484 = vmatmul.mubr.bf16.gmra.mrb[0].mxu0 %v1400
      %v1485 = vpop.f32.mrb[0].mxu0
      %v1486 = vadd.f32 0.0, %v1485
      %v1487 = vpop.f32.mrb[0].mxu0
      %v1488 = vpop.f32.mrb[0].mxu0
      %v1489 = vadd.f32 0.0, %v1488
      %v1490 = vpop.f32.mrb[0].mxu0
      %1491 = vmatprep.mubr.bf16.mxu0 0
      %1492 = vmatmul.mubr.bf16.gmra.mrb[0].mxu0 %v1403
      %v1493 = vpop.f32.mrb[0].mxu0
      %v1494 = vadd.f32 0.0, %v1493
      %v1495 = vpop.f32.mrb[0].mxu0
      %v1496 = vpop.f32.mrb[0].mxu0
      %v1497 = vadd.f32 0.0, %v1496
      %v1498 = vpop.f32.mrb[0].mxu0
      %1499 = vmatprep.mubr.bf16.mxu0 0
      %1500 = vmatmul.mubr.bf16.gmra.mrb[0].mxu0 %v1406
      %v1501 = vpop.f32.mrb[0].mxu0
      %v1502 = vadd.f32 0.0, %v1501
      %v1503 = vpop.f32.mrb[0].mxu0
      %v1504 = vpop.f32.mrb[0].mxu0
      %v1505 = vadd.f32 0.0, %v1504
      %v1506 = vpop.f32.mrb[0].mxu0
      %1507 = vmatprep.mubr.bf16.mxu0 0
      %1508 = vmatmul.mubr.bf16.gmra.mrb[0].mxu0 %v1409
      %v1509 = vpop.f32.mrb[0].mxu0
      %v1510 = vadd.f32 0.0, %v1509
      %v1511 = vpop.f32.mrb[0].mxu0
      %v1512 = vpop.f32.mrb[0].mxu0
      %v1513 = vadd.f32 0.0, %v1512
      %v1514 = vpop.f32.mrb[0].mxu0
      %1515 = vmatprep.mubr.bf16.mxu0 0
      %1516 = vmatmul.mubr.bf16.gmra.mrb[0].mxu0 %v1412
      %v1517 = vpop.f32.mrb[0].mxu0
      %v1518 = vadd.f32 0.0, %v1517
      %v1519 = vpop.f32.mrb[0].mxu0
      %v1520 = vpop.f32.mrb[0].mxu0
      %v1521 = vadd.f32 0.0, %v1520
      %v1522 = vpop.f32.mrb[0].mxu0
      %1523 = vmatprep.mubr.bf16.mxu0 0
      %1524 = vmatmul.mubr.bf16.gmra.mrb[0].mxu0 %v1415
      %v1525 = vpop.f32.mrb[0].mxu0
      %v1526 = vadd.f32 0.0, %v1525
      %v1527 = vpop.f32.mrb[0].mxu0
      %v1528 = vpop.f32.mrb[0].mxu0
      %v1529 = vadd.f32 0.0, %v1528
      %v1530 = vpop.f32.mrb[0].mxu0
      %1531 = vmatprep.mubr.bf16.mxu0 0
      %1532 = vmatmul.mubr.bf16.gmra.mrb[0].mxu0 %v1418
      %v1533 = vpop.f32.mrb[0].mxu0
      %v1534 = vadd.f32 0.0, %v1533
      %v1535 = vpop.f32.mrb[0].mxu0
      %v1536 = vpop.f32.mrb[0].mxu0
      %v1537 = vadd.f32 0.0, %v1536
      %v1538 = vpop.f32.mrb[0].mxu0
      %1539 = vmatprep.mubr.bf16.mxu0 0
      %1540 = vmatmul.mubr.bf16.gmra.mrb[0].mxu0 %v1421
      %v1541 = vpop.f32.mrb[0].mxu0
      %v1542 = vadd.f32 0.0, %v1541
      %v1543 = vpop.f32.mrb[0].mxu0
      %v1544 = vpop.f32.mrb[0].mxu0
      %v1545 = vadd.f32 0.0, %v1544
      %v1546 = vpop.f32.mrb[0].mxu0
      %1547 = vmatprep.mubr.bf16.mxu0 0
      %1548 = vmatmul.mubr.bf16.gmra.mrb[0].mxu0 %v1424
      %v1549 = vpop.f32.mrb[0].mxu0
      %v1550 = vadd.f32 0.0, %v1549
      %v1551 = vpop.f32.mrb[0].mxu0
      %v1552 = vpop.f32.mrb[0].mxu0
      %v1553 = vadd.f32 0.0, %v1552
      %v1554 = vpop.f32.mrb[0].mxu0
      %1555 = vmatprep.mubr.bf16.mxu0 0
      %1556 = vmatmul.mubr.bf16.gmra.mrb[0].mxu0 %v1427
      %v1557 = vpop.f32.mrb[0].mxu0
      %v1558 = vadd.f32 0.0, %v1557
      %v1559 = vpop.f32.mrb[0].mxu0
      %v1560 = vpop.f32.mrb[0].mxu0
      %v1561 = vadd.f32 0.0, %v1560
      %v1562 = vpop.f32.mrb[0].mxu0
      %1563 = vmatprep.mubr.bf16.mxu0 0
      %1564 = vmatmul.mubr.bf16.gmra.mrb[0].mxu0 %v1430
      %v1565 = vpop.f32.mrb[0].mxu0
      %v1566 = vadd.f32 0.0, %v1565
      %v1567 = vpop.f32.mrb[0].mxu0
      %v1568 = vpop.f32.mrb[0].mxu0
      %v1569 = vadd.f32 0.0, %v1568
      %v1570 = vpop.f32.mrb[0].mxu0
      %1571 = vmatprep.mubr.bf16.mxu0 0
      %1572 = vmatmul.mubr.bf16.gmra.mrb[0].mxu0 %v1433
      %v1573 = vpop.f32.mrb[0].mxu0
      %v1574 = vadd.f32 0.0, %v1573
      %v1575 = vpop.f32.mrb[0].mxu0
      %v1576 = vpop.f32.mrb[0].mxu0
      %v1577 = vadd.f32 0.0, %v1576
      %v1578 = vpop.f32.mrb[0].mxu0
      %1579 = vmatprep.mubr.bf16.mxu0 0
      %1580 = vmatmul.mubr.bf16.gmra.mrb[0].mxu0 %v1436
      %v1581 = vpop.f32.mrb[0].mxu0
      %v1582 = vadd.f32 0.0, %v1581
      %v1583 = vpop.f32.mrb[0].mxu0
      %v1584 = vpop.f32.mrb[0].mxu0
      %v1585 = vadd.f32 0.0, %v1584
      %v1586 = vpop.f32.mrb[0].mxu0
      %1587 = vmatprep.mubr.bf16.mxu0 0
      %1588 = vmatmul.mubr.bf16.gmra.mrb[0].mxu0 %v1439
      %v1589 = vpop.f32.mrb[0].mxu0
      %v1590 = vadd.f32 0.0, %v1589
      %v1591 = vpop.f32.mrb[0].mxu0
      %v1592 = vpop.f32.mrb[0].mxu0
      %v1593 = vadd.f32 0.0, %v1592
      %v1594 = vpop.f32.mrb[0].mxu0
      %1595 = vmatprep.mubr.bf16.mxu0 0
      %1596 = vmatmul.mubr.bf16.gmra.mrb[0].mxu0 %v1442
      %v1597 = vpop.f32.mrb[0].mxu0
      %v1598 = vadd.f32 0.0, %v1597
      %v1599 = vpop.f32.mrb[0].mxu0
      %v1600 = vpop.f32.mrb[0].mxu0
      %v1601 = vadd.f32 0.0, %v1600
      %v1602 = vpop.f32.mrb[0].mxu0
      %1603 = vmatprep.mubr.bf16.mxu0 0
      %1604 = vmatmul.mubr.bf16.gmra.mrb[0].mxu0 %v1445
      %v1605 = vpop.f32.mrb[0].mxu0
      %v1606 = vadd.f32 0.0, %v1605
      %v1607 = vpop.f32.mrb[0].mxu0
      %v1608 = vpop.f32.mrb[0].mxu0
      %v1609 = vadd.f32 0.0, %v1608
      %v1610 = vpop.f32.mrb[0].mxu0
      %1611 = vdwg.mxu0
      %v1644 = vunpack.c.l.b16 %v912
      %v1645 = vunpack.c.l.b16 %v913
      %v1646 = vunpack.c.l.b16 %v914
      %v1647 = vunpack.c.l.b16 %v915
      %v1648 = vunpack.c.l.b16 %v916
      %v1649 = vunpack.c.l.b16 %v917
      %v1650 = vunpack.c.l.b16 %v918
      %v1651 = vunpack.c.l.b16 %v919
      %v1652 = vunpack.c.l.b16 %v920
      %v1653 = vunpack.c.l.b16 %v921
      %v1654 = vunpack.c.l.b16 %v922
      %v1655 = vunpack.c.l.b16 %v923
      %v1656 = vunpack.c.l.b16 %v924
      %v1657 = vunpack.c.l.b16 %v925
      %v1658 = vunpack.c.l.b16 %v926
      %v1659 = vunpack.c.l.b16 %v927
      %v1660 = vunpack.c.l.b16 %v928
      %v1661 = vunpack.c.l.b16 %v929
      %v1662 = vunpack.c.l.b16 %v930
      %v1663 = vunpack.c.l.b16 %v931
      %v1664 = vunpack.c.l.b16 %v932
      %v1665 = vunpack.c.l.b16 %v933
      %v1666 = vunpack.c.l.b16 %v934
      %v1667 = vunpack.c.l.b16 %v935
      %v1668 = vunpack.c.l.b16 %v936
      %v1669 = vunpack.c.l.b16 %v937
      %v1670 = vunpack.c.l.b16 %v938
      %v1671 = vunpack.c.l.b16 %v939
      %v1672 = vunpack.c.l.b16 %v940
      %v1673 = vunpack.c.l.b16 %v941
      %v1674 = vunpack.c.l.b16 %v942
      %v1675 = vunpack.c.l.b16 %v943
      %v1676 = vpack.c.b16 %v1645, %v1644
      %v1677 = vpack.c.b16 %v1647, %v1646
      %v1678 = vpack.c.b16 %v1649, %v1648
      %v1679 = vpack.c.b16 %v1651, %v1650
      %v1680 = vpack.c.b16 %v1653, %v1652
      %v1681 = vpack.c.b16 %v1655, %v1654
      %v1682 = vpack.c.b16 %v1657, %v1656
      %v1683 = vpack.c.b16 %v1659, %v1658
      %v1684 = vpack.c.b16 %v1661, %v1660
      %v1685 = vpack.c.b16 %v1663, %v1662
      %v1686 = vpack.c.b16 %v1665, %v1664
      %v1687 = vpack.c.b16 %v1667, %v1666
      %v1688 = vpack.c.b16 %v1669, %v1668
      %v1689 = vpack.c.b16 %v1671, %v1670
      %v1690 = vpack.c.b16 %v1673, %v1672
      %v1691 = vpack.c.b16 %v1675, %v1674
      %v1693 = vsel %vm1398, %v1676, 0
      %v1696 = vsel %vm1398, %v1677, 0
      %v1699 = vsel %vm1398, %v1678, 0
      %v1702 = vsel %vm1398, %v1679, 0
      %v1705 = vsel %vm1398, %v1680, 0
      %v1708 = vsel %vm1398, %v1681, 0
      %v1711 = vsel %vm1398, %v1682, 0
      %v1714 = vsel %vm1398, %v1683, 0
      %v1717 = vsel %vm1398, %v1684, 0
      %v1720 = vsel %vm1398, %v1685, 0
      %v1723 = vsel %vm1398, %v1686, 0
      %v1726 = vsel %vm1398, %v1687, 0
      %v1729 = vsel %vm1398, %v1688, 0
      %v1732 = vsel %vm1398, %v1689, 0
      %v1735 = vsel %vm1398, %v1690, 0
      %v1738 = vsel %vm1398, %v1691, 0
      %v1741 = vsel %vm1447, %v944, 0
      %1743 = vmatprep.subr.bf16.mxu0 0
      %1744 = vmatpush1.bf16.msra.mxu0 %v1741
      %1745 = vmatprep.subr.bf16.mxu0 0
      %1746 = vmatpush1.bf16.msra.mxu0 0
      %1747 = vmatprep.subr.bf16.mxu0 0
      %1748 = vmatpush1.bf16.msra.mxu0 0
      %1749 = vmatprep.subr.bf16.mxu0 0
      %1750 = vmatpush1.bf16.msra.mxu0 0
      %1751 = vmatprep.subr.bf16.mxu0 0
      %1752 = vmatpush1.bf16.msra.mxu0 0
      %1753 = vmatprep.subr.bf16.mxu0 0
      %1754 = vmatpush1.bf16.msra.mxu0 0
      %1755 = vmatprep.subr.bf16.mxu0 0
      %1756 = vmatpush1.bf16.msra.mxu0 0
      %1757 = vmatprep.subr.bf16.mxu0 0
      %1758 = vmatpush1.bf16.msra.mxu0 0
      %1759 = vmatprep.subr.bf16.mxu0 0
      %1760 = vmatpush1.bf16.msra.mxu0 0
      %1761 = vmatprep.subr.bf16.mxu0 0
      %1762 = vmatpush1.bf16.msra.mxu0 0
      %1763 = vmatprep.subr.bf16.mxu0 0
      %1764 = vmatpush1.bf16.msra.mxu0 0
      %1765 = vmatprep.subr.bf16.mxu0 0
      %1766 = vmatpush1.bf16.msra.mxu0 0
      %1767 = vmatprep.subr.bf16.mxu0 0
      %1768 = vmatpush1.bf16.msra.mxu0 0
      %1769 = vmatprep.subr.bf16.mxu0 0
      %1770 = vmatpush1.bf16.msra.mxu0 0
      %1771 = vmatprep.subr.bf16.mxu0 0
      %1772 = vmatpush1.bf16.msra.mxu0 0
      %1773 = vmatprep.subr.bf16.mxu0 0
      %1774 = vmatpush1.bf16.msra.mxu0 0
      %1775 = vmatprep.mubr.bf16.mxu0 0
      %1776 = vmatmul.mubr.bf16.gmra.mrb[0].mxu0 %v1693
      %v1777 = vpop.f32.mrb[0].mxu0
      %v1778 = vadd.f32 %v1486, %v1777
      %v1779 = vpop.f32.mrb[0].mxu0
      %v1780 = vpop.f32.mrb[0].mxu0
      %v1781 = vadd.f32 %v1489, %v1780
      %v1782 = vpop.f32.mrb[0].mxu0
      %1783 = vmatprep.mubr.bf16.mxu0 0
      %1784 = vmatmul.mubr.bf16.gmra.mrb[0].mxu0 %v1696
      %v1785 = vpop.f32.mrb[0].mxu0
      %v1786 = vadd.f32 %v1494, %v1785
      %v1787 = vpop.f32.mrb[0].mxu0
      %v1788 = vpop.f32.mrb[0].mxu0
      %v1789 = vadd.f32 %v1497, %v1788
      %v1790 = vpop.f32.mrb[0].mxu0
      %1791 = vmatprep.mubr.bf16.mxu0 0
      %1792 = vmatmul.mubr.bf16.gmra.mrb[0].mxu0 %v1699
      %v1793 = vpop.f32.mrb[0].mxu0
      %v1794 = vadd.f32 %v1502, %v1793
      %v1795 = vpop.f32.mrb[0].mxu0
      %v1796 = vpop.f32.mrb[0].mxu0
      %v1797 = vadd.f32 %v1505, %v1796
      %v1798 = vpop.f32.mrb[0].mxu0
      %1799 = vmatprep.mubr.bf16.mxu0 0
      %1800 = vmatmul.mubr.bf16.gmra.mrb[0].mxu0 %v1702
      %v1801 = vpop.f32.mrb[0].mxu0
      %v1802 = vadd.f32 %v1510, %v1801
      %v1803 = vpop.f32.mrb[0].mxu0
      %v1804 = vpop.f32.mrb[0].mxu0
      %v1805 = vadd.f32 %v1513, %v1804
      %v1806 = vpop.f32.mrb[0].mxu0
      %1807 = vmatprep.mubr.bf16.mxu0 0
      %1808 = vmatmul.mubr.bf16.gmra.mrb[0].mxu0 %v1705
      %v1809 = vpop.f32.mrb[0].mxu0
      %v1810 = vadd.f32 %v1518, %v1809
      %v1811 = vpop.f32.mrb[0].mxu0
      %v1812 = vpop.f32.mrb[0].mxu0
      %v1813 = vadd.f32 %v1521, %v1812
      %v1814 = vpop.f32.mrb[0].mxu0
      %1815 = vmatprep.mubr.bf16.mxu0 0
      %1816 = vmatmul.mubr.bf16.gmra.mrb[0].mxu0 %v1708
      %v1817 = vpop.f32.mrb[0].mxu0
      %v1818 = vadd.f32 %v1526, %v1817
      %v1819 = vpop.f32.mrb[0].mxu0
      %v1820 = vpop.f32.mrb[0].mxu0
      %v1821 = vadd.f32 %v1529, %v1820
      %v1822 = vpop.f32.mrb[0].mxu0
      %1823 = vmatprep.mubr.bf16.mxu0 0
      %1824 = vmatmul.mubr.bf16.gmra.mrb[0].mxu0 %v1711
      %v1825 = vpop.f32.mrb[0].mxu0
      %v1826 = vadd.f32 %v1534, %v1825
      %v1827 = vpop.f32.mrb[0].mxu0
      %v1828 = vpop.f32.mrb[0].mxu0
      %v1829 = vadd.f32 %v1537, %v1828
      %v1830 = vpop.f32.mrb[0].mxu0
      %1831 = vmatprep.mubr.bf16.mxu0 0
      %1832 = vmatmul.mubr.bf16.gmra.mrb[0].mxu0 %v1714
      %v1833 = vpop.f32.mrb[0].mxu0
      %v1834 = vadd.f32 %v1542, %v1833
      %v1835 = vpop.f32.mrb[0].mxu0
      %v1836 = vpop.f32.mrb[0].mxu0
      %v1837 = vadd.f32 %v1545, %v1836
      %v1838 = vpop.f32.mrb[0].mxu0
      %1839 = vmatprep.mubr.bf16.mxu0 0
      %1840 = vmatmul.mubr.bf16.gmra.mrb[0].mxu0 %v1717
      %v1841 = vpop.f32.mrb[0].mxu0
      %v1842 = vadd.f32 %v1550, %v1841
      %v1843 = vpop.f32.mrb[0].mxu0
      %v1844 = vpop.f32.mrb[0].mxu0
      %v1845 = vadd.f32 %v1553, %v1844
      %v1846 = vpop.f32.mrb[0].mxu0
      %1847 = vmatprep.mubr.bf16.mxu0 0
      %1848 = vmatmul.mubr.bf16.gmra.mrb[0].mxu0 %v1720
      %v1849 = vpop.f32.mrb[0].mxu0
      %v1850 = vadd.f32 %v1558, %v1849
      %v1851 = vpop.f32.mrb[0].mxu0
      %v1852 = vpop.f32.mrb[0].mxu0
      %v1853 = vadd.f32 %v1561, %v1852
      %v1854 = vpop.f32.mrb[0].mxu0
      %1855 = vmatprep.mubr.bf16.mxu0 0
      %1856 = vmatmul.mubr.bf16.gmra.mrb[0].mxu0 %v1723
      %v1857 = vpop.f32.mrb[0].mxu0
      %v1858 = vadd.f32 %v1566, %v1857
      %v1859 = vpop.f32.mrb[0].mxu0
      %v1860 = vpop.f32.mrb[0].mxu0
      %v1861 = vadd.f32 %v1569, %v1860
      %v1862 = vpop.f32.mrb[0].mxu0
      %1863 = vmatprep.mubr.bf16.mxu0 0
      %1864 = vmatmul.mubr.bf16.gmra.mrb[0].mxu0 %v1726
      %v1865 = vpop.f32.mrb[0].mxu0
      %v1866 = vadd.f32 %v1574, %v1865
      %v1867 = vpop.f32.mrb[0].mxu0
      %v1868 = vpop.f32.mrb[0].mxu0
      %v1869 = vadd.f32 %v1577, %v1868
      %v1870 = vpop.f32.mrb[0].mxu0
      %1871 = vmatprep.mubr.bf16.mxu0 0
      %1872 = vmatmul.mubr.bf16.gmra.mrb[0].mxu0 %v1729
      %v1873 = vpop.f32.mrb[0].mxu0
      %v1874 = vadd.f32 %v1582, %v1873
      %v1875 = vpop.f32.mrb[0].mxu0
      %v1876 = vpop.f32.mrb[0].mxu0
      %v1877 = vadd.f32 %v1585, %v1876
      %v1878 = vpop.f32.mrb[0].mxu0
      %1879 = vmatprep.mubr.bf16.mxu0 0
      %1880 = vmatmul.mubr.bf16.gmra.mrb[0].mxu0 %v1732
      %v1881 = vpop.f32.mrb[0].mxu0
      %v1882 = vadd.f32 %v1590, %v1881
      %v1883 = vpop.f32.mrb[0].mxu0
      %v1884 = vpop.f32.mrb[0].mxu0
      %v1885 = vadd.f32 %v1593, %v1884
      %v1886 = vpop.f32.mrb[0].mxu0
      %1887 = vmatprep.mubr.bf16.mxu0 0
      %1888 = vmatmul.mubr.bf16.gmra.mrb[0].mxu0 %v1735
      %v1889 = vpop.f32.mrb[0].mxu0
      %v1890 = vadd.f32 %v1598, %v1889
      %v1891 = vpop.f32.mrb[0].mxu0
      %v1892 = vpop.f32.mrb[0].mxu0
      %v1893 = vadd.f32 %v1601, %v1892
      %v1894 = vpop.f32.mrb[0].mxu0
      %1895 = vmatprep.mubr.bf16.mxu0 0
      %1896 = vmatmul.mubr.bf16.gmra.mrb[0].mxu0 %v1738
      %v1897 = vpop.f32.mrb[0].mxu0
      %v1898 = vadd.f32 %v1606, %v1897
      %v1899 = vpop.f32.mrb[0].mxu0
      %v1900 = vpop.f32.mrb[0].mxu0
      %v1901 = vadd.f32 %v1609, %v1900
      %v1902 = vpop.f32.mrb[0].mxu0
      %1903 = vdwg.mxu0
      %v1904 = vld [vmem:[#allocation2] sm:$0xe]
      %v1905 = vld [vmem:[#allocation2 + $0xc] sm:$0xe]
      %v1906 = vld [vmem:[#allocation2 + $0x18] sm:$0xe]
      %v1907 = vld [vmem:[#allocation2 + $0x24] sm:$0xe]
      %v1908 = vld [vmem:[#allocation2 + $0x30] sm:$0xe]
      %v1909 = vld [vmem:[#allocation2 + $0x3c] sm:$0xe]
      %v1910 = vld [vmem:[#allocation2 + $0x48] sm:$0xe]
      %v1911 = vld [vmem:[#allocation2 + $0x54] sm:$0xe]
      %v1912 = vld [vmem:[#allocation2 + $0x60] sm:$0xe]
      %v1913 = vld [vmem:[#allocation2 + $0x6c] sm:$0xe]
      %v1914 = vld [vmem:[#allocation2 + $0x78] sm:$0xe]
      %v1915 = vld [vmem:[#allocation2 + $0x84] sm:$0xe]
      %v1916 = vld [vmem:[#allocation2 + $0x90] sm:$0xe]
      %v1917 = vld [vmem:[#allocation2 + $0x9c] sm:$0xe]
      %v1918 = vld [vmem:[#allocation2 + $0xa8] sm:$0xe]
      %v1919 = vld [vmem:[#allocation2 + $0xb4] sm:$0xe]
      %vm1952 = vcmask 1042432
      %vm1953 = vcmask 1046532
      %vm1954 = vmor %vm1952, %vm1953
      %v1955 = vrot.slane %v1904, 5
      %v1956 = vrot.slane %v1955, 4
      %v1957 = vrot.slane %v913, 5
      %v1958 = vsel %vm1954, %v1956, %v1957
      %v1959 = vrot.slane %v1957, 4
      %v1960 = vrot.slane %v945, 5
      %v1961 = vsel %vm1954, %v1959, %v1960
      %v1962 = vrot.slane %v1905, 5
      %v1963 = vrot.slane %v1962, 4
      %v1964 = vrot.slane %v915, 5
      %v1965 = vsel %vm1954, %v1963, %v1964
      %v1966 = vrot.slane %v1964, 4
      %v1967 = vrot.slane %v946, 5
      %v1968 = vsel %vm1954, %v1966, %v1967
      %v1969 = vrot.slane %v1906, 5
      %v1970 = vrot.slane %v1969, 4
      %v1971 = vrot.slane %v917, 5
      %v1972 = vsel %vm1954, %v1970, %v1971
      %v1973 = vrot.slane %v1971, 4
      %v1974 = vrot.slane %v947, 5
      %v1975 = vsel %vm1954, %v1973, %v1974
      %v1976 = vrot.slane %v1907, 5
      %v1977 = vrot.slane %v1976, 4
      %v1978 = vrot.slane %v919, 5
      %v1979 = vsel %vm1954, %v1977, %v1978
      %v1980 = vrot.slane %v1978, 4
      %v1981 = vrot.slane %v948, 5
      %v1982 = vsel %vm1954, %v1980, %v1981
      %v1983 = vrot.slane %v1908, 5
      %v1984 = vrot.slane %v1983, 4
      %v1985 = vrot.slane %v921, 5
      %v1986 = vsel %vm1954, %v1984, %v1985
      %v1987 = vrot.slane %v1985, 4
      %v1988 = vrot.slane %v949, 5
      %v1989 = vsel %vm1954, %v1987, %v1988
      %v1990 = vrot.slane %v1909, 5
      %v1991 = vrot.slane %v1990, 4
      %v1992 = vrot.slane %v923, 5
      %v1993 = vsel %vm1954, %v1991, %v1992
      %v1994 = vrot.slane %v1992, 4
      %v1995 = vrot.slane %v950, 5
      %v1996 = vsel %vm1954, %v1994, %v1995
      %v1997 = vrot.slane %v1910, 5
      %v1998 = vrot.slane %v1997, 4
      %v1999 = vrot.slane %v925, 5
      %v2000 = vsel %vm1954, %v1998, %v1999
      %v2001 = vrot.slane %v1999, 4
      %v2002 = vrot.slane %v951, 5
      %v2003 = vsel %vm1954, %v2001, %v2002
      %v2004 = vrot.slane %v1911, 5
      %v2005 = vrot.slane %v2004, 4
      %v2006 = vrot.slane %v927, 5
      %v2007 = vsel %vm1954, %v2005, %v2006
      %v2008 = vrot.slane %v2006, 4
      %v2009 = vrot.slane %v952, 5
      %v2010 = vsel %vm1954, %v2008, %v2009
      %v2011 = vrot.slane %v1912, 5
      %v2012 = vrot.slane %v2011, 4
      %v2013 = vrot.slane %v929, 5
      %v2014 = vsel %vm1954, %v2012, %v2013
      %v2015 = vrot.slane %v2013, 4
      %v2016 = vrot.slane %v953, 5
      %v2017 = vsel %vm1954, %v2015, %v2016
      %v2018 = vrot.slane %v1913, 5
      %v2019 = vrot.slane %v2018, 4
      %v2020 = vrot.slane %v931, 5
      %v2021 = vsel %vm1954, %v2019, %v2020
      %v2022 = vrot.slane %v2020, 4
      %v2023 = vrot.slane %v954, 5
      %v2024 = vsel %vm1954, %v2022, %v2023
      %v2025 = vrot.slane %v1914, 5
      %v2026 = vrot.slane %v2025, 4
      %v2027 = vrot.slane %v933, 5
      %v2028 = vsel %vm1954, %v2026, %v2027
      %v2029 = vrot.slane %v2027, 4
      %v2030 = vrot.slane %v955, 5
      %v2031 = vsel %vm1954, %v2029, %v2030
      %v2032 = vrot.slane %v1915, 5
      %v2033 = vrot.slane %v2032, 4
      %v2034 = vrot.slane %v935, 5
      %v2035 = vsel %vm1954, %v2033, %v2034
      %v2036 = vrot.slane %v2034, 4
      %v2037 = vrot.slane %v956, 5
      %v2038 = vsel %vm1954, %v2036, %v2037
      %v2039 = vrot.slane %v1916, 5
      %v2040 = vrot.slane %v2039, 4
      %v2041 = vrot.slane %v937, 5
      %v2042 = vsel %vm1954, %v2040, %v2041
      %v2043 = vrot.slane %v2041, 4
      %v2044 = vrot.slane %v957, 5
      %v2045 = vsel %vm1954, %v2043, %v2044
      %v2046 = vrot.slane %v1917, 5
      %v2047 = vrot.slane %v2046, 4
      %v2048 = vrot.slane %v939, 5
      %v2049 = vsel %vm1954, %v2047, %v2048
      %v2050 = vrot.slane %v2048, 4
      %v2051 = vrot.slane %v958, 5
      %v2052 = vsel %vm1954, %v2050, %v2051
      %v2053 = vrot.slane %v1918, 5
      %v2054 = vrot.slane %v2053, 4
      %v2055 = vrot.slane %v941, 5
      %v2056 = vsel %vm1954, %v2054, %v2055
      %v2057 = vrot.slane %v2055, 4
      %v2058 = vrot.slane %v959, 5
      %v2059 = vsel %vm1954, %v2057, %v2058
      %v2060 = vrot.slane %v1919, 5
      %v2061 = vrot.slane %v2060, 4
      %v2062 = vrot.slane %v943, 5
      %v2063 = vsel %vm1954, %v2061, %v2062
      %v2064 = vrot.slane %v2062, 4
      %v2065 = vrot.slane %v960, 5
      %v2066 = vsel %vm1954, %v2064, %v2065
      %s2067 = scalar_lea.vmem %s3, 4
      %v2068 = vld [vmem:[%s2067] sm:$0x3]
      %v2069 = vunpack.c.l.b16 %v1958
      %v2070 = vunpack.c.l.b16 %v1961
      %v2071 = vunpack.c.l.b16 %v1965
      %v2072 = vunpack.c.l.b16 %v1968
      %v2073 = vunpack.c.l.b16 %v1972
      %v2074 = vunpack.c.l.b16 %v1975
      %v2075 = vunpack.c.l.b16 %v1979
      %v2076 = vunpack.c.l.b16 %v1982
      %v2077 = vunpack.c.l.b16 %v1986
      %v2078 = vunpack.c.l.b16 %v1989
      %v2079 = vunpack.c.l.b16 %v1993
      %v2080 = vunpack.c.l.b16 %v1996
      %v2081 = vunpack.c.l.b16 %v2000
      %v2082 = vunpack.c.l.b16 %v2003
      %v2083 = vunpack.c.l.b16 %v2007
      %v2084 = vunpack.c.l.b16 %v2010
      %v2085 = vunpack.c.l.b16 %v2014
      %v2086 = vunpack.c.l.b16 %v2017
      %v2087 = vunpack.c.l.b16 %v2021
      %v2088 = vunpack.c.l.b16 %v2024
      %v2089 = vunpack.c.l.b16 %v2028
      %v2090 = vunpack.c.l.b16 %v2031
      %v2091 = vunpack.c.l.b16 %v2035
      %v2092 = vunpack.c.l.b16 %v2038
      %v2093 = vunpack.c.l.b16 %v2042
      %v2094 = vunpack.c.l.b16 %v2045
      %v2095 = vunpack.c.l.b16 %v2049
      %v2096 = vunpack.c.l.b16 %v2052
      %v2097 = vunpack.c.l.b16 %v2056
      %v2098 = vunpack.c.l.b16 %v2059
      %v2099 = vunpack.c.l.b16 %v2063
      %v2100 = vunpack.c.l.b16 %v2066
      %v2101 = vpack.c.b16 %v2070, %v2069
      %v2102 = vpack.c.b16 %v2072, %v2071
      %v2103 = vpack.c.b16 %v2074, %v2073
      %v2104 = vpack.c.b16 %v2076, %v2075
      %v2105 = vpack.c.b16 %v2078, %v2077
      %v2106 = vpack.c.b16 %v2080, %v2079
      %v2107 = vpack.c.b16 %v2082, %v2081
      %v2108 = vpack.c.b16 %v2084, %v2083
      %v2109 = vpack.c.b16 %v2086, %v2085
      %v2110 = vpack.c.b16 %v2088, %v2087
      %v2111 = vpack.c.b16 %v2090, %v2089
      %v2112 = vpack.c.b16 %v2092, %v2091
      %v2113 = vpack.c.b16 %v2094, %v2093
      %v2114 = vpack.c.b16 %v2096, %v2095
      %v2115 = vpack.c.b16 %v2098, %v2097
      %v2116 = vpack.c.b16 %v2100, %v2099
      %v2118 = vsel %vm1398, %v2101, 0
      %v2121 = vsel %vm1398, %v2102, 0
      %v2124 = vsel %vm1398, %v2103, 0
      %v2127 = vsel %vm1398, %v2104, 0
      %v2130 = vsel %vm1398, %v2105, 0
      %v2133 = vsel %vm1398, %v2106, 0
      %v2136 = vsel %vm1398, %v2107, 0
      %v2139 = vsel %vm1398, %v2108, 0
      %v2142 = vsel %vm1398, %v2109, 0
      %v2145 = vsel %vm1398, %v2110, 0
      %v2148 = vsel %vm1398, %v2111, 0
      %v2151 = vsel %vm1398, %v2112, 0
      %v2154 = vsel %vm1398, %v2113, 0
      %v2157 = vsel %vm1398, %v2114, 0
      %v2160 = vsel %vm1398, %v2115, 0
      %v2163 = vsel %vm1398, %v2116, 0
      %v2166 = vsel %vm1447, %v2068, 0
      %2168 = vmatprep.subr.bf16.mxu0 0
      %2169 = vmatpush1.bf16.msra.mxu0 %v2166
      %2170 = vmatprep.subr.bf16.mxu0 0
      %2171 = vmatpush1.bf16.msra.mxu0 0
      %2172 = vmatprep.subr.bf16.mxu0 0
      %2173 = vmatpush1.bf16.msra.mxu0 0
      %2174 = vmatprep.subr.bf16.mxu0 0
      %2175 = vmatpush1.bf16.msra.mxu0 0
      %2176 = vmatprep.subr.bf16.mxu0 0
      %2177 = vmatpush1.bf16.msra.mxu0 0
      %2178 = vmatprep.subr.bf16.mxu0 0
      %2179 = vmatpush1.bf16.msra.mxu0 0
      %2180 = vmatprep.subr.bf16.mxu0 0
      %2181 = vmatpush1.bf16.msra.mxu0 0
      %2182 = vmatprep.subr.bf16.mxu0 0
      %2183 = vmatpush1.bf16.msra.mxu0 0
      %2184 = vmatprep.subr.bf16.mxu0 0
      %2185 = vmatpush1.bf16.msra.mxu0 0
      %2186 = vmatprep.subr.bf16.mxu0 0
      %2187 = vmatpush1.bf16.msra.mxu0 0
      %2188 = vmatprep.subr.bf16.mxu0 0
      %2189 = vmatpush1.bf16.msra.mxu0 0
      %2190 = vmatprep.subr.bf16.mxu0 0
      %2191 = vmatpush1.bf16.msra.mxu0 0
      %2192 = vmatprep.subr.bf16.mxu0 0
      %2193 = vmatpush1.bf16.msra.mxu0 0
      %2194 = vmatprep.subr.bf16.mxu0 0
      %2195 = vmatpush1.bf16.msra.mxu0 0
      %2196 = vmatprep.subr.bf16.mxu0 0
      %2197 = vmatpush1.bf16.msra.mxu0 0
      %2198 = vmatprep.subr.bf16.mxu0 0
      %2199 = vmatpush1.bf16.msra.mxu0 0
      %2200 = vmatprep.mubr.bf16.mxu0 0
      %2201 = vmatmul.mubr.bf16.gmra.mrb[0].mxu0 %v2118
      %v2202 = vpop.f32.mrb[0].mxu0
      %v2203 = vadd.f32 0.0, %v2202
      %v2204 = vpop.f32.mrb[0].mxu0
      %v2205 = vpop.f32.mrb[0].mxu0
      %v2206 = vadd.f32 0.0, %v2205
      %v2207 = vpop.f32.mrb[0].mxu0
      %2208 = vmatprep.mubr.bf16.mxu0 0
      %2209 = vmatmul.mubr.bf16.gmra.mrb[0].mxu0 %v2121
      %v2210 = vpop.f32.mrb[0].mxu0
      %v2211 = vadd.f32 0.0, %v2210
      %v2212 = vpop.f32.mrb[0].mxu0
      %v2213 = vpop.f32.mrb[0].mxu0
      %v2214 = vadd.f32 0.0, %v2213
      %v2215 = vpop.f32.mrb[0].mxu0
      %2216 = vmatprep.mubr.bf16.mxu0 0
      %2217 = vmatmul.mubr.bf16.gmra.mrb[0].mxu0 %v2124
      %v2218 = vpop.f32.mrb[0].mxu0
      %v2219 = vadd.f32 0.0, %v2218
      %v2220 = vpop.f32.mrb[0].mxu0
      %v2221 = vpop.f32.mrb[0].mxu0
      %v2222 = vadd.f32 0.0, %v2221
      %v2223 = vpop.f32.mrb[0].mxu0
      %2224 = vmatprep.mubr.bf16.mxu0 0
      %2225 = vmatmul.mubr.bf16.gmra.mrb[0].mxu0 %v2127
      %v2226 = vpop.f32.mrb[0].mxu0
      %v2227 = vadd.f32 0.0, %v2226
      %v2228 = vpop.f32.mrb[0].mxu0
      %v2229 = vpop.f32.mrb[0].mxu0
      %v2230 = vadd.f32 0.0, %v2229
      %v2231 = vpop.f32.mrb[0].mxu0
      %2232 = vmatprep.mubr.bf16.mxu0 0
      %2233 = vmatmul.mubr.bf16.gmra.mrb[0].mxu0 %v2130
      %v2234 = vpop.f32.mrb[0].mxu0
      %v2235 = vadd.f32 0.0, %v2234
      %v2236 = vpop.f32.mrb[0].mxu0
      %v2237 = vpop.f32.mrb[0].mxu0
      %v2238 = vadd.f32 0.0, %v2237
      %v2239 = vpop.f32.mrb[0].mxu0
      %2240 = vmatprep.mubr.bf16.mxu0 0
      %2241 = vmatmul.mubr.bf16.gmra.mrb[0].mxu0 %v2133
      %v2242 = vpop.f32.mrb[0].mxu0
      %v2243 = vadd.f32 0.0, %v2242
      %v2244 = vpop.f32.mrb[0].mxu0
      %v2245 = vpop.f32.mrb[0].mxu0
      %v2246 = vadd.f32 0.0, %v2245
      %v2247 = vpop.f32.mrb[0].mxu0
      %2248 = vmatprep.mubr.bf16.mxu0 0
      %2249 = vmatmul.mubr.bf16.gmra.mrb[0].mxu0 %v2136
      %v2250 = vpop.f32.mrb[0].mxu0
      %v2251 = vadd.f32 0.0, %v2250
      %v2252 = vpop.f32.mrb[0].mxu0
      %v2253 = vpop.f32.mrb[0].mxu0
      %v2254 = vadd.f32 0.0, %v2253
      %v2255 = vpop.f32.mrb[0].mxu0
      %2256 = vmatprep.mubr.bf16.mxu0 0
      %2257 = vmatmul.mubr.bf16.gmra.mrb[0].mxu0 %v2139
      %v2258 = vpop.f32.mrb[0].mxu0
      %v2259 = vadd.f32 0.0, %v2258
      %v2260 = vpop.f32.mrb[0].mxu0
      %v2261 = vpop.f32.mrb[0].mxu0
      %v2262 = vadd.f32 0.0, %v2261
      %v2263 = vpop.f32.mrb[0].mxu0
      %2264 = vmatprep.mubr.bf16.mxu0 0
      %2265 = vmatmul.mubr.bf16.gmra.mrb[0].mxu0 %v2142
      %v2266 = vpop.f32.mrb[0].mxu0
      %v2267 = vadd.f32 0.0, %v2266
      %v2268 = vpop.f32.mrb[0].mxu0
      %v2269 = vpop.f32.mrb[0].mxu0
      %v2270 = vadd.f32 0.0, %v2269
      %v2271 = vpop.f32.mrb[0].mxu0
      %2272 = vmatprep.mubr.bf16.mxu0 0
      %2273 = vmatmul.mubr.bf16.gmra.mrb[0].mxu0 %v2145
      %v2274 = vpop.f32.mrb[0].mxu0
      %v2275 = vadd.f32 0.0, %v2274
      %v2276 = vpop.f32.mrb[0].mxu0
      %v2277 = vpop.f32.mrb[0].mxu0
      %v2278 = vadd.f32 0.0, %v2277
      %v2279 = vpop.f32.mrb[0].mxu0
      %2280 = vmatprep.mubr.bf16.mxu0 0
      %2281 = vmatmul.mubr.bf16.gmra.mrb[0].mxu0 %v2148
      %v2282 = vpop.f32.mrb[0].mxu0
      %v2283 = vadd.f32 0.0, %v2282
      %v2284 = vpop.f32.mrb[0].mxu0
      %v2285 = vpop.f32.mrb[0].mxu0
      %v2286 = vadd.f32 0.0, %v2285
      %v2287 = vpop.f32.mrb[0].mxu0
      %2288 = vmatprep.mubr.bf16.mxu0 0
      %2289 = vmatmul.mubr.bf16.gmra.mrb[0].mxu0 %v2151
      %v2290 = vpop.f32.mrb[0].mxu0
      %v2291 = vadd.f32 0.0, %v2290
      %v2292 = vpop.f32.mrb[0].mxu0
      %v2293 = vpop.f32.mrb[0].mxu0
      %v2294 = vadd.f32 0.0, %v2293
      %v2295 = vpop.f32.mrb[0].mxu0
      %2296 = vmatprep.mubr.bf16.mxu0 0
      %2297 = vmatmul.mubr.bf16.gmra.mrb[0].mxu0 %v2154
      %v2298 = vpop.f32.mrb[0].mxu0
      %v2299 = vadd.f32 0.0, %v2298
      %v2300 = vpop.f32.mrb[0].mxu0
      %v2301 = vpop.f32.mrb[0].mxu0
      %v2302 = vadd.f32 0.0, %v2301
      %v2303 = vpop.f32.mrb[0].mxu0
      %2304 = vmatprep.mubr.bf16.mxu0 0
      %2305 = vmatmul.mubr.bf16.gmra.mrb[0].mxu0 %v2157
      %v2306 = vpop.f32.mrb[0].mxu0
      %v2307 = vadd.f32 0.0, %v2306
      %v2308 = vpop.f32.mrb[0].mxu0
      %v2309 = vpop.f32.mrb[0].mxu0
      %v2310 = vadd.f32 0.0, %v2309
      %v2311 = vpop.f32.mrb[0].mxu0
      %2312 = vmatprep.mubr.bf16.mxu0 0
      %2313 = vmatmul.mubr.bf16.gmra.mrb[0].mxu0 %v2160
      %v2314 = vpop.f32.mrb[0].mxu0
      %v2315 = vadd.f32 0.0, %v2314
      %v2316 = vpop.f32.mrb[0].mxu0
      %v2317 = vpop.f32.mrb[0].mxu0
      %v2318 = vadd.f32 0.0, %v2317
      %v2319 = vpop.f32.mrb[0].mxu0
      %2320 = vmatprep.mubr.bf16.mxu0 0
      %2321 = vmatmul.mubr.bf16.gmra.mrb[0].mxu0 %v2163
      %v2322 = vpop.f32.mrb[0].mxu0
      %v2323 = vadd.f32 0.0, %v2322
      %v2324 = vpop.f32.mrb[0].mxu0
      %v2325 = vpop.f32.mrb[0].mxu0
      %v2326 = vadd.f32 0.0, %v2325
      %v2327 = vpop.f32.mrb[0].mxu0
      %2328 = vdwg.mxu0
      %v2329 = vadd.f32 %v1778, %v2203
      %v2330 = vadd.f32 %v1781, %v2206
      %v2331 = vadd.f32 %v1786, %v2211
      %v2332 = vadd.f32 %v1789, %v2214
      %v2333 = vadd.f32 %v1794, %v2219
      %v2334 = vadd.f32 %v1797, %v2222
      %v2335 = vadd.f32 %v1802, %v2227
      %v2336 = vadd.f32 %v1805, %v2230
      %v2337 = vadd.f32 %v1810, %v2235
      %v2338 = vadd.f32 %v1813, %v2238
      %v2339 = vadd.f32 %v1818, %v2243
      %v2340 = vadd.f32 %v1821, %v2246
      %v2341 = vadd.f32 %v1826, %v2251
      %v2342 = vadd.f32 %v1829, %v2254
      %v2343 = vadd.f32 %v1834, %v2259
      %v2344 = vadd.f32 %v1837, %v2262
      %v2345 = vadd.f32 %v1842, %v2267
      %v2346 = vadd.f32 %v1845, %v2270
      %v2347 = vadd.f32 %v1850, %v2275
      %v2348 = vadd.f32 %v1853, %v2278
      %v2349 = vadd.f32 %v1858, %v2283
      %v2350 = vadd.f32 %v1861, %v2286
      %v2351 = vadd.f32 %v1866, %v2291
      %v2352 = vadd.f32 %v1869, %v2294
      %v2353 = vadd.f32 %v1874, %v2299
      %v2354 = vadd.f32 %v1877, %v2302
      %v2355 = vadd.f32 %v1882, %v2307
      %v2356 = vadd.f32 %v1885, %v2310
      %v2357 = vadd.f32 %v1890, %v2315
      %v2358 = vadd.f32 %v1893, %v2318
      %v2359 = vadd.f32 %v1898, %v2323
      %v2360 = vadd.f32 %v1901, %v2326
      %v2361 = vld [vmem:[%s294] sm:$0xf]
      %v2362 = vld [vmem:[%s294 + $0x4] sm:$0xf]
      %v2363 = vld [vmem:[%s294 + $0xc] sm:$0xf]
      %v2364 = vld [vmem:[%s294 + $0x10] sm:$0xf]
      %v2365 = vld [vmem:[%s294 + $0x18] sm:$0xf]
      %v2366 = vld [vmem:[%s294 + $0x1c] sm:$0xf]
      %v2367 = vld [vmem:[%s294 + $0x24] sm:$0xf]
      %v2368 = vld [vmem:[%s294 + $0x28] sm:$0xf]
      %v2369 = vld [vmem:[%s294 + $0x30] sm:$0xf]
      %v2370 = vld [vmem:[%s294 + $0x34] sm:$0xf]
      %v2371 = vld [vmem:[%s294 + $0x3c] sm:$0xf]
      %v2372 = vld [vmem:[%s294 + $0x40] sm:$0xf]
      %v2373 = vld [vmem:[%s294 + $0x48] sm:$0xf]
      %v2374 = vld [vmem:[%s294 + $0x4c] sm:$0xf]
      %v2375 = vld [vmem:[%s294 + $0x54] sm:$0xf]
      %v2376 = vld [vmem:[%s294 + $0x58] sm:$0xf]
      %v2377 = vld [vmem:[%s294 + $0x60] sm:$0xf]
      %v2378 = vld [vmem:[%s294 + $0x64] sm:$0xf]
      %v2379 = vld [vmem:[%s294 + $0x6c] sm:$0xf]
      %v2380 = vld [vmem:[%s294 + $0x70] sm:$0xf]
      %v2381 = vld [vmem:[%s294 + $0x78] sm:$0xf]
      %v2382 = vld [vmem:[%s294 + $0x7c] sm:$0xf]
      %v2383 = vld [vmem:[%s294 + $0x84] sm:$0xf]
      %v2384 = vld [vmem:[%s294 + $0x88] sm:$0xf]
      %v2385 = vld [vmem:[%s294 + $0x90] sm:$0xf]
      %v2386 = vld [vmem:[%s294 + $0x94] sm:$0xf]
      %v2387 = vld [vmem:[%s294 + $0x9c] sm:$0xf]
      %v2388 = vld [vmem:[%s294 + $0xa0] sm:$0xf]
      %v2389 = vld [vmem:[%s294 + $0xa8] sm:$0xf]
      %v2390 = vld [vmem:[%s294 + $0xac] sm:$0xf]
      %v2391 = vld [vmem:[%s294 + $0xb4] sm:$0xf]
      %v2392 = vld [vmem:[%s294 + $0xb8] sm:$0xf]
      %s2393 = scalar_lea.vmem %s3, 6
      %v2394 = vld [vmem:[%s2393] sm:$0x3]
      %v2427 = vunpack.c.l.b16 %v2361
      %v2428 = vunpack.c.l.b16 %v2362
      %v2429 = vunpack.c.l.b16 %v2363
      %v2430 = vunpack.c.l.b16 %v2364
      %v2431 = vunpack.c.l.b16 %v2365
      %v2432 = vunpack.c.l.b16 %v2366
      %v2433 = vunpack.c.l.b16 %v2367
      %v2434 = vunpack.c.l.b16 %v2368
      %v2435 = vunpack.c.l.b16 %v2369
      %v2436 = vunpack.c.l.b16 %v2370
      %v2437 = vunpack.c.l.b16 %v2371
      %v2438 = vunpack.c.l.b16 %v2372
      %v2439 = vunpack.c.l.b16 %v2373
      %v2440 = vunpack.c.l.b16 %v2374
      %v2441 = vunpack.c.l.b16 %v2375
      %v2442 = vunpack.c.l.b16 %v2376
      %v2443 = vunpack.c.l.b16 %v2377
      %v2444 = vunpack.c.l.b16 %v2378
      %v2445 = vunpack.c.l.b16 %v2379
      %v2446 = vunpack.c.l.b16 %v2380
      %v2447 = vunpack.c.l.b16 %v2381
      %v2448 = vunpack.c.l.b16 %v2382
      %v2449 = vunpack.c.l.b16 %v2383
      %v2450 = vunpack.c.l.b16 %v2384
      %v2451 = vunpack.c.l.b16 %v2385
      %v2452 = vunpack.c.l.b16 %v2386
      %v2453 = vunpack.c.l.b16 %v2387
      %v2454 = vunpack.c.l.b16 %v2388
      %v2455 = vunpack.c.l.b16 %v2389
      %v2456 = vunpack.c.l.b16 %v2390
      %v2457 = vunpack.c.l.b16 %v2391
      %v2458 = vunpack.c.l.b16 %v2392
      %v2459 = vpack.c.b16 %v2428, %v2427
      %v2460 = vpack.c.b16 %v2430, %v2429
      %v2461 = vpack.c.b16 %v2432, %v2431
      %v2462 = vpack.c.b16 %v2434, %v2433
      %v2463 = vpack.c.b16 %v2436, %v2435
      %v2464 = vpack.c.b16 %v2438, %v2437
      %v2465 = vpack.c.b16 %v2440, %v2439
      %v2466 = vpack.c.b16 %v2442, %v2441
      %v2467 = vpack.c.b16 %v2444, %v2443
      %v2468 = vpack.c.b16 %v2446, %v2445
      %v2469 = vpack.c.b16 %v2448, %v2447
      %v2470 = vpack.c.b16 %v2450, %v2449
      %v2471 = vpack.c.b16 %v2452, %v2451
      %v2472 = vpack.c.b16 %v2454, %v2453
      %v2473 = vpack.c.b16 %v2456, %v2455
      %v2474 = vpack.c.b16 %v2458, %v2457
      %v2476 = vsel %vm1398, %v2459, 0
      %v2479 = vsel %vm1398, %v2460, 0
      %v2482 = vsel %vm1398, %v2461, 0
      %v2485 = vsel %vm1398, %v2462, 0
      %v2488 = vsel %vm1398, %v2463, 0
      %v2491 = vsel %vm1398, %v2464, 0
      %v2494 = vsel %vm1398, %v2465, 0
      %v2497 = vsel %vm1398, %v2466, 0
      %v2500 = vsel %vm1398, %v2467, 0
      %v2503 = vsel %vm1398, %v2468, 0
      %v2506 = vsel %vm1398, %v2469, 0
      %v2509 = vsel %vm1398, %v2470, 0
      %v2512 = vsel %vm1398, %v2471, 0
      %v2515 = vsel %vm1398, %v2472, 0
      %v2518 = vsel %vm1398, %v2473, 0
      %v2521 = vsel %vm1398, %v2474, 0
      %v2524 = vsel %vm1447, %v2394, 0
      %2526 = vmatprep.subr.bf16.mxu0 0
      %2527 = vmatpush1.bf16.msra.mxu0 %v2524
      %2528 = vmatprep.subr.bf16.mxu0 0
      %2529 = vmatpush1.bf16.msra.mxu0 0
      %2530 = vmatprep.subr.bf16.mxu0 0
      %2531 = vmatpush1.bf16.msra.mxu0 0
      %2532 = vmatprep.subr.bf16.mxu0 0
      %2533 = vmatpush1.bf16.msra.mxu0 0
      %2534 = vmatprep.subr.bf16.mxu0 0
      %2535 = vmatpush1.bf16.msra.mxu0 0
      %2536 = vmatprep.subr.bf16.mxu0 0
      %2537 = vmatpush1.bf16.msra.mxu0 0
      %2538 = vmatprep.subr.bf16.mxu0 0
      %2539 = vmatpush1.bf16.msra.mxu0 0
      %2540 = vmatprep.subr.bf16.mxu0 0
      %2541 = vmatpush1.bf16.msra.mxu0 0
      %2542 = vmatprep.subr.bf16.mxu0 0
      %2543 = vmatpush1.bf16.msra.mxu0 0
      %2544 = vmatprep.subr.bf16.mxu0 0
      %2545 = vmatpush1.bf16.msra.mxu0 0
      %2546 = vmatprep.subr.bf16.mxu0 0
      %2547 = vmatpush1.bf16.msra.mxu0 0
      %2548 = vmatprep.subr.bf16.mxu0 0
      %2549 = vmatpush1.bf16.msra.mxu0 0
      %2550 = vmatprep.subr.bf16.mxu0 0
      %2551 = vmatpush1.bf16.msra.mxu0 0
      %2552 = vmatprep.subr.bf16.mxu0 0
      %2553 = vmatpush1.bf16.msra.mxu0 0
      %2554 = vmatprep.subr.bf16.mxu0 0
      %2555 = vmatpush1.bf16.msra.mxu0 0
      %2556 = vmatprep.subr.bf16.mxu0 0
      %2557 = vmatpush1.bf16.msra.mxu0 0
      %2558 = vmatprep.mubr.bf16.mxu0 0
      %2559 = vmatmul.mubr.bf16.gmra.mrb[0].mxu0 %v2476
      %v2560 = vpop.f32.mrb[0].mxu0
      %v2561 = vadd.f32 0.0, %v2560
      %v2562 = vpop.f32.mrb[0].mxu0
      %v2563 = vpop.f32.mrb[0].mxu0
      %v2564 = vadd.f32 0.0, %v2563
      %v2565 = vpop.f32.mrb[0].mxu0
      %2566 = vmatprep.mubr.bf16.mxu0 0
      %2567 = vmatmul.mubr.bf16.gmra.mrb[0].mxu0 %v2479
      %v2568 = vpop.f32.mrb[0].mxu0
      %v2569 = vadd.f32 0.0, %v2568
      %v2570 = vpop.f32.mrb[0].mxu0
      %v2571 = vpop.f32.mrb[0].mxu0
      %v2572 = vadd.f32 0.0, %v2571
      %v2573 = vpop.f32.mrb[0].mxu0
      %2574 = vmatprep.mubr.bf16.mxu0 0
      %2575 = vmatmul.mubr.bf16.gmra.mrb[0].mxu0 %v2482
      %v2576 = vpop.f32.mrb[0].mxu0
      %v2577 = vadd.f32 0.0, %v2576
      %v2578 = vpop.f32.mrb[0].mxu0
      %v2579 = vpop.f32.mrb[0].mxu0
      %v2580 = vadd.f32 0.0, %v2579
      %v2581 = vpop.f32.mrb[0].mxu0
      %2582 = vmatprep.mubr.bf16.mxu0 0
      %2583 = vmatmul.mubr.bf16.gmra.mrb[0].mxu0 %v2485
      %v2584 = vpop.f32.mrb[0].mxu0
      %v2585 = vadd.f32 0.0, %v2584
      %v2586 = vpop.f32.mrb[0].mxu0
      %v2587 = vpop.f32.mrb[0].mxu0
      %v2588 = vadd.f32 0.0, %v2587
      %v2589 = vpop.f32.mrb[0].mxu0
      %2590 = vmatprep.mubr.bf16.mxu0 0
      %2591 = vmatmul.mubr.bf16.gmra.mrb[0].mxu0 %v2488
      %v2592 = vpop.f32.mrb[0].mxu0
      %v2593 = vadd.f32 0.0, %v2592
      %v2594 = vpop.f32.mrb[0].mxu0
      %v2595 = vpop.f32.mrb[0].mxu0
      %v2596 = vadd.f32 0.0, %v2595
      %v2597 = vpop.f32.mrb[0].mxu0
      %2598 = vmatprep.mubr.bf16.mxu0 0
      %2599 = vmatmul.mubr.bf16.gmra.mrb[0].mxu0 %v2491
      %v2600 = vpop.f32.mrb[0].mxu0
      %v2601 = vadd.f32 0.0, %v2600
      %v2602 = vpop.f32.mrb[0].mxu0
      %v2603 = vpop.f32.mrb[0].mxu0
      %v2604 = vadd.f32 0.0, %v2603
      %v2605 = vpop.f32.mrb[0].mxu0
      %2606 = vmatprep.mubr.bf16.mxu0 0
      %2607 = vmatmul.mubr.bf16.gmra.mrb[0].mxu0 %v2494
      %v2608 = vpop.f32.mrb[0].mxu0
      %v2609 = vadd.f32 0.0, %v2608
      %v2610 = vpop.f32.mrb[0].mxu0
      %v2611 = vpop.f32.mrb[0].mxu0
      %v2612 = vadd.f32 0.0, %v2611
      %v2613 = vpop.f32.mrb[0].mxu0
      %2614 = vmatprep.mubr.bf16.mxu0 0
      %2615 = vmatmul.mubr.bf16.gmra.mrb[0].mxu0 %v2497
      %v2616 = vpop.f32.mrb[0].mxu0
      %v2617 = vadd.f32 0.0, %v2616
      %v2618 = vpop.f32.mrb[0].mxu0
      %v2619 = vpop.f32.mrb[0].mxu0
      %v2620 = vadd.f32 0.0, %v2619
      %v2621 = vpop.f32.mrb[0].mxu0
      %2622 = vmatprep.mubr.bf16.mxu0 0
      %2623 = vmatmul.mubr.bf16.gmra.mrb[0].mxu0 %v2500
      %v2624 = vpop.f32.mrb[0].mxu0
      %v2625 = vadd.f32 0.0, %v2624
      %v2626 = vpop.f32.mrb[0].mxu0
      %v2627 = vpop.f32.mrb[0].mxu0
      %v2628 = vadd.f32 0.0, %v2627
      %v2629 = vpop.f32.mrb[0].mxu0
      %2630 = vmatprep.mubr.bf16.mxu0 0
      %2631 = vmatmul.mubr.bf16.gmra.mrb[0].mxu0 %v2503
      %v2632 = vpop.f32.mrb[0].mxu0
      %v2633 = vadd.f32 0.0, %v2632
      %v2634 = vpop.f32.mrb[0].mxu0
      %v2635 = vpop.f32.mrb[0].mxu0
      %v2636 = vadd.f32 0.0, %v2635
      %v2637 = vpop.f32.mrb[0].mxu0
      %2638 = vmatprep.mubr.bf16.mxu0 0
      %2639 = vmatmul.mubr.bf16.gmra.mrb[0].mxu0 %v2506
      %v2640 = vpop.f32.mrb[0].mxu0
      %v2641 = vadd.f32 0.0, %v2640
      %v2642 = vpop.f32.mrb[0].mxu0
      %v2643 = vpop.f32.mrb[0].mxu0
      %v2644 = vadd.f32 0.0, %v2643
      %v2645 = vpop.f32.mrb[0].mxu0
      %2646 = vmatprep.mubr.bf16.mxu0 0
      %2647 = vmatmul.mubr.bf16.gmra.mrb[0].mxu0 %v2509
      %v2648 = vpop.f32.mrb[0].mxu0
      %v2649 = vadd.f32 0.0, %v2648
      %v2650 = vpop.f32.mrb[0].mxu0
      %v2651 = vpop.f32.mrb[0].mxu0
      %v2652 = vadd.f32 0.0, %v2651
      %v2653 = vpop.f32.mrb[0].mxu0
      %2654 = vmatprep.mubr.bf16.mxu0 0
      %2655 = vmatmul.mubr.bf16.gmra.mrb[0].mxu0 %v2512
      %v2656 = vpop.f32.mrb[0].mxu0
      %v2657 = vadd.f32 0.0, %v2656
      %v2658 = vpop.f32.mrb[0].mxu0
      %v2659 = vpop.f32.mrb[0].mxu0
      %v2660 = vadd.f32 0.0, %v2659
      %v2661 = vpop.f32.mrb[0].mxu0
      %2662 = vmatprep.mubr.bf16.mxu0 0
      %2663 = vmatmul.mubr.bf16.gmra.mrb[0].mxu0 %v2515
      %v2664 = vpop.f32.mrb[0].mxu0
      %v2665 = vadd.f32 0.0, %v2664
      %v2666 = vpop.f32.mrb[0].mxu0
      %v2667 = vpop.f32.mrb[0].mxu0
      %v2668 = vadd.f32 0.0, %v2667
      %v2669 = vpop.f32.mrb[0].mxu0
      %2670 = vmatprep.mubr.bf16.mxu0 0
      %2671 = vmatmul.mubr.bf16.gmra.mrb[0].mxu0 %v2518
      %v2672 = vpop.f32.mrb[0].mxu0
      %v2673 = vadd.f32 0.0, %v2672
      %v2674 = vpop.f32.mrb[0].mxu0
      %v2675 = vpop.f32.mrb[0].mxu0
      %v2676 = vadd.f32 0.0, %v2675
      %v2677 = vpop.f32.mrb[0].mxu0
      %2678 = vmatprep.mubr.bf16.mxu0 0
      %2679 = vmatmul.mubr.bf16.gmra.mrb[0].mxu0 %v2521
      %v2680 = vpop.f32.mrb[0].mxu0
      %v2681 = vadd.f32 0.0, %v2680
      %v2682 = vpop.f32.mrb[0].mxu0
      %v2683 = vpop.f32.mrb[0].mxu0
      %v2684 = vadd.f32 0.0, %v2683
      %v2685 = vpop.f32.mrb[0].mxu0
      %2686 = vdwg.mxu0
      %v2687 = vadd.f32 %v2329, %v2561
      %v2688 = vadd.f32 %v2330, %v2564
      %v2689 = vadd.f32 %v2331, %v2569
      %v2690 = vadd.f32 %v2332, %v2572
      %v2691 = vadd.f32 %v2333, %v2577
      %v2692 = vadd.f32 %v2334, %v2580
      %v2693 = vadd.f32 %v2335, %v2585
      %v2694 = vadd.f32 %v2336, %v2588
      %v2695 = vadd.f32 %v2337, %v2593
      %v2696 = vadd.f32 %v2338, %v2596
      %v2697 = vadd.f32 %v2339, %v2601
      %v2698 = vadd.f32 %v2340, %v2604
      %v2699 = vadd.f32 %v2341, %v2609
      %v2700 = vadd.f32 %v2342, %v2612
      %v2701 = vadd.f32 %v2343, %v2617
      %v2702 = vadd.f32 %v2344, %v2620
      %v2703 = vadd.f32 %v2345, %v2625
      %v2704 = vadd.f32 %v2346, %v2628
      %v2705 = vadd.f32 %v2347, %v2633
      %v2706 = vadd.f32 %v2348, %v2636
      %v2707 = vadd.f32 %v2349, %v2641
      %v2708 = vadd.f32 %v2350, %v2644
      %v2709 = vadd.f32 %v2351, %v2649
      %v2710 = vadd.f32 %v2352, %v2652
      %v2711 = vadd.f32 %v2353, %v2657
      %v2712 = vadd.f32 %v2354, %v2660
      %v2713 = vadd.f32 %v2355, %v2665
      %v2714 = vadd.f32 %v2356, %v2668
      %v2715 = vadd.f32 %v2357, %v2673
      %v2716 = vadd.f32 %v2358, %v2676
      %v2717 = vadd.f32 %v2359, %v2681
      %v2718 = vadd.f32 %v2360, %v2684
      %v2719 = vld [vmem:[%s294] sm:$0xf]
      %v2720 = vld [vmem:[%s294 + $0x4] sm:$0xf]
      %v2721 = vld [vmem:[%s294 + $0x8] sm:$0x1]
      %v2722 = vld [vmem:[%s294 + $0xc] sm:$0xf]
      %v2723 = vld [vmem:[%s294 + $0x10] sm:$0xf]
      %v2724 = vld [vmem:[%s294 + $0x14] sm:$0x1]
      %v2725 = vld [vmem:[%s294 + $0x18] sm:$0xf]
      %v2726 = vld [vmem:[%s294 + $0x1c] sm:$0xf]
      %v2727 = vld [vmem:[%s294 + $0x20] sm:$0x1]
      %v2728 = vld [vmem:[%s294 + $0x24] sm:$0xf]
      %v2729 = vld [vmem:[%s294 + $0x28] sm:$0xf]
      %v2730 = vld [vmem:[%s294 + $0x2c] sm:$0x1]
      %v2731 = vld [vmem:[%s294 + $0x30] sm:$0xf]
      %v2732 = vld [vmem:[%s294 + $0x34] sm:$0xf]
      %v2733 = vld [vmem:[%s294 + $0x38] sm:$0x1]
      %v2734 = vld [vmem:[%s294 + $0x3c] sm:$0xf]
      %v2735 = vld [vmem:[%s294 + $0x40] sm:$0xf]
      %v2736 = vld [vmem:[%s294 + $0x44] sm:$0x1]
      %v2737 = vld [vmem:[%s294 + $0x48] sm:$0xf]
      %v2738 = vld [vmem:[%s294 + $0x4c] sm:$0xf]
      %v2739 = vld [vmem:[%s294 + $0x50] sm:$0x1]
      %v2740 = vld [vmem:[%s294 + $0x54] sm:$0xf]
      %v2741 = vld [vmem:[%s294 + $0x58] sm:$0xf]
      %v2742 = vld [vmem:[%s294 + $0x5c] sm:$0x1]
      %v2743 = vld [vmem:[%s294 + $0x60] sm:$0xf]
      %v2744 = vld [vmem:[%s294 + $0x64] sm:$0xf]
      %v2745 = vld [vmem:[%s294 + $0x68] sm:$0x1]
      %v2746 = vld [vmem:[%s294 + $0x6c] sm:$0xf]
      %v2747 = vld [vmem:[%s294 + $0x70] sm:$0xf]
      %v2748 = vld [vmem:[%s294 + $0x74] sm:$0x1]
      %v2749 = vld [vmem:[%s294 + $0x78] sm:$0xf]
      %v2750 = vld [vmem:[%s294 + $0x7c] sm:$0xf]
      %v2751 = vld [vmem:[%s294 + $0x80] sm:$0x1]
      %v2752 = vld [vmem:[%s294 + $0x84] sm:$0xf]
      %v2753 = vld [vmem:[%s294 + $0x88] sm:$0xf]
      %v2754 = vld [vmem:[%s294 + $0x8c] sm:$0x1]
      %v2755 = vld [vmem:[%s294 + $0x90] sm:$0xf]
      %v2756 = vld [vmem:[%s294 + $0x94] sm:$0xf]
      %v2757 = vld [vmem:[%s294 + $0x98] sm:$0x1]
      %v2758 = vld [vmem:[%s294 + $0x9c] sm:$0xf]
      %v2759 = vld [vmem:[%s294 + $0xa0] sm:$0xf]
      %v2760 = vld [vmem:[%s294 + $0xa4] sm:$0x1]
      %v2761 = vld [vmem:[%s294 + $0xa8] sm:$0xf]
      %v2762 = vld [vmem:[%s294 + $0xac] sm:$0xf]
      %v2763 = vld [vmem:[%s294 + $0xb0] sm:$0x1]
      %v2764 = vld [vmem:[%s294 + $0xb4] sm:$0xf]
      %v2765 = vld [vmem:[%s294 + $0xb8] sm:$0xf]
      %v2766 = vld [vmem:[%s294 + $0xbc] sm:$0x1]
      %v2768 = vshrl.u32 %v2719, 16
      %v2770 = vrot.slane %v2768, 4
      %v2771 = vshll.u32 %v2719, 16
      %v2773 = vrot.slane %v2771, 5
      %v2774 = vor.u32 %v2770, %v2773
      %v2775 = vrot.slane %v2774, 4
      %v2777 = vshll.u32 %v2720, 16
      %v2779 = vrot.slane %v2777, 5
      %v2780 = vsel %vm963, %v2775, %v2779
      %v2781 = vshrl.u32 %v2720, 16
      %v2783 = vrot.slane %v2781, 4
      %v2784 = vor.u32 %v2783, %v2779
      %v2785 = vrot.slane %v2784, 4
      %v2787 = vshll.u32 %v2721, 16
      %v2789 = vrot.slane %v2787, 5
      %v2790 = vsel %vm963, %v2785, %v2789
      %v2792 = vshrl.u32 %v2722, 16
      %v2794 = vrot.slane %v2792, 4
      %v2795 = vshll.u32 %v2722, 16
      %v2797 = vrot.slane %v2795, 5
      %v2798 = vor.u32 %v2794, %v2797
      %v2799 = vrot.slane %v2798, 4
      %v2801 = vshll.u32 %v2723, 16
      %v2803 = vrot.slane %v2801, 5
      %v2804 = vsel %vm963, %v2799, %v2803
      %v2805 = vshrl.u32 %v2723, 16
      %v2807 = vrot.slane %v2805, 4
      %v2808 = vor.u32 %v2807, %v2803
      %v2809 = vrot.slane %v2808, 4
      %v2811 = vshll.u32 %v2724, 16
      %v2813 = vrot.slane %v2811, 5
      %v2814 = vsel %vm963, %v2809, %v2813
      %v2816 = vshrl.u32 %v2725, 16
      %v2818 = vrot.slane %v2816, 4
      %v2819 = vshll.u32 %v2725, 16
      %v2821 = vrot.slane %v2819, 5
      %v2822 = vor.u32 %v2818, %v2821
      %v2823 = vrot.slane %v2822, 4
      %v2825 = vshll.u32 %v2726, 16
      %v2827 = vrot.slane %v2825, 5
      %v2828 = vsel %vm963, %v2823, %v2827
      %v2829 = vshrl.u32 %v2726, 16
      %v2831 = vrot.slane %v2829, 4
      %v2832 = vor.u32 %v2831, %v2827
      %v2833 = vrot.slane %v2832, 4
      %v2835 = vshll.u32 %v2727, 16
      %v2837 = vrot.slane %v2835, 5
      %v2838 = vsel %vm963, %v2833, %v2837
      %v2840 = vshrl.u32 %v2728, 16
      %v2842 = vrot.slane %v2840, 4
      %v2843 = vshll.u32 %v2728, 16
      %v2845 = vrot.slane %v2843, 5
      %v2846 = vor.u32 %v2842, %v2845
      %v2847 = vrot.slane %v2846, 4
      %v2849 = vshll.u32 %v2729, 16
      %v2851 = vrot.slane %v2849, 5
      %v2852 = vsel %vm963, %v2847, %v2851
      %v2853 = vshrl.u32 %v2729, 16
      %v2855 = vrot.slane %v2853, 4
      %v2856 = vor.u32 %v2855, %v2851
      %v2857 = vrot.slane %v2856, 4
      %v2859 = vshll.u32 %v2730, 16
      %v2861 = vrot.slane %v2859, 5
      %v2862 = vsel %vm963, %v2857, %v2861
      %v2864 = vshrl.u32 %v2731, 16
      %v2866 = vrot.slane %v2864, 4
      %v2867 = vshll.u32 %v2731, 16
      %v2869 = vrot.slane %v2867, 5
      %v2870 = vor.u32 %v2866, %v2869
      %v2871 = vrot.slane %v2870, 4
      %v2873 = vshll.u32 %v2732, 16
      %v2875 = vrot.slane %v2873, 5
      %v2876 = vsel %vm963, %v2871, %v2875
      %v2877 = vshrl.u32 %v2732, 16
      %v2879 = vrot.slane %v2877, 4
      %v2880 = vor.u32 %v2879, %v2875
      %v2881 = vrot.slane %v2880, 4
      %v2883 = vshll.u32 %v2733, 16
      %v2885 = vrot.slane %v2883, 5
      %v2886 = vsel %vm963, %v2881, %v2885
      %v2888 = vshrl.u32 %v2734, 16
      %v2890 = vrot.slane %v2888, 4
      %v2891 = vshll.u32 %v2734, 16
      %v2893 = vrot.slane %v2891, 5
      %v2894 = vor.u32 %v2890, %v2893
      %v2895 = vrot.slane %v2894, 4
      %v2897 = vshll.u32 %v2735, 16
      %v2899 = vrot.slane %v2897, 5
      %v2900 = vsel %vm963, %v2895, %v2899
      %v2901 = vshrl.u32 %v2735, 16
      %v2903 = vrot.slane %v2901, 4
      %v2904 = vor.u32 %v2903, %v2899
      %v2905 = vrot.slane %v2904, 4
      %v2907 = vshll.u32 %v2736, 16
      %v2909 = vrot.slane %v2907, 5
      %v2910 = vsel %vm963, %v2905, %v2909
      %v2912 = vshrl.u32 %v2737, 16
      %v2914 = vrot.slane %v2912, 4
      %v2915 = vshll.u32 %v2737, 16
      %v2917 = vrot.slane %v2915, 5
      %v2918 = vor.u32 %v2914, %v2917
      %v2919 = vrot.slane %v2918, 4
      %v2921 = vshll.u32 %v2738, 16
      %v2923 = vrot.slane %v2921, 5
      %v2924 = vsel %vm963, %v2919, %v2923
      %v2925 = vshrl.u32 %v2738, 16
      %v2927 = vrot.slane %v2925, 4
      %v2928 = vor.u32 %v2927, %v2923
      %v2929 = vrot.slane %v2928, 4
      %v2931 = vshll.u32 %v2739, 16
      %v2933 = vrot.slane %v2931, 5
      %v2934 = vsel %vm963, %v2929, %v2933
      %v2936 = vshrl.u32 %v2740, 16
      %v2938 = vrot.slane %v2936, 4
      %v2939 = vshll.u32 %v2740, 16
      %v2941 = vrot.slane %v2939, 5
      %v2942 = vor.u32 %v2938, %v2941
      %v2943 = vrot.slane %v2942, 4
      %v2945 = vshll.u32 %v2741, 16
      %v2947 = vrot.slane %v2945, 5
      %v2948 = vsel %vm963, %v2943, %v2947
      %v2949 = vshrl.u32 %v2741, 16
      %v2951 = vrot.slane %v2949, 4
      %v2952 = vor.u32 %v2951, %v2947
      %v2953 = vrot.slane %v2952, 4
      %v2955 = vshll.u32 %v2742, 16
      %v2957 = vrot.slane %v2955, 5
      %v2958 = vsel %vm963, %v2953, %v2957
      %v2960 = vshrl.u32 %v2743, 16
      %v2962 = vrot.slane %v2960, 4
      %v2963 = vshll.u32 %v2743, 16
      %v2965 = vrot.slane %v2963, 5
      %v2966 = vor.u32 %v2962, %v2965
      %v2967 = vrot.slane %v2966, 4
      %v2969 = vshll.u32 %v2744, 16
      %v2971 = vrot.slane %v2969, 5
      %v2972 = vsel %vm963, %v2967, %v2971
      %v2973 = vshrl.u32 %v2744, 16
      %v2975 = vrot.slane %v2973, 4
      %v2976 = vor.u32 %v2975, %v2971
      %v2977 = vrot.slane %v2976, 4
      %v2979 = vshll.u32 %v2745, 16
      %v2981 = vrot.slane %v2979, 5
      %v2982 = vsel %vm963, %v2977, %v2981
      %v2984 = vshrl.u32 %v2746, 16
      %v2986 = vrot.slane %v2984, 4
      %v2987 = vshll.u32 %v2746, 16
      %v2989 = vrot.slane %v2987, 5
      %v2990 = vor.u32 %v2986, %v2989
      %v2991 = vrot.slane %v2990, 4
      %v2993 = vshll.u32 %v2747, 16
      %v2995 = vrot.slane %v2993, 5
      %v2996 = vsel %vm963, %v2991, %v2995
      %v2997 = vshrl.u32 %v2747, 16
      %v2999 = vrot.slane %v2997, 4
      %v3000 = vor.u32 %v2999, %v2995
      %v3001 = vrot.slane %v3000, 4
      %v3003 = vshll.u32 %v2748, 16
      %v3005 = vrot.slane %v3003, 5
      %v3006 = vsel %vm963, %v3001, %v3005
      %v3008 = vshrl.u32 %v2749, 16
      %v3010 = vrot.slane %v3008, 4
      %v3011 = vshll.u32 %v2749, 16
      %v3013 = vrot.slane %v3011, 5
      %v3014 = vor.u32 %v3010, %v3013
      %v3015 = vrot.slane %v3014, 4
      %v3017 = vshll.u32 %v2750, 16
      %v3019 = vrot.slane %v3017, 5
      %v3020 = vsel %vm963, %v3015, %v3019
      %v3021 = vshrl.u32 %v2750, 16
      %v3023 = vrot.slane %v3021, 4
      %v3024 = vor.u32 %v3023, %v3019
      %v3025 = vrot.slane %v3024, 4
      %v3027 = vshll.u32 %v2751, 16
      %v3029 = vrot.slane %v3027, 5
      %v3030 = vsel %vm963, %v3025, %v3029
      %v3032 = vshrl.u32 %v2752, 16
      %v3034 = vrot.slane %v3032, 4
      %v3035 = vshll.u32 %v2752, 16
      %v3037 = vrot.slane %v3035, 5
      %v3038 = vor.u32 %v3034, %v3037
      %v3039 = vrot.slane %v3038, 4
      %v3041 = vshll.u32 %v2753, 16
      %v3043 = vrot.slane %v3041, 5
      %v3044 = vsel %vm963, %v3039, %v3043
      %v3045 = vshrl.u32 %v2753, 16
      %v3047 = vrot.slane %v3045, 4
      %v3048 = vor.u32 %v3047, %v3043
      %v3049 = vrot.slane %v3048, 4
      %v3051 = vshll.u32 %v2754, 16
      %v3053 = vrot.slane %v3051, 5
      %v3054 = vsel %vm963, %v3049, %v3053
      %v3056 = vshrl.u32 %v2755, 16
      %v3058 = vrot.slane %v3056, 4
      %v3059 = vshll.u32 %v2755, 16
      %v3061 = vrot.slane %v3059, 5
      %v3062 = vor.u32 %v3058, %v3061
      %v3063 = vrot.slane %v3062, 4
      %v3065 = vshll.u32 %v2756, 16
      %v3067 = vrot.slane %v3065, 5
      %v3068 = vsel %vm963, %v3063, %v3067
      %v3069 = vshrl.u32 %v2756, 16
      %v3071 = vrot.slane %v3069, 4
      %v3072 = vor.u32 %v3071, %v3067
      %v3073 = vrot.slane %v3072, 4
      %v3075 = vshll.u32 %v2757, 16
      %v3077 = vrot.slane %v3075, 5
      %v3078 = vsel %vm963, %v3073, %v3077
      %v3080 = vshrl.u32 %v2758, 16
      %v3082 = vrot.slane %v3080, 4
      %v3083 = vshll.u32 %v2758, 16
      %v3085 = vrot.slane %v3083, 5
      %v3086 = vor.u32 %v3082, %v3085
      %v3087 = vrot.slane %v3086, 4
      %v3089 = vshll.u32 %v2759, 16
      %v3091 = vrot.slane %v3089, 5
      %v3092 = vsel %vm963, %v3087, %v3091
      %v3093 = vshrl.u32 %v2759, 16
      %v3095 = vrot.slane %v3093, 4
      %v3096 = vor.u32 %v3095, %v3091
      %v3097 = vrot.slane %v3096, 4
      %v3099 = vshll.u32 %v2760, 16
      %v3101 = vrot.slane %v3099, 5
      %v3102 = vsel %vm963, %v3097, %v3101
      %v3104 = vshrl.u32 %v2761, 16
      %v3106 = vrot.slane %v3104, 4
      %v3107 = vshll.u32 %v2761, 16
      %v3109 = vrot.slane %v3107, 5
      %v3110 = vor.u32 %v3106, %v3109
      %v3111 = vrot.slane %v3110, 4
      %v3113 = vshll.u32 %v2762, 16
      %v3115 = vrot.slane %v3113, 5
      %v3116 = vsel %vm963, %v3111, %v3115
      %v3117 = vshrl.u32 %v2762, 16
      %v3119 = vrot.slane %v3117, 4
      %v3120 = vor.u32 %v3119, %v3115
      %v3121 = vrot.slane %v3120, 4
      %v3123 = vshll.u32 %v2763, 16
      %v3125 = vrot.slane %v3123, 5
      %v3126 = vsel %vm963, %v3121, %v3125
      %v3128 = vshrl.u32 %v2764, 16
      %v3130 = vrot.slane %v3128, 4
      %v3131 = vshll.u32 %v2764, 16
      %v3133 = vrot.slane %v3131, 5
      %v3134 = vor.u32 %v3130, %v3133
      %v3135 = vrot.slane %v3134, 4
      %v3137 = vshll.u32 %v2765, 16
      %v3139 = vrot.slane %v3137, 5
      %v3140 = vsel %vm963, %v3135, %v3139
      %v3141 = vshrl.u32 %v2765, 16
      %v3143 = vrot.slane %v3141, 4
      %v3144 = vor.u32 %v3143, %v3139
      %v3145 = vrot.slane %v3144, 4
      %v3147 = vshll.u32 %v2766, 16
      %v3149 = vrot.slane %v3147, 5
      %v3150 = vsel %vm963, %v3145, %v3149
      %s3151 = scalar_lea.vmem %s3, 8
      %v3152 = vld [vmem:[%s3151] sm:$0x3]
      %v3153 = vunpack.c.l.b16 %v2780
      %v3154 = vunpack.c.l.b16 %v2790
      %v3155 = vunpack.c.l.b16 %v2804
      %v3156 = vunpack.c.l.b16 %v2814
      %v3157 = vunpack.c.l.b16 %v2828
      %v3158 = vunpack.c.l.b16 %v2838
      %v3159 = vunpack.c.l.b16 %v2852
      %v3160 = vunpack.c.l.b16 %v2862
      %v3161 = vunpack.c.l.b16 %v2876
      %v3162 = vunpack.c.l.b16 %v2886
      %v3163 = vunpack.c.l.b16 %v2900
      %v3164 = vunpack.c.l.b16 %v2910
      %v3165 = vunpack.c.l.b16 %v2924
      %v3166 = vunpack.c.l.b16 %v2934
      %v3167 = vunpack.c.l.b16 %v2948
      %v3168 = vunpack.c.l.b16 %v2958
      %v3169 = vunpack.c.l.b16 %v2972
      %v3170 = vunpack.c.l.b16 %v2982
      %v3171 = vunpack.c.l.b16 %v2996
      %v3172 = vunpack.c.l.b16 %v3006
      %v3173 = vunpack.c.l.b16 %v3020
      %v3174 = vunpack.c.l.b16 %v3030
      %v3175 = vunpack.c.l.b16 %v3044
      %v3176 = vunpack.c.l.b16 %v3054
      %v3177 = vunpack.c.l.b16 %v3068
      %v3178 = vunpack.c.l.b16 %v3078
      %v3179 = vunpack.c.l.b16 %v3092
      %v3180 = vunpack.c.l.b16 %v3102
      %v3181 = vunpack.c.l.b16 %v3116
      %v3182 = vunpack.c.l.b16 %v3126
      %v3183 = vunpack.c.l.b16 %v3140
      %v3184 = vunpack.c.l.b16 %v3150
      %v3185 = vpack.c.b16 %v3154, %v3153
      %v3186 = vpack.c.b16 %v3156, %v3155
      %v3187 = vpack.c.b16 %v3158, %v3157
      %v3188 = vpack.c.b16 %v3160, %v3159
      %v3189 = vpack.c.b16 %v3162, %v3161
      %v3190 = vpack.c.b16 %v3164, %v3163
      %v3191 = vpack.c.b16 %v3166, %v3165
      %v3192 = vpack.c.b16 %v3168, %v3167
      %v3193 = vpack.c.b16 %v3170, %v3169
      %v3194 = vpack.c.b16 %v3172, %v3171
      %v3195 = vpack.c.b16 %v3174, %v3173
      %v3196 = vpack.c.b16 %v3176, %v3175
      %v3197 = vpack.c.b16 %v3178, %v3177
      %v3198 = vpack.c.b16 %v3180, %v3179
      %v3199 = vpack.c.b16 %v3182, %v3181
      %v3200 = vpack.c.b16 %v3184, %v3183
      %v3202 = vsel %vm1398, %v3185, 0
      %v3205 = vsel %vm1398, %v3186, 0
      %v3208 = vsel %vm1398, %v3187, 0
      %v3211 = vsel %vm1398, %v3188, 0
      %v3214 = vsel %vm1398, %v3189, 0
      %v3217 = vsel %vm1398, %v3190, 0
      %v3220 = vsel %vm1398, %v3191, 0
      %v3223 = vsel %vm1398, %v3192, 0
      %v3226 = vsel %vm1398, %v3193, 0
      %v3229 = vsel %vm1398, %v3194, 0
      %v3232 = vsel %vm1398, %v3195, 0
      %v3235 = vsel %vm1398, %v3196, 0
      %v3238 = vsel %vm1398, %v3197, 0
      %v3241 = vsel %vm1398, %v3198, 0
      %v3244 = vsel %vm1398, %v3199, 0
      %v3247 = vsel %vm1398, %v3200, 0
      %v3250 = vsel %vm1447, %v3152, 0
      %3252 = vmatprep.subr.bf16.mxu0 0
      %3253 = vmatpush1.bf16.msra.mxu0 %v3250
      %3254 = vmatprep.subr.bf16.mxu0 0
      %3255 = vmatpush1.bf16.msra.mxu0 0
      %3256 = vmatprep.subr.bf16.mxu0 0
      %3257 = vmatpush1.bf16.msra.mxu0 0
      %3258 = vmatprep.subr.bf16.mxu0 0
      %3259 = vmatpush1.bf16.msra.mxu0 0
      %3260 = vmatprep.subr.bf16.mxu0 0
      %3261 = vmatpush1.bf16.msra.mxu0 0
      %3262 = vmatprep.subr.bf16.mxu0 0
      %3263 = vmatpush1.bf16.msra.mxu0 0
      %3264 = vmatprep.subr.bf16.mxu0 0
      %3265 = vmatpush1.bf16.msra.mxu0 0
      %3266 = vmatprep.subr.bf16.mxu0 0
      %3267 = vmatpush1.bf16.msra.mxu0 0
      %3268 = vmatprep.subr.bf16.mxu0 0
      %3269 = vmatpush1.bf16.msra.mxu0 0
      %3270 = vmatprep.subr.bf16.mxu0 0
      %3271 = vmatpush1.bf16.msra.mxu0 0
      %3272 = vmatprep.subr.bf16.mxu0 0
      %3273 = vmatpush1.bf16.msra.mxu0 0
      %3274 = vmatprep.subr.bf16.mxu0 0
      %3275 = vmatpush1.bf16.msra.mxu0 0
      %3276 = vmatprep.subr.bf16.mxu0 0
      %3277 = vmatpush1.bf16.msra.mxu0 0
      %3278 = vmatprep.subr.bf16.mxu0 0
      %3279 = vmatpush1.bf16.msra.mxu0 0
      %3280 = vmatprep.subr.bf16.mxu0 0
      %3281 = vmatpush1.bf16.msra.mxu0 0
      %3282 = vmatprep.subr.bf16.mxu0 0
      %3283 = vmatpush1.bf16.msra.mxu0 0
      %3284 = vmatprep.mubr.bf16.mxu0 0
      %3285 = vmatmul.mubr.bf16.gmra.mrb[0].mxu0 %v3202
      %v3286 = vpop.f32.mrb[0].mxu0
      %v3287 = vadd.f32 0.0, %v3286
      %v3288 = vpop.f32.mrb[0].mxu0
      %v3289 = vpop.f32.mrb[0].mxu0
      %v3290 = vadd.f32 0.0, %v3289
      %v3291 = vpop.f32.mrb[0].mxu0
      %3292 = vmatprep.mubr.bf16.mxu0 0
      %3293 = vmatmul.mubr.bf16.gmra.mrb[0].mxu0 %v3205
      %v3294 = vpop.f32.mrb[0].mxu0
      %v3295 = vadd.f32 0.0, %v3294
      %v3296 = vpop.f32.mrb[0].mxu0
      %v3297 = vpop.f32.mrb[0].mxu0
      %v3298 = vadd.f32 0.0, %v3297
      %v3299 = vpop.f32.mrb[0].mxu0
      %3300 = vmatprep.mubr.bf16.mxu0 0
      %3301 = vmatmul.mubr.bf16.gmra.mrb[0].mxu0 %v3208
      %v3302 = vpop.f32.mrb[0].mxu0
      %v3303 = vadd.f32 0.0, %v3302
      %v3304 = vpop.f32.mrb[0].mxu0
      %v3305 = vpop.f32.mrb[0].mxu0
      %v3306 = vadd.f32 0.0, %v3305
      %v3307 = vpop.f32.mrb[0].mxu0
      %3308 = vmatprep.mubr.bf16.mxu0 0
      %3309 = vmatmul.mubr.bf16.gmra.mrb[0].mxu0 %v3211
      %v3310 = vpop.f32.mrb[0].mxu0
      %v3311 = vadd.f32 0.0, %v3310
      %v3312 = vpop.f32.mrb[0].mxu0
      %v3313 = vpop.f32.mrb[0].mxu0
      %v3314 = vadd.f32 0.0, %v3313
      %v3315 = vpop.f32.mrb[0].mxu0
      %3316 = vmatprep.mubr.bf16.mxu0 0
      %3317 = vmatmul.mubr.bf16.gmra.mrb[0].mxu0 %v3214
      %v3318 = vpop.f32.mrb[0].mxu0
      %v3319 = vadd.f32 0.0, %v3318
      %v3320 = vpop.f32.mrb[0].mxu0
      %v3321 = vpop.f32.mrb[0].mxu0
      %v3322 = vadd.f32 0.0, %v3321
      %v3323 = vpop.f32.mrb[0].mxu0
      %3324 = vmatprep.mubr.bf16.mxu0 0
      %3325 = vmatmul.mubr.bf16.gmra.mrb[0].mxu0 %v3217
      %v3326 = vpop.f32.mrb[0].mxu0
      %v3327 = vadd.f32 0.0, %v3326
      %v3328 = vpop.f32.mrb[0].mxu0
      %v3329 = vpop.f32.mrb[0].mxu0
      %v3330 = vadd.f32 0.0, %v3329
      %v3331 = vpop.f32.mrb[0].mxu0
      %3332 = vmatprep.mubr.bf16.mxu0 0
      %3333 = vmatmul.mubr.bf16.gmra.mrb[0].mxu0 %v3220
      %v3334 = vpop.f32.mrb[0].mxu0
      %v3335 = vadd.f32 0.0, %v3334
      %v3336 = vpop.f32.mrb[0].mxu0
      %v3337 = vpop.f32.mrb[0].mxu0
      %v3338 = vadd.f32 0.0, %v3337
      %v3339 = vpop.f32.mrb[0].mxu0
      %3340 = vmatprep.mubr.bf16.mxu0 0
      %3341 = vmatmul.mubr.bf16.gmra.mrb[0].mxu0 %v3223
      %v3342 = vpop.f32.mrb[0].mxu0
      %v3343 = vadd.f32 0.0, %v3342
      %v3344 = vpop.f32.mrb[0].mxu0
      %v3345 = vpop.f32.mrb[0].mxu0
      %v3346 = vadd.f32 0.0, %v3345
      %v3347 = vpop.f32.mrb[0].mxu0
      %3348 = vmatprep.mubr.bf16.mxu0 0
      %3349 = vmatmul.mubr.bf16.gmra.mrb[0].mxu0 %v3226
      %v3350 = vpop.f32.mrb[0].mxu0
      %v3351 = vadd.f32 0.0, %v3350
      %v3352 = vpop.f32.mrb[0].mxu0
      %v3353 = vpop.f32.mrb[0].mxu0
      %v3354 = vadd.f32 0.0, %v3353
      %v3355 = vpop.f32.mrb[0].mxu0
      %3356 = vmatprep.mubr.bf16.mxu0 0
      %3357 = vmatmul.mubr.bf16.gmra.mrb[0].mxu0 %v3229
      %v3358 = vpop.f32.mrb[0].mxu0
      %v3359 = vadd.f32 0.0, %v3358
      %v3360 = vpop.f32.mrb[0].mxu0
      %v3361 = vpop.f32.mrb[0].mxu0
      %v3362 = vadd.f32 0.0, %v3361
      %v3363 = vpop.f32.mrb[0].mxu0
      %3364 = vmatprep.mubr.bf16.mxu0 0
      %3365 = vmatmul.mubr.bf16.gmra.mrb[0].mxu0 %v3232
      %v3366 = vpop.f32.mrb[0].mxu0
      %v3367 = vadd.f32 0.0, %v3366
      %v3368 = vpop.f32.mrb[0].mxu0
      %v3369 = vpop.f32.mrb[0].mxu0
      %v3370 = vadd.f32 0.0, %v3369
      %v3371 = vpop.f32.mrb[0].mxu0
      %3372 = vmatprep.mubr.bf16.mxu0 0
      %3373 = vmatmul.mubr.bf16.gmra.mrb[0].mxu0 %v3235
      %v3374 = vpop.f32.mrb[0].mxu0
      %v3375 = vadd.f32 0.0, %v3374
      %v3376 = vpop.f32.mrb[0].mxu0
      %v3377 = vpop.f32.mrb[0].mxu0
      %v3378 = vadd.f32 0.0, %v3377
      %v3379 = vpop.f32.mrb[0].mxu0
      %3380 = vmatprep.mubr.bf16.mxu0 0
      %3381 = vmatmul.mubr.bf16.gmra.mrb[0].mxu0 %v3238
      %v3382 = vpop.f32.mrb[0].mxu0
      %v3383 = vadd.f32 0.0, %v3382
      %v3384 = vpop.f32.mrb[0].mxu0
      %v3385 = vpop.f32.mrb[0].mxu0
      %v3386 = vadd.f32 0.0, %v3385
      %v3387 = vpop.f32.mrb[0].mxu0
      %3388 = vmatprep.mubr.bf16.mxu0 0
      %3389 = vmatmul.mubr.bf16.gmra.mrb[0].mxu0 %v3241
      %v3390 = vpop.f32.mrb[0].mxu0
      %v3391 = vadd.f32 0.0, %v3390
      %v3392 = vpop.f32.mrb[0].mxu0
      %v3393 = vpop.f32.mrb[0].mxu0
      %v3394 = vadd.f32 0.0, %v3393
      %v3395 = vpop.f32.mrb[0].mxu0
      %3396 = vmatprep.mubr.bf16.mxu0 0
      %3397 = vmatmul.mubr.bf16.gmra.mrb[0].mxu0 %v3244
      %v3398 = vpop.f32.mrb[0].mxu0
      %v3399 = vadd.f32 0.0, %v3398
      %v3400 = vpop.f32.mrb[0].mxu0
      %v3401 = vpop.f32.mrb[0].mxu0
      %v3402 = vadd.f32 0.0, %v3401
      %v3403 = vpop.f32.mrb[0].mxu0
      %3404 = vmatprep.mubr.bf16.mxu0 0
      %3405 = vmatmul.mubr.bf16.gmra.mrb[0].mxu0 %v3247
      %v3406 = vpop.f32.mrb[0].mxu0
      %v3407 = vadd.f32 0.0, %v3406
      %v3408 = vpop.f32.mrb[0].mxu0
      %v3409 = vpop.f32.mrb[0].mxu0
      %v3410 = vadd.f32 0.0, %v3409
      %v3411 = vpop.f32.mrb[0].mxu0
      %3412 = vdwg.mxu0
      %v3413 = vadd.f32 %v2687, %v3287
      %v3414 = vadd.f32 %v2688, %v3290
      %v3415 = vadd.f32 %v2689, %v3295
      %v3416 = vadd.f32 %v2690, %v3298
      %v3417 = vadd.f32 %v2691, %v3303
      %v3418 = vadd.f32 %v2692, %v3306
      %v3419 = vadd.f32 %v2693, %v3311
      %v3420 = vadd.f32 %v2694, %v3314
      %v3421 = vadd.f32 %v2695, %v3319
      %v3422 = vadd.f32 %v2696, %v3322
      %v3423 = vadd.f32 %v2697, %v3327
      %v3424 = vadd.f32 %v2698, %v3330
      %v3425 = vadd.f32 %v2699, %v3335
      %v3426 = vadd.f32 %v2700, %v3338
      %v3427 = vadd.f32 %v2701, %v3343
      %v3428 = vadd.f32 %v2702, %v3346
      %v3429 = vadd.f32 %v2703, %v3351
      %v3430 = vadd.f32 %v2704, %v3354
      %v3431 = vadd.f32 %v2705, %v3359
      %v3432 = vadd.f32 %v2706, %v3362
      %v3433 = vadd.f32 %v2707, %v3367
      %v3434 = vadd.f32 %v2708, %v3370
      %v3435 = vadd.f32 %v2709, %v3375
      %v3436 = vadd.f32 %v2710, %v3378
      %v3437 = vadd.f32 %v2711, %v3383
      %v3438 = vadd.f32 %v2712, %v3386
      %v3439 = vadd.f32 %v2713, %v3391
      %v3440 = vadd.f32 %v2714, %v3394
      %v3441 = vadd.f32 %v2715, %v3399
      %v3442 = vadd.f32 %v2716, %v3402
      %v3443 = vadd.f32 %v2717, %v3407
      %v3444 = vadd.f32 %v2718, %v3410
      %v3445 = vld [vmem:[%s294] sm:$0xe]
      %v3446 = vld [vmem:[%s294 + $0xc] sm:$0xe]
      %v3447 = vld [vmem:[%s294 + $0x18] sm:$0xe]
      %v3448 = vld [vmem:[%s294 + $0x24] sm:$0xe]
      %v3449 = vld [vmem:[%s294 + $0x30] sm:$0xe]
      %v3450 = vld [vmem:[%s294 + $0x3c] sm:$0xe]
      %v3451 = vld [vmem:[%s294 + $0x48] sm:$0xe]
      %v3452 = vld [vmem:[%s294 + $0x54] sm:$0xe]
      %v3453 = vld [vmem:[%s294 + $0x60] sm:$0xe]
      %v3454 = vld [vmem:[%s294 + $0x6c] sm:$0xe]
      %v3455 = vld [vmem:[%s294 + $0x78] sm:$0xe]
      %v3456 = vld [vmem:[%s294 + $0x84] sm:$0xe]
      %v3457 = vld [vmem:[%s294 + $0x90] sm:$0xe]
      %v3458 = vld [vmem:[%s294 + $0x9c] sm:$0xe]
      %v3459 = vld [vmem:[%s294 + $0xa8] sm:$0xe]
      %v3460 = vld [vmem:[%s294 + $0xb4] sm:$0xe]
      %v3509 = vrot.slane %v3445, 5
      %v3510 = vrot.slane %v3509, 4
      %v3511 = vrot.slane %v2720, 5
      %v3512 = vsel %vm1954, %v3510, %v3511
      %v3513 = vrot.slane %v3511, 4
      %v3514 = vrot.slane %v2721, 5
      %v3515 = vsel %vm1954, %v3513, %v3514
      %v3516 = vrot.slane %v3446, 5
      %v3517 = vrot.slane %v3516, 4
      %v3518 = vrot.slane %v2723, 5
      %v3519 = vsel %vm1954, %v3517, %v3518
      %v3520 = vrot.slane %v3518, 4
      %v3521 = vrot.slane %v2724, 5
      %v3522 = vsel %vm1954, %v3520, %v3521
      %v3523 = vrot.slane %v3447, 5
      %v3524 = vrot.slane %v3523, 4
      %v3525 = vrot.slane %v2726, 5
      %v3526 = vsel %vm1954, %v3524, %v3525
      %v3527 = vrot.slane %v3525, 4
      %v3528 = vrot.slane %v2727, 5
      %v3529 = vsel %vm1954, %v3527, %v3528
      %v3530 = vrot.slane %v3448, 5
      %v3531 = vrot.slane %v3530, 4
      %v3532 = vrot.slane %v2729, 5
      %v3533 = vsel %vm1954, %v3531, %v3532
      %v3534 = vrot.slane %v3532, 4
      %v3535 = vrot.slane %v2730, 5
      %v3536 = vsel %vm1954, %v3534, %v3535
      %v3537 = vrot.slane %v3449, 5
      %v3538 = vrot.slane %v3537, 4
      %v3539 = vrot.slane %v2732, 5
      %v3540 = vsel %vm1954, %v3538, %v3539
      %v3541 = vrot.slane %v3539, 4
      %v3542 = vrot.slane %v2733, 5
      %v3543 = vsel %vm1954, %v3541, %v3542
      %v3544 = vrot.slane %v3450, 5
      %v3545 = vrot.slane %v3544, 4
      %v3546 = vrot.slane %v2735, 5
      %v3547 = vsel %vm1954, %v3545, %v3546
      %v3548 = vrot.slane %v3546, 4
      %v3549 = vrot.slane %v2736, 5
      %v3550 = vsel %vm1954, %v3548, %v3549
      %v3551 = vrot.slane %v3451, 5
      %v3552 = vrot.slane %v3551, 4
      %v3553 = vrot.slane %v2738, 5
      %v3554 = vsel %vm1954, %v3552, %v3553
      %v3555 = vrot.slane %v3553, 4
      %v3556 = vrot.slane %v2739, 5
      %v3557 = vsel %vm1954, %v3555, %v3556
      %v3558 = vrot.slane %v3452, 5
      %v3559 = vrot.slane %v3558, 4
      %v3560 = vrot.slane %v2741, 5
      %v3561 = vsel %vm1954, %v3559, %v3560
      %v3562 = vrot.slane %v3560, 4
      %v3563 = vrot.slane %v2742, 5
      %v3564 = vsel %vm1954, %v3562, %v3563
      %v3565 = vrot.slane %v3453, 5
      %v3566 = vrot.slane %v3565, 4
      %v3567 = vrot.slane %v2744, 5
      %v3568 = vsel %vm1954, %v3566, %v3567
      %v3569 = vrot.slane %v3567, 4
      %v3570 = vrot.slane %v2745, 5
      %v3571 = vsel %vm1954, %v3569, %v3570
      %v3572 = vrot.slane %v3454, 5
      %v3573 = vrot.slane %v3572, 4
      %v3574 = vrot.slane %v2747, 5
      %v3575 = vsel %vm1954, %v3573, %v3574
      %v3576 = vrot.slane %v3574, 4
      %v3577 = vrot.slane %v2748, 5
      %v3578 = vsel %vm1954, %v3576, %v3577
      %v3579 = vrot.slane %v3455, 5
      %v3580 = vrot.slane %v3579, 4
      %v3581 = vrot.slane %v2750, 5
      %v3582 = vsel %vm1954, %v3580, %v3581
      %v3583 = vrot.slane %v3581, 4
      %v3584 = vrot.slane %v2751, 5
      %v3585 = vsel %vm1954, %v3583, %v3584
      %v3586 = vrot.slane %v3456, 5
      %v3587 = vrot.slane %v3586, 4
      %v3588 = vrot.slane %v2753, 5
      %v3589 = vsel %vm1954, %v3587, %v3588
      %v3590 = vrot.slane %v3588, 4
      %v3591 = vrot.slane %v2754, 5
      %v3592 = vsel %vm1954, %v3590, %v3591
      %v3593 = vrot.slane %v3457, 5
      %v3594 = vrot.slane %v3593, 4
      %v3595 = vrot.slane %v2756, 5
      %v3596 = vsel %vm1954, %v3594, %v3595
      %v3597 = vrot.slane %v3595, 4
      %v3598 = vrot.slane %v2757, 5
      %v3599 = vsel %vm1954, %v3597, %v3598
      %v3600 = vrot.slane %v3458, 5
      %v3601 = vrot.slane %v3600, 4
      %v3602 = vrot.slane %v2759, 5
      %v3603 = vsel %vm1954, %v3601, %v3602
      %v3604 = vrot.slane %v3602, 4
      %v3605 = vrot.slane %v2760, 5
      %v3606 = vsel %vm1954, %v3604, %v3605
      %v3607 = vrot.slane %v3459, 5
      %v3608 = vrot.slane %v3607, 4
      %v3609 = vrot.slane %v2762, 5
      %v3610 = vsel %vm1954, %v3608, %v3609
      %v3611 = vrot.slane %v3609, 4
      %v3612 = vrot.slane %v2763, 5
      %v3613 = vsel %vm1954, %v3611, %v3612
      %v3614 = vrot.slane %v3460, 5
      %v3615 = vrot.slane %v3614, 4
      %v3616 = vrot.slane %v2765, 5
      %v3617 = vsel %vm1954, %v3615, %v3616
      %v3618 = vrot.slane %v3616, 4
      %v3619 = vrot.slane %v2766, 5
      %v3620 = vsel %vm1954, %v3618, %v3619
      %s3621 = scalar_lea.vmem %s3, 10
      %v3622 = vld [vmem:[%s3621] sm:$0x3]
      %v3623 = vunpack.c.l.b16 %v3512
      %v3624 = vunpack.c.l.b16 %v3515
      %v3625 = vunpack.c.l.b16 %v3519
      %v3626 = vunpack.c.l.b16 %v3522
      %v3627 = vunpack.c.l.b16 %v3526
      %v3628 = vunpack.c.l.b16 %v3529
      %v3629 = vunpack.c.l.b16 %v3533
      %v3630 = vunpack.c.l.b16 %v3536
      %v3631 = vunpack.c.l.b16 %v3540
      %v3632 = vunpack.c.l.b16 %v3543
      %v3633 = vunpack.c.l.b16 %v3547
      %v3634 = vunpack.c.l.b16 %v3550
      %v3635 = vunpack.c.l.b16 %v3554
      %v3636 = vunpack.c.l.b16 %v3557
      %v3637 = vunpack.c.l.b16 %v3561
      %v3638 = vunpack.c.l.b16 %v3564
      %v3639 = vunpack.c.l.b16 %v3568
      %v3640 = vunpack.c.l.b16 %v3571
      %v3641 = vunpack.c.l.b16 %v3575
      %v3642 = vunpack.c.l.b16 %v3578
      %v3643 = vunpack.c.l.b16 %v3582
      %v3644 = vunpack.c.l.b16 %v3585
      %v3645 = vunpack.c.l.b16 %v3589
      %v3646 = vunpack.c.l.b16 %v3592
      %v3647 = vunpack.c.l.b16 %v3596
      %v3648 = vunpack.c.l.b16 %v3599
      %v3649 = vunpack.c.l.b16 %v3603
      %v3650 = vunpack.c.l.b16 %v3606
      %v3651 = vunpack.c.l.b16 %v3610
      %v3652 = vunpack.c.l.b16 %v3613
      %v3653 = vunpack.c.l.b16 %v3617
      %v3654 = vunpack.c.l.b16 %v3620
      %v3655 = vpack.c.b16 %v3624, %v3623
      %v3656 = vpack.c.b16 %v3626, %v3625
      %v3657 = vpack.c.b16 %v3628, %v3627
      %v3658 = vpack.c.b16 %v3630, %v3629
      %v3659 = vpack.c.b16 %v3632, %v3631
      %v3660 = vpack.c.b16 %v3634, %v3633
      %v3661 = vpack.c.b16 %v3636, %v3635
      %v3662 = vpack.c.b16 %v3638, %v3637
      %v3663 = vpack.c.b16 %v3640, %v3639
      %v3664 = vpack.c.b16 %v3642, %v3641
      %v3665 = vpack.c.b16 %v3644, %v3643
      %v3666 = vpack.c.b16 %v3646, %v3645
      %v3667 = vpack.c.b16 %v3648, %v3647
      %v3668 = vpack.c.b16 %v3650, %v3649
      %v3669 = vpack.c.b16 %v3652, %v3651
      %v3670 = vpack.c.b16 %v3654, %v3653
      %v3672 = vsel %vm1398, %v3655, 0
      %v3675 = vsel %vm1398, %v3656, 0
      %v3678 = vsel %vm1398, %v3657, 0
      %v3681 = vsel %vm1398, %v3658, 0
      %v3684 = vsel %vm1398, %v3659, 0
      %v3687 = vsel %vm1398, %v3660, 0
      %v3690 = vsel %vm1398, %v3661, 0
      %v3693 = vsel %vm1398, %v3662, 0
      %v3696 = vsel %vm1398, %v3663, 0
      %v3699 = vsel %vm1398, %v3664, 0
      %v3702 = vsel %vm1398, %v3665, 0
      %v3705 = vsel %vm1398, %v3666, 0
      %v3708 = vsel %vm1398, %v3667, 0
      %v3711 = vsel %vm1398, %v3668, 0
      %v3714 = vsel %vm1398, %v3669, 0
      %v3717 = vsel %vm1398, %v3670, 0
      %v3720 = vsel %vm1447, %v3622, 0
      %3722 = vmatprep.subr.bf16.mxu0 0
      %3723 = vmatpush1.bf16.msra.mxu0 %v3720
      %3724 = vmatprep.subr.bf16.mxu0 0
      %3725 = vmatpush1.bf16.msra.mxu0 0
      %3726 = vmatprep.subr.bf16.mxu0 0
      %3727 = vmatpush1.bf16.msra.mxu0 0
      %3728 = vmatprep.subr.bf16.mxu0 0
      %3729 = vmatpush1.bf16.msra.mxu0 0
      %3730 = vmatprep.subr.bf16.mxu0 0
      %3731 = vmatpush1.bf16.msra.mxu0 0
      %3732 = vmatprep.subr.bf16.mxu0 0
      %3733 = vmatpush1.bf16.msra.mxu0 0
      %3734 = vmatprep.subr.bf16.mxu0 0
      %3735 = vmatpush1.bf16.msra.mxu0 0
      %3736 = vmatprep.subr.bf16.mxu0 0
      %3737 = vmatpush1.bf16.msra.mxu0 0
      %3738 = vmatprep.subr.bf16.mxu0 0
      %3739 = vmatpush1.bf16.msra.mxu0 0
      %3740 = vmatprep.subr.bf16.mxu0 0
      %3741 = vmatpush1.bf16.msra.mxu0 0
      %3742 = vmatprep.subr.bf16.mxu0 0
      %3743 = vmatpush1.bf16.msra.mxu0 0
      %3744 = vmatprep.subr.bf16.mxu0 0
      %3745 = vmatpush1.bf16.msra.mxu0 0
      %3746 = vmatprep.subr.bf16.mxu0 0
      %3747 = vmatpush1.bf16.msra.mxu0 0
      %3748 = vmatprep.subr.bf16.mxu0 0
      %3749 = vmatpush1.bf16.msra.mxu0 0
      %3750 = vmatprep.subr.bf16.mxu0 0
      %3751 = vmatpush1.bf16.msra.mxu0 0
      %3752 = vmatprep.subr.bf16.mxu0 0
      %3753 = vmatpush1.bf16.msra.mxu0 0
      %3754 = vmatprep.mubr.bf16.mxu0 0
      %3755 = vmatmul.mubr.bf16.gmra.mrb[0].mxu0 %v3672
      %v3756 = vpop.f32.mrb[0].mxu0
      %v3757 = vadd.f32 0.0, %v3756
      %v3758 = vpop.f32.mrb[0].mxu0
      %v3759 = vpop.f32.mrb[0].mxu0
      %v3760 = vadd.f32 0.0, %v3759
      %v3761 = vpop.f32.mrb[0].mxu0
      %3762 = vmatprep.mubr.bf16.mxu0 0
      %3763 = vmatmul.mubr.bf16.gmra.mrb[0].mxu0 %v3675
      %v3764 = vpop.f32.mrb[0].mxu0
      %v3765 = vadd.f32 0.0, %v3764
      %v3766 = vpop.f32.mrb[0].mxu0
      %v3767 = vpop.f32.mrb[0].mxu0
      %v3768 = vadd.f32 0.0, %v3767
      %v3769 = vpop.f32.mrb[0].mxu0
      %3770 = vmatprep.mubr.bf16.mxu0 0
      %3771 = vmatmul.mubr.bf16.gmra.mrb[0].mxu0 %v3678
      %v3772 = vpop.f32.mrb[0].mxu0
      %v3773 = vadd.f32 0.0, %v3772
      %v3774 = vpop.f32.mrb[0].mxu0
      %v3775 = vpop.f32.mrb[0].mxu0
      %v3776 = vadd.f32 0.0, %v3775
      %v3777 = vpop.f32.mrb[0].mxu0
      %3778 = vmatprep.mubr.bf16.mxu0 0
      %3779 = vmatmul.mubr.bf16.gmra.mrb[0].mxu0 %v3681
      %v3780 = vpop.f32.mrb[0].mxu0
      %v3781 = vadd.f32 0.0, %v3780
      %v3782 = vpop.f32.mrb[0].mxu0
      %v3783 = vpop.f32.mrb[0].mxu0
      %v3784 = vadd.f32 0.0, %v3783
      %v3785 = vpop.f32.mrb[0].mxu0
      %3786 = vmatprep.mubr.bf16.mxu0 0
      %3787 = vmatmul.mubr.bf16.gmra.mrb[0].mxu0 %v3684
      %v3788 = vpop.f32.mrb[0].mxu0
      %v3789 = vadd.f32 0.0, %v3788
      %v3790 = vpop.f32.mrb[0].mxu0
      %v3791 = vpop.f32.mrb[0].mxu0
      %v3792 = vadd.f32 0.0, %v3791
      %v3793 = vpop.f32.mrb[0].mxu0
      %3794 = vmatprep.mubr.bf16.mxu0 0
      %3795 = vmatmul.mubr.bf16.gmra.mrb[0].mxu0 %v3687
      %v3796 = vpop.f32.mrb[0].mxu0
      %v3797 = vadd.f32 0.0, %v3796
      %v3798 = vpop.f32.mrb[0].mxu0
      %v3799 = vpop.f32.mrb[0].mxu0
      %v3800 = vadd.f32 0.0, %v3799
      %v3801 = vpop.f32.mrb[0].mxu0
      %3802 = vmatprep.mubr.bf16.mxu0 0
      %3803 = vmatmul.mubr.bf16.gmra.mrb[0].mxu0 %v3690
      %v3804 = vpop.f32.mrb[0].mxu0
      %v3805 = vadd.f32 0.0, %v3804
      %v3806 = vpop.f32.mrb[0].mxu0
      %v3807 = vpop.f32.mrb[0].mxu0
      %v3808 = vadd.f32 0.0, %v3807
      %v3809 = vpop.f32.mrb[0].mxu0
      %3810 = vmatprep.mubr.bf16.mxu0 0
      %3811 = vmatmul.mubr.bf16.gmra.mrb[0].mxu0 %v3693
      %v3812 = vpop.f32.mrb[0].mxu0
      %v3813 = vadd.f32 0.0, %v3812
      %v3814 = vpop.f32.mrb[0].mxu0
      %v3815 = vpop.f32.mrb[0].mxu0
      %v3816 = vadd.f32 0.0, %v3815
      %v3817 = vpop.f32.mrb[0].mxu0
      %3818 = vmatprep.mubr.bf16.mxu0 0
      %3819 = vmatmul.mubr.bf16.gmra.mrb[0].mxu0 %v3696
      %v3820 = vpop.f32.mrb[0].mxu0
      %v3821 = vadd.f32 0.0, %v3820
      %v3822 = vpop.f32.mrb[0].mxu0
      %v3823 = vpop.f32.mrb[0].mxu0
      %v3824 = vadd.f32 0.0, %v3823
      %v3825 = vpop.f32.mrb[0].mxu0
      %3826 = vmatprep.mubr.bf16.mxu0 0
      %3827 = vmatmul.mubr.bf16.gmra.mrb[0].mxu0 %v3699
      %v3828 = vpop.f32.mrb[0].mxu0
      %v3829 = vadd.f32 0.0, %v3828
      %v3830 = vpop.f32.mrb[0].mxu0
      %v3831 = vpop.f32.mrb[0].mxu0
      %v3832 = vadd.f32 0.0, %v3831
      %v3833 = vpop.f32.mrb[0].mxu0
      %3834 = vmatprep.mubr.bf16.mxu0 0
      %3835 = vmatmul.mubr.bf16.gmra.mrb[0].mxu0 %v3702
      %v3836 = vpop.f32.mrb[0].mxu0
      %v3837 = vadd.f32 0.0, %v3836
      %v3838 = vpop.f32.mrb[0].mxu0
      %v3839 = vpop.f32.mrb[0].mxu0
      %v3840 = vadd.f32 0.0, %v3839
      %v3841 = vpop.f32.mrb[0].mxu0
      %3842 = vmatprep.mubr.bf16.mxu0 0
      %3843 = vmatmul.mubr.bf16.gmra.mrb[0].mxu0 %v3705
      %v3844 = vpop.f32.mrb[0].mxu0
      %v3845 = vadd.f32 0.0, %v3844
      %v3846 = vpop.f32.mrb[0].mxu0
      %v3847 = vpop.f32.mrb[0].mxu0
      %v3848 = vadd.f32 0.0, %v3847
      %v3849 = vpop.f32.mrb[0].mxu0
      %3850 = vmatprep.mubr.bf16.mxu0 0
      %3851 = vmatmul.mubr.bf16.gmra.mrb[0].mxu0 %v3708
      %v3852 = vpop.f32.mrb[0].mxu0
      %v3853 = vadd.f32 0.0, %v3852
      %v3854 = vpop.f32.mrb[0].mxu0
      %v3855 = vpop.f32.mrb[0].mxu0
      %v3856 = vadd.f32 0.0, %v3855
      %v3857 = vpop.f32.mrb[0].mxu0
      %3858 = vmatprep.mubr.bf16.mxu0 0
      %3859 = vmatmul.mubr.bf16.gmra.mrb[0].mxu0 %v3711
      %v3860 = vpop.f32.mrb[0].mxu0
      %v3861 = vadd.f32 0.0, %v3860
      %v3862 = vpop.f32.mrb[0].mxu0
      %v3863 = vpop.f32.mrb[0].mxu0
      %v3864 = vadd.f32 0.0, %v3863
      %v3865 = vpop.f32.mrb[0].mxu0
      %3866 = vmatprep.mubr.bf16.mxu0 0
      %3867 = vmatmul.mubr.bf16.gmra.mrb[0].mxu0 %v3714
      %v3868 = vpop.f32.mrb[0].mxu0
      %v3869 = vadd.f32 0.0, %v3868
      %v3870 = vpop.f32.mrb[0].mxu0
      %v3871 = vpop.f32.mrb[0].mxu0
      %v3872 = vadd.f32 0.0, %v3871
      %v3873 = vpop.f32.mrb[0].mxu0
      %3874 = vmatprep.mubr.bf16.mxu0 0
      %3875 = vmatmul.mubr.bf16.gmra.mrb[0].mxu0 %v3717
      %v3876 = vpop.f32.mrb[0].mxu0
      %v3877 = vadd.f32 0.0, %v3876
      %v3878 = vpop.f32.mrb[0].mxu0
      %v3879 = vpop.f32.mrb[0].mxu0
      %v3880 = vadd.f32 0.0, %v3879
      %v3881 = vpop.f32.mrb[0].mxu0
      %3882 = vdwg.mxu0
      %v3883 = vadd.f32 %v3413, %v3757
      %v3884 = vadd.f32 %v3414, %v3760
      %v3885 = vadd.f32 %v3415, %v3765
      %v3886 = vadd.f32 %v3416, %v3768
      %v3887 = vadd.f32 %v3417, %v3773
      %v3888 = vadd.f32 %v3418, %v3776
      %v3889 = vadd.f32 %v3419, %v3781
      %v3890 = vadd.f32 %v3420, %v3784
      %v3891 = vadd.f32 %v3421, %v3789
      %v3892 = vadd.f32 %v3422, %v3792
      %v3893 = vadd.f32 %v3423, %v3797
      %v3894 = vadd.f32 %v3424, %v3800
      %v3895 = vadd.f32 %v3425, %v3805
      %v3896 = vadd.f32 %v3426, %v3808
      %v3897 = vadd.f32 %v3427, %v3813
      %v3898 = vadd.f32 %v3428, %v3816
      %v3899 = vadd.f32 %v3429, %v3821
      %v3900 = vadd.f32 %v3430, %v3824
      %v3901 = vadd.f32 %v3431, %v3829
      %v3902 = vadd.f32 %v3432, %v3832
      %v3903 = vadd.f32 %v3433, %v3837
      %v3904 = vadd.f32 %v3434, %v3840
      %v3905 = vadd.f32 %v3435, %v3845
      %v3906 = vadd.f32 %v3436, %v3848
      %v3907 = vadd.f32 %v3437, %v3853
      %v3908 = vadd.f32 %v3438, %v3856
      %v3909 = vadd.f32 %v3439, %v3861
      %v3910 = vadd.f32 %v3440, %v3864
      %v3911 = vadd.f32 %v3441, %v3869
      %v3912 = vadd.f32 %v3442, %v3872
      %v3913 = vadd.f32 %v3443, %v3877
      %v3914 = vadd.f32 %v3444, %v3880
      %s3915 = scalar_lea.vmem [#allocation2], 24
      %v3916 = vld [vmem:[%s3915] sm:$0xf]
      %v3917 = vld [vmem:[%s3915 + $0x4] sm:$0xf]
      %v3918 = vld [vmem:[%s3915 + $0xc] sm:$0xf]
      %v3919 = vld [vmem:[%s3915 + $0x10] sm:$0xf]
      %v3920 = vld [vmem:[%s3915 + $0x18] sm:$0xf]
      %v3921 = vld [vmem:[%s3915 + $0x1c] sm:$0xf]
      %v3922 = vld [vmem:[%s3915 + $0x24] sm:$0xf]
      %v3923 = vld [vmem:[%s3915 + $0x28] sm:$0xf]
      %v3924 = vld [vmem:[%s3915 + $0x30] sm:$0xf]
      %v3925 = vld [vmem:[%s3915 + $0x34] sm:$0xf]
      %v3926 = vld [vmem:[%s3915 + $0x3c] sm:$0xf]
      %v3927 = vld [vmem:[%s3915 + $0x40] sm:$0xf]
      %v3928 = vld [vmem:[%s3915 + $0x48] sm:$0xf]
      %v3929 = vld [vmem:[%s3915 + $0x4c] sm:$0xf]
      %v3930 = vld [vmem:[%s3915 + $0x54] sm:$0xf]
      %v3931 = vld [vmem:[%s3915 + $0x58] sm:$0xf]
      %v3932 = vld [vmem:[%s3915 + $0x60] sm:$0xf]
      %v3933 = vld [vmem:[%s3915 + $0x64] sm:$0xf]
      %v3934 = vld [vmem:[%s3915 + $0x6c] sm:$0xf]
      %v3935 = vld [vmem:[%s3915 + $0x70] sm:$0xf]
      %v3936 = vld [vmem:[%s3915 + $0x78] sm:$0xf]
      %v3937 = vld [vmem:[%s3915 + $0x7c] sm:$0xf]
      %v3938 = vld [vmem:[%s3915 + $0x84] sm:$0xf]
      %v3939 = vld [vmem:[%s3915 + $0x88] sm:$0xf]
      %v3940 = vld [vmem:[%s3915 + $0x90] sm:$0xf]
      %v3941 = vld [vmem:[%s3915 + $0x94] sm:$0xf]
      %v3942 = vld [vmem:[%s3915 + $0x9c] sm:$0xf]
      %v3943 = vld [vmem:[%s3915 + $0xa0] sm:$0xf]
      %v3944 = vld [vmem:[%s3915 + $0xa8] sm:$0xf]
      %v3945 = vld [vmem:[%s3915 + $0xac] sm:$0xf]
      %v3946 = vld [vmem:[%s3915 + $0xb4] sm:$0xf]
      %v3947 = vld [vmem:[%s3915 + $0xb8] sm:$0xf]
      %s3948 = scalar_lea.vmem %s3, 12
      %v3949 = vld [vmem:[%s3948] sm:$0x3]
      %v3982 = vunpack.c.l.b16 %v3916
      %v3983 = vunpack.c.l.b16 %v3917
      %v3984 = vunpack.c.l.b16 %v3918
      %v3985 = vunpack.c.l.b16 %v3919
      %v3986 = vunpack.c.l.b16 %v3920
      %v3987 = vunpack.c.l.b16 %v3921
      %v3988 = vunpack.c.l.b16 %v3922
      %v3989 = vunpack.c.l.b16 %v3923
      %v3990 = vunpack.c.l.b16 %v3924
      %v3991 = vunpack.c.l.b16 %v3925
      %v3992 = vunpack.c.l.b16 %v3926
      %v3993 = vunpack.c.l.b16 %v3927
      %v3994 = vunpack.c.l.b16 %v3928
      %v3995 = vunpack.c.l.b16 %v3929
      %v3996 = vunpack.c.l.b16 %v3930
      %v3997 = vunpack.c.l.b16 %v3931
      %v3998 = vunpack.c.l.b16 %v3932
      %v3999 = vunpack.c.l.b16 %v3933
      %v4000 = vunpack.c.l.b16 %v3934
      %v4001 = vunpack.c.l.b16 %v3935
      %v4002 = vunpack.c.l.b16 %v3936
      %v4003 = vunpack.c.l.b16 %v3937
      %v4004 = vunpack.c.l.b16 %v3938
      %v4005 = vunpack.c.l.b16 %v3939
      %v4006 = vunpack.c.l.b16 %v3940
      %v4007 = vunpack.c.l.b16 %v3941
      %v4008 = vunpack.c.l.b16 %v3942
      %v4009 = vunpack.c.l.b16 %v3943
      %v4010 = vunpack.c.l.b16 %v3944
      %v4011 = vunpack.c.l.b16 %v3945
      %v4012 = vunpack.c.l.b16 %v3946
      %v4013 = vunpack.c.l.b16 %v3947
      %v4014 = vpack.c.b16 %v3983, %v3982
      %v4015 = vpack.c.b16 %v3985, %v3984
      %v4016 = vpack.c.b16 %v3987, %v3986
      %v4017 = vpack.c.b16 %v3989, %v3988
      %v4018 = vpack.c.b16 %v3991, %v3990
      %v4019 = vpack.c.b16 %v3993, %v3992
      %v4020 = vpack.c.b16 %v3995, %v3994
      %v4021 = vpack.c.b16 %v3997, %v3996
      %v4022 = vpack.c.b16 %v3999, %v3998
      %v4023 = vpack.c.b16 %v4001, %v4000
      %v4024 = vpack.c.b16 %v4003, %v4002
      %v4025 = vpack.c.b16 %v4005, %v4004
      %v4026 = vpack.c.b16 %v4007, %v4006
      %v4027 = vpack.c.b16 %v4009, %v4008
      %v4028 = vpack.c.b16 %v4011, %v4010
      %v4029 = vpack.c.b16 %v4013, %v4012
      %v4031 = vsel %vm1398, %v4014, 0
      %v4034 = vsel %vm1398, %v4015, 0
      %v4037 = vsel %vm1398, %v4016, 0
      %v4040 = vsel %vm1398, %v4017, 0
      %v4043 = vsel %vm1398, %v4018, 0
      %v4046 = vsel %vm1398, %v4019, 0
      %v4049 = vsel %vm1398, %v4020, 0
      %v4052 = vsel %vm1398, %v4021, 0
      %v4055 = vsel %vm1398, %v4022, 0
      %v4058 = vsel %vm1398, %v4023, 0
      %v4061 = vsel %vm1398, %v4024, 0
      %v4064 = vsel %vm1398, %v4025, 0
      %v4067 = vsel %vm1398, %v4026, 0
      %v4070 = vsel %vm1398, %v4027, 0
      %v4073 = vsel %vm1398, %v4028, 0
      %v4076 = vsel %vm1398, %v4029, 0
      %v4079 = vsel %vm1447, %v3949, 0
      %4081 = vmatprep.subr.bf16.mxu0 0
      %4082 = vmatpush1.bf16.msra.mxu0 %v4079
      %4083 = vmatprep.subr.bf16.mxu0 0
      %4084 = vmatpush1.bf16.msra.mxu0 0
      %4085 = vmatprep.subr.bf16.mxu0 0
      %4086 = vmatpush1.bf16.msra.mxu0 0
      %4087 = vmatprep.subr.bf16.mxu0 0
      %4088 = vmatpush1.bf16.msra.mxu0 0
      %4089 = vmatprep.subr.bf16.mxu0 0
      %4090 = vmatpush1.bf16.msra.mxu0 0
      %4091 = vmatprep.subr.bf16.mxu0 0
      %4092 = vmatpush1.bf16.msra.mxu0 0
      %4093 = vmatprep.subr.bf16.mxu0 0
      %4094 = vmatpush1.bf16.msra.mxu0 0
      %4095 = vmatprep.subr.bf16.mxu0 0
      %4096 = vmatpush1.bf16.msra.mxu0 0
      %4097 = vmatprep.subr.bf16.mxu0 0
      %4098 = vmatpush1.bf16.msra.mxu0 0
      %4099 = vmatprep.subr.bf16.mxu0 0
      %4100 = vmatpush1.bf16.msra.mxu0 0
      %4101 = vmatprep.subr.bf16.mxu0 0
      %4102 = vmatpush1.bf16.msra.mxu0 0
      %4103 = vmatprep.subr.bf16.mxu0 0
      %4104 = vmatpush1.bf16.msra.mxu0 0
      %4105 = vmatprep.subr.bf16.mxu0 0
      %4106 = vmatpush1.bf16.msra.mxu0 0
      %4107 = vmatprep.subr.bf16.mxu0 0
      %4108 = vmatpush1.bf16.msra.mxu0 0
      %4109 = vmatprep.subr.bf16.mxu0 0
      %4110 = vmatpush1.bf16.msra.mxu0 0
      %4111 = vmatprep.subr.bf16.mxu0 0
      %4112 = vmatpush1.bf16.msra.mxu0 0
      %4113 = vmatprep.mubr.bf16.mxu0 0
      %4114 = vmatmul.mubr.bf16.gmra.mrb[0].mxu0 %v4031
      %v4115 = vpop.f32.mrb[0].mxu0
      %v4116 = vadd.f32 0.0, %v4115
      %v4117 = vpop.f32.mrb[0].mxu0
      %v4118 = vpop.f32.mrb[0].mxu0
      %v4119 = vadd.f32 0.0, %v4118
      %v4120 = vpop.f32.mrb[0].mxu0
      %4121 = vmatprep.mubr.bf16.mxu0 0
      %4122 = vmatmul.mubr.bf16.gmra.mrb[0].mxu0 %v4034
      %v4123 = vpop.f32.mrb[0].mxu0
      %v4124 = vadd.f32 0.0, %v4123
      %v4125 = vpop.f32.mrb[0].mxu0
      %v4126 = vpop.f32.mrb[0].mxu0
      %v4127 = vadd.f32 0.0, %v4126
      %v4128 = vpop.f32.mrb[0].mxu0
      %4129 = vmatprep.mubr.bf16.mxu0 0
      %4130 = vmatmul.mubr.bf16.gmra.mrb[0].mxu0 %v4037
      %v4131 = vpop.f32.mrb[0].mxu0
      %v4132 = vadd.f32 0.0, %v4131
      %v4133 = vpop.f32.mrb[0].mxu0
      %v4134 = vpop.f32.mrb[0].mxu0
      %v4135 = vadd.f32 0.0, %v4134
      %v4136 = vpop.f32.mrb[0].mxu0
      %4137 = vmatprep.mubr.bf16.mxu0 0
      %4138 = vmatmul.mubr.bf16.gmra.mrb[0].mxu0 %v4040
      %v4139 = vpop.f32.mrb[0].mxu0
      %v4140 = vadd.f32 0.0, %v4139
      %v4141 = vpop.f32.mrb[0].mxu0
      %v4142 = vpop.f32.mrb[0].mxu0
      %v4143 = vadd.f32 0.0, %v4142
      %v4144 = vpop.f32.mrb[0].mxu0
      %4145 = vmatprep.mubr.bf16.mxu0 0
      %4146 = vmatmul.mubr.bf16.gmra.mrb[0].mxu0 %v4043
      %v4147 = vpop.f32.mrb[0].mxu0
      %v4148 = vadd.f32 0.0, %v4147
      %v4149 = vpop.f32.mrb[0].mxu0
      %v4150 = vpop.f32.mrb[0].mxu0
      %v4151 = vadd.f32 0.0, %v4150
      %v4152 = vpop.f32.mrb[0].mxu0
      %4153 = vmatprep.mubr.bf16.mxu0 0
      %4154 = vmatmul.mubr.bf16.gmra.mrb[0].mxu0 %v4046
      %v4155 = vpop.f32.mrb[0].mxu0
      %v4156 = vadd.f32 0.0, %v4155
      %v4157 = vpop.f32.mrb[0].mxu0
      %v4158 = vpop.f32.mrb[0].mxu0
      %v4159 = vadd.f32 0.0, %v4158
      %v4160 = vpop.f32.mrb[0].mxu0
      %4161 = vmatprep.mubr.bf16.mxu0 0
      %4162 = vmatmul.mubr.bf16.gmra.mrb[0].mxu0 %v4049
      %v4163 = vpop.f32.mrb[0].mxu0
      %v4164 = vadd.f32 0.0, %v4163
      %v4165 = vpop.f32.mrb[0].mxu0
      %v4166 = vpop.f32.mrb[0].mxu0
      %v4167 = vadd.f32 0.0, %v4166
      %v4168 = vpop.f32.mrb[0].mxu0
      %4169 = vmatprep.mubr.bf16.mxu0 0
      %4170 = vmatmul.mubr.bf16.gmra.mrb[0].mxu0 %v4052
      %v4171 = vpop.f32.mrb[0].mxu0
      %v4172 = vadd.f32 0.0, %v4171
      %v4173 = vpop.f32.mrb[0].mxu0
      %v4174 = vpop.f32.mrb[0].mxu0
      %v4175 = vadd.f32 0.0, %v4174
      %v4176 = vpop.f32.mrb[0].mxu0
      %4177 = vmatprep.mubr.bf16.mxu0 0
      %4178 = vmatmul.mubr.bf16.gmra.mrb[0].mxu0 %v4055
      %v4179 = vpop.f32.mrb[0].mxu0
      %v4180 = vadd.f32 0.0, %v4179
      %v4181 = vpop.f32.mrb[0].mxu0
      %v4182 = vpop.f32.mrb[0].mxu0
      %v4183 = vadd.f32 0.0, %v4182
      %v4184 = vpop.f32.mrb[0].mxu0
      %4185 = vmatprep.mubr.bf16.mxu0 0
      %4186 = vmatmul.mubr.bf16.gmra.mrb[0].mxu0 %v4058
      %v4187 = vpop.f32.mrb[0].mxu0
      %v4188 = vadd.f32 0.0, %v4187
      %v4189 = vpop.f32.mrb[0].mxu0
      %v4190 = vpop.f32.mrb[0].mxu0
      %v4191 = vadd.f32 0.0, %v4190
      %v4192 = vpop.f32.mrb[0].mxu0
      %4193 = vmatprep.mubr.bf16.mxu0 0
      %4194 = vmatmul.mubr.bf16.gmra.mrb[0].mxu0 %v4061
      %v4195 = vpop.f32.mrb[0].mxu0
      %v4196 = vadd.f32 0.0, %v4195
      %v4197 = vpop.f32.mrb[0].mxu0
      %v4198 = vpop.f32.mrb[0].mxu0
      %v4199 = vadd.f32 0.0, %v4198
      %v4200 = vpop.f32.mrb[0].mxu0
      %4201 = vmatprep.mubr.bf16.mxu0 0
      %4202 = vmatmul.mubr.bf16.gmra.mrb[0].mxu0 %v4064
      %v4203 = vpop.f32.mrb[0].mxu0
      %v4204 = vadd.f32 0.0, %v4203
      %v4205 = vpop.f32.mrb[0].mxu0
      %v4206 = vpop.f32.mrb[0].mxu0
      %v4207 = vadd.f32 0.0, %v4206
      %v4208 = vpop.f32.mrb[0].mxu0
      %4209 = vmatprep.mubr.bf16.mxu0 0
      %4210 = vmatmul.mubr.bf16.gmra.mrb[0].mxu0 %v4067
      %v4211 = vpop.f32.mrb[0].mxu0
      %v4212 = vadd.f32 0.0, %v4211
      %v4213 = vpop.f32.mrb[0].mxu0
      %v4214 = vpop.f32.mrb[0].mxu0
      %v4215 = vadd.f32 0.0, %v4214
      %v4216 = vpop.f32.mrb[0].mxu0
      %4217 = vmatprep.mubr.bf16.mxu0 0
      %4218 = vmatmul.mubr.bf16.gmra.mrb[0].mxu0 %v4070
      %v4219 = vpop.f32.mrb[0].mxu0
      %v4220 = vadd.f32 0.0, %v4219
      %v4221 = vpop.f32.mrb[0].mxu0
      %v4222 = vpop.f32.mrb[0].mxu0
      %v4223 = vadd.f32 0.0, %v4222
      %v4224 = vpop.f32.mrb[0].mxu0
      %4225 = vmatprep.mubr.bf16.mxu0 0
      %4226 = vmatmul.mubr.bf16.gmra.mrb[0].mxu0 %v4073
      %v4227 = vpop.f32.mrb[0].mxu0
      %v4228 = vadd.f32 0.0, %v4227
      %v4229 = vpop.f32.mrb[0].mxu0
      %v4230 = vpop.f32.mrb[0].mxu0
      %v4231 = vadd.f32 0.0, %v4230
      %v4232 = vpop.f32.mrb[0].mxu0
      %4233 = vmatprep.mubr.bf16.mxu0 0
      %4234 = vmatmul.mubr.bf16.gmra.mrb[0].mxu0 %v4076
      %v4235 = vpop.f32.mrb[0].mxu0
      %v4236 = vadd.f32 0.0, %v4235
      %v4237 = vpop.f32.mrb[0].mxu0
      %v4238 = vpop.f32.mrb[0].mxu0
      %v4239 = vadd.f32 0.0, %v4238
      %v4240 = vpop.f32.mrb[0].mxu0
      %4241 = vdwg.mxu0
      %v4242 = vadd.f32 %v3883, %v4116
      %v4243 = vadd.f32 %v3884, %v4119
      %v4244 = vadd.f32 %v3885, %v4124
      %v4245 = vadd.f32 %v3886, %v4127
      %v4246 = vadd.f32 %v3887, %v4132
      %v4247 = vadd.f32 %v3888, %v4135
      %v4248 = vadd.f32 %v3889, %v4140
      %v4249 = vadd.f32 %v3890, %v4143
      %v4250 = vadd.f32 %v3891, %v4148
      %v4251 = vadd.f32 %v3892, %v4151
      %v4252 = vadd.f32 %v3893, %v4156
      %v4253 = vadd.f32 %v3894, %v4159
      %v4254 = vadd.f32 %v3895, %v4164
      %v4255 = vadd.f32 %v3896, %v4167
      %v4256 = vadd.f32 %v3897, %v4172
      %v4257 = vadd.f32 %v3898, %v4175
      %v4258 = vadd.f32 %v3899, %v4180
      %v4259 = vadd.f32 %v3900, %v4183
      %v4260 = vadd.f32 %v3901, %v4188
      %v4261 = vadd.f32 %v3902, %v4191
      %v4262 = vadd.f32 %v3903, %v4196
      %v4263 = vadd.f32 %v3904, %v4199
      %v4264 = vadd.f32 %v3905, %v4204
      %v4265 = vadd.f32 %v3906, %v4207
      %v4266 = vadd.f32 %v3907, %v4212
      %v4267 = vadd.f32 %v3908, %v4215
      %v4268 = vadd.f32 %v3909, %v4220
      %v4269 = vadd.f32 %v3910, %v4223
      %v4270 = vadd.f32 %v3911, %v4228
      %v4271 = vadd.f32 %v3912, %v4231
      %v4272 = vadd.f32 %v3913, %v4236
      %v4273 = vadd.f32 %v3914, %v4239
      %v4274 = vld [vmem:[%s3915] sm:$0xf]
      %v4275 = vld [vmem:[%s3915 + $0x4] sm:$0xf]
      %v4276 = vld [vmem:[%s3915 + $0x8] sm:$0x1]
      %v4277 = vld [vmem:[%s3915 + $0xc] sm:$0xf]
      %v4278 = vld [vmem:[%s3915 + $0x10] sm:$0xf]
      %v4279 = vld [vmem:[%s3915 + $0x14] sm:$0x1]
      %v4280 = vld [vmem:[%s3915 + $0x18] sm:$0xf]
      %v4281 = vld [vmem:[%s3915 + $0x1c] sm:$0xf]
      %v4282 = vld [vmem:[%s3915 + $0x20] sm:$0x1]
      %v4283 = vld [vmem:[%s3915 + $0x24] sm:$0xf]
      %v4284 = vld [vmem:[%s3915 + $0x28] sm:$0xf]
      %v4285 = vld [vmem:[%s3915 + $0x2c] sm:$0x1]
      %v4286 = vld [vmem:[%s3915 + $0x30] sm:$0xf]
      %v4287 = vld [vmem:[%s3915 + $0x34] sm:$0xf]
      %v4288 = vld [vmem:[%s3915 + $0x38] sm:$0x1]
      %v4289 = vld [vmem:[%s3915 + $0x3c] sm:$0xf]
      %v4290 = vld [vmem:[%s3915 + $0x40] sm:$0xf]
      %v4291 = vld [vmem:[%s3915 + $0x44] sm:$0x1]
      %v4292 = vld [vmem:[%s3915 + $0x48] sm:$0xf]
      %v4293 = vld [vmem:[%s3915 + $0x4c] sm:$0xf]
      %v4294 = vld [vmem:[%s3915 + $0x50] sm:$0x1]
      %v4295 = vld [vmem:[%s3915 + $0x54] sm:$0xf]
      %v4296 = vld [vmem:[%s3915 + $0x58] sm:$0xf]
      %v4297 = vld [vmem:[%s3915 + $0x5c] sm:$0x1]
      %v4298 = vld [vmem:[%s3915 + $0x60] sm:$0xf]
      %v4299 = vld [vmem:[%s3915 + $0x64] sm:$0xf]
      %v4300 = vld [vmem:[%s3915 + $0x68] sm:$0x1]
      %v4301 = vld [vmem:[%s3915 + $0x6c] sm:$0xf]
      %v4302 = vld [vmem:[%s3915 + $0x70] sm:$0xf]
      %v4303 = vld [vmem:[%s3915 + $0x74] sm:$0x1]
      %v4304 = vld [vmem:[%s3915 + $0x78] sm:$0xf]
      %v4305 = vld [vmem:[%s3915 + $0x7c] sm:$0xf]
      %v4306 = vld [vmem:[%s3915 + $0x80] sm:$0x1]
      %v4307 = vld [vmem:[%s3915 + $0x84] sm:$0xf]
      %v4308 = vld [vmem:[%s3915 + $0x88] sm:$0xf]
      %v4309 = vld [vmem:[%s3915 + $0x8c] sm:$0x1]
      %v4310 = vld [vmem:[%s3915 + $0x90] sm:$0xf]
      %v4311 = vld [vmem:[%s3915 + $0x94] sm:$0xf]
      %v4312 = vld [vmem:[%s3915 + $0x98] sm:$0x1]
      %v4313 = vld [vmem:[%s3915 + $0x9c] sm:$0xf]
      %v4314 = vld [vmem:[%s3915 + $0xa0] sm:$0xf]
      %v4315 = vld [vmem:[%s3915 + $0xa4] sm:$0x1]
      %v4316 = vld [vmem:[%s3915 + $0xa8] sm:$0xf]
      %v4317 = vld [vmem:[%s3915 + $0xac] sm:$0xf]
      %v4318 = vld [vmem:[%s3915 + $0xb0] sm:$0x1]
      %v4319 = vld [vmem:[%s3915 + $0xb4] sm:$0xf]
      %v4320 = vld [vmem:[%s3915 + $0xb8] sm:$0xf]
      %v4321 = vld [vmem:[%s3915 + $0xbc] sm:$0x1]
      %v4323 = vshrl.u32 %v4274, 16
      %v4325 = vrot.slane %v4323, 4
      %v4326 = vshll.u32 %v4274, 16
      %v4328 = vrot.slane %v4326, 5
      %v4329 = vor.u32 %v4325, %v4328
      %v4330 = vrot.slane %v4329, 4
      %v4332 = vshll.u32 %v4275, 16
      %v4334 = vrot.slane %v4332, 5
      %v4335 = vsel %vm963, %v4330, %v4334
      %v4336 = vshrl.u32 %v4275, 16
      %v4338 = vrot.slane %v4336, 4
      %v4339 = vor.u32 %v4338, %v4334
      %v4340 = vrot.slane %v4339, 4
      %v4342 = vshll.u32 %v4276, 16
      %v4344 = vrot.slane %v4342, 5
      %v4345 = vsel %vm963, %v4340, %v4344
      %v4347 = vshrl.u32 %v4277, 16
      %v4349 = vrot.slane %v4347, 4
      %v4350 = vshll.u32 %v4277, 16
      %v4352 = vrot.slane %v4350, 5
      %v4353 = vor.u32 %v4349, %v4352
      %v4354 = vrot.slane %v4353, 4
      %v4356 = vshll.u32 %v4278, 16
      %v4358 = vrot.slane %v4356, 5
      %v4359 = vsel %vm963, %v4354, %v4358
      %v4360 = vshrl.u32 %v4278, 16
      %v4362 = vrot.slane %v4360, 4
      %v4363 = vor.u32 %v4362, %v4358
      %v4364 = vrot.slane %v4363, 4
      %v4366 = vshll.u32 %v4279, 16
      %v4368 = vrot.slane %v4366, 5
      %v4369 = vsel %vm963, %v4364, %v4368
      %v4371 = vshrl.u32 %v4280, 16
      %v4373 = vrot.slane %v4371, 4
      %v4374 = vshll.u32 %v4280, 16
      %v4376 = vrot.slane %v4374, 5
      %v4377 = vor.u32 %v4373, %v4376
      %v4378 = vrot.slane %v4377, 4
      %v4380 = vshll.u32 %v4281, 16
      %v4382 = vrot.slane %v4380, 5
      %v4383 = vsel %vm963, %v4378, %v4382
      %v4384 = vshrl.u32 %v4281, 16
      %v4386 = vrot.slane %v4384, 4
      %v4387 = vor.u32 %v4386, %v4382
      %v4388 = vrot.slane %v4387, 4
      %v4390 = vshll.u32 %v4282, 16
      %v4392 = vrot.slane %v4390, 5
      %v4393 = vsel %vm963, %v4388, %v4392
      %v4395 = vshrl.u32 %v4283, 16
      %v4397 = vrot.slane %v4395, 4
      %v4398 = vshll.u32 %v4283, 16
      %v4400 = vrot.slane %v4398, 5
      %v4401 = vor.u32 %v4397, %v4400
      %v4402 = vrot.slane %v4401, 4
      %v4404 = vshll.u32 %v4284, 16
      %v4406 = vrot.slane %v4404, 5
      %v4407 = vsel %vm963, %v4402, %v4406
      %v4408 = vshrl.u32 %v4284, 16
      %v4410 = vrot.slane %v4408, 4
      %v4411 = vor.u32 %v4410, %v4406
      %v4412 = vrot.slane %v4411, 4
      %v4414 = vshll.u32 %v4285, 16
      %v4416 = vrot.slane %v4414, 5
      %v4417 = vsel %vm963, %v4412, %v4416
      %v4419 = vshrl.u32 %v4286, 16
      %v4421 = vrot.slane %v4419, 4
      %v4422 = vshll.u32 %v4286, 16
      %v4424 = vrot.slane %v4422, 5
      %v4425 = vor.u32 %v4421, %v4424
      %v4426 = vrot.slane %v4425, 4
      %v4428 = vshll.u32 %v4287, 16
      %v4430 = vrot.slane %v4428, 5
      %v4431 = vsel %vm963, %v4426, %v4430
      %v4432 = vshrl.u32 %v4287, 16
      %v4434 = vrot.slane %v4432, 4
      %v4435 = vor.u32 %v4434, %v4430
      %v4436 = vrot.slane %v4435, 4
      %v4438 = vshll.u32 %v4288, 16
      %v4440 = vrot.slane %v4438, 5
      %v4441 = vsel %vm963, %v4436, %v4440
      %v4443 = vshrl.u32 %v4289, 16
      %v4445 = vrot.slane %v4443, 4
      %v4446 = vshll.u32 %v4289, 16
      %v4448 = vrot.slane %v4446, 5
      %v4449 = vor.u32 %v4445, %v4448
      %v4450 = vrot.slane %v4449, 4
      %v4452 = vshll.u32 %v4290, 16
      %v4454 = vrot.slane %v4452, 5
      %v4455 = vsel %vm963, %v4450, %v4454
      %v4456 = vshrl.u32 %v4290, 16
      %v4458 = vrot.slane %v4456, 4
      %v4459 = vor.u32 %v4458, %v4454
      %v4460 = vrot.slane %v4459, 4
      %v4462 = vshll.u32 %v4291, 16
      %v4464 = vrot.slane %v4462, 5
      %v4465 = vsel %vm963, %v4460, %v4464
      %v4467 = vshrl.u32 %v4292, 16
      %v4469 = vrot.slane %v4467, 4
      %v4470 = vshll.u32 %v4292, 16
      %v4472 = vrot.slane %v4470, 5
      %v4473 = vor.u32 %v4469, %v4472
      %v4474 = vrot.slane %v4473, 4
      %v4476 = vshll.u32 %v4293, 16
      %v4478 = vrot.slane %v4476, 5
      %v4479 = vsel %vm963, %v4474, %v4478
      %v4480 = vshrl.u32 %v4293, 16
      %v4482 = vrot.slane %v4480, 4
      %v4483 = vor.u32 %v4482, %v4478
      %v4484 = vrot.slane %v4483, 4
      %v4486 = vshll.u32 %v4294, 16
      %v4488 = vrot.slane %v4486, 5
      %v4489 = vsel %vm963, %v4484, %v4488
      %v4491 = vshrl.u32 %v4295, 16
      %v4493 = vrot.slane %v4491, 4
      %v4494 = vshll.u32 %v4295, 16
      %v4496 = vrot.slane %v4494, 5
      %v4497 = vor.u32 %v4493, %v4496
      %v4498 = vrot.slane %v4497, 4
      %v4500 = vshll.u32 %v4296, 16
      %v4502 = vrot.slane %v4500, 5
      %v4503 = vsel %vm963, %v4498, %v4502
      %v4504 = vshrl.u32 %v4296, 16
      %v4506 = vrot.slane %v4504, 4
      %v4507 = vor.u32 %v4506, %v4502
      %v4508 = vrot.slane %v4507, 4
      %v4510 = vshll.u32 %v4297, 16
      %v4512 = vrot.slane %v4510, 5
      %v4513 = vsel %vm963, %v4508, %v4512
      %v4515 = vshrl.u32 %v4298, 16
      %v4517 = vrot.slane %v4515, 4
      %v4518 = vshll.u32 %v4298, 16
      %v4520 = vrot.slane %v4518, 5
      %v4521 = vor.u32 %v4517, %v4520
      %v4522 = vrot.slane %v4521, 4
      %v4524 = vshll.u32 %v4299, 16
      %v4526 = vrot.slane %v4524, 5
      %v4527 = vsel %vm963, %v4522, %v4526
      %v4528 = vshrl.u32 %v4299, 16
      %v4530 = vrot.slane %v4528, 4
      %v4531 = vor.u32 %v4530, %v4526
      %v4532 = vrot.slane %v4531, 4
      %v4534 = vshll.u32 %v4300, 16
      %v4536 = vrot.slane %v4534, 5
      %v4537 = vsel %vm963, %v4532, %v4536
      %v4539 = vshrl.u32 %v4301, 16
      %v4541 = vrot.slane %v4539, 4
      %v4542 = vshll.u32 %v4301, 16
      %v4544 = vrot.slane %v4542, 5
      %v4545 = vor.u32 %v4541, %v4544
      %v4546 = vrot.slane %v4545, 4
      %v4548 = vshll.u32 %v4302, 16
      %v4550 = vrot.slane %v4548, 5
      %v4551 = vsel %vm963, %v4546, %v4550
      %v4552 = vshrl.u32 %v4302, 16
      %v4554 = vrot.slane %v4552, 4
      %v4555 = vor.u32 %v4554, %v4550
      %v4556 = vrot.slane %v4555, 4
      %v4558 = vshll.u32 %v4303, 16
      %v4560 = vrot.slane %v4558, 5
      %v4561 = vsel %vm963, %v4556, %v4560
      %v4563 = vshrl.u32 %v4304, 16
      %v4565 = vrot.slane %v4563, 4
      %v4566 = vshll.u32 %v4304, 16
      %v4568 = vrot.slane %v4566, 5
      %v4569 = vor.u32 %v4565, %v4568
      %v4570 = vrot.slane %v4569, 4
      %v4572 = vshll.u32 %v4305, 16
      %v4574 = vrot.slane %v4572, 5
      %v4575 = vsel %vm963, %v4570, %v4574
      %v4576 = vshrl.u32 %v4305, 16
      %v4578 = vrot.slane %v4576, 4
      %v4579 = vor.u32 %v4578, %v4574
      %v4580 = vrot.slane %v4579, 4
      %v4582 = vshll.u32 %v4306, 16
      %v4584 = vrot.slane %v4582, 5
      %v4585 = vsel %vm963, %v4580, %v4584
      %v4587 = vshrl.u32 %v4307, 16
      %v4589 = vrot.slane %v4587, 4
      %v4590 = vshll.u32 %v4307, 16
      %v4592 = vrot.slane %v4590, 5
      %v4593 = vor.u32 %v4589, %v4592
      %v4594 = vrot.slane %v4593, 4
      %v4596 = vshll.u32 %v4308, 16
      %v4598 = vrot.slane %v4596, 5
      %v4599 = vsel %vm963, %v4594, %v4598
      %v4600 = vshrl.u32 %v4308, 16
      %v4602 = vrot.slane %v4600, 4
      %v4603 = vor.u32 %v4602, %v4598
      %v4604 = vrot.slane %v4603, 4
      %v4606 = vshll.u32 %v4309, 16
      %v4608 = vrot.slane %v4606, 5
      %v4609 = vsel %vm963, %v4604, %v4608
      %v4611 = vshrl.u32 %v4310, 16
      %v4613 = vrot.slane %v4611, 4
      %v4614 = vshll.u32 %v4310, 16
      %v4616 = vrot.slane %v4614, 5
      %v4617 = vor.u32 %v4613, %v4616
      %v4618 = vrot.slane %v4617, 4
      %v4620 = vshll.u32 %v4311, 16
      %v4622 = vrot.slane %v4620, 5
      %v4623 = vsel %vm963, %v4618, %v4622
      %v4624 = vshrl.u32 %v4311, 16
      %v4626 = vrot.slane %v4624, 4
      %v4627 = vor.u32 %v4626, %v4622
      %v4628 = vrot.slane %v4627, 4
      %v4630 = vshll.u32 %v4312, 16
      %v4632 = vrot.slane %v4630, 5
      %v4633 = vsel %vm963, %v4628, %v4632
      %v4635 = vshrl.u32 %v4313, 16
      %v4637 = vrot.slane %v4635, 4
      %v4638 = vshll.u32 %v4313, 16
      %v4640 = vrot.slane %v4638, 5
      %v4641 = vor.u32 %v4637, %v4640
      %v4642 = vrot.slane %v4641, 4
      %v4644 = vshll.u32 %v4314, 16
      %v4646 = vrot.slane %v4644, 5
      %v4647 = vsel %vm963, %v4642, %v4646
      %v4648 = vshrl.u32 %v4314, 16
      %v4650 = vrot.slane %v4648, 4
      %v4651 = vor.u32 %v4650, %v4646
      %v4652 = vrot.slane %v4651, 4
      %v4654 = vshll.u32 %v4315, 16
      %v4656 = vrot.slane %v4654, 5
      %v4657 = vsel %vm963, %v4652, %v4656
      %v4659 = vshrl.u32 %v4316, 16
      %v4661 = vrot.slane %v4659, 4
      %v4662 = vshll.u32 %v4316, 16
      %v4664 = vrot.slane %v4662, 5
      %v4665 = vor.u32 %v4661, %v4664
      %v4666 = vrot.slane %v4665, 4
      %v4668 = vshll.u32 %v4317, 16
      %v4670 = vrot.slane %v4668, 5
      %v4671 = vsel %vm963, %v4666, %v4670
      %v4672 = vshrl.u32 %v4317, 16
      %v4674 = vrot.slane %v4672, 4
      %v4675 = vor.u32 %v4674, %v4670
      %v4676 = vrot.slane %v4675, 4
      %v4678 = vshll.u32 %v4318, 16
      %v4680 = vrot.slane %v4678, 5
      %v4681 = vsel %vm963, %v4676, %v4680
      %v4683 = vshrl.u32 %v4319, 16
      %v4685 = vrot.slane %v4683, 4
      %v4686 = vshll.u32 %v4319, 16
      %v4688 = vrot.slane %v4686, 5
      %v4689 = vor.u32 %v4685, %v4688
      %v4690 = vrot.slane %v4689, 4
      %v4692 = vshll.u32 %v4320, 16
      %v4694 = vrot.slane %v4692, 5
      %v4695 = vsel %vm963, %v4690, %v4694
      %v4696 = vshrl.u32 %v4320, 16
      %v4698 = vrot.slane %v4696, 4
      %v4699 = vor.u32 %v4698, %v4694
      %v4700 = vrot.slane %v4699, 4
      %v4702 = vshll.u32 %v4321, 16
      %v4704 = vrot.slane %v4702, 5
      %v4705 = vsel %vm963, %v4700, %v4704
      %s4706 = scalar_lea.vmem %s3, 14
      %v4707 = vld [vmem:[%s4706] sm:$0x3]
      %v4708 = vunpack.c.l.b16 %v4335
      %v4709 = vunpack.c.l.b16 %v4345
      %v4710 = vunpack.c.l.b16 %v4359
      %v4711 = vunpack.c.l.b16 %v4369
      %v4712 = vunpack.c.l.b16 %v4383
      %v4713 = vunpack.c.l.b16 %v4393
      %v4714 = vunpack.c.l.b16 %v4407
      %v4715 = vunpack.c.l.b16 %v4417
      %v4716 = vunpack.c.l.b16 %v4431
      %v4717 = vunpack.c.l.b16 %v4441
      %v4718 = vunpack.c.l.b16 %v4455
      %v4719 = vunpack.c.l.b16 %v4465
      %v4720 = vunpack.c.l.b16 %v4479
      %v4721 = vunpack.c.l.b16 %v4489
      %v4722 = vunpack.c.l.b16 %v4503
      %v4723 = vunpack.c.l.b16 %v4513
      %v4724 = vunpack.c.l.b16 %v4527
      %v4725 = vunpack.c.l.b16 %v4537
      %v4726 = vunpack.c.l.b16 %v4551
      %v4727 = vunpack.c.l.b16 %v4561
      %v4728 = vunpack.c.l.b16 %v4575
      %v4729 = vunpack.c.l.b16 %v4585
      %v4730 = vunpack.c.l.b16 %v4599
      %v4731 = vunpack.c.l.b16 %v4609
      %v4732 = vunpack.c.l.b16 %v4623
      %v4733 = vunpack.c.l.b16 %v4633
      %v4734 = vunpack.c.l.b16 %v4647
      %v4735 = vunpack.c.l.b16 %v4657
      %v4736 = vunpack.c.l.b16 %v4671
      %v4737 = vunpack.c.l.b16 %v4681
      %v4738 = vunpack.c.l.b16 %v4695
      %v4739 = vunpack.c.l.b16 %v4705
      %v4740 = vpack.c.b16 %v4709, %v4708
      %v4741 = vpack.c.b16 %v4711, %v4710
      %v4742 = vpack.c.b16 %v4713, %v4712
      %v4743 = vpack.c.b16 %v4715, %v4714
      %v4744 = vpack.c.b16 %v4717, %v4716
      %v4745 = vpack.c.b16 %v4719, %v4718
      %v4746 = vpack.c.b16 %v4721, %v4720
      %v4747 = vpack.c.b16 %v4723, %v4722
      %v4748 = vpack.c.b16 %v4725, %v4724
      %v4749 = vpack.c.b16 %v4727, %v4726
      %v4750 = vpack.c.b16 %v4729, %v4728
      %v4751 = vpack.c.b16 %v4731, %v4730
      %v4752 = vpack.c.b16 %v4733, %v4732
      %v4753 = vpack.c.b16 %v4735, %v4734
      %v4754 = vpack.c.b16 %v4737, %v4736
      %v4755 = vpack.c.b16 %v4739, %v4738
      %v4757 = vsel %vm1398, %v4740, 0
      %v4760 = vsel %vm1398, %v4741, 0
      %v4763 = vsel %vm1398, %v4742, 0
      %v4766 = vsel %vm1398, %v4743, 0
      %v4769 = vsel %vm1398, %v4744, 0
      %v4772 = vsel %vm1398, %v4745, 0
      %v4775 = vsel %vm1398, %v4746, 0
      %v4778 = vsel %vm1398, %v4747, 0
      %v4781 = vsel %vm1398, %v4748, 0
      %v4784 = vsel %vm1398, %v4749, 0
      %v4787 = vsel %vm1398, %v4750, 0
      %v4790 = vsel %vm1398, %v4751, 0
      %v4793 = vsel %vm1398, %v4752, 0
      %v4796 = vsel %vm1398, %v4753, 0
      %v4799 = vsel %vm1398, %v4754, 0
      %v4802 = vsel %vm1398, %v4755, 0
      %v4805 = vsel %vm1447, %v4707, 0
      %4807 = vmatprep.subr.bf16.mxu0 0
      %4808 = vmatpush1.bf16.msra.mxu0 %v4805
      %4809 = vmatprep.subr.bf16.mxu0 0
      %4810 = vmatpush1.bf16.msra.mxu0 0
      %4811 = vmatprep.subr.bf16.mxu0 0
      %4812 = vmatpush1.bf16.msra.mxu0 0
      %4813 = vmatprep.subr.bf16.mxu0 0
      %4814 = vmatpush1.bf16.msra.mxu0 0
      %4815 = vmatprep.subr.bf16.mxu0 0
      %4816 = vmatpush1.bf16.msra.mxu0 0
      %4817 = vmatprep.subr.bf16.mxu0 0
      %4818 = vmatpush1.bf16.msra.mxu0 0
      %4819 = vmatprep.subr.bf16.mxu0 0
      %4820 = vmatpush1.bf16.msra.mxu0 0
      %4821 = vmatprep.subr.bf16.mxu0 0
      %4822 = vmatpush1.bf16.msra.mxu0 0
      %4823 = vmatprep.subr.bf16.mxu0 0
      %4824 = vmatpush1.bf16.msra.mxu0 0
      %4825 = vmatprep.subr.bf16.mxu0 0
      %4826 = vmatpush1.bf16.msra.mxu0 0
      %4827 = vmatprep.subr.bf16.mxu0 0
      %4828 = vmatpush1.bf16.msra.mxu0 0
      %4829 = vmatprep.subr.bf16.mxu0 0
      %4830 = vmatpush1.bf16.msra.mxu0 0
      %4831 = vmatprep.subr.bf16.mxu0 0
      %4832 = vmatpush1.bf16.msra.mxu0 0
      %4833 = vmatprep.subr.bf16.mxu0 0
      %4834 = vmatpush1.bf16.msra.mxu0 0
      %4835 = vmatprep.subr.bf16.mxu0 0
      %4836 = vmatpush1.bf16.msra.mxu0 0
      %4837 = vmatprep.subr.bf16.mxu0 0
      %4838 = vmatpush1.bf16.msra.mxu0 0
      %4839 = vmatprep.mubr.bf16.mxu0 0
      %4840 = vmatmul.mubr.bf16.gmra.mrb[0].mxu0 %v4757
      %v4841 = vpop.f32.mrb[0].mxu0
      %v4842 = vadd.f32 0.0, %v4841
      %v4843 = vpop.f32.mrb[0].mxu0
      %v4844 = vpop.f32.mrb[0].mxu0
      %v4845 = vadd.f32 0.0, %v4844
      %v4846 = vpop.f32.mrb[0].mxu0
      %4847 = vmatprep.mubr.bf16.mxu0 0
      %4848 = vmatmul.mubr.bf16.gmra.mrb[0].mxu0 %v4760
      %v4849 = vpop.f32.mrb[0].mxu0
      %v4850 = vadd.f32 0.0, %v4849
      %v4851 = vpop.f32.mrb[0].mxu0
      %v4852 = vpop.f32.mrb[0].mxu0
      %v4853 = vadd.f32 0.0, %v4852
      %v4854 = vpop.f32.mrb[0].mxu0
      %4855 = vmatprep.mubr.bf16.mxu0 0
      %4856 = vmatmul.mubr.bf16.gmra.mrb[0].mxu0 %v4763
      %v4857 = vpop.f32.mrb[0].mxu0
      %v4858 = vadd.f32 0.0, %v4857
      %v4859 = vpop.f32.mrb[0].mxu0
      %v4860 = vpop.f32.mrb[0].mxu0
      %v4861 = vadd.f32 0.0, %v4860
      %v4862 = vpop.f32.mrb[0].mxu0
      %4863 = vmatprep.mubr.bf16.mxu0 0
      %4864 = vmatmul.mubr.bf16.gmra.mrb[0].mxu0 %v4766
      %v4865 = vpop.f32.mrb[0].mxu0
      %v4866 = vadd.f32 0.0, %v4865
      %v4867 = vpop.f32.mrb[0].mxu0
      %v4868 = vpop.f32.mrb[0].mxu0
      %v4869 = vadd.f32 0.0, %v4868
      %v4870 = vpop.f32.mrb[0].mxu0
      %4871 = vmatprep.mubr.bf16.mxu0 0
      %4872 = vmatmul.mubr.bf16.gmra.mrb[0].mxu0 %v4769
      %v4873 = vpop.f32.mrb[0].mxu0
      %v4874 = vadd.f32 0.0, %v4873
      %v4875 = vpop.f32.mrb[0].mxu0
      %v4876 = vpop.f32.mrb[0].mxu0
      %v4877 = vadd.f32 0.0, %v4876
      %v4878 = vpop.f32.mrb[0].mxu0
      %4879 = vmatprep.mubr.bf16.mxu0 0
      %4880 = vmatmul.mubr.bf16.gmra.mrb[0].mxu0 %v4772
      %v4881 = vpop.f32.mrb[0].mxu0
      %v4882 = vadd.f32 0.0, %v4881
      %v4883 = vpop.f32.mrb[0].mxu0
      %v4884 = vpop.f32.mrb[0].mxu0
      %v4885 = vadd.f32 0.0, %v4884
      %v4886 = vpop.f32.mrb[0].mxu0
      %4887 = vmatprep.mubr.bf16.mxu0 0
      %4888 = vmatmul.mubr.bf16.gmra.mrb[0].mxu0 %v4775
      %v4889 = vpop.f32.mrb[0].mxu0
      %v4890 = vadd.f32 0.0, %v4889
      %v4891 = vpop.f32.mrb[0].mxu0
      %v4892 = vpop.f32.mrb[0].mxu0
      %v4893 = vadd.f32 0.0, %v4892
      %v4894 = vpop.f32.mrb[0].mxu0
      %4895 = vmatprep.mubr.bf16.mxu0 0
      %4896 = vmatmul.mubr.bf16.gmra.mrb[0].mxu0 %v4778
      %v4897 = vpop.f32.mrb[0].mxu0
      %v4898 = vadd.f32 0.0, %v4897
      %v4899 = vpop.f32.mrb[0].mxu0
      %v4900 = vpop.f32.mrb[0].mxu0
      %v4901 = vadd.f32 0.0, %v4900
      %v4902 = vpop.f32.mrb[0].mxu0
      %4903 = vmatprep.mubr.bf16.mxu0 0
      %4904 = vmatmul.mubr.bf16.gmra.mrb[0].mxu0 %v4781
      %v4905 = vpop.f32.mrb[0].mxu0
      %v4906 = vadd.f32 0.0, %v4905
      %v4907 = vpop.f32.mrb[0].mxu0
      %v4908 = vpop.f32.mrb[0].mxu0
      %v4909 = vadd.f32 0.0, %v4908
      %v4910 = vpop.f32.mrb[0].mxu0
      %4911 = vmatprep.mubr.bf16.mxu0 0
      %4912 = vmatmul.mubr.bf16.gmra.mrb[0].mxu0 %v4784
      %v4913 = vpop.f32.mrb[0].mxu0
      %v4914 = vadd.f32 0.0, %v4913
      %v4915 = vpop.f32.mrb[0].mxu0
      %v4916 = vpop.f32.mrb[0].mxu0
      %v4917 = vadd.f32 0.0, %v4916
      %v4918 = vpop.f32.mrb[0].mxu0
      %4919 = vmatprep.mubr.bf16.mxu0 0
      %4920 = vmatmul.mubr.bf16.gmra.mrb[0].mxu0 %v4787
      %v4921 = vpop.f32.mrb[0].mxu0
      %v4922 = vadd.f32 0.0, %v4921
      %v4923 = vpop.f32.mrb[0].mxu0
      %v4924 = vpop.f32.mrb[0].mxu0
      %v4925 = vadd.f32 0.0, %v4924
      %v4926 = vpop.f32.mrb[0].mxu0
      %4927 = vmatprep.mubr.bf16.mxu0 0
      %4928 = vmatmul.mubr.bf16.gmra.mrb[0].mxu0 %v4790
      %v4929 = vpop.f32.mrb[0].mxu0
      %v4930 = vadd.f32 0.0, %v4929
      %v4931 = vpop.f32.mrb[0].mxu0
      %v4932 = vpop.f32.mrb[0].mxu0
      %v4933 = vadd.f32 0.0, %v4932
      %v4934 = vpop.f32.mrb[0].mxu0
      %4935 = vmatprep.mubr.bf16.mxu0 0
      %4936 = vmatmul.mubr.bf16.gmra.mrb[0].mxu0 %v4793
      %v4937 = vpop.f32.mrb[0].mxu0
      %v4938 = vadd.f32 0.0, %v4937
      %v4939 = vpop.f32.mrb[0].mxu0
      %v4940 = vpop.f32.mrb[0].mxu0
      %v4941 = vadd.f32 0.0, %v4940
      %v4942 = vpop.f32.mrb[0].mxu0
      %4943 = vmatprep.mubr.bf16.mxu0 0
      %4944 = vmatmul.mubr.bf16.gmra.mrb[0].mxu0 %v4796
      %v4945 = vpop.f32.mrb[0].mxu0
      %v4946 = vadd.f32 0.0, %v4945
      %v4947 = vpop.f32.mrb[0].mxu0
      %v4948 = vpop.f32.mrb[0].mxu0
      %v4949 = vadd.f32 0.0, %v4948
      %v4950 = vpop.f32.mrb[0].mxu0
      %4951 = vmatprep.mubr.bf16.mxu0 0
      %4952 = vmatmul.mubr.bf16.gmra.mrb[0].mxu0 %v4799
      %v4953 = vpop.f32.mrb[0].mxu0
      %v4954 = vadd.f32 0.0, %v4953
      %v4955 = vpop.f32.mrb[0].mxu0
      %v4956 = vpop.f32.mrb[0].mxu0
      %v4957 = vadd.f32 0.0, %v4956
      %v4958 = vpop.f32.mrb[0].mxu0
      %4959 = vmatprep.mubr.bf16.mxu0 0
      %4960 = vmatmul.mubr.bf16.gmra.mrb[0].mxu0 %v4802
      %v4961 = vpop.f32.mrb[0].mxu0
      %v4962 = vadd.f32 0.0, %v4961
      %v4963 = vpop.f32.mrb[0].mxu0
      %v4964 = vpop.f32.mrb[0].mxu0
      %v4965 = vadd.f32 0.0, %v4964
      %v4966 = vpop.f32.mrb[0].mxu0
      %4967 = vdwg.mxu0
      %v4968 = vadd.f32 %v4242, %v4842
      %v4969 = vadd.f32 %v4243, %v4845
      %v4970 = vadd.f32 %v4244, %v4850
      %v4971 = vadd.f32 %v4245, %v4853
      %v4972 = vadd.f32 %v4246, %v4858
      %v4973 = vadd.f32 %v4247, %v4861
      %v4974 = vadd.f32 %v4248, %v4866
      %v4975 = vadd.f32 %v4249, %v4869
      %v4976 = vadd.f32 %v4250, %v4874
      %v4977 = vadd.f32 %v4251, %v4877
      %v4978 = vadd.f32 %v4252, %v4882
      %v4979 = vadd.f32 %v4253, %v4885
      %v4980 = vadd.f32 %v4254, %v4890
      %v4981 = vadd.f32 %v4255, %v4893
      %v4982 = vadd.f32 %v4256, %v4898
      %v4983 = vadd.f32 %v4257, %v4901
      %v4984 = vadd.f32 %v4258, %v4906
      %v4985 = vadd.f32 %v4259, %v4909
      %v4986 = vadd.f32 %v4260, %v4914
      %v4987 = vadd.f32 %v4261, %v4917
      %v4988 = vadd.f32 %v4262, %v4922
      %v4989 = vadd.f32 %v4263, %v4925
      %v4990 = vadd.f32 %v4264, %v4930
      %v4991 = vadd.f32 %v4265, %v4933
      %v4992 = vadd.f32 %v4266, %v4938
      %v4993 = vadd.f32 %v4267, %v4941
      %v4994 = vadd.f32 %v4268, %v4946
      %v4995 = vadd.f32 %v4269, %v4949
      %v4996 = vadd.f32 %v4270, %v4954
      %v4997 = vadd.f32 %v4271, %v4957
      %v4998 = vadd.f32 %v4272, %v4962
      %v4999 = vadd.f32 %v4273, %v4965
      %v5000 = vld [vmem:[%s3915] sm:$0xe]
      %v5001 = vld [vmem:[%s3915 + $0xc] sm:$0xe]
      %v5002 = vld [vmem:[%s3915 + $0x18] sm:$0xe]
      %v5003 = vld [vmem:[%s3915 + $0x24] sm:$0xe]
      %v5004 = vld [vmem:[%s3915 + $0x30] sm:$0xe]
      %v5005 = vld [vmem:[%s3915 + $0x3c] sm:$0xe]
      %v5006 = vld [vmem:[%s3915 + $0x48] sm:$0xe]
      %v5007 = vld [vmem:[%s3915 + $0x54] sm:$0xe]
      %v5008 = vld [vmem:[%s3915 + $0x60] sm:$0xe]
      %v5009 = vld [vmem:[%s3915 + $0x6c] sm:$0xe]
      %v5010 = vld [vmem:[%s3915 + $0x78] sm:$0xe]
      %v5011 = vld [vmem:[%s3915 + $0x84] sm:$0xe]
      %v5012 = vld [vmem:[%s3915 + $0x90] sm:$0xe]
      %v5013 = vld [vmem:[%s3915 + $0x9c] sm:$0xe]
      %v5014 = vld [vmem:[%s3915 + $0xa8] sm:$0xe]
      %v5015 = vld [vmem:[%s3915 + $0xb4] sm:$0xe]
      %v5064 = vrot.slane %v5000, 5
      %v5065 = vrot.slane %v5064, 4
      %v5066 = vrot.slane %v4275, 5
      %v5067 = vsel %vm1954, %v5065, %v5066
      %v5068 = vrot.slane %v5066, 4
      %v5069 = vrot.slane %v4276, 5
      %v5070 = vsel %vm1954, %v5068, %v5069
      %v5071 = vrot.slane %v5001, 5
      %v5072 = vrot.slane %v5071, 4
      %v5073 = vrot.slane %v4278, 5
      %v5074 = vsel %vm1954, %v5072, %v5073
      %v5075 = vrot.slane %v5073, 4
      %v5076 = vrot.slane %v4279, 5
      %v5077 = vsel %vm1954, %v5075, %v5076
      %v5078 = vrot.slane %v5002, 5
      %v5079 = vrot.slane %v5078, 4
      %v5080 = vrot.slane %v4281, 5
      %v5081 = vsel %vm1954, %v5079, %v5080
      %v5082 = vrot.slane %v5080, 4
      %v5083 = vrot.slane %v4282, 5
      %v5084 = vsel %vm1954, %v5082, %v5083
      %v5085 = vrot.slane %v5003, 5
      %v5086 = vrot.slane %v5085, 4
      %v5087 = vrot.slane %v4284, 5
      %v5088 = vsel %vm1954, %v5086, %v5087
      %v5089 = vrot.slane %v5087, 4
      %v5090 = vrot.slane %v4285, 5
      %v5091 = vsel %vm1954, %v5089, %v5090
      %v5092 = vrot.slane %v5004, 5
      %v5093 = vrot.slane %v5092, 4
      %v5094 = vrot.slane %v4287, 5
      %v5095 = vsel %vm1954, %v5093, %v5094
      %v5096 = vrot.slane %v5094, 4
      %v5097 = vrot.slane %v4288, 5
      %v5098 = vsel %vm1954, %v5096, %v5097
      %v5099 = vrot.slane %v5005, 5
      %v5100 = vrot.slane %v5099, 4
      %v5101 = vrot.slane %v4290, 5
      %v5102 = vsel %vm1954, %v5100, %v5101
      %v5103 = vrot.slane %v5101, 4
      %v5104 = vrot.slane %v4291, 5
      %v5105 = vsel %vm1954, %v5103, %v5104
      %v5106 = vrot.slane %v5006, 5
      %v5107 = vrot.slane %v5106, 4
      %v5108 = vrot.slane %v4293, 5
      %v5109 = vsel %vm1954, %v5107, %v5108
      %v5110 = vrot.slane %v5108, 4
      %v5111 = vrot.slane %v4294, 5
      %v5112 = vsel %vm1954, %v5110, %v5111
      %v5113 = vrot.slane %v5007, 5
      %v5114 = vrot.slane %v5113, 4
      %v5115 = vrot.slane %v4296, 5
      %v5116 = vsel %vm1954, %v5114, %v5115
      %v5117 = vrot.slane %v5115, 4
      %v5118 = vrot.slane %v4297, 5
      %v5119 = vsel %vm1954, %v5117, %v5118
      %v5120 = vrot.slane %v5008, 5
      %v5121 = vrot.slane %v5120, 4
      %v5122 = vrot.slane %v4299, 5
      %v5123 = vsel %vm1954, %v5121, %v5122
      %v5124 = vrot.slane %v5122, 4
      %v5125 = vrot.slane %v4300, 5
      %v5126 = vsel %vm1954, %v5124, %v5125
      %v5127 = vrot.slane %v5009, 5
      %v5128 = vrot.slane %v5127, 4
      %v5129 = vrot.slane %v4302, 5
      %v5130 = vsel %vm1954, %v5128, %v5129
      %v5131 = vrot.slane %v5129, 4
      %v5132 = vrot.slane %v4303, 5
      %v5133 = vsel %vm1954, %v5131, %v5132
      %v5134 = vrot.slane %v5010, 5
      %v5135 = vrot.slane %v5134, 4
      %v5136 = vrot.slane %v4305, 5
      %v5137 = vsel %vm1954, %v5135, %v5136
      %v5138 = vrot.slane %v5136, 4
      %v5139 = vrot.slane %v4306, 5
      %v5140 = vsel %vm1954, %v5138, %v5139
      %v5141 = vrot.slane %v5011, 5
      %v5142 = vrot.slane %v5141, 4
      %v5143 = vrot.slane %v4308, 5
      %v5144 = vsel %vm1954, %v5142, %v5143
      %v5145 = vrot.slane %v5143, 4
      %v5146 = vrot.slane %v4309, 5
      %v5147 = vsel %vm1954, %v5145, %v5146
      %v5148 = vrot.slane %v5012, 5
      %v5149 = vrot.slane %v5148, 4
      %v5150 = vrot.slane %v4311, 5
      %v5151 = vsel %vm1954, %v5149, %v5150
      %v5152 = vrot.slane %v5150, 4
      %v5153 = vrot.slane %v4312, 5
      %v5154 = vsel %vm1954, %v5152, %v5153
      %v5155 = vrot.slane %v5013, 5
      %v5156 = vrot.slane %v5155, 4
      %v5157 = vrot.slane %v4314, 5
      %v5158 = vsel %vm1954, %v5156, %v5157
      %v5159 = vrot.slane %v5157, 4
      %v5160 = vrot.slane %v4315, 5
      %v5161 = vsel %vm1954, %v5159, %v5160
      %v5162 = vrot.slane %v5014, 5
      %v5163 = vrot.slane %v5162, 4
      %v5164 = vrot.slane %v4317, 5
      %v5165 = vsel %vm1954, %v5163, %v5164
      %v5166 = vrot.slane %v5164, 4
      %v5167 = vrot.slane %v4318, 5
      %v5168 = vsel %vm1954, %v5166, %v5167
      %v5169 = vrot.slane %v5015, 5
      %v5170 = vrot.slane %v5169, 4
      %v5171 = vrot.slane %v4320, 5
      %v5172 = vsel %vm1954, %v5170, %v5171
      %v5173 = vrot.slane %v5171, 4
      %v5174 = vrot.slane %v4321, 5
      %v5175 = vsel %vm1954, %v5173, %v5174
      %s5176 = scalar_lea.vmem %s3, 16
      %v5177 = vld [vmem:[%s5176] sm:$0x3]
      %v5178 = vunpack.c.l.b16 %v5067
      %v5179 = vunpack.c.l.b16 %v5070
      %v5180 = vunpack.c.l.b16 %v5074
      %v5181 = vunpack.c.l.b16 %v5077
      %v5182 = vunpack.c.l.b16 %v5081
      %v5183 = vunpack.c.l.b16 %v5084
      %v5184 = vunpack.c.l.b16 %v5088
      %v5185 = vunpack.c.l.b16 %v5091
      %v5186 = vunpack.c.l.b16 %v5095
      %v5187 = vunpack.c.l.b16 %v5098
      %v5188 = vunpack.c.l.b16 %v5102
      %v5189 = vunpack.c.l.b16 %v5105
      %v5190 = vunpack.c.l.b16 %v5109
      %v5191 = vunpack.c.l.b16 %v5112
      %v5192 = vunpack.c.l.b16 %v5116
      %v5193 = vunpack.c.l.b16 %v5119
      %v5194 = vunpack.c.l.b16 %v5123
      %v5195 = vunpack.c.l.b16 %v5126
      %v5196 = vunpack.c.l.b16 %v5130
      %v5197 = vunpack.c.l.b16 %v5133
      %v5198 = vunpack.c.l.b16 %v5137
      %v5199 = vunpack.c.l.b16 %v5140
      %v5200 = vunpack.c.l.b16 %v5144
      %v5201 = vunpack.c.l.b16 %v5147
      %v5202 = vunpack.c.l.b16 %v5151
      %v5203 = vunpack.c.l.b16 %v5154
      %v5204 = vunpack.c.l.b16 %v5158
      %v5205 = vunpack.c.l.b16 %v5161
      %v5206 = vunpack.c.l.b16 %v5165
      %v5207 = vunpack.c.l.b16 %v5168
      %v5208 = vunpack.c.l.b16 %v5172
      %v5209 = vunpack.c.l.b16 %v5175
      %v5210 = vpack.c.b16 %v5179, %v5178
      %v5211 = vpack.c.b16 %v5181, %v5180
      %v5212 = vpack.c.b16 %v5183, %v5182
      %v5213 = vpack.c.b16 %v5185, %v5184
      %v5214 = vpack.c.b16 %v5187, %v5186
      %v5215 = vpack.c.b16 %v5189, %v5188
      %v5216 = vpack.c.b16 %v5191, %v5190
      %v5217 = vpack.c.b16 %v5193, %v5192
      %v5218 = vpack.c.b16 %v5195, %v5194
      %v5219 = vpack.c.b16 %v5197, %v5196
      %v5220 = vpack.c.b16 %v5199, %v5198
      %v5221 = vpack.c.b16 %v5201, %v5200
      %v5222 = vpack.c.b16 %v5203, %v5202
      %v5223 = vpack.c.b16 %v5205, %v5204
      %v5224 = vpack.c.b16 %v5207, %v5206
      %v5225 = vpack.c.b16 %v5209, %v5208
      %v5227 = vsel %vm1398, %v5210, 0
      %v5230 = vsel %vm1398, %v5211, 0
      %v5233 = vsel %vm1398, %v5212, 0
      %v5236 = vsel %vm1398, %v5213, 0
      %v5239 = vsel %vm1398, %v5214, 0
      %v5242 = vsel %vm1398, %v5215, 0
      %v5245 = vsel %vm1398, %v5216, 0
      %v5248 = vsel %vm1398, %v5217, 0
      %v5251 = vsel %vm1398, %v5218, 0
      %v5254 = vsel %vm1398, %v5219, 0
      %v5257 = vsel %vm1398, %v5220, 0
      %v5260 = vsel %vm1398, %v5221, 0
      %v5263 = vsel %vm1398, %v5222, 0
      %v5266 = vsel %vm1398, %v5223, 0
      %v5269 = vsel %vm1398, %v5224, 0
      %v5272 = vsel %vm1398, %v5225, 0
      %v5275 = vsel %vm1447, %v5177, 0
      %5277 = vmatprep.subr.bf16.mxu0 0
      %5278 = vmatpush1.bf16.msra.mxu0 %v5275
      %5279 = vmatprep.subr.bf16.mxu0 0
      %5280 = vmatpush1.bf16.msra.mxu0 0
      %5281 = vmatprep.subr.bf16.mxu0 0
      %5282 = vmatpush1.bf16.msra.mxu0 0
      %5283 = vmatprep.subr.bf16.mxu0 0
      %5284 = vmatpush1.bf16.msra.mxu0 0
      %5285 = vmatprep.subr.bf16.mxu0 0
      %5286 = vmatpush1.bf16.msra.mxu0 0
      %5287 = vmatprep.subr.bf16.mxu0 0
      %5288 = vmatpush1.bf16.msra.mxu0 0
      %5289 = vmatprep.subr.bf16.mxu0 0
      %5290 = vmatpush1.bf16.msra.mxu0 0
      %5291 = vmatprep.subr.bf16.mxu0 0
      %5292 = vmatpush1.bf16.msra.mxu0 0
      %5293 = vmatprep.subr.bf16.mxu0 0
      %5294 = vmatpush1.bf16.msra.mxu0 0
      %5295 = vmatprep.subr.bf16.mxu0 0
      %5296 = vmatpush1.bf16.msra.mxu0 0
      %5297 = vmatprep.subr.bf16.mxu0 0
      %5298 = vmatpush1.bf16.msra.mxu0 0
      %5299 = vmatprep.subr.bf16.mxu0 0
      %5300 = vmatpush1.bf16.msra.mxu0 0
      %5301 = vmatprep.subr.bf16.mxu0 0
      %5302 = vmatpush1.bf16.msra.mxu0 0
      %5303 = vmatprep.subr.bf16.mxu0 0
      %5304 = vmatpush1.bf16.msra.mxu0 0
      %5305 = vmatprep.subr.bf16.mxu0 0
      %5306 = vmatpush1.bf16.msra.mxu0 0
      %5307 = vmatprep.subr.bf16.mxu0 0
      %5308 = vmatpush1.bf16.msra.mxu0 0
      %5309 = vmatprep.mubr.bf16.mxu0 0
      %5310 = vmatmul.mubr.bf16.gmra.mrb[0].mxu0 %v5227
      %v5311 = vpop.f32.mrb[0].mxu0
      %v5312 = vadd.f32 0.0, %v5311
      %v5313 = vpop.f32.mrb[0].mxu0
      %v5314 = vpop.f32.mrb[0].mxu0
      %v5315 = vadd.f32 0.0, %v5314
      %v5316 = vpop.f32.mrb[0].mxu0
      %5317 = vmatprep.mubr.bf16.mxu0 0
      %5318 = vmatmul.mubr.bf16.gmra.mrb[0].mxu0 %v5230
      %v5319 = vpop.f32.mrb[0].mxu0
      %v5320 = vadd.f32 0.0, %v5319
      %v5321 = vpop.f32.mrb[0].mxu0
      %v5322 = vpop.f32.mrb[0].mxu0
      %v5323 = vadd.f32 0.0, %v5322
      %v5324 = vpop.f32.mrb[0].mxu0
      %5325 = vmatprep.mubr.bf16.mxu0 0
      %5326 = vmatmul.mubr.bf16.gmra.mrb[0].mxu0 %v5233
      %v5327 = vpop.f32.mrb[0].mxu0
      %v5328 = vadd.f32 0.0, %v5327
      %v5329 = vpop.f32.mrb[0].mxu0
      %v5330 = vpop.f32.mrb[0].mxu0
      %v5331 = vadd.f32 0.0, %v5330
      %v5332 = vpop.f32.mrb[0].mxu0
      %5333 = vmatprep.mubr.bf16.mxu0 0
      %5334 = vmatmul.mubr.bf16.gmra.mrb[0].mxu0 %v5236
      %v5335 = vpop.f32.mrb[0].mxu0
      %v5336 = vadd.f32 0.0, %v5335
      %v5337 = vpop.f32.mrb[0].mxu0
      %v5338 = vpop.f32.mrb[0].mxu0
      %v5339 = vadd.f32 0.0, %v5338
      %v5340 = vpop.f32.mrb[0].mxu0
      %5341 = vmatprep.mubr.bf16.mxu0 0
      %5342 = vmatmul.mubr.bf16.gmra.mrb[0].mxu0 %v5239
      %v5343 = vpop.f32.mrb[0].mxu0
      %v5344 = vadd.f32 0.0, %v5343
      %v5345 = vpop.f32.mrb[0].mxu0
      %v5346 = vpop.f32.mrb[0].mxu0
      %v5347 = vadd.f32 0.0, %v5346
      %v5348 = vpop.f32.mrb[0].mxu0
      %5349 = vmatprep.mubr.bf16.mxu0 0
      %5350 = vmatmul.mubr.bf16.gmra.mrb[0].mxu0 %v5242
      %v5351 = vpop.f32.mrb[0].mxu0
      %v5352 = vadd.f32 0.0, %v5351
      %v5353 = vpop.f32.mrb[0].mxu0
      %v5354 = vpop.f32.mrb[0].mxu0
      %v5355 = vadd.f32 0.0, %v5354
      %v5356 = vpop.f32.mrb[0].mxu0
      %5357 = vmatprep.mubr.bf16.mxu0 0
      %5358 = vmatmul.mubr.bf16.gmra.mrb[0].mxu0 %v5245
      %v5359 = vpop.f32.mrb[0].mxu0
      %v5360 = vadd.f32 0.0, %v5359
      %v5361 = vpop.f32.mrb[0].mxu0
      %v5362 = vpop.f32.mrb[0].mxu0
      %v5363 = vadd.f32 0.0, %v5362
      %v5364 = vpop.f32.mrb[0].mxu0
      %5365 = vmatprep.mubr.bf16.mxu0 0
      %5366 = vmatmul.mubr.bf16.gmra.mrb[0].mxu0 %v5248
      %v5367 = vpop.f32.mrb[0].mxu0
      %v5368 = vadd.f32 0.0, %v5367
      %v5369 = vpop.f32.mrb[0].mxu0
      %v5370 = vpop.f32.mrb[0].mxu0
      %v5371 = vadd.f32 0.0, %v5370
      %v5372 = vpop.f32.mrb[0].mxu0
      %5373 = vmatprep.mubr.bf16.mxu0 0
      %5374 = vmatmul.mubr.bf16.gmra.mrb[0].mxu0 %v5251
      %v5375 = vpop.f32.mrb[0].mxu0
      %v5376 = vadd.f32 0.0, %v5375
      %v5377 = vpop.f32.mrb[0].mxu0
      %v5378 = vpop.f32.mrb[0].mxu0
      %v5379 = vadd.f32 0.0, %v5378
      %v5380 = vpop.f32.mrb[0].mxu0
      %5381 = vmatprep.mubr.bf16.mxu0 0
      %5382 = vmatmul.mubr.bf16.gmra.mrb[0].mxu0 %v5254
      %v5383 = vpop.f32.mrb[0].mxu0
      %v5384 = vadd.f32 0.0, %v5383
      %v5385 = vpop.f32.mrb[0].mxu0
      %v5386 = vpop.f32.mrb[0].mxu0
      %v5387 = vadd.f32 0.0, %v5386
      %v5388 = vpop.f32.mrb[0].mxu0
      %5389 = vmatprep.mubr.bf16.mxu0 0
      %5390 = vmatmul.mubr.bf16.gmra.mrb[0].mxu0 %v5257
      %v5391 = vpop.f32.mrb[0].mxu0
      %v5392 = vadd.f32 0.0, %v5391
      %v5393 = vpop.f32.mrb[0].mxu0
      %v5394 = vpop.f32.mrb[0].mxu0
      %v5395 = vadd.f32 0.0, %v5394
      %v5396 = vpop.f32.mrb[0].mxu0
      %5397 = vmatprep.mubr.bf16.mxu0 0
      %5398 = vmatmul.mubr.bf16.gmra.mrb[0].mxu0 %v5260
      %v5399 = vpop.f32.mrb[0].mxu0
      %v5400 = vadd.f32 0.0, %v5399
      %v5401 = vpop.f32.mrb[0].mxu0
      %v5402 = vpop.f32.mrb[0].mxu0
      %v5403 = vadd.f32 0.0, %v5402
      %v5404 = vpop.f32.mrb[0].mxu0
      %5405 = vmatprep.mubr.bf16.mxu0 0
      %5406 = vmatmul.mubr.bf16.gmra.mrb[0].mxu0 %v5263
      %v5407 = vpop.f32.mrb[0].mxu0
      %v5408 = vadd.f32 0.0, %v5407
      %v5409 = vpop.f32.mrb[0].mxu0
      %v5410 = vpop.f32.mrb[0].mxu0
      %v5411 = vadd.f32 0.0, %v5410
      %v5412 = vpop.f32.mrb[0].mxu0
      %5413 = vmatprep.mubr.bf16.mxu0 0
      %5414 = vmatmul.mubr.bf16.gmra.mrb[0].mxu0 %v5266
      %v5415 = vpop.f32.mrb[0].mxu0
      %v5416 = vadd.f32 0.0, %v5415
      %v5417 = vpop.f32.mrb[0].mxu0
      %v5418 = vpop.f32.mrb[0].mxu0
      %v5419 = vadd.f32 0.0, %v5418
      %v5420 = vpop.f32.mrb[0].mxu0
      %5421 = vmatprep.mubr.bf16.mxu0 0
      %5422 = vmatmul.mubr.bf16.gmra.mrb[0].mxu0 %v5269
      %v5423 = vpop.f32.mrb[0].mxu0
      %v5424 = vadd.f32 0.0, %v5423
      %v5425 = vpop.f32.mrb[0].mxu0
      %v5426 = vpop.f32.mrb[0].mxu0
      %v5427 = vadd.f32 0.0, %v5426
      %v5428 = vpop.f32.mrb[0].mxu0
      %5429 = vmatprep.mubr.bf16.mxu0 0
      %5430 = vmatmul.mubr.bf16.gmra.mrb[0].mxu0 %v5272
      %v5431 = vpop.f32.mrb[0].mxu0
      %v5432 = vadd.f32 0.0, %v5431
      %v5433 = vpop.f32.mrb[0].mxu0
      %v5434 = vpop.f32.mrb[0].mxu0
      %v5435 = vadd.f32 0.0, %v5434
      %v5436 = vpop.f32.mrb[0].mxu0
      %5437 = vdwg.mxu0
      %v5438 = vadd.f32 %v4968, %v5312
      %v5439 = vadd.f32 %v4969, %v5315
      %v5440 = vadd.f32 %v4970, %v5320
      %v5441 = vadd.f32 %v4971, %v5323
      %v5442 = vadd.f32 %v4972, %v5328
      %v5443 = vadd.f32 %v4973, %v5331
      %v5444 = vadd.f32 %v4974, %v5336
      %v5445 = vadd.f32 %v4975, %v5339
      %v5446 = vadd.f32 %v4976, %v5344
      %v5447 = vadd.f32 %v4977, %v5347
      %v5448 = vadd.f32 %v4978, %v5352
      %v5449 = vadd.f32 %v4979, %v5355
      %v5450 = vadd.f32 %v4980, %v5360
      %v5451 = vadd.f32 %v4981, %v5363
      %v5452 = vadd.f32 %v4982, %v5368
      %v5453 = vadd.f32 %v4983, %v5371
      %v5454 = vadd.f32 %v4984, %v5376
      %v5455 = vadd.f32 %v4985, %v5379
      %v5456 = vadd.f32 %v4986, %v5384
      %v5457 = vadd.f32 %v4987, %v5387
      %v5458 = vadd.f32 %v4988, %v5392
      %v5459 = vadd.f32 %v4989, %v5395
      %v5460 = vadd.f32 %v4990, %v5400
      %v5461 = vadd.f32 %v4991, %v5403
      %v5462 = vadd.f32 %v4992, %v5408
      %v5463 = vadd.f32 %v4993, %v5411
      %v5464 = vadd.f32 %v4994, %v5416
      %v5465 = vadd.f32 %v4995, %v5419
      %v5466 = vadd.f32 %v4996, %v5424
      %v5467 = vadd.f32 %v4997, %v5427
      %v5468 = vadd.f32 %v4998, %v5432
      %v5469 = vadd.f32 %v4999, %v5435
      %v5470 = vpack.c.bf16 %v5439, %v5438
      %v5471 = vpack.c.bf16 %v5441, %v5440
      %v5472 = vpack.c.bf16 %v5443, %v5442
      %v5473 = vpack.c.bf16 %v5445, %v5444
      %v5474 = vpack.c.bf16 %v5447, %v5446
      %v5475 = vpack.c.bf16 %v5449, %v5448
      %v5476 = vpack.c.bf16 %v5451, %v5450
      %v5477 = vpack.c.bf16 %v5453, %v5452
      %v5478 = vpack.c.bf16 %v5455, %v5454
      %v5479 = vpack.c.bf16 %v5457, %v5456
      %v5480 = vpack.c.bf16 %v5459, %v5458
      %v5481 = vpack.c.bf16 %v5461, %v5460
      %v5482 = vpack.c.bf16 %v5463, %v5462
      %v5483 = vpack.c.bf16 %v5465, %v5464
      %v5484 = vpack.c.bf16 %v5467, %v5466
      %v5485 = vpack.c.bf16 %v5469, %v5468
      %v5502 = vunpack.c.l.b16 %v5470
      %v5503 = vunpack.c.h.b16 %v5470
      %v5504 = vunpack.c.l.b16 %v5471
      %v5505 = vunpack.c.h.b16 %v5471
      %v5506 = vunpack.c.l.b16 %v5472
      %v5507 = vunpack.c.h.b16 %v5472
      %v5508 = vunpack.c.l.b16 %v5473
      %v5509 = vunpack.c.h.b16 %v5473
      %v5510 = vunpack.c.l.b16 %v5474
      %v5511 = vunpack.c.h.b16 %v5474
      %v5512 = vunpack.c.l.b16 %v5475
      %v5513 = vunpack.c.h.b16 %v5475
      %v5514 = vunpack.c.l.b16 %v5476
      %v5515 = vunpack.c.h.b16 %v5476
      %v5516 = vunpack.c.l.b16 %v5477
      %v5517 = vunpack.c.h.b16 %v5477
      %v5518 = vunpack.c.l.b16 %v5478
      %v5519 = vunpack.c.h.b16 %v5478
      %v5520 = vunpack.c.l.b16 %v5479
      %v5521 = vunpack.c.h.b16 %v5479
      %v5522 = vunpack.c.l.b16 %v5480
      %v5523 = vunpack.c.h.b16 %v5480
      %v5524 = vunpack.c.l.b16 %v5481
      %v5525 = vunpack.c.h.b16 %v5481
      %v5526 = vunpack.c.l.b16 %v5482
      %v5527 = vunpack.c.h.b16 %v5482
      %v5528 = vunpack.c.l.b16 %v5483
      %v5529 = vunpack.c.h.b16 %v5483
      %v5530 = vunpack.c.l.b16 %v5484
      %v5531 = vunpack.c.h.b16 %v5484
      %v5532 = vunpack.c.l.b16 %v5485
      %v5533 = vunpack.c.h.b16 %v5485
      %v5534 = vpack.c.b16 %v5502, %v5502
      %v5535 = vpack.c.b16 %v5503, %v5503
      %v5536 = vpack.c.b16 %v5504, %v5504
      %v5537 = vpack.c.b16 %v5505, %v5505
      %v5538 = vpack.c.b16 %v5506, %v5506
      %v5539 = vpack.c.b16 %v5507, %v5507
      %v5540 = vpack.c.b16 %v5508, %v5508
      %v5541 = vpack.c.b16 %v5509, %v5509
      %v5542 = vpack.c.b16 %v5510, %v5510
      %v5543 = vpack.c.b16 %v5511, %v5511
      %v5544 = vpack.c.b16 %v5512, %v5512
      %v5545 = vpack.c.b16 %v5513, %v5513
      %v5546 = vpack.c.b16 %v5514, %v5514
      %v5547 = vpack.c.b16 %v5515, %v5515
      %v5548 = vpack.c.b16 %v5516, %v5516
      %v5549 = vpack.c.b16 %v5517, %v5517
      %v5550 = vpack.c.b16 %v5518, %v5518
      %v5551 = vpack.c.b16 %v5519, %v5519
      %v5552 = vpack.c.b16 %v5520, %v5520
      %v5553 = vpack.c.b16 %v5521, %v5521
      %v5554 = vpack.c.b16 %v5522, %v5522
      %v5555 = vpack.c.b16 %v5523, %v5523
      %v5556 = vpack.c.b16 %v5524, %v5524
      %v5557 = vpack.c.b16 %v5525, %v5525
      %v5558 = vpack.c.b16 %v5526, %v5526
      %v5559 = vpack.c.b16 %v5527, %v5527
      %v5560 = vpack.c.b16 %v5528, %v5528
      %v5561 = vpack.c.b16 %v5529, %v5529
      %v5562 = vpack.c.b16 %v5530, %v5530
      %v5563 = vpack.c.b16 %v5531, %v5531
      %v5564 = vpack.c.b16 %v5532, %v5532
      %v5565 = vpack.c.b16 %v5533, %v5533
      %5598 = vst [vmem:[%s231] sm:$0xf] %v5534
      %5599 = vst [vmem:[%s231 + $0x4] sm:$0xf] %v5535
      %5600 = vst [vmem:[%s231 + $0x8] sm:$0xf] %v5536
      %5601 = vst [vmem:[%s231 + $0xc] sm:$0xf] %v5537
      %5602 = vst [vmem:[%s231 + $0x10] sm:$0xf] %v5538
      %5603 = vst [vmem:[%s231 + $0x14] sm:$0xf] %v5539
      %5604 = vst [vmem:[%s231 + $0x18] sm:$0xf] %v5540
      %5605 = vst [vmem:[%s231 + $0x1c] sm:$0xf] %v5541
      %5606 = vst [vmem:[%s231 + $0x20] sm:$0xf] %v5542
      %5607 = vst [vmem:[%s231 + $0x24] sm:$0xf] %v5543
      %5608 = vst [vmem:[%s231 + $0x28] sm:$0xf] %v5544
      %5609 = vst [vmem:[%s231 + $0x2c] sm:$0xf] %v5545
      %5610 = vst [vmem:[%s231 + $0x30] sm:$0xf] %v5546
      %5611 = vst [vmem:[%s231 + $0x34] sm:$0xf] %v5547
      %5612 = vst [vmem:[%s231 + $0x38] sm:$0xf] %v5548
      %5613 = vst [vmem:[%s231 + $0x3c] sm:$0xf] %v5549
      %5614 = vst [vmem:[%s231 + $0x40] sm:$0xf] %v5550
      %5615 = vst [vmem:[%s231 + $0x44] sm:$0xf] %v5551
      %5616 = vst [vmem:[%s231 + $0x48] sm:$0xf] %v5552
      %5617 = vst [vmem:[%s231 + $0x4c] sm:$0xf] %v5553
      %5618 = vst [vmem:[%s231 + $0x50] sm:$0xf] %v5554
      %5619 = vst [vmem:[%s231 + $0x54] sm:$0xf] %v5555
      %5620 = vst [vmem:[%s231 + $0x58] sm:$0xf] %v5556
      %5621 = vst [vmem:[%s231 + $0x5c] sm:$0xf] %v5557
      %5622 = vst [vmem:[%s231 + $0x60] sm:$0xf] %v5558
      %5623 = vst [vmem:[%s231 + $0x64] sm:$0xf] %v5559
      %5624 = vst [vmem:[%s231 + $0x68] sm:$0xf] %v5560
      %5625 = vst [vmem:[%s231 + $0x6c] sm:$0xf] %v5561
      %5626 = vst [vmem:[%s231 + $0x70] sm:$0xf] %v5562
      %5627 = vst [vmem:[%s231 + $0x74] sm:$0xf] %v5563
      %5628 = vst [vmem:[%s231 + $0x78] sm:$0xf] %v5564
      %5629 = vst [vmem:[%s231 + $0x7c] sm:$0xf] %v5565
      %v5630 = vadd.f32 %v5438, %v5439
      %v5631 = vadd.f32 %v5630, %v5440
      %v5632 = vadd.f32 %v5631, %v5441
      %v5633 = vadd.f32 %v5632, %v5442
      %v5634 = vadd.f32 %v5633, %v5443
      %v5635 = vadd.f32 %v5634, %v5444
      %v5636 = vadd.f32 %v5635, %v5445
      %v5637 = vadd.f32 %v5636, %v5446
      %v5638 = vadd.f32 %v5637, %v5447
      %v5639 = vadd.f32 %v5638, %v5448
      %v5640 = vadd.f32 %v5639, %v5449
      %v5641 = vadd.f32 %v5640, %v5450
      %v5642 = vadd.f32 %v5641, %v5451
      %v5643 = vadd.f32 %v5642, %v5452
      %v5644 = vadd.f32 %v5643, %v5453
      %v5645 = vadd.f32 %v5644, %v5454
      %v5646 = vadd.f32 %v5645, %v5455
      %v5647 = vadd.f32 %v5646, %v5456
      %v5648 = vadd.f32 %v5647, %v5457
      %v5649 = vadd.f32 %v5648, %v5458
      %v5650 = vadd.f32 %v5649, %v5459
      %v5651 = vadd.f32 %v5650, %v5460
      %v5652 = vadd.f32 %v5651, %v5461
      %v5653 = vadd.f32 %v5652, %v5462
      %v5654 = vadd.f32 %v5653, %v5463
      %v5655 = vadd.f32 %v5654, %v5464
      %v5656 = vadd.f32 %v5655, %v5465
      %v5657 = vadd.f32 %v5656, %v5466
      %v5658 = vadd.f32 %v5657, %v5467
      %v5659 = vadd.f32 %v5658, %v5468
      %v5660 = vadd.f32 %v5659, %v5469
      %v5661 = vrot.slane %v5660, 4
      %v5662 = vadd.f32 %v5660, %v5661
      %v5663 = vrot.slane %v5662, 2
      %v5664 = vadd.f32 %v5662, %v5663
      %v5665 = vrot.slane %v5664, 1
      %v5666 = vadd.f32 %v5664, %v5665
      %5667 = vst [vmem:[%s235] sm:$0x1] %v5666
      %v5668 = vmul.f32 %v5438, %v5438
      %v5669 = vmul.f32 %v5439, %v5439
      %v5670 = vmul.f32 %v5440, %v5440
      %v5671 = vmul.f32 %v5441, %v5441
      %v5672 = vmul.f32 %v5442, %v5442
      %v5673 = vmul.f32 %v5443, %v5443
      %v5674 = vmul.f32 %v5444, %v5444
      %v5675 = vmul.f32 %v5445, %v5445
      %v5676 = vmul.f32 %v5446, %v5446
      %v5677 = vmul.f32 %v5447, %v5447
      %v5678 = vmul.f32 %v5448, %v5448
      %v5679 = vmul.f32 %v5449, %v5449
      %v5680 = vmul.f32 %v5450, %v5450
      %v5681 = vmul.f32 %v5451, %v5451
      %v5682 = vmul.f32 %v5452, %v5452
      %v5683 = vmul.f32 %v5453, %v5453
      %v5684 = vmul.f32 %v5454, %v5454
      %v5685 = vmul.f32 %v5455, %v5455
      %v5686 = vmul.f32 %v5456, %v5456
      %v5687 = vmul.f32 %v5457, %v5457
      %v5688 = vmul.f32 %v5458, %v5458
      %v5689 = vmul.f32 %v5459, %v5459
      %v5690 = vmul.f32 %v5460, %v5460
      %v5691 = vmul.f32 %v5461, %v5461
      %v5692 = vmul.f32 %v5462, %v5462
      %v5693 = vmul.f32 %v5463, %v5463
      %v5694 = vmul.f32 %v5464, %v5464
      %v5695 = vmul.f32 %v5465, %v5465
      %v5696 = vmul.f32 %v5466, %v5466
      %v5697 = vmul.f32 %v5467, %v5467
      %v5698 = vmul.f32 %v5468, %v5468
      %v5699 = vmul.f32 %v5469, %v5469
      %v5700 = vadd.f32 %v5668, %v5669
      %v5701 = vadd.f32 %v5700, %v5670
      %v5702 = vadd.f32 %v5701, %v5671
      %v5703 = vadd.f32 %v5702, %v5672
      %v5704 = vadd.f32 %v5703, %v5673
      %v5705 = vadd.f32 %v5704, %v5674
      %v5706 = vadd.f32 %v5705, %v5675
      %v5707 = vadd.f32 %v5706, %v5676
      %v5708 = vadd.f32 %v5707, %v5677
      %v5709 = vadd.f32 %v5708, %v5678
      %v5710 = vadd.f32 %v5709, %v5679
      %v5711 = vadd.f32 %v5710, %v5680
      %v5712 = vadd.f32 %v5711, %v5681
      %v5713 = vadd.f32 %v5712, %v5682
      %v5714 = vadd.f32 %v5713, %v5683
      %v5715 = vadd.f32 %v5714, %v5684
      %v5716 = vadd.f32 %v5715, %v5685
      %v5717 = vadd.f32 %v5716, %v5686
      %v5718 = vadd.f32 %v5717, %v5687
      %v5719 = vadd.f32 %v5718, %v5688
      %v5720 = vadd.f32 %v5719, %v5689
      %v5721 = vadd.f32 %v5720, %v5690
      %v5722 = vadd.f32 %v5721, %v5691
      %v5723 = vadd.f32 %v5722, %v5692
      %v5724 = vadd.f32 %v5723, %v5693
      %v5725 = vadd.f32 %v5724, %v5694
      %v5726 = vadd.f32 %v5725, %v5695
      %v5727 = vadd.f32 %v5726, %v5696
      %v5728 = vadd.f32 %v5727, %v5697
      %v5729 = vadd.f32 %v5728, %v5698
      %v5730 = vadd.f32 %v5729, %v5699
      %v5731 = vrot.slane %v5730, 4
      %v5732 = vadd.f32 %v5730, %v5731
      %v5733 = vrot.slane %v5732, 2
      %v5734 = vadd.f32 %v5732, %v5733
      %v5735 = vrot.slane %v5734, 1
      %v5736 = vadd.f32 %v5734, %v5735
      %5737 = vst [vmem:[%s235 + $0x1] sm:$0x1] %v5736
      %p5738 = scmp.lt.s32.totalorder %s17, 1
      %s5739 = scalar_select %p5738, %s17, 1
      %s5740 = smul.addr %s5739, 32
      %s5741 = smul.addr %s5740, 4
      %s5742 = scalar_lea.vmem %s4, %s5741
      %p5743 = scmp.lt.s32.totalorder %s17, 1
      %s5744 = scalar_select %p5743, %s17, 1
      %s5745 = smul.addr %s5744, 2
      %s5746 = scalar_lea.vmem %s5, %s5745
      // Predicated region
      $region37: #{double_conv.3} parent=35 // pred_check
        %p5747 = pneg %p124
      $region38: #{double_conv.3} parent=35 // pred_check_branch
        %5749 = sbr.rel (%p5747) target = $region40
      $region39: #{double_conv.3} parent=35 // pred_region
        _
      $region40: #{double_conv.3} parent=35 // pred_fallthru
        _
      // Predicated region
      $region41: #{double_conv.3} parent=35 // pred_check
        %p5750 = pneg %p150
      $region42: #{double_conv.3} parent=35 // pred_check_branch
        %5752 = sbr.rel (%p5750) target = $region44
      $region43: #{double_conv.3} parent=35 // pred_region
        _
      $region44: #{double_conv.3} parent=35 // pred_fallthru
        _
    $region36: #{double_conv.3} parent=5 // pred_fallthru
      _
    %p5753 = scmp.le.s32.totalorder 2, %s12
    // Predicated region
    $region45: #{double_conv.3} parent=5 // pred_check
      %p5754 = pneg %p5753
    $region46: #{double_conv.3} parent=5 // pred_check_branch
      %5756 = sbr.rel (%p5754) target = $region48
    $region47: #{double_conv.3} parent=5 // pred_region
      %s5757 = ssub.s32 %s12, 2
      // Predicated region
      $region49: #{double_conv.3} parent=47 // pred_check
        %p5758 = pneg %p130
      $region50: #{double_conv.3} parent=47 // pred_check_branch
        %5760 = sbr.rel (%p5758) target = $region52
      $region51: #{double_conv.3} parent=47 // pred_region
        %p5761 = scmp.lt.s32.totalorder %s18, 1
        %s5762 = scalar_select %p5761, %s18, 1
        %s5763 = smul.addr %s5762, 32
        %s5764 = smul.addr %s5763, 4
        %s5765 = scalar_lea.vmem %s4, %s5764
      $region52: #{double_conv.3} parent=47 // pred_fallthru
        _
      // Predicated region
      $region53: #{double_conv.3} parent=47 // pred_check
        %p5766 = pneg %p156
      $region54: #{double_conv.3} parent=47 // pred_check_branch
        %5768 = sbr.rel (%p5766) target = $region56
      $region55: #{double_conv.3} parent=47 // pred_region
        %p5769 = scmp.lt.s32.totalorder %s18, 1
        %s5770 = scalar_select %p5769, %s18, 1
        %s5771 = smul.addr %s5770, 2
        %s5772 = scalar_lea.vmem %s5, %s5771
      $region56: #{double_conv.3} parent=47 // pred_fallthru
        _
    $region48: #{double_conv.3} parent=5 // pred_fallthru
      _
  $region6: #{double_conv.3} parent=0 // loop_footer
    %s16 = sadd.s32 1, %s12
  $region7: #{double_conv.3} parent=0 // loop_footer_branch
    %11 = sbr.rel target = $region3
  $region8: #{double_conv.3} parent=0 // loop_exit
    _

</llo_original>
